<compile_context>
chip_gen: v7x
topology: tpu7x:2x2x1
jax: 0.10.0
libtpu: 0.0.40
codegen_flags: <defaults>
</compile_context>

<pallas_src>
import functools

import jax
import jax.numpy as jnp
from jax.experimental import pallas as pl
from jax.experimental.pallas import tpu as pltpu


# ----------------------------------------------------------------------------
# tiling helpers
# ----------------------------------------------------------------------------
def _round_up(x, m):
    return (x + m - 1) // m * m


def _pick_tm(m):
    """(tm, padded_M): tm multiple of 16 (bf16 sublane tile), <= 512.

    Prefers 256/512-row tiles for large M (matches v6e/v7x MXU pass height and
    gives the 'parallel' M axis multiple tiles for v7x megacore)."""
    mp = _round_up(max(m, 16), 16)
    if mp <= 512:
        return mp, mp
    for tm in (512, 256):
        if mp % tm == 0:
            return tm, mp
    mp = _round_up(mp, 256)
    return 256, mp


def _pick_tk(kp):
    """Largest tk <= 1024 (multiple of 128) dividing kp (kp is 128-aligned)."""
    for tk in range(1024, 127, -128):
        if kp % tk == 0:
            return tk
    return 128


# ----------------------------------------------------------------------------
# Pallas kernel: y = relu?(x @ w + b), bf16 inputs, f32 accumulation.
# Grid = (M tiles, K tiles); reduction axis last.  When the output dtype is f32
# the output block itself is the accumulator; otherwise a small f32 VMEM
# scratch is used and the result is cast once at the final K step.
# ----------------------------------------------------------------------------
def _linear_kernel(x_ref, w_ref, b_ref, o_ref, *scratch, relu, nk):
    acc_ref = scratch[0] if scratch else o_ref
    k = pl.program_id(1)
    d = jnp.dot(x_ref[...], w_ref[...], preferred_element_type=jnp.float32)

    if nk == 1:
        r = d + b_ref[...]
        if relu:
            r = jnp.maximum(r, 0.0)
        o_ref[...] = r.astype(o_ref.dtype)
    else:
        @pl.when(k == 0)
        def _():
            acc_ref[...] = d + b_ref[...]          # bias folded into init

        @pl.when((k > 0) & (k < nk - 1))
        def _():
            acc_ref[...] += d

        @pl.when(k == nk - 1)
        def _():
            r = acc_ref[...] + d                    # last dot fused into epilogue
            if relu:
                r = jnp.maximum(r, 0.0)
            o_ref[...] = r.astype(o_ref.dtype)


def fused_linear(x, w, b, relu=False, out_dtype=jnp.float32):
    """y = relu?(x @ w + b).

    x: (M, K) any float dtype (cast to bf16); w: (Kp, Np) bf16, pre-padded to
    128-multiples; b: (1, Np) f32.  Returns (M, Np) in out_dtype."""
    M, K = x.shape
    Kp, Np = w.shape

    tm, Mp = _pick_tm(M)
    tk = _pick_tk(Kp)
    nk = Kp // tk
    nm = Mp // tm

    x = x.astype(jnp.bfloat16)
    if (Mp, Kp) != (M, K):
        x = jnp.pad(x, ((0, Mp - M), (0, Kp - K)))

    need_scratch = (nk > 1) and (out_dtype != jnp.float32)
    scratch_shapes = [pltpu.VMEM((tm, Np), jnp.float32)] if need_scratch else []

    kernel = functools.partial(_linear_kernel, relu=relu, nk=nk)
    out = pl.pallas_call(
        kernel,
        out_shape=jax.ShapeDtypeStruct((Mp, Np), out_dtype),
        grid_spec=pltpu.PrefetchScalarGridSpec(
            num_scalar_prefetch=0,
            grid=(nm, nk),
            in_specs=[
                pl.BlockSpec((tm, tk), lambda i, k: (i, k)),
                pl.BlockSpec((tk, Np), lambda i, k: (k, 0)),
                pl.BlockSpec((1, Np), lambda i, k: (0, 0)),
            ],
            out_specs=pl.BlockSpec((tm, Np), lambda i, k: (i, 0)),
            scratch_shapes=scratch_shapes,
        ),
        compiler_params=pltpu.CompilerParams(
            dimension_semantics=("parallel", "arbitrary")),
    )(x, w, b)

    return out[:M] if Mp != M else out


# ----------------------------------------------------------------------------
# Pallas kernel: linear1 (+ReLU) with the per-task critic/dist head, argmax
# action and log-prob fused into the last-K-step epilogue.
# Outputs:
#   actor_ref: (tm, H)   f32 actor features (also the linear1 accumulator)
#   stats_ref: (tm, Ap)  f32, col0=value, col1=action (as f32), col2=logp.
# ----------------------------------------------------------------------------
def _linear_head_kernel(x_ref, w_ref, b_ref, hw_ref, hb_ref,
                        actor_ref, stats_ref, *, nk, n_act):
    k = pl.program_id(1)
    d = jnp.dot(x_ref[...], w_ref[...], preferred_element_type=jnp.float32)

    @pl.when(k == 0)
    def _():
        actor_ref[...] = d + b_ref[...]

    @pl.when((k > 0) & (k < nk - 1))
    def _():
        actor_ref[...] += d

    @pl.when(k == nk - 1)
    def _():
        acc = (actor_ref[...] + d) if nk > 1 else (d + b_ref[...])
        actor = jnp.maximum(acc, 0.0)
        actor_ref[...] = actor

        # Head: [critic | logits | zero-padding], one lane-dense (tm, Ap) tile.
        head = jnp.dot(actor.astype(hw_ref.dtype), hw_ref[...],
                       preferred_element_type=jnp.float32) + hb_ref[...]

        col = jax.lax.broadcasted_iota(jnp.int32, head.shape, 1)
        valid = (col >= 1) & (col < 1 + n_act)
        logits = jnp.where(valid, head, jnp.float32(-1e30))   # mask padded lanes

        m = jnp.max(logits, axis=-1, keepdims=True)
        # deterministic action = argmax (first max index), so logit[action] == m
        first_max = jnp.min(
            jnp.where(logits == m, col, jnp.int32(2 ** 30)),
            axis=-1, keepdims=True) - 1
        lse = jnp.log(jnp.sum(jnp.exp(logits - m), axis=-1, keepdims=True))
        logp = -lse                                            # m - (m + lse)
        value = jnp.sum(jnp.where(col == 0, head, 0.0), axis=-1, keepdims=True)

        stats = jnp.where(
            col == 0, jnp.broadcast_to(value, head.shape),
            jnp.where(
                col == 1,
                jnp.broadcast_to(first_max.astype(jnp.float32), head.shape),
                jnp.where(col == 2, jnp.broadcast_to(logp, head.shape), 0.0)))
        stats_ref[...] = stats


def fused_linear_head(x, w, b, hw, hb, n_act):
    """actor = relu(x @ w + b); head/value/action/logp fused in-kernel."""
    M, K = x.shape
    Kp, H = w.shape
    Hp, Ap = hw.shape
    assert Hp == H

    tm, Mp = _pick_tm(M)
    tk = _pick_tk(Kp)
    nk = Kp // tk
    nm = Mp // tm

    x = x.astype(jnp.bfloat16)
    if (Mp, Kp) != (M, K):
        x = jnp.pad(x, ((0, Mp - M), (0, Kp - K)))

    kernel = functools.partial(_linear_head_kernel, nk=nk, n_act=n_act)
    actor, stats = pl.pallas_call(
        kernel,
        out_shape=(jax.ShapeDtypeStruct((Mp, H), jnp.float32),
                   jax.ShapeDtypeStruct((Mp, Ap), jnp.float32)),
        grid_spec=pltpu.PrefetchScalarGridSpec(
            num_scalar_prefetch=0,
            grid=(nm, nk),
            in_specs=[
                pl.BlockSpec((tm, tk), lambda i, k: (i, k)),
                pl.BlockSpec((tk, H), lambda i, k: (k, 0)),
                pl.BlockSpec((1, H), lambda i, k: (0, 0)),
                pl.BlockSpec((H, Ap), lambda i, k: (0, 0)),
                pl.BlockSpec((1, Ap), lambda i, k: (0, 0)),
            ],
            out_specs=[
                pl.BlockSpec((tm, H), lambda i, k: (i, 0)),
                pl.BlockSpec((tm, Ap), lambda i, k: (i, 0)),
            ],
        ),
        compiler_params=pltpu.CompilerParams(
            dimension_semantics=("parallel", "arbitrary")),
    )(x, w, b, hw, hb)
    return actor, stats


# ----------------------------------------------------------------------------
# Conv = im2col (XLA glue, fused under jit, bf16) + fused Pallas matmul.
# ----------------------------------------------------------------------------
def _im2col(x_nhwc, kh, kw, stride):
    N, H, W, C = x_nhwc.shape
    oh = (H - kh) // stride + 1
    ow = (W - kw) // stride + 1
    cols = []
    for i in range(kh):
        for j in range(kw):
            cols.append(x_nhwc[:, i:i + stride * oh:stride,
                               j:j + stride * ow:stride, :])
    # (N, oh, ow, C, kh*kw): flatten index = c*(kh*kw) + (i*kw + j), matching a
    # PyTorch weight reshape [Cout, Cin, kh, kw] -> [Cout, Cin*kh*kw].
    p = jnp.stack(cols, axis=-1)
    return p.reshape(N * oh * ow, C * kh * kw), oh, ow


def conv2d_relu(x_nhwc, wmat, b, kh, kw, stride):
    # TODO(synk): patch extraction still materializes an expanded bf16 patch
    # tensor in XLA; in-kernel im2col would remove this HBM round trip.
    patches, oh, ow = _im2col(x_nhwc, kh, kw, stride)
    y = fused_linear(patches, wmat, b, relu=True, out_dtype=jnp.bfloat16)
    n = x_nhwc.shape[0]
    cout = wmat.shape[1]   # out channels are lane-aligned (128 / 256) here
    return y.reshape(n, oh, ow, cout)


# ----------------------------------------------------------------------------
# Policy forward (CNNBase + fused critic/dist head, deterministic act)
# ----------------------------------------------------------------------------
@functools.partial(jax.jit, static_argnums=(5,))
def _policy_act_impl(base, head_wm, head_b, inputs_nchw, rnn_hxs, n_act):
    # recurrent=False => GRU branch unused, rnn_hxs passthrough, masks unused.
    # /255 input scale is folded into conv1 weights (prepare_params).
    x = jnp.transpose(inputs_nchw.astype(jnp.bfloat16), (0, 2, 3, 1))   # NHWC

    a1 = conv2d_relu(x, base["conv1_wm"], base["conv1_b"], 8, 8, 4)
    a2 = conv2d_relu(a1, base["conv2_wm"], base["conv2_b"], 4, 4, 2)
    a3 = conv2d_relu(a2, base["conv3_wm"], base["conv3_b"], 3, 3, 1)

    N = x.shape[0]
    # linear1 weight columns were pre-permuted to NHWC-flatten order.
    flat = a3.reshape(N, -1)                                    # (N, 7*7*128)

    actor, stats = fused_linear_head(flat, base["linear1_wm"],
                                     base["linear1_b"], head_wm, head_b, n_act)

    value = stats[:N, 0:1]
    action = stats[:N, 1:2].astype(jnp.int32)
    action_log_probs = stats[:N, 2:3]
    actor_features = actor[:N]
    return value, action, action_log_probs, actor_features, rnn_hxs


def policy_act(params, inputs, rnn_hxs, masks, task_num):
    del masks  # non-recurrent: masks only feed the (unused) GRU branch
    head = params["heads"][task_num]
    return _policy_act_impl(params["base"], head["wm"], head["b"],
                            inputs, rnn_hxs, head["n"])


# ----------------------------------------------------------------------------
# Parameters: build in PyTorch layout, then prepare once into kernel layout.
# ----------------------------------------------------------------------------
def make_params(key, num_inputs, taskcla, hidden_size=512):
    ks = jax.random.split(key, 16)

    def w(k, shape, fan_in):
        return jax.random.normal(k, shape, jnp.float32) / jnp.sqrt(fan_in)

    params = {
        "conv1_w": w(ks[0], (128, num_inputs, 8, 8), num_inputs * 64),
        "conv1_b": jnp.zeros((128,), jnp.float32),
        "conv2_w": w(ks[1], (256, 128, 4, 4), 128 * 16),
        "conv2_b": jnp.zeros((256,), jnp.float32),
        "conv3_w": w(ks[2], (128, 256, 3, 3), 256 * 9),
        "conv3_b": jnp.zeros((128,), jnp.float32),
        "linear1_w": w(ks[3], (hidden_size, 128 * 7 * 7), 128 * 7 * 7),
        "linear1_b": jnp.zeros((hidden_size,), jnp.float32),
        "critic_w": [],
        "critic_b": [],
        "dist_w": [],
        "dist_b": [],
    }
    for idx, (t, n) in enumerate(taskcla):
        params["critic_w"].append(w(ks[4 + 2 * idx], (1, hidden_size), hidden_size))
        params["critic_b"].append(jnp.zeros((1,), jnp.float32))
        params["dist_w"].append(w(ks[5 + 2 * idx], (n, hidden_size), hidden_size))
        params["dist_b"].append(jnp.zeros((n,), jnp.float32))
    # TODO(synk): orthogonal init (nn.init.orthogonal_) replaced with scaled
    # normal init; forward semantics are unaffected.
    return params


def prepare_params(raw, hidden_size=512):
    """One-time conversion of PyTorch-layout params into kernel layout:
    weights padded to 128-multiples + bf16, biases (1, Np) f32, /255 folded
    into conv1, linear1 columns permuted to NHWC flatten order, critic+dist
    heads fused into a single padded matrix per task."""

    def conv_mat(w_oihw):
        cout = w_oihw.shape[0]
        return jnp.reshape(w_oihw, (cout, -1)).T        # (Cin*kh*kw, Cout)

    def prep_w(mat):                                    # (K, N) f32 -> bf16 padded
        k, n = mat.shape
        kp, np_ = _round_up(k, 128), _round_up(n, 128)
        if (kp, np_) != (k, n):
            mat = jnp.pad(mat, ((0, kp - k), (0, np_ - n)))
        return mat.astype(jnp.bfloat16)

    def prep_b(vec, np_):
        b = vec.reshape(1, -1).astype(jnp.float32)
        if b.shape[1] != np_:
            b = jnp.pad(b, ((0, 0), (0, np_ - b.shape[1])))
        return b

    base = {
        "conv1_wm": prep_w(conv_mat(raw["conv1_w"] / 255.0)),
        "conv1_b": prep_b(raw["conv1_b"], _round_up(raw["conv1_b"].shape[0], 128)),
        "conv2_wm": prep_w(conv_mat(raw["conv2_w"])),
        "conv2_b": prep_b(raw["conv2_b"], _round_up(raw["conv2_b"].shape[0], 128)),
        "conv3_wm": prep_w(conv_mat(raw["conv3_w"])),
        "conv3_b": prep_b(raw["conv3_b"], _round_up(raw["conv3_b"].shape[0], 128)),
        "linear1_b": prep_b(raw["linear1_b"], _round_up(hidden_size, 128)),
    }

    # linear1 consumes an NCHW flatten (c,h,w order) in PyTorch; our conv stack
    # produces NHWC, so permute the weight's input columns once (bit-identical).
    C, H, W = 128, 7, 7
    w1 = raw["linear1_w"].reshape(hidden_size, C, H, W)
    w1 = jnp.transpose(w1, (0, 2, 3, 1)).reshape(hidden_size, -1)
    base["linear1_wm"] = prep_w(w1.T)                   # (H*W*C, hidden) bf16

    heads = []
    for cw, cb, dw, db in zip(raw["critic_w"], raw["critic_b"],
                              raw["dist_w"], raw["dist_b"]):
        n_act = int(dw.shape[0])
        hw = jnp.concatenate([cw, dw], axis=0).T        # (hidden, 1+n)
        hb = jnp.concatenate([cb, db], axis=0)          # (1+n,)
        np_ = _round_up(1 + n_act, 128)
        heads.append({"wm": prep_w(hw), "b": prep_b(hb, np_), "n": n_act})

    return {"base": base, "heads": heads}


if __name__ == "__main__":
    key = jax.random.PRNGKey(0)
    k_in, k_par = jax.random.split(key)

    # obs_shape = (4, 84, 84): 84x84 is required by the hard-coded 32*4*7*7 linear1.
    batch = 2
    num_inputs = 4
    taskcla = [(0, 6), (1, 5)]
    task_num = 0

    inputs = jax.random.uniform(k_in, (batch, num_inputs, 84, 84),
                                jnp.float32, minval=0.0, maxval=255.0)
    rnn_hxs = jnp.zeros((batch, 1), jnp.float32)   # non-recurrent hidden size = 1
    masks = jnp.ones((batch, 1), jnp.float32)

    raw_params = make_params(k_par, num_inputs, taskcla)
    params = prepare_params(raw_params)

    value, action, action_log_probs, actor_features, rnn_hxs_out = policy_act(
        params, inputs, rnn_hxs, masks, task_num)

    jax.block_until_ready((value, action, action_log_probs,
                           actor_features, rnn_hxs_out))

    assert value.shape == (batch, 1)
    assert action.shape == (batch, 1)
    assert action_log_probs.shape == (batch, 1)
    assert actor_features.shape == (batch, 512)
    assert rnn_hxs_out.shape == (batch, 1)
    n_act0 = taskcla[task_num][1]
    assert int(action.min()) >= 0 and int(action.max()) < n_act0
    assert bool(jnp.all(action_log_probs <= 0.0))

    print("KERNEL_OK")
</pallas_src>

<mosaic_0001>
module attributes {stable_mosaic.version = 11 : i64} {
  func.func @_linear_kernel(%arg0: i32, %arg1: i32, %arg2: memref<256x256xbf16, #tpu.memory_space<vmem>>, %arg3: memref<256x128xbf16, #tpu.memory_space<vmem>>, %arg4: memref<1x128xf32, #tpu.memory_space<vmem>>, %arg5: memref<256x128xbf16, #tpu.memory_space<vmem>>) attributes {dimension_semantics = [#tpu.dimension_semantics<parallel>, #tpu.dimension_semantics<arbitrary>], iteration_bounds = array<i64: 4, 1>, scalar_prefetch = 0 : i64, scratch_operands = 0 : i64, tpu.core_type = #tpu.core_type<tc>, window_params = [{transform_indices = @transform_0, window_bounds = array<i64: 256, 256>}, {transform_indices = @transform_1, window_bounds = array<i64: 256, 128>}, {pipeline_mode = #tpu.pipeline_mode<synchronous>, transform_indices = @transform_2, window_bounds = array<i64: 1, 128>}, {transform_indices = @transform_3, window_bounds = array<i64: 256, 128>}]} {
    %c0 = arith.constant 0 : index
    %c0_0 = arith.constant 0 : index
    %0 = vector.load %arg2[%c0, %c0_0] : memref<256x256xbf16, #tpu.memory_space<vmem>>, vector<256x256xbf16>
    %c0_1 = arith.constant 0 : index
    %c0_2 = arith.constant 0 : index
    %1 = vector.load %arg3[%c0_1, %c0_2] : memref<256x128xbf16, #tpu.memory_space<vmem>>, vector<256x128xbf16>
    %cst = arith.constant dense<0.000000e+00> : vector<256x128xf32>
    %2 = tpu.matmul %0, %1, %cst {dimension_numbers = #tpu.dot_dimension_numbers<[1], [0], [0], [1], [0, 0, 1, 1], [], []>} : vector<256x256xbf16>, vector<256x128xbf16>, vector<256x128xf32> -> vector<256x128xf32>
    %c0_3 = arith.constant 0 : index
    %c0_4 = arith.constant 0 : index
    %3 = vector.load %arg4[%c0_3, %c0_4] : memref<1x128xf32, #tpu.memory_space<vmem>>, vector<1x128xf32>
    %4 = vector.broadcast %3 : vector<1x128xf32> to vector<256x128xf32>
    %5 = arith.addf %2, %4 : vector<256x128xf32>
    %cst_5 = arith.constant 0.000000e+00 : f32
    %6 = vector.broadcast %cst_5 : f32 to vector<256x128xf32>
    %7 = arith.maximumf %5, %6 : vector<256x128xf32>
    %8 = arith.truncf %7 : vector<256x128xf32> to vector<256x128xbf16>
    %c0_6 = arith.constant 0 : index
    %c0_7 = arith.constant 0 : index
    %9 = vector.load %arg5[%c0_6, %c0_7] : memref<256x128xbf16, #tpu.memory_space<vmem>>, vector<256x128xbf16>
    tpu.vector_store %arg5[%c0_6, %c0_7], %8 {strides = array<i32>} : memref<256x128xbf16, #tpu.memory_space<vmem>>, vector<256x128xbf16>,
    return
  }
  func.func @transform_0(%arg0: i32, %arg1: i32) -> (i32, i32) {
    %c0_i32 = arith.constant 0 : i32
    return %arg0, %arg1 : i32, i32
  }
  func.func @transform_1(%arg0: i32, %arg1: i32) -> (i32, i32) {
    %c0_i32 = arith.constant 0 : i32
    %c0_i32_0 = arith.constant 0 : i32
    return %arg1, %c0_i32 : i32, i32
  }
  func.func @transform_2(%arg0: i32, %arg1: i32) -> (i32, i32) {
    %c0_i32 = arith.constant 0 : i32
    %c0_i32_0 = arith.constant 0 : i32
    %c0_i32_1 = arith.constant 0 : i32
    return %c0_i32, %c0_i32_0 : i32, i32
  }
  func.func @transform_3(%arg0: i32, %arg1: i32) -> (i32, i32) {
    %c0_i32 = arith.constant 0 : i32
    %c0_i32_0 = arith.constant 0 : i32
    return %arg0, %c0_i32 : i32, i32
  }
}

module attributes {stable_mosaic.version = 11 : i64} {
  func.func @_linear_kernel(%arg0: i32, %arg1: i32, %arg2: memref<176x1024xbf16, #tpu.memory_space<vmem>>, %arg3: memref<1024x256xbf16, #tpu.memory_space<vmem>>, %arg4: memref<1x256xf32, #tpu.memory_space<vmem>>, %arg5: memref<176x256xbf16, #tpu.memory_space<vmem>>, %arg6: memref<176x256xf32, #tpu.memory_space<vmem>>) attributes {dimension_semantics = [#tpu.dimension_semantics<parallel>, #tpu.dimension_semantics<arbitrary>], iteration_bounds = array<i64: 1, 2>, scalar_prefetch = 0 : i64, scratch_operands = 1 : i64, tpu.core_type = #tpu.core_type<tc>, window_params = [{transform_indices = @transform_0, window_bounds = array<i64: 176, 1024>}, {transform_indices = @transform_1, window_bounds = array<i64: 1024, 256>}, {pipeline_mode = #tpu.pipeline_mode<synchronous>, transform_indices = @transform_2, window_bounds = array<i64: 1, 256>}, {transform_indices = @transform_3, window_bounds = array<i64: 176, 256>}]} {
    %c0 = arith.constant 0 : index
    %c0_0 = arith.constant 0 : index
    %0 = vector.load %arg2[%c0, %c0_0] : memref<176x1024xbf16, #tpu.memory_space<vmem>>, vector<176x1024xbf16>
    %c0_1 = arith.constant 0 : index
    %c0_2 = arith.constant 0 : index
    %1 = vector.load %arg3[%c0_1, %c0_2] : memref<1024x256xbf16, #tpu.memory_space<vmem>>, vector<1024x256xbf16>
    %cst = arith.constant dense<0.000000e+00> : vector<176x256xf32>
    %2 = tpu.matmul %0, %1, %cst {dimension_numbers = #tpu.dot_dimension_numbers<[1], [0], [0], [1], [0, 0, 1, 1], [], []>} : vector<176x1024xbf16>, vector<1024x256xbf16>, vector<176x256xf32> -> vector<176x256xf32>
    %c0_i32 = arith.constant 0 : i32
    %3 = arith.cmpi eq, %arg1, %c0_i32 : i32
    %4 = arith.extui %3 : i1 to i32
    %c0_i32_3 = arith.constant 0 : i32
    %5 = arith.cmpi ne, %4, %c0_i32_3 : i32
    scf.if %5 {
      %c0_8 = arith.constant 0 : index
      %c0_9 = arith.constant 0 : index
      %14 = vector.load %arg4[%c0_8, %c0_9] : memref<1x256xf32, #tpu.memory_space<vmem>>, vector<1x256xf32>
      %15 = vector.broadcast %14 : vector<1x256xf32> to vector<176x256xf32>
      %16 = arith.addf %2, %15 : vector<176x256xf32>
      %c0_10 = arith.constant 0 : index
      %c0_11 = arith.constant 0 : index
      %17 = vector.load %arg6[%c0_10, %c0_11] : memref<176x256xf32, #tpu.memory_space<vmem>>, vector<176x256xf32>
      tpu.vector_store %arg6[%c0_10, %c0_11], %16 {strides = array<i32>} : memref<176x256xf32, #tpu.memory_space<vmem>>, vector<176x256xf32>,
    } else {
    }
    %c0_i32_4 = arith.constant 0 : i32
    %6 = arith.cmpi sgt, %arg1, %c0_i32_4 : i32
    %c1_i32 = arith.constant 1 : i32
    %7 = arith.cmpi slt, %arg1, %c1_i32 : i32
    %8 = arith.andi %6, %7 : i1
    %9 = arith.extui %8 : i1 to i32
    %c0_i32_5 = arith.constant 0 : i32
    %10 = arith.cmpi ne, %9, %c0_i32_5 : i32
    scf.if %10 {
      %c0_8 = arith.constant 0 : index
      %c0_9 = arith.constant 0 : index
      %14 = vector.load %arg6[%c0_8, %c0_9] : memref<176x256xf32, #tpu.memory_space<vmem>>, vector<176x256xf32>
      %15 = arith.addf %14, %2 : vector<176x256xf32>
      %c0_10 = arith.constant 0 : index
      %c0_11 = arith.constant 0 : index
      %16 = vector.load %arg6[%c0_10, %c0_11] : memref<176x256xf32, #tpu.memory_space<vmem>>, vector<176x256xf32>
      tpu.vector_store %arg6[%c0_10, %c0_11], %15 {strides = array<i32>} : memref<176x256xf32, #tpu.memory_space<vmem>>, vector<176x256xf32>,
    } else {
    }
    %c1_i32_6 = arith.constant 1 : i32
    %11 = arith.cmpi eq, %arg1, %c1_i32_6 : i32
    %12 = arith.extui %11 : i1 to i32
    %c0_i32_7 = arith.constant 0 : i32
    %13 = arith.cmpi ne, %12, %c0_i32_7 : i32
    scf.if %13 {
      %c0_8 = arith.constant 0 : index
      %c0_9 = arith.constant 0 : index
      %14 = vector.load %arg6[%c0_8, %c0_9] : memref<176x256xf32, #tpu.memory_space<vmem>>, vector<176x256xf32>
      %15 = arith.addf %14, %2 : vector<176x256xf32>
      %cst_10 = arith.constant 0.000000e+00 : f32
      %16 = vector.broadcast %cst_10 : f32 to vector<176x256xf32>
      %17 = arith.maximumf %15, %16 : vector<176x256xf32>
      %18 = arith.truncf %17 : vector<176x256xf32> to vector<176x256xbf16>
      %c0_11 = arith.constant 0 : index
      %c0_12 = arith.constant 0 : index
      %19 = vector.load %arg5[%c0_11, %c0_12] : memref<176x256xbf16, #tpu.memory_space<vmem>>, vector<176x256xbf16>
      tpu.vector_store %arg5[%c0_11, %c0_12], %18 {strides = array<i32>} : memref<176x256xbf16, #tpu.memory_space<vmem>>, vector<176x256xbf16>,
    } else {
    }
    return
  }
  func.func @transform_0(%arg0: i32, %arg1: i32) -> (i32, i32) {
    %c0_i32 = arith.constant 0 : i32
    return %arg0, %arg1 : i32, i32
  }
  func.func @transform_1(%arg0: i32, %arg1: i32) -> (i32, i32) {
    %c0_i32 = arith.constant 0 : i32
    %c0_i32_0 = arith.constant 0 : i32
    return %arg1, %c0_i32 : i32, i32
  }
  func.func @transform_2(%arg0: i32, %arg1: i32) -> (i32, i32) {
    %c0_i32 = arith.constant 0 : i32
    %c0_i32_0 = arith.constant 0 : i32
    %c0_i32_1 = arith.constant 0 : i32
    return %c0_i32, %c0_i32_0 : i32, i32
  }
  func.func @transform_3(%arg0: i32, %arg1: i32) -> (i32, i32) {
    %c0_i32 = arith.constant 0 : i32
    %c0_i32_0 = arith.constant 0 : i32
    return %arg0, %c0_i32 : i32, i32
  }
}

module attributes {stable_mosaic.version = 11 : i64} {
  func.func @_linear_kernel(%arg0: i32, %arg1: i32, %arg2: memref<112x768xbf16, #tpu.memory_space<vmem>>, %arg3: memref<768x128xbf16, #tpu.memory_space<vmem>>, %arg4: memref<1x128xf32, #tpu.memory_space<vmem>>, %arg5: memref<112x128xbf16, #tpu.memory_space<vmem>>, %arg6: memref<112x128xf32, #tpu.memory_space<vmem>>) attributes {dimension_semantics = [#tpu.dimension_semantics<parallel>, #tpu.dimension_semantics<arbitrary>], iteration_bounds = array<i64: 1, 3>, scalar_prefetch = 0 : i64, scratch_operands = 1 : i64, tpu.core_type = #tpu.core_type<tc>, window_params = [{transform_indices = @transform_0, window_bounds = array<i64: 112, 768>}, {transform_indices = @transform_1, window_bounds = array<i64: 768, 128>}, {pipeline_mode = #tpu.pipeline_mode<synchronous>, transform_indices = @transform_2, window_bounds = array<i64: 1, 128>}, {transform_indices = @transform_3, window_bounds = array<i64: 112, 128>}]} {
    %c0 = arith.constant 0 : index
    %c0_0 = arith.constant 0 : index
    %0 = vector.load %arg2[%c0, %c0_0] : memref<112x768xbf16, #tpu.memory_space<vmem>>, vector<112x768xbf16>
    %c0_1 = arith.constant 0 : index
    %c0_2 = arith.constant 0 : index
    %1 = vector.load %arg3[%c0_1, %c0_2] : memref<768x128xbf16, #tpu.memory_space<vmem>>, vector<768x128xbf16>
    %cst = arith.constant dense<0.000000e+00> : vector<112x128xf32>
    %2 = tpu.matmul %0, %1, %cst {dimension_numbers = #tpu.dot_dimension_numbers<[1], [0], [0], [1], [0, 0, 1, 1], [], []>} : vector<112x768xbf16>, vector<768x128xbf16>, vector<112x128xf32> -> vector<112x128xf32>
    %c0_i32 = arith.constant 0 : i32
    %3 = arith.cmpi eq, %arg1, %c0_i32 : i32
    %4 = arith.extui %3 : i1 to i32
    %c0_i32_3 = arith.constant 0 : i32
    %5 = arith.cmpi ne, %4, %c0_i32_3 : i32
    scf.if %5 {
      %c0_8 = arith.constant 0 : index
      %c0_9 = arith.constant 0 : index
      %14 = vector.load %arg4[%c0_8, %c0_9] : memref<1x128xf32, #tpu.memory_space<vmem>>, vector<1x128xf32>
      %15 = vector.broadcast %14 : vector<1x128xf32> to vector<112x128xf32>
      %16 = arith.addf %2, %15 : vector<112x128xf32>
      %c0_10 = arith.constant 0 : index
      %c0_11 = arith.constant 0 : index
      %17 = vector.load %arg6[%c0_10, %c0_11] : memref<112x128xf32, #tpu.memory_space<vmem>>, vector<112x128xf32>
      tpu.vector_store %arg6[%c0_10, %c0_11], %16 {strides = array<i32>} : memref<112x128xf32, #tpu.memory_space<vmem>>, vector<112x128xf32>,
    } else {
    }
    %c0_i32_4 = arith.constant 0 : i32
    %6 = arith.cmpi sgt, %arg1, %c0_i32_4 : i32
    %c2_i32 = arith.constant 2 : i32
    %7 = arith.cmpi slt, %arg1, %c2_i32 : i32
    %8 = arith.andi %6, %7 : i1
    %9 = arith.extui %8 : i1 to i32
    %c0_i32_5 = arith.constant 0 : i32
    %10 = arith.cmpi ne, %9, %c0_i32_5 : i32
    scf.if %10 {
      %c0_8 = arith.constant 0 : index
      %c0_9 = arith.constant 0 : index
      %14 = vector.load %arg6[%c0_8, %c0_9] : memref<112x128xf32, #tpu.memory_space<vmem>>, vector<112x128xf32>
      %15 = arith.addf %14, %2 : vector<112x128xf32>
      %c0_10 = arith.constant 0 : index
      %c0_11 = arith.constant 0 : index
      %16 = vector.load %arg6[%c0_10, %c0_11] : memref<112x128xf32, #tpu.memory_space<vmem>>, vector<112x128xf32>
      tpu.vector_store %arg6[%c0_10, %c0_11], %15 {strides = array<i32>} : memref<112x128xf32, #tpu.memory_space<vmem>>, vector<112x128xf32>,
    } else {
    }
    %c2_i32_6 = arith.constant 2 : i32
    %11 = arith.cmpi eq, %arg1, %c2_i32_6 : i32
    %12 = arith.extui %11 : i1 to i32
    %c0_i32_7 = arith.constant 0 : i32
    %13 = arith.cmpi ne, %12, %c0_i32_7 : i32
    scf.if %13 {
      %c0_8 = arith.constant 0 : index
      %c0_9 = arith.constant 0 : index
      %14 = vector.load %arg6[%c0_8, %c0_9] : memref<112x128xf32, #tpu.memory_space<vmem>>, vector<112x128xf32>
      %15 = arith.addf %14, %2 : vector<112x128xf32>
      %cst_10 = arith.constant 0.000000e+00 : f32
      %16 = vector.broadcast %cst_10 : f32 to vector<112x128xf32>
      %17 = arith.maximumf %15, %16 : vector<112x128xf32>
      %18 = arith.truncf %17 : vector<112x128xf32> to vector<112x128xbf16>
      %c0_11 = arith.constant 0 : index
      %c0_12 = arith.constant 0 : index
      %19 = vector.load %arg5[%c0_11, %c0_12] : memref<112x128xbf16, #tpu.memory_space<vmem>>, vector<112x128xbf16>
      tpu.vector_store %arg5[%c0_11, %c0_12], %18 {strides = array<i32>} : memref<112x128xbf16, #tpu.memory_space<vmem>>, vector<112x128xbf16>,
    } else {
    }
    return
  }
  func.func @transform_0(%arg0: i32, %arg1: i32) -> (i32, i32) {
    %c0_i32 = arith.constant 0 : i32
    return %arg0, %arg1 : i32, i32
  }
  func.func @transform_1(%arg0: i32, %arg1: i32) -> (i32, i32) {
    %c0_i32 = arith.constant 0 : i32
    %c0_i32_0 = arith.constant 0 : i32
    return %arg1, %c0_i32 : i32, i32
  }
  func.func @transform_2(%arg0: i32, %arg1: i32) -> (i32, i32) {
    %c0_i32 = arith.constant 0 : i32
    %c0_i32_0 = arith.constant 0 : i32
    %c0_i32_1 = arith.constant 0 : i32
    return %c0_i32, %c0_i32_0 : i32, i32
  }
  func.func @transform_3(%arg0: i32, %arg1: i32) -> (i32, i32) {
    %c0_i32 = arith.constant 0 : i32
    %c0_i32_0 = arith.constant 0 : i32
    return %arg0, %c0_i32 : i32, i32
  }
}

module attributes {stable_mosaic.version = 11 : i64} {
  func.func @_linear_head_kernel(%arg0: i32, %arg1: i32, %arg2: memref<16x896xbf16, #tpu.memory_space<vmem>>, %arg3: memref<896x512xbf16, #tpu.memory_space<vmem>>, %arg4: memref<1x512xf32, #tpu.memory_space<vmem>>, %arg5: memref<512x128xbf16, #tpu.memory_space<vmem>>, %arg6: memref<1x128xf32, #tpu.memory_space<vmem>>, %arg7: memref<16x512xf32, #tpu.memory_space<vmem>>, %arg8: memref<16x128xf32, #tpu.memory_space<vmem>>) attributes {dimension_semantics = [#tpu.dimension_semantics<parallel>, #tpu.dimension_semantics<arbitrary>], iteration_bounds = array<i64: 1, 7>, scalar_prefetch = 0 : i64, scratch_operands = 0 : i64, tpu.core_type = #tpu.core_type<tc>, window_params = [{transform_indices = @transform_0, window_bounds = array<i64: 16, 896>}, {transform_indices = @transform_1, window_bounds = array<i64: 896, 512>}, {pipeline_mode = #tpu.pipeline_mode<synchronous>, transform_indices = @transform_2, window_bounds = array<i64: 1, 512>}, {pipeline_mode = #tpu.pipeline_mode<synchronous>, transform_indices = @transform_3, window_bounds = array<i64: 512, 128>}, {pipeline_mode = #tpu.pipeline_mode<synchronous>, transform_indices = @transform_4, window_bounds = array<i64: 1, 128>}, {transform_indices = @transform_5, window_bounds = array<i64: 16, 512>}, {transform_indices = @transform_6, window_bounds = array<i64: 16, 128>}]} {
    %c0 = arith.constant 0 : index
    %c0_0 = arith.constant 0 : index
    %0 = vector.load %arg2[%c0, %c0_0] : memref<16x896xbf16, #tpu.memory_space<vmem>>, vector<16x896xbf16>
    %c0_1 = arith.constant 0 : index
    %c0_2 = arith.constant 0 : index
    %1 = vector.load %arg3[%c0_1, %c0_2] : memref<896x512xbf16, #tpu.memory_space<vmem>>, vector<896x512xbf16>
    %cst = arith.constant dense<0.000000e+00> : vector<16x512xf32>
    %2 = tpu.matmul %0, %1, %cst {dimension_numbers = #tpu.dot_dimension_numbers<[1], [0], [0], [1], [0, 0, 1, 1], [], []>} : vector<16x896xbf16>, vector<896x512xbf16>, vector<16x512xf32> -> vector<16x512xf32>
    %c0_i32 = arith.constant 0 : i32
    %3 = arith.cmpi eq, %arg1, %c0_i32 : i32
    %4 = arith.extui %3 : i1 to i32
    %c0_i32_3 = arith.constant 0 : i32
    %5 = arith.cmpi ne, %4, %c0_i32_3 : i32
    scf.if %5 {
      %c0_8 = arith.constant 0 : index
      %c0_9 = arith.constant 0 : index
      %14 = vector.load %arg4[%c0_8, %c0_9] : memref<1x512xf32, #tpu.memory_space<vmem>>, vector<1x512xf32>
      %15 = vector.broadcast %14 : vector<1x512xf32> to vector<16x512xf32>
      %16 = arith.addf %2, %15 : vector<16x512xf32>
      %c0_10 = arith.constant 0 : index
      %c0_11 = arith.constant 0 : index
      %17 = vector.load %arg7[%c0_10, %c0_11] : memref<16x512xf32, #tpu.memory_space<vmem>>, vector<16x512xf32>
      tpu.vector_store %arg7[%c0_10, %c0_11], %16 {strides = array<i32>} : memref<16x512xf32, #tpu.memory_space<vmem>>, vector<16x512xf32>,
    } else {
    }
    %c0_i32_4 = arith.constant 0 : i32
    %6 = arith.cmpi sgt, %arg1, %c0_i32_4 : i32
    %c6_i32 = arith.constant 6 : i32
    %7 = arith.cmpi slt, %arg1, %c6_i32 : i32
    %8 = arith.andi %6, %7 : i1
    %9 = arith.extui %8 : i1 to i32
    %c0_i32_5 = arith.constant 0 : i32
    %10 = arith.cmpi ne, %9, %c0_i32_5 : i32
    scf.if %10 {
      %c0_8 = arith.constant 0 : index
      %c0_9 = arith.constant 0 : index
      %14 = vector.load %arg7[%c0_8, %c0_9] : memref<16x512xf32, #tpu.memory_space<vmem>>, vector<16x512xf32>
      %15 = arith.addf %14, %2 : vector<16x512xf32>
      %c0_10 = arith.constant 0 : index
      %c0_11 = arith.constant 0 : index
      %16 = vector.load %arg7[%c0_10, %c0_11] : memref<16x512xf32, #tpu.memory_space<vmem>>, vector<16x512xf32>
      tpu.vector_store %arg7[%c0_10, %c0_11], %15 {strides = array<i32>} : memref<16x512xf32, #tpu.memory_space<vmem>>, vector<16x512xf32>,
    } else {
    }
    %c6_i32_6 = arith.constant 6 : i32
    %11 = arith.cmpi eq, %arg1, %c6_i32_6 : i32
    %12 = arith.extui %11 : i1 to i32
    %c0_i32_7 = arith.constant 0 : i32
    %13 = arith.cmpi ne, %12, %c0_i32_7 : i32
    scf.if %13 {
      %c0_8 = arith.constant 0 : index
      %c0_9 = arith.constant 0 : index
      %14 = vector.load %arg7[%c0_8, %c0_9] : memref<16x512xf32, #tpu.memory_space<vmem>>, vector<16x512xf32>
      %15 = arith.addf %14, %2 : vector<16x512xf32>
      %cst_10 = arith.constant 0.000000e+00 : f32
      %16 = vector.broadcast %cst_10 : f32 to vector<16x512xf32>
      %17 = arith.maximumf %15, %16 : vector<16x512xf32>
      %c0_11 = arith.constant 0 : index
      %c0_12 = arith.constant 0 : index
      %18 = vector.load %arg7[%c0_11, %c0_12] : memref<16x512xf32, #tpu.memory_space<vmem>>, vector<16x512xf32>
      tpu.vector_store %arg7[%c0_11, %c0_12], %17 {strides = array<i32>} : memref<16x512xf32, #tpu.memory_space<vmem>>, vector<16x512xf32>,
      %19 = arith.truncf %17 : vector<16x512xf32> to vector<16x512xbf16>
      %c0_13 = arith.constant 0 : index
      %c0_14 = arith.constant 0 : index
      %20 = vector.load %arg5[%c0_13, %c0_14] : memref<512x128xbf16, #tpu.memory_space<vmem>>, vector<512x128xbf16>
      %cst_15 = arith.constant dense<0.000000e+00> : vector<16x128xf32>
      %21 = tpu.matmul %19, %20, %cst_15 {dimension_numbers = #tpu.dot_dimension_numbers<[1], [0], [0], [1], [0, 0, 1, 1], [], []>} : vector<16x512xbf16>, vector<512x128xbf16>, vector<16x128xf32> -> vector<16x128xf32>
      %c0_16 = arith.constant 0 : index
      %c0_17 = arith.constant 0 : index
      %22 = vector.load %arg6[%c0_16, %c0_17] : memref<1x128xf32, #tpu.memory_space<vmem>>, vector<1x128xf32>
      %23 = vector.broadcast %22 : vector<1x128xf32> to vector<16x128xf32>
      %24 = arith.addf %21, %23 : vector<16x128xf32>
      %25 = tpu.iota {dimensions = array<i32: 1>} : vector<16x128xi32>
      %c1_i32 = arith.constant 1 : i32
      %26 = vector.broadcast %c1_i32 : i32 to vector<16x128xi32>
      %27 = arith.cmpi sge, %25, %26 : vector<16x128xi32>
      %c7_i32 = arith.constant 7 : i32
      %28 = vector.broadcast %c7_i32 : i32 to vector<16x128xi32>
      %29 = arith.cmpi slt, %25, %28 : vector<16x128xi32>
      %30 = arith.andi %27, %29 : vector<16x128xi1>
      %cst_18 = arith.constant -1.000000e+30 : f32
      %31 = vector.broadcast %cst_18 : f32 to vector<16x128xf32>
      %32 = arith.select %30, %24, %31 : vector<16x128xi1>, vector<16x128xf32>
      %cst_19 = arith.constant dense<0xFF800000> : vector<16xf32>
      %33 = vector.multi_reduction <maximumf>, %32, %cst_19 [1] : vector<16x128xf32> to vector<16xf32>
      %34 = vector.shape_cast %33 : vector<16xf32> to vector<16x1xf32>
      %35 = vector.broadcast %34 : vector<16x1xf32> to vector<16x128xf32>
      %36 = arith.cmpf oeq, %32, %35 : vector<16x128xf32>
      %c1073741824_i32 = arith.constant 1073741824 : i32
      %37 = vector.broadcast %c1073741824_i32 : i32 to vector<16x128xi32>
      %38 = arith.select %36, %25, %37 : vector<16x128xi1>, vector<16x128xi32>
      %cst_20 = arith.constant dense<2147483647> : vector<16xi32>
      %39 = vector.multi_reduction <minsi>, %38, %cst_20 [1] : vector<16x128xi32> to vector<16xi32>
      %40 = vector.shape_cast %39 : vector<16xi32> to vector<16x1xi32>
      %c1_i32_21 = arith.constant 1 : i32
      %41 = vector.broadcast %c1_i32_21 : i32 to vector<16x1xi32>
      %42 = arith.subi %40, %41 : vector<16x1xi32>
      %43 = vector.broadcast %34 : vector<16x1xf32> to vector<16x128xf32>
      %44 = arith.subf %32, %43 : vector<16x128xf32>
      %45 = math.exp %44 : vector<16x128xf32>
      %cst_22 = arith.constant dense<0.000000e+00> : vector<16xf32>
      %46 = vector.multi_reduction <add>, %45, %cst_22 [1] : vector<16x128xf32> to vector<16xf32>
      %47 = vector.shape_cast %46 : vector<16xf32> to vector<16x1xf32>
      %48 = math.log %47 : vector<16x1xf32>
      %cst_23 = arith.constant 0.000000e+00 : f32
      %49 = vector.broadcast %cst_23 : f32 to vector<16x1xf32>
      %50 = arith.subf %49, %48 : vector<16x1xf32>
      %c0_i32_24 = arith.constant 0 : i32
      %51 = vector.broadcast %c0_i32_24 : i32 to vector<16x128xi32>
      %52 = arith.cmpi eq, %25, %51 : vector<16x128xi32>
      %cst_25 = arith.constant 0.000000e+00 : f32
      %53 = vector.broadcast %cst_25 : f32 to vector<16x128xf32>
      %54 = arith.select %52, %24, %53 : vector<16x128xi1>, vector<16x128xf32>
      %cst_26 = arith.constant dense<0.000000e+00> : vector<16xf32>
      %55 = vector.multi_reduction <add>, %54, %cst_26 [1] : vector<16x128xf32> to vector<16xf32>
      %56 = vector.shape_cast %55 : vector<16xf32> to vector<16x1xf32>
      %c0_i32_27 = arith.constant 0 : i32
      %57 = vector.broadcast %c0_i32_27 : i32 to vector<16x128xi32>
      %58 = arith.cmpi eq, %25, %57 : vector<16x128xi32>
      %59 = vector.shape_cast %56 : vector<16x1xf32> to vector<16x1xf32>
      %60 = vector.broadcast %59 : vector<16x1xf32> to vector<16x128xf32>
      %c1_i32_28 = arith.constant 1 : i32
      %61 = vector.broadcast %c1_i32_28 : i32 to vector<16x128xi32>
      %62 = arith.cmpi eq, %25, %61 : vector<16x128xi32>
      %63 = arith.sitofp %42 : vector<16x1xi32> to vector<16x1xf32>
      %64 = vector.shape_cast %63 : vector<16x1xf32> to vector<16x1xf32>
      %65 = vector.broadcast %64 : vector<16x1xf32> to vector<16x128xf32>
      %c2_i32 = arith.constant 2 : i32
      %66 = vector.broadcast %c2_i32 : i32 to vector<16x128xi32>
      %67 = arith.cmpi eq, %25, %66 : vector<16x128xi32>
      %68 = vector.shape_cast %50 : vector<16x1xf32> to vector<16x1xf32>
      %69 = vector.broadcast %68 : vector<16x1xf32> to vector<16x128xf32>
      %cst_29 = arith.constant 0.000000e+00 : f32
      %70 = vector.broadcast %cst_29 : f32 to vector<16x128xf32>
      %71 = arith.select %67, %69, %70 : vector<16x128xi1>, vector<16x128xf32>
      %72 = arith.select %62, %65, %71 : vector<16x128xi1>, vector<16x128xf32>
      %73 = arith.select %58, %60, %72 : vector<16x128xi1>, vector<16x128xf32>
      %c0_30 = arith.constant 0 : index
      %c0_31 = arith.constant 0 : index
      %74 = vector.load %arg8[%c0_30, %c0_31] : memref<16x128xf32, #tpu.memory_space<vmem>>, vector<16x128xf32>
      tpu.vector_store %arg8[%c0_30, %c0_31], %73 {strides = array<i32>} : memref<16x128xf32, #tpu.memory_space<vmem>>, vector<16x128xf32>,
    } else {
    }
    return
  }
  func.func @transform_0(%arg0: i32, %arg1: i32) -> (i32, i32) {
    %c0_i32 = arith.constant 0 : i32
    return %arg0, %arg1 : i32, i32
  }
  func.func @transform_1(%arg0: i32, %arg1: i32) -> (i32, i32) {
    %c0_i32 = arith.constant 0 : i32
    %c0_i32_0 = arith.constant 0 : i32
    return %arg1, %c0_i32 : i32, i32
  }
  func.func @transform_2(%arg0: i32, %arg1: i32) -> (i32, i32) {
    %c0_i32 = arith.constant 0 : i32
    %c0_i32_0 = arith.constant 0 : i32
    %c0_i32_1 = arith.constant 0 : i32
    return %c0_i32, %c0_i32_0 : i32, i32
  }
  func.func @transform_3(%arg0: i32, %arg1: i32) -> (i32, i32) {
    %c0_i32 = arith.constant 0 : i32
    %c0_i32_0 = arith.constant 0 : i32
    %c0_i32_1 = arith.constant 0 : i32
    return %c0_i32, %c0_i32_0 : i32, i32
  }
  func.func @transform_4(%arg0: i32, %arg1: i32) -> (i32, i32) {
    %c0_i32 = arith.constant 0 : i32
    %c0_i32_0 = arith.constant 0 : i32
    %c0_i32_1 = arith.constant 0 : i32
    return %c0_i32, %c0_i32_0 : i32, i32
  }
  func.func @transform_5(%arg0: i32, %arg1: i32) -> (i32, i32) {
    %c0_i32 = arith.constant 0 : i32
    %c0_i32_0 = arith.constant 0 : i32
    return %arg0, %c0_i32 : i32, i32
  }
  func.func @transform_6(%arg0: i32, %arg1: i32) -> (i32, i32) {
    %c0_i32 = arith.constant 0 : i32
    %c0_i32_0 = arith.constant 0 : i32
    return %arg0, %c0_i32 : i32, i32
  }
}

</mosaic_0001>

<llo_original>
// kernel: _policy_act_impl.4
$region0: #{_policy_act_impl.4}
  #allocation0 [shape = 'u32[]', space=smem, size = 0x4, offset = 0x4, fixed_abs, tag = 'smem constant byte address 0x4 - core index']
  #allocation1 [shape = 'u32[144,128]{1,0:T(1,128)}', space=vmem, size = 0x12000, scoped, tag = 'internal scratch']
  %s0 = inlined_call_operand.vmem [shape: bf16[1024,256], index: 0, kind: input, shape index: {}]
  %s1 = inlined_call_operand.vmem [shape: bf16[256,128], index: 1, kind: input, shape index: {}]
  %s2 = inlined_call_operand.vmem [shape: f32[1,128], index: 2, kind: input, shape index: {}]
  %s3 = inlined_call_operand.vmem [shape: bf16[1024,128], index: 3, kind: output, shape index: {}]
  %s4 = sld [smem:[#allocation0]]
  $region45: #{_policy_act_impl.4} parent=0
    _
  %s6 = ssub.s32 1, %s4
  %s7 = scalar_select 0, %s6, %s4
  loop: start=0, step=1, limit=6
  $region2: #{_policy_act_impl.4} parent=0 // loop_pre_header
    _
  $region3: #{_policy_act_impl.4} parent=0 // loop_header
    %s9 = sphi 0, %s13
    %p10 = scmp.ge.s32.totalorder %s9, 6
    %s16 = sphi 0, %s28
    %s17 = sphi 0, %s24
    %s18 = sphi 0, %s16
    %s19 = sphi 0, %s17
    %s20 = sphi 0, %s18
    %s21 = sphi 0, %s19
    %s33 = sphi 0, %s35
    %s36 = sphi 0, %s33
    %s37 = sphi 0, %s36
    %s53 = sphi 0, %s37
    %s59 = sphi 0, %s61
    %s62 = sphi 0, %s59
    %s63 = sphi 0, %s62
    %s79 = sphi 0, %s63
    %s83 = sphi 0, %s83
    %s85 = sphi 0, %s83
    %s86 = sphi 0, %s85
    %s100 = sphi 0, %s86
    %s106 = sphi 0, %s108
    %s109 = sphi 0, %s106
    %s110 = sphi 0, %s109
    %s126 = sphi 0, %s110
  $region4: #{_policy_act_impl.4} parent=0 // loop_header_branch
    %12 = sbr.rel (%p10) target = $region8
  $region5: #{_policy_act_impl.4} parent=0 // loop_body
    %s14 = ssub.s32 %s9, 1
    %s15 = ssub.s32 %s9, 2
    %s22 = sadd.s32 1, %s17
    %p23 = scmp.ge.s32.totalorder %s22, 1
    %s24 = scalar_select %p23, 0, %s22
    %s25 = sadd.s32 1, %s16
    %s26 = scalar_select %p23, %s25, %s16
    %p27 = scmp.ge.s32.totalorder %s26, 4
    %s28 = scalar_select %p27, 0, %s26
    %s29 = ssub.s32 %s16, %s28
    %s30 = ssub.s32 %s17, %s24
    %s31 = sor.u32 %s29, %s30
    %p32 = scmp.eq.s32.totalorder %s31, 0
    %s34 = sadd.s32 %s33, 1
    %s35 = scalar_select %p32, %s33, %s34
    %p38 = pneg %p32
    %p39 = scmp.eq.s32.totalorder %s9, 3
    %p40 = por %p38, %p39
    %p41 = scmp.ne.s32.totalorder %s33, %s36
    %p42 = scmp.eq.s32.totalorder %s9, 0
    %p43 = por %p41, %p42
    %p44 = scmp.ne.s32.totalorder %s33, %s36
    %p45 = scmp.eq.s32.totalorder %s14, 3
    %p46 = por %p44, %p45
    %p47 = scmp.ne.s32.totalorder %s36, %s37
    %p48 = scmp.eq.s32.totalorder %s14, 0
    %p49 = por %p47, %p48
    %p50 = scmp.ne.s32.totalorder %s36, %s37
    %p51 = scmp.eq.s32.totalorder %s15, 3
    %p52 = por %p50, %p51
    %p54 = scmp.ne.s32.totalorder %s37, %s53
    %p55 = scmp.eq.s32.totalorder %s15, 0
    %p56 = por %p54, %p55
    %s57 = ssub.s32 %s17, %s24
    %p58 = scmp.eq.s32.totalorder %s57, 0
    %s60 = sadd.s32 %s59, 1
    %s61 = scalar_select %p58, %s59, %s60
    %p64 = pneg %p58
    %p65 = scmp.eq.s32.totalorder %s9, 3
    %p66 = por %p64, %p65
    %p67 = scmp.ne.s32.totalorder %s59, %s62
    %p68 = scmp.eq.s32.totalorder %s9, 0
    %p69 = por %p67, %p68
    %p70 = scmp.ne.s32.totalorder %s59, %s62
    %p71 = scmp.eq.s32.totalorder %s14, 3
    %p72 = por %p70, %p71
    %p73 = scmp.ne.s32.totalorder %s62, %s63
    %p74 = scmp.eq.s32.totalorder %s14, 0
    %p75 = por %p73, %p74
    %p76 = scmp.ne.s32.totalorder %s62, %s63
    %p77 = scmp.eq.s32.totalorder %s15, 3
    %p78 = por %p76, %p77
    %p80 = scmp.ne.s32.totalorder %s63, %s79
    %p81 = scmp.eq.s32.totalorder %s15, 0
    %p82 = por %p80, %p81
    %s84 = sadd.s32 %s83, 1
    %p87 = scmp.eq.s32.totalorder %s9, 3
    %p88 = scmp.ne.s32.totalorder %s83, %s85
    %p89 = scmp.eq.s32.totalorder %s9, 0
    %p90 = por %p88, %p89
    %p91 = scmp.ne.s32.totalorder %s83, %s85
    %p92 = scmp.eq.s32.totalorder %s14, 3
    %p93 = por %p91, %p92
    %p94 = scmp.ne.s32.totalorder %s85, %s86
    %p95 = scmp.eq.s32.totalorder %s14, 0
    %p96 = por %p94, %p95
    %p97 = scmp.ne.s32.totalorder %s85, %s86
    %p98 = scmp.eq.s32.totalorder %s15, 3
    %p99 = por %p97, %p98
    %p101 = scmp.ne.s32.totalorder %s86, %s100
    %p102 = scmp.eq.s32.totalorder %s15, 0
    %p103 = por %p101, %p102
    %s104 = ssub.s32 %s16, %s28
    %p105 = scmp.eq.s32.totalorder %s104, 0
    %s107 = sadd.s32 %s106, 1
    %s108 = scalar_select %p105, %s106, %s107
    %p111 = pneg %p105
    %p112 = scmp.eq.s32.totalorder %s9, 3
    %p113 = por %p111, %p112
    %p114 = scmp.ne.s32.totalorder %s106, %s109
    %p115 = scmp.eq.s32.totalorder %s9, 0
    %p116 = por %p114, %p115
    %p117 = scmp.ne.s32.totalorder %s106, %s109
    %p118 = scmp.eq.s32.totalorder %s14, 3
    %p119 = por %p117, %p118
    %p120 = scmp.ne.s32.totalorder %s109, %s110
    %p121 = scmp.eq.s32.totalorder %s14, 0
    %p122 = por %p120, %p121
    %p123 = scmp.ne.s32.totalorder %s109, %s110
    %p124 = scmp.eq.s32.totalorder %s15, 3
    %p125 = por %p123, %p124
    %p127 = scmp.ne.s32.totalorder %s110, %s126
    %p128 = scmp.eq.s32.totalorder %s15, 0
    %p129 = por %p127, %p128
    %p130 = scmp.le.s32.totalorder 1, %s9
    %p131 = scmp.lt.s32.totalorder %s9, 5
    %p132 = pnand %p130, %p131
    %p133 = pneg %p132
    // Predicated region
    $region9: #{_policy_act_impl.4} parent=5 // pred_check
      _
    $region10: #{_policy_act_impl.4} parent=5 // pred_check_branch
      %135 = sbr.rel (%p132) target = $region12
    $region11: #{_policy_act_impl.4} parent=5 // pred_region
      %s136 = ssub.s32 %s9, 1
      // Predicated region
      $region13: #{_policy_act_impl.4} parent=11 // pred_check
        %p137 = pneg %p75
      $region14: #{_policy_act_impl.4} parent=11 // pred_check_branch
        %139 = sbr.rel (%p137) target = $region16
      $region15: #{_policy_act_impl.4} parent=11 // pred_region
        %s140 = smul.u32 32, %s19
        %p141 = scmp.lt.s32.totalorder %s140, 31
        %s142 = scalar_select %p141, %s140, 31
        %s143 = smul.addr %s142, 4
        %s144 = scalar_lea.vmem %s1, %s143
        %s145 = smul.u32 32, %s19
      $region16: #{_policy_act_impl.4} parent=11 // pred_fallthru
        _
      // Predicated region
      $region17: #{_policy_act_impl.4} parent=11 // pred_check
        %p146 = pneg %p96
      $region18: #{_policy_act_impl.4} parent=11 // pred_check_branch
        %148 = sbr.rel (%p146) target = $region20
      $region19: #{_policy_act_impl.4} parent=11 // pred_region
        _
      $region20: #{_policy_act_impl.4} parent=11 // pred_fallthru
        _
    $region12: #{_policy_act_impl.4} parent=5 // pred_fallthru
      _
    %p149 = scmp.lt.s32.totalorder %s9, 4
    // Predicated region
    $region21: #{_policy_act_impl.4} parent=5 // pred_check
      %p150 = pneg %p149
    $region22: #{_policy_act_impl.4} parent=5 // pred_check_branch
      %152 = sbr.rel (%p150) target = $region24
    $region23: #{_policy_act_impl.4} parent=5 // pred_region
      // Predicated region
      $region25: #{_policy_act_impl.4} parent=23 // pred_check
        %p153 = pneg %p43
      $region26: #{_policy_act_impl.4} parent=23 // pred_check_branch
        %155 = sbr.rel (%p153) target = $region28
      $region27: #{_policy_act_impl.4} parent=23 // pred_region
        %s156 = smul.u32 32, %s16
        %s157 = smul.u32 2, %s17
        %p158 = scmp.lt.s32.totalorder %s156, 127
        %s159 = scalar_select %p158, %s156, 127
        %p160 = scmp.lt.s32.totalorder %s157, 1
        %s161 = scalar_select %p160, %s157, 1
        %s162 = smul.addr %s159, 2
        %s163 = sadd.s32 %s161, %s162
        %s164 = smul.addr %s163, 4
        %s165 = scalar_lea.vmem %s0, %s164
        %s166 = smul.u32 32, %s16
        %s167 = smul.u32 2, %s17
      $region28: #{_policy_act_impl.4} parent=23 // pred_fallthru
        _
    $region24: #{_policy_act_impl.4} parent=5 // pred_fallthru
      _
    %p168 = scmp.le.s32.totalorder 1, %s9
    %p169 = scmp.lt.s32.totalorder %s9, 5
    %p170 = pnand %p168, %p169
    %p171 = pneg %p170
    // Predicated region
    $region29: #{_policy_act_impl.4} parent=5 // pred_check
      _
    $region30: #{_policy_act_impl.4} parent=5 // pred_check_branch
      %173 = sbr.rel (%p170) target = $region32
    $region31: #{_policy_act_impl.4} parent=5 // pred_region
      %s174 = ssub.s32 %s9, 1
      %s175 = smul.u32 32, %s18
      %s176 = smul.u32 2, %s19
      %p177 = scmp.lt.s32.totalorder %s175, 127
      %s178 = scalar_select %p177, %s175, 127
      %p179 = scmp.lt.s32.totalorder %s176, 1
      %s180 = scalar_select %p179, %s176, 1
      %s181 = smul.addr %s178, 2
      %s182 = sadd.s32 %s180, %s181
      %s183 = smul.addr %s182, 4
      %s184 = scalar_lea.vmem %s0, %s183
      %p185 = pneg %p49
      %p186 = pneg %p46
      %s187 = smul.u32 32, %s19
      %p188 = scmp.lt.s32.totalorder %s187, 31
      %s189 = scalar_select %p188, %s187, 31
      %s190 = smul.addr %s189, 4
      %s191 = scalar_lea.vmem %s1, %s190
      %p192 = pneg %p75
      %p193 = pneg %p72
      %p194 = pneg %p96
      %p195 = pneg %p93
      %p196 = pneg %p122
      %p197 = pneg %p119
      %s198 = smul.u32 32, %s18
      %p199 = scmp.lt.s32.totalorder %s198, 127
      %s200 = scalar_select %p199, %s198, 127
      %s201 = smul.addr %s200, 4
      %s202 = scalar_lea.vmem %s3, %s201
      %s203 = smul.u32 32, %s18
      %s204 = smul.u32 2, %s19
      %p205 = scmp.lt.s32.totalorder %s203, 127
      %s206 = scalar_select %p205, %s203, 127
      %p207 = scmp.lt.s32.totalorder %s204, 1
      %s208 = scalar_select %p207, %s204, 1
      %s209 = smul.addr %s206, 2
      %s210 = sadd.s32 %s208, %s209
      %s211 = smul.addr %s210, 4
      %s212 = scalar_lea.vmem %s0, %s211
      %s213 = smul.u32 32, %s18
      %s214 = smul.u32 2, %s19
      %s215 = smul.u32 32, %s19
      %p216 = scmp.lt.s32.totalorder %s215, 31
      %s217 = scalar_select %p216, %s215, 31
      %s218 = smul.addr %s217, 4
      %s219 = scalar_lea.vmem %s1, %s218
      %s220 = smul.u32 32, %s19
      %s221 = smul.u32 32, %s18
      %p222 = scmp.lt.s32.totalorder %s221, 127
      %s223 = scalar_select %p222, %s221, 127
      %s224 = smul.addr %s223, 4
      %s225 = scalar_lea.vmem %s3, %s224
      %s226 = smul.u32 32, %s18
      %v228 = vld [vmem:[%s212] sm:$0xff]
      %v229 = vld [vmem:[%s212 + $0x8] sm:$0xff]
      %v230 = vld [vmem:[%s212 + $0x10] sm:$0xff]
      %v231 = vld [vmem:[%s212 + $0x18] sm:$0xff]
      %v232 = vld [vmem:[%s212 + $0x20] sm:$0xff]
      %v233 = vld [vmem:[%s212 + $0x28] sm:$0xff]
      %v234 = vld [vmem:[%s212 + $0x30] sm:$0xff]
      %v235 = vld [vmem:[%s212 + $0x38] sm:$0xff]
      %v236 = vld [vmem:[%s212 + $0x40] sm:$0xff]
      %v237 = vld [vmem:[%s212 + $0x48] sm:$0xff]
      %v238 = vld [vmem:[%s212 + $0x50] sm:$0xff]
      %v239 = vld [vmem:[%s212 + $0x58] sm:$0xff]
      %v240 = vld [vmem:[%s212 + $0x60] sm:$0xff]
      %v241 = vld [vmem:[%s212 + $0x68] sm:$0xff]
      %v242 = vld [vmem:[%s212 + $0x70] sm:$0xff]
      %v243 = vld [vmem:[%s212 + $0x78] sm:$0xff]
      %v244 = vld [vmem:[%s212 + $0x80] sm:$0xff]
      %v245 = vld [vmem:[%s212 + $0x88] sm:$0xff]
      %v246 = vld [vmem:[%s212 + $0x90] sm:$0xff]
      %v247 = vld [vmem:[%s212 + $0x98] sm:$0xff]
      %v248 = vld [vmem:[%s212 + $0xa0] sm:$0xff]
      %v249 = vld [vmem:[%s212 + $0xa8] sm:$0xff]
      %v250 = vld [vmem:[%s212 + $0xb0] sm:$0xff]
      %v251 = vld [vmem:[%s212 + $0xb8] sm:$0xff]
      %v252 = vld [vmem:[%s212 + $0xc0] sm:$0xff]
      %v253 = vld [vmem:[%s212 + $0xc8] sm:$0xff]
      %v254 = vld [vmem:[%s212 + $0xd0] sm:$0xff]
      %v255 = vld [vmem:[%s212 + $0xd8] sm:$0xff]
      %v256 = vld [vmem:[%s212 + $0xe0] sm:$0xff]
      %v257 = vld [vmem:[%s212 + $0xe8] sm:$0xff]
      %v258 = vld [vmem:[%s212 + $0xf0] sm:$0xff]
      %v259 = vld [vmem:[%s212 + $0xf8] sm:$0xff]
      %v260 = vld [vmem:[%s219] sm:$0xf]
      %v261 = vld [vmem:[%s219 + $0x4] sm:$0xf]
      %v262 = vld [vmem:[%s219 + $0x8] sm:$0xf]
      %v263 = vld [vmem:[%s219 + $0xc] sm:$0xf]
      %v264 = vld [vmem:[%s219 + $0x10] sm:$0xf]
      %v265 = vld [vmem:[%s219 + $0x14] sm:$0xf]
      %v266 = vld [vmem:[%s219 + $0x18] sm:$0xf]
      %v267 = vld [vmem:[%s219 + $0x1c] sm:$0xf]
      %v268 = vld [vmem:[%s219 + $0x20] sm:$0xf]
      %v269 = vld [vmem:[%s219 + $0x24] sm:$0xf]
      %v270 = vld [vmem:[%s219 + $0x28] sm:$0xf]
      %v271 = vld [vmem:[%s219 + $0x2c] sm:$0xf]
      %v272 = vld [vmem:[%s219 + $0x30] sm:$0xf]
      %v273 = vld [vmem:[%s219 + $0x34] sm:$0xf]
      %v274 = vld [vmem:[%s219 + $0x38] sm:$0xf]
      %v275 = vld [vmem:[%s219 + $0x3c] sm:$0xf]
      %v276 = vld [vmem:[%s219 + $0x40] sm:$0xf]
      %v277 = vld [vmem:[%s219 + $0x44] sm:$0xf]
      %v278 = vld [vmem:[%s219 + $0x48] sm:$0xf]
      %v279 = vld [vmem:[%s219 + $0x4c] sm:$0xf]
      %v280 = vld [vmem:[%s219 + $0x50] sm:$0xf]
      %v281 = vld [vmem:[%s219 + $0x54] sm:$0xf]
      %v282 = vld [vmem:[%s219 + $0x58] sm:$0xf]
      %v283 = vld [vmem:[%s219 + $0x5c] sm:$0xf]
      %v284 = vld [vmem:[%s219 + $0x60] sm:$0xf]
      %v285 = vld [vmem:[%s219 + $0x64] sm:$0xf]
      %v286 = vld [vmem:[%s219 + $0x68] sm:$0xf]
      %v287 = vld [vmem:[%s219 + $0x6c] sm:$0xf]
      %v288 = vld [vmem:[%s219 + $0x70] sm:$0xf]
      %v289 = vld [vmem:[%s219 + $0x74] sm:$0xf]
      %v290 = vld [vmem:[%s219 + $0x78] sm:$0xf]
      %v291 = vld [vmem:[%s219 + $0x7c] sm:$0xf]
      %v292 = vld [vmem:[%s2] sm:$0x1]
      %v294 = vlaneseq
      %v295 = vshrl.u32 %v294, 7
      %v296 = vsub.s32 0, %v295
      %v297 = vrot.slane %v292, %v296
      %v331 = vunpack.c.l.b16 %v228
      %v332 = vunpack.c.h.b16 %v228
      %v333 = vunpack.c.l.b16 %v229
      %v334 = vunpack.c.h.b16 %v229
      %v335 = vunpack.c.l.b16 %v230
      %v336 = vunpack.c.h.b16 %v230
      %v337 = vunpack.c.l.b16 %v231
      %v338 = vunpack.c.h.b16 %v231
      %v339 = vunpack.c.l.b16 %v232
      %v340 = vunpack.c.h.b16 %v232
      %v341 = vunpack.c.l.b16 %v233
      %v342 = vunpack.c.h.b16 %v233
      %v343 = vunpack.c.l.b16 %v234
      %v344 = vunpack.c.h.b16 %v234
      %v345 = vunpack.c.l.b16 %v235
      %v346 = vunpack.c.h.b16 %v235
      %v347 = vunpack.c.l.b16 %v236
      %v348 = vunpack.c.h.b16 %v236
      %v349 = vunpack.c.l.b16 %v237
      %v350 = vunpack.c.h.b16 %v237
      %v351 = vunpack.c.l.b16 %v238
      %v352 = vunpack.c.h.b16 %v238
      %v353 = vunpack.c.l.b16 %v239
      %v354 = vunpack.c.h.b16 %v239
      %v355 = vunpack.c.l.b16 %v240
      %v356 = vunpack.c.h.b16 %v240
      %v357 = vunpack.c.l.b16 %v241
      %v358 = vunpack.c.h.b16 %v241
      %v359 = vunpack.c.l.b16 %v242
      %v360 = vunpack.c.h.b16 %v242
      %v361 = vunpack.c.l.b16 %v243
      %v362 = vunpack.c.h.b16 %v243
      %v363 = vunpack.c.l.b16 %v244
      %v364 = vunpack.c.h.b16 %v244
      %v365 = vunpack.c.l.b16 %v245
      %v366 = vunpack.c.h.b16 %v245
      %v367 = vunpack.c.l.b16 %v246
      %v368 = vunpack.c.h.b16 %v246
      %v369 = vunpack.c.l.b16 %v247
      %v370 = vunpack.c.h.b16 %v247
      %v371 = vunpack.c.l.b16 %v248
      %v372 = vunpack.c.h.b16 %v248
      %v373 = vunpack.c.l.b16 %v249
      %v374 = vunpack.c.h.b16 %v249
      %v375 = vunpack.c.l.b16 %v250
      %v376 = vunpack.c.h.b16 %v250
      %v377 = vunpack.c.l.b16 %v251
      %v378 = vunpack.c.h.b16 %v251
      %v379 = vunpack.c.l.b16 %v252
      %v380 = vunpack.c.h.b16 %v252
      %v381 = vunpack.c.l.b16 %v253
      %v382 = vunpack.c.h.b16 %v253
      %v383 = vunpack.c.l.b16 %v254
      %v384 = vunpack.c.h.b16 %v254
      %v385 = vunpack.c.l.b16 %v255
      %v386 = vunpack.c.h.b16 %v255
      %v387 = vunpack.c.l.b16 %v256
      %v388 = vunpack.c.h.b16 %v256
      %v389 = vunpack.c.l.b16 %v257
      %v390 = vunpack.c.h.b16 %v257
      %v391 = vunpack.c.l.b16 %v258
      %v392 = vunpack.c.h.b16 %v258
      %v393 = vunpack.c.l.b16 %v259
      %v394 = vunpack.c.h.b16 %v259
      %v395 = vpack.c.b16 %v333, %v331
      %v396 = vpack.c.b16 %v334, %v332
      %v397 = vpack.c.b16 %v337, %v335
      %v398 = vpack.c.b16 %v338, %v336
      %v399 = vpack.c.b16 %v341, %v339
      %v400 = vpack.c.b16 %v342, %v340
      %v401 = vpack.c.b16 %v345, %v343
      %v402 = vpack.c.b16 %v346, %v344
      %v403 = vpack.c.b16 %v349, %v347
      %v404 = vpack.c.b16 %v350, %v348
      %v405 = vpack.c.b16 %v353, %v351
      %v406 = vpack.c.b16 %v354, %v352
      %v407 = vpack.c.b16 %v357, %v355
      %v408 = vpack.c.b16 %v358, %v356
      %v409 = vpack.c.b16 %v361, %v359
      %v410 = vpack.c.b16 %v362, %v360
      %v411 = vpack.c.b16 %v365, %v363
      %v412 = vpack.c.b16 %v366, %v364
      %v413 = vpack.c.b16 %v369, %v367
      %v414 = vpack.c.b16 %v370, %v368
      %v415 = vpack.c.b16 %v373, %v371
      %v416 = vpack.c.b16 %v374, %v372
      %v417 = vpack.c.b16 %v377, %v375
      %v418 = vpack.c.b16 %v378, %v376
      %v419 = vpack.c.b16 %v381, %v379
      %v420 = vpack.c.b16 %v382, %v380
      %v421 = vpack.c.b16 %v385, %v383
      %v422 = vpack.c.b16 %v386, %v384
      %v423 = vpack.c.b16 %v389, %v387
      %v424 = vpack.c.b16 %v390, %v388
      %v425 = vpack.c.b16 %v393, %v391
      %v426 = vpack.c.b16 %v394, %v392
      %v491 = vunpack.c.l.b16 %v260
      %v492 = vunpack.c.l.b16 %v261
      %v493 = vunpack.c.l.b16 %v262
      %v494 = vunpack.c.l.b16 %v263
      %v495 = vunpack.c.l.b16 %v264
      %v496 = vunpack.c.l.b16 %v265
      %v497 = vunpack.c.l.b16 %v266
      %v498 = vunpack.c.l.b16 %v267
      %v499 = vunpack.c.l.b16 %v268
      %v500 = vunpack.c.l.b16 %v269
      %v501 = vunpack.c.l.b16 %v270
      %v502 = vunpack.c.l.b16 %v271
      %v503 = vunpack.c.l.b16 %v272
      %v504 = vunpack.c.l.b16 %v273
      %v505 = vunpack.c.l.b16 %v274
      %v506 = vunpack.c.l.b16 %v275
      %v507 = vunpack.c.l.b16 %v276
      %v508 = vunpack.c.l.b16 %v277
      %v509 = vunpack.c.l.b16 %v278
      %v510 = vunpack.c.l.b16 %v279
      %v511 = vunpack.c.l.b16 %v280
      %v512 = vunpack.c.l.b16 %v281
      %v513 = vunpack.c.l.b16 %v282
      %v514 = vunpack.c.l.b16 %v283
      %v515 = vunpack.c.l.b16 %v284
      %v516 = vunpack.c.l.b16 %v285
      %v517 = vunpack.c.l.b16 %v286
      %v518 = vunpack.c.l.b16 %v287
      %v519 = vunpack.c.l.b16 %v288
      %v520 = vunpack.c.l.b16 %v289
      %v521 = vunpack.c.l.b16 %v290
      %v522 = vunpack.c.l.b16 %v291
      %v523 = vpack.c.b16 %v492, %v491
      %v524 = vpack.c.b16 %v494, %v493
      %v525 = vpack.c.b16 %v496, %v495
      %v526 = vpack.c.b16 %v498, %v497
      %v527 = vpack.c.b16 %v500, %v499
      %v528 = vpack.c.b16 %v502, %v501
      %v529 = vpack.c.b16 %v504, %v503
      %v530 = vpack.c.b16 %v506, %v505
      %v531 = vpack.c.b16 %v508, %v507
      %v532 = vpack.c.b16 %v510, %v509
      %v533 = vpack.c.b16 %v512, %v511
      %v534 = vpack.c.b16 %v514, %v513
      %v535 = vpack.c.b16 %v516, %v515
      %v536 = vpack.c.b16 %v518, %v517
      %v537 = vpack.c.b16 %v520, %v519
      %v538 = vpack.c.b16 %v522, %v521
      %555 = vmatprep.subr.bf16.mxu0 0
      %556 = vmatpush1.bf16.msra.mxu0 %v523
      %557 = vmatprep.subr.bf16.mxu0 0
      %558 = vmatpush1.bf16.msra.mxu0 %v524
      %559 = vmatprep.subr.bf16.mxu0 0
      %560 = vmatpush1.bf16.msra.mxu0 %v525
      %561 = vmatprep.subr.bf16.mxu0 0
      %562 = vmatpush1.bf16.msra.mxu0 %v526
      %563 = vmatprep.subr.bf16.mxu0 0
      %564 = vmatpush1.bf16.msra.mxu0 %v527
      %565 = vmatprep.subr.bf16.mxu0 0
      %566 = vmatpush1.bf16.msra.mxu0 %v528
      %567 = vmatprep.subr.bf16.mxu0 0
      %568 = vmatpush1.bf16.msra.mxu0 %v529
      %569 = vmatprep.subr.bf16.mxu0 0
      %570 = vmatpush1.bf16.msra.mxu0 %v530
      %571 = vmatprep.subr.bf16.mxu0 0
      %572 = vmatpush1.bf16.msra.mxu0 %v531
      %573 = vmatprep.subr.bf16.mxu0 0
      %574 = vmatpush1.bf16.msra.mxu0 %v532
      %575 = vmatprep.subr.bf16.mxu0 0
      %576 = vmatpush1.bf16.msra.mxu0 %v533
      %577 = vmatprep.subr.bf16.mxu0 0
      %578 = vmatpush1.bf16.msra.mxu0 %v534
      %579 = vmatprep.subr.bf16.mxu0 0
      %580 = vmatpush1.bf16.msra.mxu0 %v535
      %581 = vmatprep.subr.bf16.mxu0 0
      %582 = vmatpush1.bf16.msra.mxu0 %v536
      %583 = vmatprep.subr.bf16.mxu0 0
      %584 = vmatpush1.bf16.msra.mxu0 %v537
      %585 = vmatprep.subr.bf16.mxu0 0
      %586 = vmatpush1.bf16.msra.mxu0 %v538
      %587 = vmatprep.mubr.bf16.mxu0 %v396
      %588 = vmatmul.mubr.bf16.gmra.mrb[0].mxu0 %v395
      %v589 = vpop.f32.mrb[0].mxu0
      %v590 = vadd.f32 %v297, %v589
      %v591 = vpop.f32.mrb[0].mxu0
      %v592 = vpop.f32.mrb[0].mxu0
      %v593 = vadd.f32 %v297, %v592
      %v594 = vpop.f32.mrb[0].mxu0
      %595 = vmatprep.mubr.bf16.mxu0 %v398
      %596 = vmatmul.mubr.bf16.gmra.mrb[0].mxu0 %v397
      %v597 = vpop.f32.mrb[0].mxu0
      %v598 = vadd.f32 %v297, %v597
      %v599 = vpop.f32.mrb[0].mxu0
      %v600 = vpop.f32.mrb[0].mxu0
      %v601 = vadd.f32 %v297, %v600
      %v602 = vpop.f32.mrb[0].mxu0
      %603 = vmatprep.mubr.bf16.mxu0 %v400
      %604 = vmatmul.mubr.bf16.gmra.mrb[0].mxu0 %v399
      %v605 = vpop.f32.mrb[0].mxu0
      %v606 = vadd.f32 %v297, %v605
      %v607 = vpop.f32.mrb[0].mxu0
      %v608 = vpop.f32.mrb[0].mxu0
      %v609 = vadd.f32 %v297, %v608
      %v610 = vpop.f32.mrb[0].mxu0
      %611 = vmatprep.mubr.bf16.mxu0 %v402
      %612 = vmatmul.mubr.bf16.gmra.mrb[0].mxu0 %v401
      %v613 = vpop.f32.mrb[0].mxu0
      %v614 = vadd.f32 %v297, %v613
      %v615 = vpop.f32.mrb[0].mxu0
      %v616 = vpop.f32.mrb[0].mxu0
      %v617 = vadd.f32 %v297, %v616
      %v618 = vpop.f32.mrb[0].mxu0
      %619 = vmatprep.mubr.bf16.mxu0 %v404
      %620 = vmatmul.mubr.bf16.gmra.mrb[0].mxu0 %v403
      %v621 = vpop.f32.mrb[0].mxu0
      %v622 = vadd.f32 %v297, %v621
      %v623 = vpop.f32.mrb[0].mxu0
      %v624 = vpop.f32.mrb[0].mxu0
      %v625 = vadd.f32 %v297, %v624
      %v626 = vpop.f32.mrb[0].mxu0
      %627 = vmatprep.mubr.bf16.mxu0 %v406
      %628 = vmatmul.mubr.bf16.gmra.mrb[0].mxu0 %v405
      %v629 = vpop.f32.mrb[0].mxu0
      %v630 = vadd.f32 %v297, %v629
      %v631 = vpop.f32.mrb[0].mxu0
      %v632 = vpop.f32.mrb[0].mxu0
      %v633 = vadd.f32 %v297, %v632
      %v634 = vpop.f32.mrb[0].mxu0
      %635 = vmatprep.mubr.bf16.mxu0 %v408
      %636 = vmatmul.mubr.bf16.gmra.mrb[0].mxu0 %v407
      %v637 = vpop.f32.mrb[0].mxu0
      %v638 = vadd.f32 %v297, %v637
      %v639 = vpop.f32.mrb[0].mxu0
      %v640 = vpop.f32.mrb[0].mxu0
      %v641 = vadd.f32 %v297, %v640
      %v642 = vpop.f32.mrb[0].mxu0
      %643 = vmatprep.mubr.bf16.mxu0 %v410
      %644 = vmatmul.mubr.bf16.gmra.mrb[0].mxu0 %v409
      %v645 = vpop.f32.mrb[0].mxu0
      %v646 = vadd.f32 %v297, %v645
      %v647 = vpop.f32.mrb[0].mxu0
      %v648 = vpop.f32.mrb[0].mxu0
      %v649 = vadd.f32 %v297, %v648
      %v650 = vpop.f32.mrb[0].mxu0
      %651 = vmatprep.mubr.bf16.mxu0 %v412
      %652 = vmatmul.mubr.bf16.gmra.mrb[0].mxu0 %v411
      %v653 = vpop.f32.mrb[0].mxu0
      %v654 = vadd.f32 %v297, %v653
      %v655 = vpop.f32.mrb[0].mxu0
      %v656 = vpop.f32.mrb[0].mxu0
      %v657 = vadd.f32 %v297, %v656
      %v658 = vpop.f32.mrb[0].mxu0
      %659 = vmatprep.mubr.bf16.mxu0 %v414
      %660 = vmatmul.mubr.bf16.gmra.mrb[0].mxu0 %v413
      %v661 = vpop.f32.mrb[0].mxu0
      %v662 = vadd.f32 %v297, %v661
      %v663 = vpop.f32.mrb[0].mxu0
      %v664 = vpop.f32.mrb[0].mxu0
      %v665 = vadd.f32 %v297, %v664
      %v666 = vpop.f32.mrb[0].mxu0
      %667 = vmatprep.mubr.bf16.mxu0 %v416
      %668 = vmatmul.mubr.bf16.gmra.mrb[0].mxu0 %v415
      %v669 = vpop.f32.mrb[0].mxu0
      %v670 = vadd.f32 %v297, %v669
      %v671 = vpop.f32.mrb[0].mxu0
      %v672 = vpop.f32.mrb[0].mxu0
      %v673 = vadd.f32 %v297, %v672
      %v674 = vpop.f32.mrb[0].mxu0
      %675 = vmatprep.mubr.bf16.mxu0 %v418
      %676 = vmatmul.mubr.bf16.gmra.mrb[0].mxu0 %v417
      %v677 = vpop.f32.mrb[0].mxu0
      %v678 = vadd.f32 %v297, %v677
      %v679 = vpop.f32.mrb[0].mxu0
      %v680 = vpop.f32.mrb[0].mxu0
      %v681 = vadd.f32 %v297, %v680
      %v682 = vpop.f32.mrb[0].mxu0
      %683 = vmatprep.mubr.bf16.mxu0 %v420
      %684 = vmatmul.mubr.bf16.gmra.mrb[0].mxu0 %v419
      %v685 = vpop.f32.mrb[0].mxu0
      %v686 = vadd.f32 %v297, %v685
      %v687 = vpop.f32.mrb[0].mxu0
      %v688 = vpop.f32.mrb[0].mxu0
      %v689 = vadd.f32 %v297, %v688
      %v690 = vpop.f32.mrb[0].mxu0
      %691 = vmatprep.mubr.bf16.mxu0 %v422
      %692 = vmatmul.mubr.bf16.gmra.mrb[0].mxu0 %v421
      %v693 = vpop.f32.mrb[0].mxu0
      %v694 = vadd.f32 %v297, %v693
      %v695 = vpop.f32.mrb[0].mxu0
      %v696 = vpop.f32.mrb[0].mxu0
      %v697 = vadd.f32 %v297, %v696
      %v698 = vpop.f32.mrb[0].mxu0
      %699 = vmatprep.mubr.bf16.mxu0 %v424
      %700 = vmatmul.mubr.bf16.gmra.mrb[0].mxu0 %v423
      %v701 = vpop.f32.mrb[0].mxu0
      %v702 = vadd.f32 %v297, %v701
      %v703 = vpop.f32.mrb[0].mxu0
      %v704 = vpop.f32.mrb[0].mxu0
      %v705 = vadd.f32 %v297, %v704
      %v706 = vpop.f32.mrb[0].mxu0
      %707 = vmatprep.mubr.bf16.mxu0 %v426
      %708 = vmatmul.mubr.bf16.gmra.mrb[0].mxu0 %v425
      %v709 = vpop.f32.mrb[0].mxu0
      %v710 = vadd.f32 %v297, %v709
      %v711 = vpop.f32.mrb[0].mxu0
      %v712 = vpop.f32.mrb[0].mxu0
      %v713 = vadd.f32 %v297, %v712
      %v714 = vpop.f32.mrb[0].mxu0
      %715 = vdwg.mxu0
      %v716 = vmax.f32 %v590, 0.0
      %v717 = vmax.f32 %v593, 0.0
      %v718 = vmax.f32 %v598, 0.0
      %v719 = vmax.f32 %v601, 0.0
      %v720 = vmax.f32 %v606, 0.0
      %v721 = vmax.f32 %v609, 0.0
      %v722 = vmax.f32 %v614, 0.0
      %v723 = vmax.f32 %v617, 0.0
      %v724 = vmax.f32 %v622, 0.0
      %v725 = vmax.f32 %v625, 0.0
      %v726 = vmax.f32 %v630, 0.0
      %v727 = vmax.f32 %v633, 0.0
      %v728 = vmax.f32 %v638, 0.0
      %v729 = vmax.f32 %v641, 0.0
      %v730 = vmax.f32 %v646, 0.0
      %v731 = vmax.f32 %v649, 0.0
      %v732 = vmax.f32 %v654, 0.0
      %v733 = vmax.f32 %v657, 0.0
      %v734 = vmax.f32 %v662, 0.0
      %v735 = vmax.f32 %v665, 0.0
      %v736 = vmax.f32 %v670, 0.0
      %v737 = vmax.f32 %v673, 0.0
      %v738 = vmax.f32 %v678, 0.0
      %v739 = vmax.f32 %v681, 0.0
      %v740 = vmax.f32 %v686, 0.0
      %v741 = vmax.f32 %v689, 0.0
      %v742 = vmax.f32 %v694, 0.0
      %v743 = vmax.f32 %v697, 0.0
      %v744 = vmax.f32 %v702, 0.0
      %v745 = vmax.f32 %v705, 0.0
      %v746 = vmax.f32 %v710, 0.0
      %v747 = vmax.f32 %v713, 0.0
      %v748 = vpack.c.bf16 %v717, %v716
      %v749 = vpack.c.bf16 %v719, %v718
      %v750 = vpack.c.bf16 %v721, %v720
      %v751 = vpack.c.bf16 %v723, %v722
      %v752 = vpack.c.bf16 %v725, %v724
      %v753 = vpack.c.bf16 %v727, %v726
      %v754 = vpack.c.bf16 %v729, %v728
      %v755 = vpack.c.bf16 %v731, %v730
      %v756 = vpack.c.bf16 %v733, %v732
      %v757 = vpack.c.bf16 %v735, %v734
      %v758 = vpack.c.bf16 %v737, %v736
      %v759 = vpack.c.bf16 %v739, %v738
      %v760 = vpack.c.bf16 %v741, %v740
      %v761 = vpack.c.bf16 %v743, %v742
      %v762 = vpack.c.bf16 %v745, %v744
      %v763 = vpack.c.bf16 %v747, %v746
      %v780 = vunpack.c.l.b16 %v748
      %v781 = vunpack.c.h.b16 %v748
      %v782 = vunpack.c.l.b16 %v749
      %v783 = vunpack.c.h.b16 %v749
      %v784 = vunpack.c.l.b16 %v750
      %v785 = vunpack.c.h.b16 %v750
      %v786 = vunpack.c.l.b16 %v751
      %v787 = vunpack.c.h.b16 %v751
      %v788 = vunpack.c.l.b16 %v752
      %v789 = vunpack.c.h.b16 %v752
      %v790 = vunpack.c.l.b16 %v753
      %v791 = vunpack.c.h.b16 %v753
      %v792 = vunpack.c.l.b16 %v754
      %v793 = vunpack.c.h.b16 %v754
      %v794 = vunpack.c.l.b16 %v755
      %v795 = vunpack.c.h.b16 %v755
      %v796 = vunpack.c.l.b16 %v756
      %v797 = vunpack.c.h.b16 %v756
      %v798 = vunpack.c.l.b16 %v757
      %v799 = vunpack.c.h.b16 %v757
      %v800 = vunpack.c.l.b16 %v758
      %v801 = vunpack.c.h.b16 %v758
      %v802 = vunpack.c.l.b16 %v759
      %v803 = vunpack.c.h.b16 %v759
      %v804 = vunpack.c.l.b16 %v760
      %v805 = vunpack.c.h.b16 %v760
      %v806 = vunpack.c.l.b16 %v761
      %v807 = vunpack.c.h.b16 %v761
      %v808 = vunpack.c.l.b16 %v762
      %v809 = vunpack.c.h.b16 %v762
      %v810 = vunpack.c.l.b16 %v763
      %v811 = vunpack.c.h.b16 %v763
      %v812 = vpack.c.b16 %v780, %v780
      %v813 = vpack.c.b16 %v781, %v781
      %v814 = vpack.c.b16 %v782, %v782
      %v815 = vpack.c.b16 %v783, %v783
      %v816 = vpack.c.b16 %v784, %v784
      %v817 = vpack.c.b16 %v785, %v785
      %v818 = vpack.c.b16 %v786, %v786
      %v819 = vpack.c.b16 %v787, %v787
      %v820 = vpack.c.b16 %v788, %v788
      %v821 = vpack.c.b16 %v789, %v789
      %v822 = vpack.c.b16 %v790, %v790
      %v823 = vpack.c.b16 %v791, %v791
      %v824 = vpack.c.b16 %v792, %v792
      %v825 = vpack.c.b16 %v793, %v793
      %v826 = vpack.c.b16 %v794, %v794
      %v827 = vpack.c.b16 %v795, %v795
      %v828 = vpack.c.b16 %v796, %v796
      %v829 = vpack.c.b16 %v797, %v797
      %v830 = vpack.c.b16 %v798, %v798
      %v831 = vpack.c.b16 %v799, %v799
      %v832 = vpack.c.b16 %v800, %v800
      %v833 = vpack.c.b16 %v801, %v801
      %v834 = vpack.c.b16 %v802, %v802
      %v835 = vpack.c.b16 %v803, %v803
      %v836 = vpack.c.b16 %v804, %v804
      %v837 = vpack.c.b16 %v805, %v805
      %v838 = vpack.c.b16 %v806, %v806
      %v839 = vpack.c.b16 %v807, %v807
      %v840 = vpack.c.b16 %v808, %v808
      %v841 = vpack.c.b16 %v809, %v809
      %v842 = vpack.c.b16 %v810, %v810
      %v843 = vpack.c.b16 %v811, %v811
      %876 = vst [vmem:[%s225] sm:$0xf] %v812
      %877 = vst [vmem:[%s225 + $0x4] sm:$0xf] %v813
      %878 = vst [vmem:[%s225 + $0x8] sm:$0xf] %v814
      %879 = vst [vmem:[%s225 + $0xc] sm:$0xf] %v815
      %880 = vst [vmem:[%s225 + $0x10] sm:$0xf] %v816
      %881 = vst [vmem:[%s225 + $0x14] sm:$0xf] %v817
      %882 = vst [vmem:[%s225 + $0x18] sm:$0xf] %v818
      %883 = vst [vmem:[%s225 + $0x1c] sm:$0xf] %v819
      %884 = vst [vmem:[%s225 + $0x20] sm:$0xf] %v820
      %885 = vst [vmem:[%s225 + $0x24] sm:$0xf] %v821
      %886 = vst [vmem:[%s225 + $0x28] sm:$0xf] %v822
      %887 = vst [vmem:[%s225 + $0x2c] sm:$0xf] %v823
      %888 = vst [vmem:[%s225 + $0x30] sm:$0xf] %v824
      %889 = vst [vmem:[%s225 + $0x34] sm:$0xf] %v825
      %890 = vst [vmem:[%s225 + $0x38] sm:$0xf] %v826
      %891 = vst [vmem:[%s225 + $0x3c] sm:$0xf] %v827
      %892 = vst [vmem:[%s225 + $0x40] sm:$0xf] %v828
      %893 = vst [vmem:[%s225 + $0x44] sm:$0xf] %v829
      %894 = vst [vmem:[%s225 + $0x48] sm:$0xf] %v830
      %895 = vst [vmem:[%s225 + $0x4c] sm:$0xf] %v831
      %896 = vst [vmem:[%s225 + $0x50] sm:$0xf] %v832
      %897 = vst [vmem:[%s225 + $0x54] sm:$0xf] %v833
      %898 = vst [vmem:[%s225 + $0x58] sm:$0xf] %v834
      %899 = vst [vmem:[%s225 + $0x5c] sm:$0xf] %v835
      %900 = vst [vmem:[%s225 + $0x60] sm:$0xf] %v836
      %901 = vst [vmem:[%s225 + $0x64] sm:$0xf] %v837
      %902 = vst [vmem:[%s225 + $0x68] sm:$0xf] %v838
      %903 = vst [vmem:[%s225 + $0x6c] sm:$0xf] %v839
      %904 = vst [vmem:[%s225 + $0x70] sm:$0xf] %v840
      %905 = vst [vmem:[%s225 + $0x74] sm:$0xf] %v841
      %906 = vst [vmem:[%s225 + $0x78] sm:$0xf] %v842
      %907 = vst [vmem:[%s225 + $0x7c] sm:$0xf] %v843
      %s908 = smul.u32 32, %s18
      %p909 = scmp.lt.s32.totalorder %s908, 127
      %s910 = scalar_select %p909, %s908, 127
      %s911 = smul.addr %s910, 4
      %s912 = scalar_lea.vmem %s3, %s911
      // Predicated region
      $region33: #{_policy_act_impl.4} parent=31 // pred_check
        %p913 = pneg %p119
      $region34: #{_policy_act_impl.4} parent=31 // pred_check_branch
        %915 = sbr.rel (%p913) target = $region36
      $region35: #{_policy_act_impl.4} parent=31 // pred_region
        %s916 = smul.u32 32, %s18
      $region36: #{_policy_act_impl.4} parent=31 // pred_fallthru
        _
    $region32: #{_policy_act_impl.4} parent=5 // pred_fallthru
      _
    %p917 = scmp.le.s32.totalorder 2, %s9
    // Predicated region
    $region37: #{_policy_act_impl.4} parent=5 // pred_check
      %p918 = pneg %p917
    $region38: #{_policy_act_impl.4} parent=5 // pred_check_branch
      %920 = sbr.rel (%p918) target = $region40
    $region39: #{_policy_act_impl.4} parent=5 // pred_region
      %s921 = ssub.s32 %s9, 2
      // Predicated region
      $region41: #{_policy_act_impl.4} parent=39 // pred_check
        %p922 = pneg %p125
      $region42: #{_policy_act_impl.4} parent=39 // pred_check_branch
        %924 = sbr.rel (%p922) target = $region44
      $region43: #{_policy_act_impl.4} parent=39 // pred_region
        %s925 = smul.u32 32, %s20
        %p926 = scmp.lt.s32.totalorder %s925, 127
        %s927 = scalar_select %p926, %s925, 127
        %s928 = smul.addr %s927, 4
        %s929 = scalar_lea.vmem %s3, %s928
      $region44: #{_policy_act_impl.4} parent=39 // pred_fallthru
        _
    $region40: #{_policy_act_impl.4} parent=5 // pred_fallthru
      _
  $region6: #{_policy_act_impl.4} parent=0 // loop_footer
    %s13 = sadd.s32 1, %s9
  $region7: #{_policy_act_impl.4} parent=0 // loop_footer_branch
    %8 = sbr.rel target = $region3
  $region8: #{_policy_act_impl.4} parent=0 // loop_exit
    _

// kernel: _policy_act_impl.5
$region0: #{_policy_act_impl.5}
  #allocation0 [shape = 'u32[]', space=smem, size = 0x4, offset = 0x4, fixed_abs, tag = 'smem constant byte address 0x4 - core index']
  #allocation1 [shape = 'u32[144,128]{1,0:T(1,128)}', space=vmem, size = 0x12000, scoped, tag = 'internal scratch']
  #allocation2 [shape = 'f32[176,256]{1,0:T(8,128)}', space=vmem, size = 0x2c000, scoped, tag = 'scratch operand']
  %s0 = inlined_call_operand.vmem [shape: bf16[176,2048], index: 0, kind: input, shape index: {}]
  %s1 = inlined_call_operand.vmem [shape: bf16[2048,256], index: 1, kind: input, shape index: {}]
  %s2 = inlined_call_operand.vmem [shape: f32[1,256], index: 2, kind: input, shape index: {}]
  %s3 = inlined_call_operand.vmem [shape: bf16[176,256], index: 3, kind: output, shape index: {}]
  %s4 = sld [smem:[#allocation0]]
  $region80: #{_policy_act_impl.5} parent=0
    _
  %s6 = ssub.s32 1, %s4
  %s7 = scalar_select 0, %s6, %s4
  $region1: #{_policy_act_impl.5} parent=0
    #allocation3 [shape = 'u8[720896]{0}', space=vmem, size = 0xb0000, scoped, tag = 'input window, operand 0']
    loop: start=0, step=1, limit=4
    $region2: #{_policy_act_impl.5} parent=1 // loop_pre_header
      _
    $region3: #{_policy_act_impl.5} parent=1 // loop_header
      %s9 = sphi 0, %s13
      %p10 = scmp.ge.s32.totalorder %s9, 4
      %s16 = sphi 0, %s28
      %s17 = sphi 0, %s24
      %s18 = sphi 0, %s16
      %s19 = sphi 0, %s17
      %s20 = sphi 0, %s18
      %s21 = sphi 0, %s19
      %s33 = sphi 0, %s35
      %s36 = sphi 0, %s33
      %s37 = sphi 0, %s36
      %s53 = sphi 0, %s37
      %s59 = sphi 0, %s61
      %s62 = sphi 0, %s59
      %s63 = sphi 0, %s62
      %s79 = sphi 0, %s63
      %s83 = sphi 0, %s83
      %s85 = sphi 0, %s83
      %s86 = sphi 0, %s85
      %s100 = sphi 0, %s86
      %s106 = sphi 0, %s108
      %s109 = sphi 0, %s106
      %s110 = sphi 0, %s109
      %s126 = sphi 0, %s110
    $region4: #{_policy_act_impl.5} parent=1 // loop_header_branch
      %12 = sbr.rel (%p10) target = $region8
    $region5: #{_policy_act_impl.5} parent=1 // loop_body
      %s14 = ssub.s32 %s9, 1
      %s15 = ssub.s32 %s9, 2
      %s22 = sadd.s32 1, %s17
      %p23 = scmp.ge.s32.totalorder %s22, 2
      %s24 = scalar_select %p23, 0, %s22
      %s25 = sadd.s32 1, %s16
      %s26 = scalar_select %p23, %s25, %s16
      %p27 = scmp.ge.s32.totalorder %s26, 1
      %s28 = scalar_select %p27, 0, %s26
      %s29 = ssub.s32 %s16, %s28
      %s30 = ssub.s32 %s17, %s24
      %s31 = sor.u32 %s29, %s30
      %p32 = scmp.eq.s32.totalorder %s31, 0
      %s34 = sadd.s32 %s33, 1
      %s35 = scalar_select %p32, %s33, %s34
      %p38 = pneg %p32
      %p39 = scmp.eq.s32.totalorder %s9, 1
      %p40 = por %p38, %p39
      %p41 = scmp.ne.s32.totalorder %s33, %s36
      %p42 = scmp.eq.s32.totalorder %s9, 0
      %p43 = por %p41, %p42
      %p44 = scmp.ne.s32.totalorder %s33, %s36
      %p45 = scmp.eq.s32.totalorder %s14, 1
      %p46 = por %p44, %p45
      %p47 = scmp.ne.s32.totalorder %s36, %s37
      %p48 = scmp.eq.s32.totalorder %s14, 0
      %p49 = por %p47, %p48
      %p50 = scmp.ne.s32.totalorder %s36, %s37
      %p51 = scmp.eq.s32.totalorder %s15, 1
      %p52 = por %p50, %p51
      %p54 = scmp.ne.s32.totalorder %s37, %s53
      %p55 = scmp.eq.s32.totalorder %s15, 0
      %p56 = por %p54, %p55
      %s57 = ssub.s32 %s17, %s24
      %p58 = scmp.eq.s32.totalorder %s57, 0
      %s60 = sadd.s32 %s59, 1
      %s61 = scalar_select %p58, %s59, %s60
      %p64 = pneg %p58
      %p65 = scmp.eq.s32.totalorder %s9, 1
      %p66 = por %p64, %p65
      %p67 = scmp.ne.s32.totalorder %s59, %s62
      %p68 = scmp.eq.s32.totalorder %s9, 0
      %p69 = por %p67, %p68
      %p70 = scmp.ne.s32.totalorder %s59, %s62
      %p71 = scmp.eq.s32.totalorder %s14, 1
      %p72 = por %p70, %p71
      %p73 = scmp.ne.s32.totalorder %s62, %s63
      %p74 = scmp.eq.s32.totalorder %s14, 0
      %p75 = por %p73, %p74
      %p76 = scmp.ne.s32.totalorder %s62, %s63
      %p77 = scmp.eq.s32.totalorder %s15, 1
      %p78 = por %p76, %p77
      %p80 = scmp.ne.s32.totalorder %s63, %s79
      %p81 = scmp.eq.s32.totalorder %s15, 0
      %p82 = por %p80, %p81
      %s84 = sadd.s32 %s83, 1
      %p87 = scmp.eq.s32.totalorder %s9, 1
      %p88 = scmp.ne.s32.totalorder %s83, %s85
      %p89 = scmp.eq.s32.totalorder %s9, 0
      %p90 = por %p88, %p89
      %p91 = scmp.ne.s32.totalorder %s83, %s85
      %p92 = scmp.eq.s32.totalorder %s14, 1
      %p93 = por %p91, %p92
      %p94 = scmp.ne.s32.totalorder %s85, %s86
      %p95 = scmp.eq.s32.totalorder %s14, 0
      %p96 = por %p94, %p95
      %p97 = scmp.ne.s32.totalorder %s85, %s86
      %p98 = scmp.eq.s32.totalorder %s15, 1
      %p99 = por %p97, %p98
      %p101 = scmp.ne.s32.totalorder %s86, %s100
      %p102 = scmp.eq.s32.totalorder %s15, 0
      %p103 = por %p101, %p102
      %s104 = ssub.s32 %s16, %s28
      %p105 = scmp.eq.s32.totalorder %s104, 0
      %s107 = sadd.s32 %s106, 1
      %s108 = scalar_select %p105, %s106, %s107
      %p111 = pneg %p105
      %p112 = scmp.eq.s32.totalorder %s9, 1
      %p113 = por %p111, %p112
      %p114 = scmp.ne.s32.totalorder %s106, %s109
      %p115 = scmp.eq.s32.totalorder %s9, 0
      %p116 = por %p114, %p115
      %p117 = scmp.ne.s32.totalorder %s106, %s109
      %p118 = scmp.eq.s32.totalorder %s14, 1
      %p119 = por %p117, %p118
      %p120 = scmp.ne.s32.totalorder %s109, %s110
      %p121 = scmp.eq.s32.totalorder %s14, 0
      %p122 = por %p120, %p121
      %p123 = scmp.ne.s32.totalorder %s109, %s110
      %p124 = scmp.eq.s32.totalorder %s15, 1
      %p125 = por %p123, %p124
      %p127 = scmp.ne.s32.totalorder %s110, %s126
      %p128 = scmp.eq.s32.totalorder %s15, 0
      %p129 = por %p127, %p128
      %p130 = scmp.le.s32.totalorder 1, %s9
      %p131 = scmp.lt.s32.totalorder %s9, 3
      %p132 = pnand %p130, %p131
      %p133 = pneg %p132
      // Predicated region
      $region9: #{_policy_act_impl.5} parent=5 // pred_check
        _
      $region10: #{_policy_act_impl.5} parent=5 // pred_check_branch
        %135 = sbr.rel (%p132) target = $region12
      $region11: #{_policy_act_impl.5} parent=5 // pred_region
        %s136 = ssub.s32 %s9, 1
        // Predicated region
        $region13: #{_policy_act_impl.5} parent=11 // pred_check
          %p137 = pneg %p96
        $region14: #{_policy_act_impl.5} parent=11 // pred_check_branch
          %139 = sbr.rel (%p137) target = $region16
        $region15: #{_policy_act_impl.5} parent=11 // pred_region
          _
        $region16: #{_policy_act_impl.5} parent=11 // pred_fallthru
          _
      $region12: #{_policy_act_impl.5} parent=5 // pred_fallthru
        _
      %p140 = scmp.lt.s32.totalorder %s9, 2
      // Predicated region
      $region17: #{_policy_act_impl.5} parent=5 // pred_check
        %p141 = pneg %p140
      $region18: #{_policy_act_impl.5} parent=5 // pred_check_branch
        %143 = sbr.rel (%p141) target = $region20
      $region19: #{_policy_act_impl.5} parent=5 // pred_region
        // Predicated region
        $region21: #{_policy_act_impl.5} parent=19 // pred_check
          %p144 = pneg %p43
        $region22: #{_policy_act_impl.5} parent=19 // pred_check_branch
          %146 = sbr.rel (%p144) target = $region24
        $region23: #{_policy_act_impl.5} parent=19 // pred_region
          %s147 = sand.u32 %s33, 1
          %s148 = sand.u32 %s33, 1
          %s149 = smul.addr %s148, 704
          %s150 = scalar_lea.vmem [#allocation3], %s149
          %s151 = smul.u32 22, %s16
          %s152 = smul.u32 8, %s17
          %s153 = smul.addr %s151, 16
          %s154 = sadd.s32 %s152, %s153
          %s155 = smul.addr %s154, 4
          %s156 = scalar_lea.vmem %s0, %s155
          // Predicated region
          $region25: #{_policy_act_impl.5} parent=23 // pred_check
            _
          $region26: #{_policy_act_impl.5} parent=23 // pred_check_branch
            %158 = sbr.rel (0) target = $region28
          $region27: #{_policy_act_impl.5} parent=23 // pred_region
            // Predicated region
            $region29: #{_policy_act_impl.5} parent=27 // pred_check
              _
            $region30: #{_policy_act_impl.5} parent=27 // pred_check_branch
              %160 = sbr.rel (0) target = $region32
            $region31: #{_policy_act_impl.5} parent=27 // pred_region
              loop: start=0, step=1, limit=1
              $region33: #{_policy_act_impl.5} parent=31 // loop_pre_header
                _
              $region34: #{_policy_act_impl.5} parent=31 // loop_header
                %s162 = sphi 0, %s166
                %p163 = scmp.ge.s32.totalorder %s162, 1
                %s167 = sphi %s156, %s156
                %s168 = sphi %s150, %s150
              $region35: #{_policy_act_impl.5} parent=31 // loop_header_branch
                %165 = sbr.rel (%p163) target = $region39
              $region36: #{_policy_act_impl.5} parent=31 // loop_body
                %v169 = vld [vmem:[%s167] sm:$0xff]
                %170 = vst [vmem:[%s168] sm:$0xff] %v169
                %v171 = vld [vmem:[%s167 + $0x8] sm:$0xff]
                %172 = vst [vmem:[%s168 + $0x8] sm:$0xff] %v171
                %v173 = vld [vmem:[%s167 + $0x10] sm:$0xff]
                %174 = vst [vmem:[%s168 + $0x10] sm:$0xff] %v173
                %v175 = vld [vmem:[%s167 + $0x18] sm:$0xff]
                %176 = vst [vmem:[%s168 + $0x18] sm:$0xff] %v175
                %v177 = vld [vmem:[%s167 + $0x40] sm:$0xff]
                %178 = vst [vmem:[%s168 + $0x20] sm:$0xff] %v177
                %v179 = vld [vmem:[%s167 + $0x48] sm:$0xff]
                %180 = vst [vmem:[%s168 + $0x28] sm:$0xff] %v179
                %v181 = vld [vmem:[%s167 + $0x50] sm:$0xff]
                %182 = vst [vmem:[%s168 + $0x30] sm:$0xff] %v181
                %v183 = vld [vmem:[%s167 + $0x58] sm:$0xff]
                %184 = vst [vmem:[%s168 + $0x38] sm:$0xff] %v183
                %v185 = vld [vmem:[%s167 + $0x80] sm:$0xff]
                %186 = vst [vmem:[%s168 + $0x40] sm:$0xff] %v185
                %v187 = vld [vmem:[%s167 + $0x88] sm:$0xff]
                %188 = vst [vmem:[%s168 + $0x48] sm:$0xff] %v187
                %v189 = vld [vmem:[%s167 + $0x90] sm:$0xff]
                %190 = vst [vmem:[%s168 + $0x50] sm:$0xff] %v189
                %v191 = vld [vmem:[%s167 + $0x98] sm:$0xff]
                %192 = vst [vmem:[%s168 + $0x58] sm:$0xff] %v191
                %v193 = vld [vmem:[%s167 + $0xc0] sm:$0xff]
                %194 = vst [vmem:[%s168 + $0x60] sm:$0xff] %v193
                %v195 = vld [vmem:[%s167 + $0xc8] sm:$0xff]
                %196 = vst [vmem:[%s168 + $0x68] sm:$0xff] %v195
                %v197 = vld [vmem:[%s167 + $0xd0] sm:$0xff]
                %198 = vst [vmem:[%s168 + $0x70] sm:$0xff] %v197
                %v199 = vld [vmem:[%s167 + $0xd8] sm:$0xff]
                %200 = vst [vmem:[%s168 + $0x78] sm:$0xff] %v199
                %v201 = vld [vmem:[%s167 + $0x100] sm:$0xff]
                %202 = vst [vmem:[%s168 + $0x80] sm:$0xff] %v201
                %v203 = vld [vmem:[%s167 + $0x108] sm:$0xff]
                %204 = vst [vmem:[%s168 + $0x88] sm:$0xff] %v203
                %v205 = vld [vmem:[%s167 + $0x110] sm:$0xff]
                %206 = vst [vmem:[%s168 + $0x90] sm:$0xff] %v205
                %v207 = vld [vmem:[%s167 + $0x118] sm:$0xff]
                %208 = vst [vmem:[%s168 + $0x98] sm:$0xff] %v207
                %v209 = vld [vmem:[%s167 + $0x140] sm:$0xff]
                %210 = vst [vmem:[%s168 + $0xa0] sm:$0xff] %v209
                %v211 = vld [vmem:[%s167 + $0x148] sm:$0xff]
                %212 = vst [vmem:[%s168 + $0xa8] sm:$0xff] %v211
                %v213 = vld [vmem:[%s167 + $0x150] sm:$0xff]
                %214 = vst [vmem:[%s168 + $0xb0] sm:$0xff] %v213
                %v215 = vld [vmem:[%s167 + $0x158] sm:$0xff]
                %216 = vst [vmem:[%s168 + $0xb8] sm:$0xff] %v215
                %v217 = vld [vmem:[%s167 + $0x180] sm:$0xff]
                %218 = vst [vmem:[%s168 + $0xc0] sm:$0xff] %v217
                %v219 = vld [vmem:[%s167 + $0x188] sm:$0xff]
                %220 = vst [vmem:[%s168 + $0xc8] sm:$0xff] %v219
                %v221 = vld [vmem:[%s167 + $0x190] sm:$0xff]
                %222 = vst [vmem:[%s168 + $0xd0] sm:$0xff] %v221
                %v223 = vld [vmem:[%s167 + $0x198] sm:$0xff]
                %224 = vst [vmem:[%s168 + $0xd8] sm:$0xff] %v223
                %v225 = vld [vmem:[%s167 + $0x1c0] sm:$0xff]
                %226 = vst [vmem:[%s168 + $0xe0] sm:$0xff] %v225
                %v227 = vld [vmem:[%s167 + $0x1c8] sm:$0xff]
                %228 = vst [vmem:[%s168 + $0xe8] sm:$0xff] %v227
                %v229 = vld [vmem:[%s167 + $0x1d0] sm:$0xff]
                %230 = vst [vmem:[%s168 + $0xf0] sm:$0xff] %v229
                %v231 = vld [vmem:[%s167 + $0x1d8] sm:$0xff]
                %232 = vst [vmem:[%s168 + $0xf8] sm:$0xff] %v231
                %v233 = vld [vmem:[%s167 + $0x200] sm:$0xff]
                %234 = vst [vmem:[%s168 + $0x100] sm:$0xff] %v233
                %v235 = vld [vmem:[%s167 + $0x208] sm:$0xff]
                %236 = vst [vmem:[%s168 + $0x108] sm:$0xff] %v235
                %v237 = vld [vmem:[%s167 + $0x210] sm:$0xff]
                %238 = vst [vmem:[%s168 + $0x110] sm:$0xff] %v237
                %v239 = vld [vmem:[%s167 + $0x218] sm:$0xff]
                %240 = vst [vmem:[%s168 + $0x118] sm:$0xff] %v239
                %v241 = vld [vmem:[%s167 + $0x240] sm:$0xff]
                %242 = vst [vmem:[%s168 + $0x120] sm:$0xff] %v241
                %v243 = vld [vmem:[%s167 + $0x248] sm:$0xff]
                %244 = vst [vmem:[%s168 + $0x128] sm:$0xff] %v243
                %v245 = vld [vmem:[%s167 + $0x250] sm:$0xff]
                %246 = vst [vmem:[%s168 + $0x130] sm:$0xff] %v245
                %v247 = vld [vmem:[%s167 + $0x258] sm:$0xff]
                %248 = vst [vmem:[%s168 + $0x138] sm:$0xff] %v247
                %v249 = vld [vmem:[%s167 + $0x280] sm:$0xff]
                %250 = vst [vmem:[%s168 + $0x140] sm:$0xff] %v249
                %v251 = vld [vmem:[%s167 + $0x288] sm:$0xff]
                %252 = vst [vmem:[%s168 + $0x148] sm:$0xff] %v251
                %v253 = vld [vmem:[%s167 + $0x290] sm:$0xff]
                %254 = vst [vmem:[%s168 + $0x150] sm:$0xff] %v253
                %v255 = vld [vmem:[%s167 + $0x298] sm:$0xff]
                %256 = vst [vmem:[%s168 + $0x158] sm:$0xff] %v255
                %v257 = vld [vmem:[%s167 + $0x2c0] sm:$0xff]
                %258 = vst [vmem:[%s168 + $0x160] sm:$0xff] %v257
                %v259 = vld [vmem:[%s167 + $0x2c8] sm:$0xff]
                %260 = vst [vmem:[%s168 + $0x168] sm:$0xff] %v259
                %v261 = vld [vmem:[%s167 + $0x2d0] sm:$0xff]
                %262 = vst [vmem:[%s168 + $0x170] sm:$0xff] %v261
                %v263 = vld [vmem:[%s167 + $0x2d8] sm:$0xff]
                %264 = vst [vmem:[%s168 + $0x178] sm:$0xff] %v263
                %v265 = vld [vmem:[%s167 + $0x300] sm:$0xff]
                %266 = vst [vmem:[%s168 + $0x180] sm:$0xff] %v265
                %v267 = vld [vmem:[%s167 + $0x308] sm:$0xff]
                %268 = vst [vmem:[%s168 + $0x188] sm:$0xff] %v267
                %v269 = vld [vmem:[%s167 + $0x310] sm:$0xff]
                %270 = vst [vmem:[%s168 + $0x190] sm:$0xff] %v269
                %v271 = vld [vmem:[%s167 + $0x318] sm:$0xff]
                %272 = vst [vmem:[%s168 + $0x198] sm:$0xff] %v271
                %v273 = vld [vmem:[%s167 + $0x340] sm:$0xff]
                %274 = vst [vmem:[%s168 + $0x1a0] sm:$0xff] %v273
                %v275 = vld [vmem:[%s167 + $0x348] sm:$0xff]
                %276 = vst [vmem:[%s168 + $0x1a8] sm:$0xff] %v275
                %v277 = vld [vmem:[%s167 + $0x350] sm:$0xff]
                %278 = vst [vmem:[%s168 + $0x1b0] sm:$0xff] %v277
                %v279 = vld [vmem:[%s167 + $0x358] sm:$0xff]
                %280 = vst [vmem:[%s168 + $0x1b8] sm:$0xff] %v279
                %v281 = vld [vmem:[%s167 + $0x380] sm:$0xff]
                %282 = vst [vmem:[%s168 + $0x1c0] sm:$0xff] %v281
                %v283 = vld [vmem:[%s167 + $0x388] sm:$0xff]
                %284 = vst [vmem:[%s168 + $0x1c8] sm:$0xff] %v283
                %v285 = vld [vmem:[%s167 + $0x390] sm:$0xff]
                %286 = vst [vmem:[%s168 + $0x1d0] sm:$0xff] %v285
                %v287 = vld [vmem:[%s167 + $0x398] sm:$0xff]
                %288 = vst [vmem:[%s168 + $0x1d8] sm:$0xff] %v287
                %v289 = vld [vmem:[%s167 + $0x3c0] sm:$0xff]
                %290 = vst [vmem:[%s168 + $0x1e0] sm:$0xff] %v289
                %v291 = vld [vmem:[%s167 + $0x3c8] sm:$0xff]
                %292 = vst [vmem:[%s168 + $0x1e8] sm:$0xff] %v291
                %v293 = vld [vmem:[%s167 + $0x3d0] sm:$0xff]
                %294 = vst [vmem:[%s168 + $0x1f0] sm:$0xff] %v293
                %v295 = vld [vmem:[%s167 + $0x3d8] sm:$0xff]
                %296 = vst [vmem:[%s168 + $0x1f8] sm:$0xff] %v295
                %v297 = vld [vmem:[%s167 + $0x400] sm:$0xff]
                %298 = vst [vmem:[%s168 + $0x200] sm:$0xff] %v297
                %v299 = vld [vmem:[%s167 + $0x408] sm:$0xff]
                %300 = vst [vmem:[%s168 + $0x208] sm:$0xff] %v299
                %v301 = vld [vmem:[%s167 + $0x410] sm:$0xff]
                %302 = vst [vmem:[%s168 + $0x210] sm:$0xff] %v301
                %v303 = vld [vmem:[%s167 + $0x418] sm:$0xff]
                %304 = vst [vmem:[%s168 + $0x218] sm:$0xff] %v303
                %v305 = vld [vmem:[%s167 + $0x440] sm:$0xff]
                %306 = vst [vmem:[%s168 + $0x220] sm:$0xff] %v305
                %v307 = vld [vmem:[%s167 + $0x448] sm:$0xff]
                %308 = vst [vmem:[%s168 + $0x228] sm:$0xff] %v307
                %v309 = vld [vmem:[%s167 + $0x450] sm:$0xff]
                %310 = vst [vmem:[%s168 + $0x230] sm:$0xff] %v309
                %v311 = vld [vmem:[%s167 + $0x458] sm:$0xff]
                %312 = vst [vmem:[%s168 + $0x238] sm:$0xff] %v311
                %v313 = vld [vmem:[%s167 + $0x480] sm:$0xff]
                %314 = vst [vmem:[%s168 + $0x240] sm:$0xff] %v313
                %v315 = vld [vmem:[%s167 + $0x488] sm:$0xff]
                %316 = vst [vmem:[%s168 + $0x248] sm:$0xff] %v315
                %v317 = vld [vmem:[%s167 + $0x490] sm:$0xff]
                %318 = vst [vmem:[%s168 + $0x250] sm:$0xff] %v317
                %v319 = vld [vmem:[%s167 + $0x498] sm:$0xff]
                %320 = vst [vmem:[%s168 + $0x258] sm:$0xff] %v319
                %v321 = vld [vmem:[%s167 + $0x4c0] sm:$0xff]
                %322 = vst [vmem:[%s168 + $0x260] sm:$0xff] %v321
                %v323 = vld [vmem:[%s167 + $0x4c8] sm:$0xff]
                %324 = vst [vmem:[%s168 + $0x268] sm:$0xff] %v323
                %v325 = vld [vmem:[%s167 + $0x4d0] sm:$0xff]
                %326 = vst [vmem:[%s168 + $0x270] sm:$0xff] %v325
                %v327 = vld [vmem:[%s167 + $0x4d8] sm:$0xff]
                %328 = vst [vmem:[%s168 + $0x278] sm:$0xff] %v327
                %v329 = vld [vmem:[%s167 + $0x500] sm:$0xff]
                %330 = vst [vmem:[%s168 + $0x280] sm:$0xff] %v329
                %v331 = vld [vmem:[%s167 + $0x508] sm:$0xff]
                %332 = vst [vmem:[%s168 + $0x288] sm:$0xff] %v331
                %v333 = vld [vmem:[%s167 + $0x510] sm:$0xff]
                %334 = vst [vmem:[%s168 + $0x290] sm:$0xff] %v333
                %v335 = vld [vmem:[%s167 + $0x518] sm:$0xff]
                %336 = vst [vmem:[%s168 + $0x298] sm:$0xff] %v335
                %v337 = vld [vmem:[%s167 + $0x540] sm:$0xff]
                %338 = vst [vmem:[%s168 + $0x2a0] sm:$0xff] %v337
                %v339 = vld [vmem:[%s167 + $0x548] sm:$0xff]
                %340 = vst [vmem:[%s168 + $0x2a8] sm:$0xff] %v339
                %v341 = vld [vmem:[%s167 + $0x550] sm:$0xff]
                %342 = vst [vmem:[%s168 + $0x2b0] sm:$0xff] %v341
                %v343 = vld [vmem:[%s167 + $0x558] sm:$0xff]
                %344 = vst [vmem:[%s168 + $0x2b8] sm:$0xff] %v343
              $region37: #{_policy_act_impl.5} parent=31 // loop_footer
                %s166 = sadd.s32 1, %s162
              $region38: #{_policy_act_impl.5} parent=31 // loop_footer_branch
                %161 = sbr.rel target = $region34
              $region39: #{_policy_act_impl.5} parent=31 // loop_exit
                _
            $region32: #{_policy_act_impl.5} parent=27 // pred_fallthru
              _
            // Predicated region
            $region40: #{_policy_act_impl.5} parent=27 // pred_check
              _
            $region41: #{_policy_act_impl.5} parent=27 // pred_check_branch
              %346 = sbr.rel target = $region43
            $region42: #{_policy_act_impl.5} parent=27 // pred_region
              _
            $region43: #{_policy_act_impl.5} parent=27 // pred_fallthru
              _
          $region28: #{_policy_act_impl.5} parent=23 // pred_fallthru
            _
          %347 = vnop
        $region24: #{_policy_act_impl.5} parent=19 // pred_fallthru
          _
        // Predicated region
        $region44: #{_policy_act_impl.5} parent=19 // pred_check
          %p348 = pneg %p69
        $region45: #{_policy_act_impl.5} parent=19 // pred_check_branch
          %350 = sbr.rel (%p348) target = $region47
        $region46: #{_policy_act_impl.5} parent=19 // pred_region
          %s351 = smul.u32 128, %s17
          %p352 = scmp.lt.s32.totalorder %s351, 255
          %s353 = scalar_select %p352, %s351, 255
          %s354 = smul.addr %s353, 2
          %s355 = smul.addr %s354, 4
          %s356 = scalar_lea.vmem %s1, %s355
          %s357 = smul.u32 128, %s17
        $region47: #{_policy_act_impl.5} parent=19 // pred_fallthru
          _
      $region20: #{_policy_act_impl.5} parent=5 // pred_fallthru
        _
      %p358 = scmp.le.s32.totalorder 1, %s9
      %p359 = scmp.lt.s32.totalorder %s9, 3
      %p360 = pnand %p358, %p359
      %p361 = pneg %p360
      // Predicated region
      $region48: #{_policy_act_impl.5} parent=5 // pred_check
        _
      $region49: #{_policy_act_impl.5} parent=5 // pred_check_branch
        %363 = sbr.rel (%p360) target = $region51
      $region50: #{_policy_act_impl.5} parent=5 // pred_region
        %s364 = ssub.s32 %s9, 1
        %s365 = sand.u32 %s36, 1
        %s366 = sand.u32 %s36, 1
        %s367 = smul.addr %s366, 704
        %s368 = scalar_lea.vmem [#allocation3], %s367
        // Predicated region
        $region52: #{_policy_act_impl.5} parent=50 // pred_check
          %p369 = pneg %p49
        $region53: #{_policy_act_impl.5} parent=50 // pred_check_branch
          %371 = sbr.rel (%p369) target = $region55
        $region54: #{_policy_act_impl.5} parent=50 // pred_region
          _
        $region55: #{_policy_act_impl.5} parent=50 // pred_fallthru
          _
        %s372 = sand.u32 %s36, 1
        %s373 = sand.u32 %s36, 1
        %s374 = smul.addr %s373, 704
        %s375 = scalar_lea.vmem [#allocation3], %s374
        %p376 = pneg %p49
        %p377 = pneg %p46
        %s378 = smul.u32 128, %s19
        %p379 = scmp.lt.s32.totalorder %s378, 255
        %s380 = scalar_select %p379, %s378, 255
        %s381 = smul.addr %s380, 2
        %s382 = smul.addr %s381, 4
        %s383 = scalar_lea.vmem %s1, %s382
        %p384 = pneg %p75
        %p385 = pneg %p72
        %p386 = pneg %p96
        %p387 = pneg %p93
        %p388 = pneg %p122
        %p389 = pneg %p119
        %s390 = smul.u32 22, %s18
        %p391 = scmp.lt.s32.totalorder %s390, 21
        %s392 = scalar_select %p391, %s390, 21
        %s393 = smul.addr %s392, 2
        %s394 = smul.addr %s393, 4
        %s395 = scalar_lea.vmem %s3, %s394
        %s396 = smul.u32 22, %s18
        %s397 = smul.u32 8, %s19
        %s398 = smul.u32 128, %s19
        %p399 = scmp.lt.s32.totalorder %s398, 255
        %s400 = scalar_select %p399, %s398, 255
        %s401 = smul.addr %s400, 2
        %s402 = smul.addr %s401, 4
        %s403 = scalar_lea.vmem %s1, %s402
        %s404 = smul.u32 128, %s19
        %s405 = smul.u32 22, %s18
        %p406 = scmp.lt.s32.totalorder %s405, 21
        %s407 = scalar_select %p406, %s405, 21
        %s408 = smul.addr %s407, 2
        %s409 = smul.addr %s408, 4
        %s410 = scalar_lea.vmem %s3, %s409
        %s411 = smul.u32 22, %s18
        %v412 = vld [vmem:[%s368] sm:$0xff]
        %v413 = vld [vmem:[%s368 + $0x8] sm:$0xff]
        %v414 = vld [vmem:[%s368 + $0x10] sm:$0xff]
        %v415 = vld [vmem:[%s368 + $0x18] sm:$0xff]
        %v416 = vld [vmem:[%s368 + $0x20] sm:$0xff]
        %v417 = vld [vmem:[%s368 + $0x28] sm:$0xff]
        %v418 = vld [vmem:[%s368 + $0x30] sm:$0xff]
        %v419 = vld [vmem:[%s368 + $0x38] sm:$0xff]
        %v420 = vld [vmem:[%s368 + $0x40] sm:$0xff]
        %v421 = vld [vmem:[%s368 + $0x48] sm:$0xff]
        %v422 = vld [vmem:[%s368 + $0x50] sm:$0xff]
        %v423 = vld [vmem:[%s368 + $0x58] sm:$0xff]
        %v424 = vld [vmem:[%s368 + $0x60] sm:$0xff]
        %v425 = vld [vmem:[%s368 + $0x68] sm:$0xff]
        %v426 = vld [vmem:[%s368 + $0x70] sm:$0xff]
        %v427 = vld [vmem:[%s368 + $0x78] sm:$0xff]
        %v428 = vld [vmem:[%s368 + $0x80] sm:$0xff]
        %v429 = vld [vmem:[%s368 + $0x88] sm:$0xff]
        %v430 = vld [vmem:[%s368 + $0x90] sm:$0xff]
        %v431 = vld [vmem:[%s368 + $0x98] sm:$0xff]
        %v432 = vld [vmem:[%s368 + $0xa0] sm:$0xff]
        %v433 = vld [vmem:[%s368 + $0xa8] sm:$0xff]
        %v434 = vld [vmem:[%s368 + $0xb0] sm:$0xff]
        %v435 = vld [vmem:[%s368 + $0xb8] sm:$0xff]
        %v436 = vld [vmem:[%s368 + $0xc0] sm:$0xff]
        %v437 = vld [vmem:[%s368 + $0xc8] sm:$0xff]
        %v438 = vld [vmem:[%s368 + $0xd0] sm:$0xff]
        %v439 = vld [vmem:[%s368 + $0xd8] sm:$0xff]
        %v440 = vld [vmem:[%s368 + $0xe0] sm:$0xff]
        %v441 = vld [vmem:[%s368 + $0xe8] sm:$0xff]
        %v442 = vld [vmem:[%s368 + $0xf0] sm:$0xff]
        %v443 = vld [vmem:[%s368 + $0xf8] sm:$0xff]
        %v444 = vld [vmem:[%s368 + $0x100] sm:$0xff]
        %v445 = vld [vmem:[%s368 + $0x108] sm:$0xff]
        %v446 = vld [vmem:[%s368 + $0x110] sm:$0xff]
        %v447 = vld [vmem:[%s368 + $0x118] sm:$0xff]
        %v448 = vld [vmem:[%s368 + $0x120] sm:$0xff]
        %v449 = vld [vmem:[%s368 + $0x128] sm:$0xff]
        %v450 = vld [vmem:[%s368 + $0x130] sm:$0xff]
        %v451 = vld [vmem:[%s368 + $0x138] sm:$0xff]
        %v452 = vld [vmem:[%s368 + $0x140] sm:$0xff]
        %v453 = vld [vmem:[%s368 + $0x148] sm:$0xff]
        %v454 = vld [vmem:[%s368 + $0x150] sm:$0xff]
        %v455 = vld [vmem:[%s368 + $0x158] sm:$0xff]
        %v456 = vld [vmem:[%s368 + $0x160] sm:$0xff]
        %v457 = vld [vmem:[%s368 + $0x168] sm:$0xff]
        %v458 = vld [vmem:[%s368 + $0x170] sm:$0xff]
        %v459 = vld [vmem:[%s368 + $0x178] sm:$0xff]
        %v460 = vld [vmem:[%s368 + $0x180] sm:$0xff]
        %v461 = vld [vmem:[%s368 + $0x188] sm:$0xff]
        %v462 = vld [vmem:[%s368 + $0x190] sm:$0xff]
        %v463 = vld [vmem:[%s368 + $0x198] sm:$0xff]
        %v464 = vld [vmem:[%s368 + $0x1a0] sm:$0xff]
        %v465 = vld [vmem:[%s368 + $0x1a8] sm:$0xff]
        %v466 = vld [vmem:[%s368 + $0x1b0] sm:$0xff]
        %v467 = vld [vmem:[%s368 + $0x1b8] sm:$0xff]
        %v468 = vld [vmem:[%s368 + $0x1c0] sm:$0xff]
        %v469 = vld [vmem:[%s368 + $0x1c8] sm:$0xff]
        %v470 = vld [vmem:[%s368 + $0x1d0] sm:$0xff]
        %v471 = vld [vmem:[%s368 + $0x1d8] sm:$0xff]
        %v472 = vld [vmem:[%s368 + $0x1e0] sm:$0xff]
        %v473 = vld [vmem:[%s368 + $0x1e8] sm:$0xff]
        %v474 = vld [vmem:[%s368 + $0x1f0] sm:$0xff]
        %v475 = vld [vmem:[%s368 + $0x1f8] sm:$0xff]
        %v476 = vld [vmem:[%s368 + $0x200] sm:$0xff]
        %v477 = vld [vmem:[%s368 + $0x208] sm:$0xff]
        %v478 = vld [vmem:[%s368 + $0x210] sm:$0xff]
        %v479 = vld [vmem:[%s368 + $0x218] sm:$0xff]
        %v480 = vld [vmem:[%s368 + $0x220] sm:$0xff]
        %v481 = vld [vmem:[%s368 + $0x228] sm:$0xff]
        %v482 = vld [vmem:[%s368 + $0x230] sm:$0xff]
        %v483 = vld [vmem:[%s368 + $0x238] sm:$0xff]
        %v484 = vld [vmem:[%s368 + $0x240] sm:$0xff]
        %v485 = vld [vmem:[%s368 + $0x248] sm:$0xff]
        %v486 = vld [vmem:[%s368 + $0x250] sm:$0xff]
        %v487 = vld [vmem:[%s368 + $0x258] sm:$0xff]
        %v488 = vld [vmem:[%s368 + $0x260] sm:$0xff]
        %v489 = vld [vmem:[%s368 + $0x268] sm:$0xff]
        %v490 = vld [vmem:[%s368 + $0x270] sm:$0xff]
        %v491 = vld [vmem:[%s368 + $0x278] sm:$0xff]
        %v492 = vld [vmem:[%s368 + $0x280] sm:$0xff]
        %v493 = vld [vmem:[%s368 + $0x288] sm:$0xff]
        %v494 = vld [vmem:[%s368 + $0x290] sm:$0xff]
        %v495 = vld [vmem:[%s368 + $0x298] sm:$0xff]
        %v496 = vld [vmem:[%s368 + $0x2a0] sm:$0xff]
        %v497 = vld [vmem:[%s368 + $0x2a8] sm:$0xff]
        %v498 = vld [vmem:[%s368 + $0x2b0] sm:$0xff]
        %v499 = vld [vmem:[%s368 + $0x2b8] sm:$0xff]
        %v500 = vld [vmem:[%s403] sm:$0xff]
        %v501 = vld [vmem:[%s403 + $0x8] sm:$0xff]
        %v502 = vld [vmem:[%s403 + $0x10] sm:$0xff]
        %v503 = vld [vmem:[%s403 + $0x18] sm:$0xff]
        %v504 = vld [vmem:[%s403 + $0x20] sm:$0xff]
        %v505 = vld [vmem:[%s403 + $0x28] sm:$0xff]
        %v506 = vld [vmem:[%s403 + $0x30] sm:$0xff]
        %v507 = vld [vmem:[%s403 + $0x38] sm:$0xff]
        %v508 = vld [vmem:[%s403 + $0x40] sm:$0xff]
        %v509 = vld [vmem:[%s403 + $0x48] sm:$0xff]
        %v510 = vld [vmem:[%s403 + $0x50] sm:$0xff]
        %v511 = vld [vmem:[%s403 + $0x58] sm:$0xff]
        %v512 = vld [vmem:[%s403 + $0x60] sm:$0xff]
        %v513 = vld [vmem:[%s403 + $0x68] sm:$0xff]
        %v514 = vld [vmem:[%s403 + $0x70] sm:$0xff]
        %v515 = vld [vmem:[%s403 + $0x78] sm:$0xff]
        %v516 = vld [vmem:[%s403 + $0x80] sm:$0xff]
        %v517 = vld [vmem:[%s403 + $0x88] sm:$0xff]
        %v518 = vld [vmem:[%s403 + $0x90] sm:$0xff]
        %v519 = vld [vmem:[%s403 + $0x98] sm:$0xff]
        %v520 = vld [vmem:[%s403 + $0xa0] sm:$0xff]
        %v521 = vld [vmem:[%s403 + $0xa8] sm:$0xff]
        %v522 = vld [vmem:[%s403 + $0xb0] sm:$0xff]
        %v523 = vld [vmem:[%s403 + $0xb8] sm:$0xff]
        %v524 = vld [vmem:[%s403 + $0xc0] sm:$0xff]
        %v525 = vld [vmem:[%s403 + $0xc8] sm:$0xff]
        %v526 = vld [vmem:[%s403 + $0xd0] sm:$0xff]
        %v527 = vld [vmem:[%s403 + $0xd8] sm:$0xff]
        %v528 = vld [vmem:[%s403 + $0xe0] sm:$0xff]
        %v529 = vld [vmem:[%s403 + $0xe8] sm:$0xff]
        %v530 = vld [vmem:[%s403 + $0xf0] sm:$0xff]
        %v531 = vld [vmem:[%s403 + $0xf8] sm:$0xff]
        %v532 = vld [vmem:[%s403 + $0x100] sm:$0xff]
        %v533 = vld [vmem:[%s403 + $0x108] sm:$0xff]
        %v534 = vld [vmem:[%s403 + $0x110] sm:$0xff]
        %v535 = vld [vmem:[%s403 + $0x118] sm:$0xff]
        %v536 = vld [vmem:[%s403 + $0x120] sm:$0xff]
        %v537 = vld [vmem:[%s403 + $0x128] sm:$0xff]
        %v538 = vld [vmem:[%s403 + $0x130] sm:$0xff]
        %v539 = vld [vmem:[%s403 + $0x138] sm:$0xff]
        %v540 = vld [vmem:[%s403 + $0x140] sm:$0xff]
        %v541 = vld [vmem:[%s403 + $0x148] sm:$0xff]
        %v542 = vld [vmem:[%s403 + $0x150] sm:$0xff]
        %v543 = vld [vmem:[%s403 + $0x158] sm:$0xff]
        %v544 = vld [vmem:[%s403 + $0x160] sm:$0xff]
        %v545 = vld [vmem:[%s403 + $0x168] sm:$0xff]
        %v546 = vld [vmem:[%s403 + $0x170] sm:$0xff]
        %v547 = vld [vmem:[%s403 + $0x178] sm:$0xff]
        %v548 = vld [vmem:[%s403 + $0x180] sm:$0xff]
        %v549 = vld [vmem:[%s403 + $0x188] sm:$0xff]
        %v550 = vld [vmem:[%s403 + $0x190] sm:$0xff]
        %v551 = vld [vmem:[%s403 + $0x198] sm:$0xff]
        %v552 = vld [vmem:[%s403 + $0x1a0] sm:$0xff]
        %v553 = vld [vmem:[%s403 + $0x1a8] sm:$0xff]
        %v554 = vld [vmem:[%s403 + $0x1b0] sm:$0xff]
        %v555 = vld [vmem:[%s403 + $0x1b8] sm:$0xff]
        %v556 = vld [vmem:[%s403 + $0x1c0] sm:$0xff]
        %v557 = vld [vmem:[%s403 + $0x1c8] sm:$0xff]
        %v558 = vld [vmem:[%s403 + $0x1d0] sm:$0xff]
        %v559 = vld [vmem:[%s403 + $0x1d8] sm:$0xff]
        %v560 = vld [vmem:[%s403 + $0x1e0] sm:$0xff]
        %v561 = vld [vmem:[%s403 + $0x1e8] sm:$0xff]
        %v562 = vld [vmem:[%s403 + $0x1f0] sm:$0xff]
        %v563 = vld [vmem:[%s403 + $0x1f8] sm:$0xff]
        %v564 = vld [vmem:[%s403 + $0x200] sm:$0xff]
        %v565 = vld [vmem:[%s403 + $0x208] sm:$0xff]
        %v566 = vld [vmem:[%s403 + $0x210] sm:$0xff]
        %v567 = vld [vmem:[%s403 + $0x218] sm:$0xff]
        %v568 = vld [vmem:[%s403 + $0x220] sm:$0xff]
        %v569 = vld [vmem:[%s403 + $0x228] sm:$0xff]
        %v570 = vld [vmem:[%s403 + $0x230] sm:$0xff]
        %v571 = vld [vmem:[%s403 + $0x238] sm:$0xff]
        %v572 = vld [vmem:[%s403 + $0x240] sm:$0xff]
        %v573 = vld [vmem:[%s403 + $0x248] sm:$0xff]
        %v574 = vld [vmem:[%s403 + $0x250] sm:$0xff]
        %v575 = vld [vmem:[%s403 + $0x258] sm:$0xff]
        %v576 = vld [vmem:[%s403 + $0x260] sm:$0xff]
        %v577 = vld [vmem:[%s403 + $0x268] sm:$0xff]
        %v578 = vld [vmem:[%s403 + $0x270] sm:$0xff]
        %v579 = vld [vmem:[%s403 + $0x278] sm:$0xff]
        %v580 = vld [vmem:[%s403 + $0x280] sm:$0xff]
        %v581 = vld [vmem:[%s403 + $0x288] sm:$0xff]
        %v582 = vld [vmem:[%s403 + $0x290] sm:$0xff]
        %v583 = vld [vmem:[%s403 + $0x298] sm:$0xff]
        %v584 = vld [vmem:[%s403 + $0x2a0] sm:$0xff]
        %v585 = vld [vmem:[%s403 + $0x2a8] sm:$0xff]
        %v586 = vld [vmem:[%s403 + $0x2b0] sm:$0xff]
        %v587 = vld [vmem:[%s403 + $0x2b8] sm:$0xff]
        %v588 = vld [vmem:[%s403 + $0x2c0] sm:$0xff]
        %v589 = vld [vmem:[%s403 + $0x2c8] sm:$0xff]
        %v590 = vld [vmem:[%s403 + $0x2d0] sm:$0xff]
        %v591 = vld [vmem:[%s403 + $0x2d8] sm:$0xff]
        %v592 = vld [vmem:[%s403 + $0x2e0] sm:$0xff]
        %v593 = vld [vmem:[%s403 + $0x2e8] sm:$0xff]
        %v594 = vld [vmem:[%s403 + $0x2f0] sm:$0xff]
        %v595 = vld [vmem:[%s403 + $0x2f8] sm:$0xff]
        %v596 = vld [vmem:[%s403 + $0x300] sm:$0xff]
        %v597 = vld [vmem:[%s403 + $0x308] sm:$0xff]
        %v598 = vld [vmem:[%s403 + $0x310] sm:$0xff]
        %v599 = vld [vmem:[%s403 + $0x318] sm:$0xff]
        %v600 = vld [vmem:[%s403 + $0x320] sm:$0xff]
        %v601 = vld [vmem:[%s403 + $0x328] sm:$0xff]
        %v602 = vld [vmem:[%s403 + $0x330] sm:$0xff]
        %v603 = vld [vmem:[%s403 + $0x338] sm:$0xff]
        %v604 = vld [vmem:[%s403 + $0x340] sm:$0xff]
        %v605 = vld [vmem:[%s403 + $0x348] sm:$0xff]
        %v606 = vld [vmem:[%s403 + $0x350] sm:$0xff]
        %v607 = vld [vmem:[%s403 + $0x358] sm:$0xff]
        %v608 = vld [vmem:[%s403 + $0x360] sm:$0xff]
        %v609 = vld [vmem:[%s403 + $0x368] sm:$0xff]
        %v610 = vld [vmem:[%s403 + $0x370] sm:$0xff]
        %v611 = vld [vmem:[%s403 + $0x378] sm:$0xff]
        %v612 = vld [vmem:[%s403 + $0x380] sm:$0xff]
        %v613 = vld [vmem:[%s403 + $0x388] sm:$0xff]
        %v614 = vld [vmem:[%s403 + $0x390] sm:$0xff]
        %v615 = vld [vmem:[%s403 + $0x398] sm:$0xff]
        %v616 = vld [vmem:[%s403 + $0x3a0] sm:$0xff]
        %v617 = vld [vmem:[%s403 + $0x3a8] sm:$0xff]
        %v618 = vld [vmem:[%s403 + $0x3b0] sm:$0xff]
        %v619 = vld [vmem:[%s403 + $0x3b8] sm:$0xff]
        %v620 = vld [vmem:[%s403 + $0x3c0] sm:$0xff]
        %v621 = vld [vmem:[%s403 + $0x3c8] sm:$0xff]
        %v622 = vld [vmem:[%s403 + $0x3d0] sm:$0xff]
        %v623 = vld [vmem:[%s403 + $0x3d8] sm:$0xff]
        %v624 = vld [vmem:[%s403 + $0x3e0] sm:$0xff]
        %v625 = vld [vmem:[%s403 + $0x3e8] sm:$0xff]
        %v626 = vld [vmem:[%s403 + $0x3f0] sm:$0xff]
        %v627 = vld [vmem:[%s403 + $0x3f8] sm:$0xff]
        %v716 = vunpack.c.l.b16 %v412
        %v717 = vunpack.c.h.b16 %v412
        %v718 = vunpack.c.l.b16 %v413
        %v719 = vunpack.c.h.b16 %v413
        %v720 = vunpack.c.l.b16 %v414
        %v721 = vunpack.c.h.b16 %v414
        %v722 = vunpack.c.l.b16 %v415
        %v723 = vunpack.c.h.b16 %v415
        %v724 = vunpack.c.l.b16 %v416
        %v725 = vunpack.c.h.b16 %v416
        %v726 = vunpack.c.l.b16 %v417
        %v727 = vunpack.c.h.b16 %v417
        %v728 = vunpack.c.l.b16 %v418
        %v729 = vunpack.c.h.b16 %v418
        %v730 = vunpack.c.l.b16 %v419
        %v731 = vunpack.c.h.b16 %v419
        %v732 = vunpack.c.l.b16 %v420
        %v733 = vunpack.c.h.b16 %v420
        %v734 = vunpack.c.l.b16 %v421
        %v735 = vunpack.c.h.b16 %v421
        %v736 = vunpack.c.l.b16 %v422
        %v737 = vunpack.c.h.b16 %v422
        %v738 = vunpack.c.l.b16 %v423
        %v739 = vunpack.c.h.b16 %v423
        %v740 = vunpack.c.l.b16 %v424
        %v741 = vunpack.c.h.b16 %v424
        %v742 = vunpack.c.l.b16 %v425
        %v743 = vunpack.c.h.b16 %v425
        %v744 = vunpack.c.l.b16 %v426
        %v745 = vunpack.c.h.b16 %v426
        %v746 = vunpack.c.l.b16 %v427
        %v747 = vunpack.c.h.b16 %v427
        %v748 = vunpack.c.l.b16 %v428
        %v749 = vunpack.c.h.b16 %v428
        %v750 = vunpack.c.l.b16 %v429
        %v751 = vunpack.c.h.b16 %v429
        %v752 = vunpack.c.l.b16 %v430
        %v753 = vunpack.c.h.b16 %v430
        %v754 = vunpack.c.l.b16 %v431
        %v755 = vunpack.c.h.b16 %v431
        %v756 = vunpack.c.l.b16 %v432
        %v757 = vunpack.c.h.b16 %v432
        %v758 = vunpack.c.l.b16 %v433
        %v759 = vunpack.c.h.b16 %v433
        %v760 = vunpack.c.l.b16 %v434
        %v761 = vunpack.c.h.b16 %v434
        %v762 = vunpack.c.l.b16 %v435
        %v763 = vunpack.c.h.b16 %v435
        %v764 = vunpack.c.l.b16 %v436
        %v765 = vunpack.c.h.b16 %v436
        %v766 = vunpack.c.l.b16 %v437
        %v767 = vunpack.c.h.b16 %v437
        %v768 = vunpack.c.l.b16 %v438
        %v769 = vunpack.c.h.b16 %v438
        %v770 = vunpack.c.l.b16 %v439
        %v771 = vunpack.c.h.b16 %v439
        %v772 = vunpack.c.l.b16 %v440
        %v773 = vunpack.c.h.b16 %v440
        %v774 = vunpack.c.l.b16 %v441
        %v775 = vunpack.c.h.b16 %v441
        %v776 = vunpack.c.l.b16 %v442
        %v777 = vunpack.c.h.b16 %v442
        %v778 = vunpack.c.l.b16 %v443
        %v779 = vunpack.c.h.b16 %v443
        %v780 = vunpack.c.l.b16 %v444
        %v781 = vunpack.c.h.b16 %v444
        %v782 = vunpack.c.l.b16 %v445
        %v783 = vunpack.c.h.b16 %v445
        %v784 = vunpack.c.l.b16 %v446
        %v785 = vunpack.c.h.b16 %v446
        %v786 = vunpack.c.l.b16 %v447
        %v787 = vunpack.c.h.b16 %v447
        %v788 = vunpack.c.l.b16 %v448
        %v789 = vunpack.c.h.b16 %v448
        %v790 = vunpack.c.l.b16 %v449
        %v791 = vunpack.c.h.b16 %v449
        %v792 = vunpack.c.l.b16 %v450
        %v793 = vunpack.c.h.b16 %v450
        %v794 = vunpack.c.l.b16 %v451
        %v795 = vunpack.c.h.b16 %v451
        %v796 = vunpack.c.l.b16 %v452
        %v797 = vunpack.c.h.b16 %v452
        %v798 = vunpack.c.l.b16 %v453
        %v799 = vunpack.c.h.b16 %v453
        %v800 = vunpack.c.l.b16 %v454
        %v801 = vunpack.c.h.b16 %v454
        %v802 = vunpack.c.l.b16 %v455
        %v803 = vunpack.c.h.b16 %v455
        %v804 = vunpack.c.l.b16 %v456
        %v805 = vunpack.c.h.b16 %v456
        %v806 = vunpack.c.l.b16 %v457
        %v807 = vunpack.c.h.b16 %v457
        %v808 = vunpack.c.l.b16 %v458
        %v809 = vunpack.c.h.b16 %v458
        %v810 = vunpack.c.l.b16 %v459
        %v811 = vunpack.c.h.b16 %v459
        %v812 = vunpack.c.l.b16 %v460
        %v813 = vunpack.c.h.b16 %v460
        %v814 = vunpack.c.l.b16 %v461
        %v815 = vunpack.c.h.b16 %v461
        %v816 = vunpack.c.l.b16 %v462
        %v817 = vunpack.c.h.b16 %v462
        %v818 = vunpack.c.l.b16 %v463
        %v819 = vunpack.c.h.b16 %v463
        %v820 = vunpack.c.l.b16 %v464
        %v821 = vunpack.c.h.b16 %v464
        %v822 = vunpack.c.l.b16 %v465
        %v823 = vunpack.c.h.b16 %v465
        %v824 = vunpack.c.l.b16 %v466
        %v825 = vunpack.c.h.b16 %v466
        %v826 = vunpack.c.l.b16 %v467
        %v827 = vunpack.c.h.b16 %v467
        %v828 = vunpack.c.l.b16 %v468
        %v829 = vunpack.c.h.b16 %v468
        %v830 = vunpack.c.l.b16 %v469
        %v831 = vunpack.c.h.b16 %v469
        %v832 = vunpack.c.l.b16 %v470
        %v833 = vunpack.c.h.b16 %v470
        %v834 = vunpack.c.l.b16 %v471
        %v835 = vunpack.c.h.b16 %v471
        %v836 = vunpack.c.l.b16 %v472
        %v837 = vunpack.c.h.b16 %v472
        %v838 = vunpack.c.l.b16 %v473
        %v839 = vunpack.c.h.b16 %v473
        %v840 = vunpack.c.l.b16 %v474
        %v841 = vunpack.c.h.b16 %v474
        %v842 = vunpack.c.l.b16 %v475
        %v843 = vunpack.c.h.b16 %v475
        %v844 = vunpack.c.l.b16 %v476
        %v845 = vunpack.c.h.b16 %v476
        %v846 = vunpack.c.l.b16 %v477
        %v847 = vunpack.c.h.b16 %v477
        %v848 = vunpack.c.l.b16 %v478
        %v849 = vunpack.c.h.b16 %v478
        %v850 = vunpack.c.l.b16 %v479
        %v851 = vunpack.c.h.b16 %v479
        %v852 = vunpack.c.l.b16 %v480
        %v853 = vunpack.c.h.b16 %v480
        %v854 = vunpack.c.l.b16 %v481
        %v855 = vunpack.c.h.b16 %v481
        %v856 = vunpack.c.l.b16 %v482
        %v857 = vunpack.c.h.b16 %v482
        %v858 = vunpack.c.l.b16 %v483
        %v859 = vunpack.c.h.b16 %v483
        %v860 = vunpack.c.l.b16 %v484
        %v861 = vunpack.c.h.b16 %v484
        %v862 = vunpack.c.l.b16 %v485
        %v863 = vunpack.c.h.b16 %v485
        %v864 = vunpack.c.l.b16 %v486
        %v865 = vunpack.c.h.b16 %v486
        %v866 = vunpack.c.l.b16 %v487
        %v867 = vunpack.c.h.b16 %v487
        %v868 = vunpack.c.l.b16 %v488
        %v869 = vunpack.c.h.b16 %v488
        %v870 = vunpack.c.l.b16 %v489
        %v871 = vunpack.c.h.b16 %v489
        %v872 = vunpack.c.l.b16 %v490
        %v873 = vunpack.c.h.b16 %v490
        %v874 = vunpack.c.l.b16 %v491
        %v875 = vunpack.c.h.b16 %v491
        %v876 = vunpack.c.l.b16 %v492
        %v877 = vunpack.c.h.b16 %v492
        %v878 = vunpack.c.l.b16 %v493
        %v879 = vunpack.c.h.b16 %v493
        %v880 = vunpack.c.l.b16 %v494
        %v881 = vunpack.c.h.b16 %v494
        %v882 = vunpack.c.l.b16 %v495
        %v883 = vunpack.c.h.b16 %v495
        %v884 = vunpack.c.l.b16 %v496
        %v885 = vunpack.c.h.b16 %v496
        %v886 = vunpack.c.l.b16 %v497
        %v887 = vunpack.c.h.b16 %v497
        %v888 = vunpack.c.l.b16 %v498
        %v889 = vunpack.c.h.b16 %v498
        %v890 = vunpack.c.l.b16 %v499
        %v891 = vunpack.c.h.b16 %v499
        %v892 = vpack.c.b16 %v724, %v716
        %v893 = vpack.c.b16 %v725, %v717
        %v894 = vpack.c.b16 %v726, %v718
        %v895 = vpack.c.b16 %v727, %v719
        %v896 = vpack.c.b16 %v728, %v720
        %v897 = vpack.c.b16 %v729, %v721
        %v898 = vpack.c.b16 %v730, %v722
        %v899 = vpack.c.b16 %v731, %v723
        %v900 = vpack.c.b16 %v740, %v732
        %v901 = vpack.c.b16 %v741, %v733
        %v902 = vpack.c.b16 %v742, %v734
        %v903 = vpack.c.b16 %v743, %v735
        %v904 = vpack.c.b16 %v744, %v736
        %v905 = vpack.c.b16 %v745, %v737
        %v906 = vpack.c.b16 %v746, %v738
        %v907 = vpack.c.b16 %v747, %v739
        %v908 = vpack.c.b16 %v756, %v748
        %v909 = vpack.c.b16 %v757, %v749
        %v910 = vpack.c.b16 %v758, %v750
        %v911 = vpack.c.b16 %v759, %v751
        %v912 = vpack.c.b16 %v760, %v752
        %v913 = vpack.c.b16 %v761, %v753
        %v914 = vpack.c.b16 %v762, %v754
        %v915 = vpack.c.b16 %v763, %v755
        %v916 = vpack.c.b16 %v772, %v764
        %v917 = vpack.c.b16 %v773, %v765
        %v918 = vpack.c.b16 %v774, %v766
        %v919 = vpack.c.b16 %v775, %v767
        %v920 = vpack.c.b16 %v776, %v768
        %v921 = vpack.c.b16 %v777, %v769
        %v922 = vpack.c.b16 %v778, %v770
        %v923 = vpack.c.b16 %v779, %v771
        %v924 = vpack.c.b16 %v788, %v780
        %v925 = vpack.c.b16 %v789, %v781
        %v926 = vpack.c.b16 %v790, %v782
        %v927 = vpack.c.b16 %v791, %v783
        %v928 = vpack.c.b16 %v792, %v784
        %v929 = vpack.c.b16 %v793, %v785
        %v930 = vpack.c.b16 %v794, %v786
        %v931 = vpack.c.b16 %v795, %v787
        %v932 = vpack.c.b16 %v804, %v796
        %v933 = vpack.c.b16 %v805, %v797
        %v934 = vpack.c.b16 %v806, %v798
        %v935 = vpack.c.b16 %v807, %v799
        %v936 = vpack.c.b16 %v808, %v800
        %v937 = vpack.c.b16 %v809, %v801
        %v938 = vpack.c.b16 %v810, %v802
        %v939 = vpack.c.b16 %v811, %v803
        %v940 = vpack.c.b16 %v820, %v812
        %v941 = vpack.c.b16 %v821, %v813
        %v942 = vpack.c.b16 %v822, %v814
        %v943 = vpack.c.b16 %v823, %v815
        %v944 = vpack.c.b16 %v824, %v816
        %v945 = vpack.c.b16 %v825, %v817
        %v946 = vpack.c.b16 %v826, %v818
        %v947 = vpack.c.b16 %v827, %v819
        %v948 = vpack.c.b16 %v836, %v828
        %v949 = vpack.c.b16 %v837, %v829
        %v950 = vpack.c.b16 %v838, %v830
        %v951 = vpack.c.b16 %v839, %v831
        %v952 = vpack.c.b16 %v840, %v832
        %v953 = vpack.c.b16 %v841, %v833
        %v954 = vpack.c.b16 %v842, %v834
        %v955 = vpack.c.b16 %v843, %v835
        %v956 = vpack.c.b16 %v852, %v844
        %v957 = vpack.c.b16 %v853, %v845
        %v958 = vpack.c.b16 %v854, %v846
        %v959 = vpack.c.b16 %v855, %v847
        %v960 = vpack.c.b16 %v856, %v848
        %v961 = vpack.c.b16 %v857, %v849
        %v962 = vpack.c.b16 %v858, %v850
        %v963 = vpack.c.b16 %v859, %v851
        %v964 = vpack.c.b16 %v868, %v860
        %v965 = vpack.c.b16 %v869, %v861
        %v966 = vpack.c.b16 %v870, %v862
        %v967 = vpack.c.b16 %v871, %v863
        %v968 = vpack.c.b16 %v872, %v864
        %v969 = vpack.c.b16 %v873, %v865
        %v970 = vpack.c.b16 %v874, %v866
        %v971 = vpack.c.b16 %v875, %v867
        %v972 = vpack.c.b16 %v884, %v876
        %v973 = vpack.c.b16 %v885, %v877
        %v974 = vpack.c.b16 %v886, %v878
        %v975 = vpack.c.b16 %v887, %v879
        %v976 = vpack.c.b16 %v888, %v880
        %v977 = vpack.c.b16 %v889, %v881
        %v978 = vpack.c.b16 %v890, %v882
        %v979 = vpack.c.b16 %v891, %v883
        %v1196 = vunpack.c.l.b16 %v500
        %v1197 = vunpack.c.h.b16 %v500
        %v1198 = vunpack.c.l.b16 %v501
        %v1199 = vunpack.c.h.b16 %v501
        %v1200 = vunpack.c.l.b16 %v502
        %v1201 = vunpack.c.h.b16 %v502
        %v1202 = vunpack.c.l.b16 %v503
        %v1203 = vunpack.c.h.b16 %v503
        %v1204 = vunpack.c.l.b16 %v504
        %v1205 = vunpack.c.h.b16 %v504
        %v1206 = vunpack.c.l.b16 %v505
        %v1207 = vunpack.c.h.b16 %v505
        %v1208 = vunpack.c.l.b16 %v506
        %v1209 = vunpack.c.h.b16 %v506
        %v1210 = vunpack.c.l.b16 %v507
        %v1211 = vunpack.c.h.b16 %v507
        %v1212 = vunpack.c.l.b16 %v508
        %v1213 = vunpack.c.h.b16 %v508
        %v1214 = vunpack.c.l.b16 %v509
        %v1215 = vunpack.c.h.b16 %v509
        %v1216 = vunpack.c.l.b16 %v510
        %v1217 = vunpack.c.h.b16 %v510
        %v1218 = vunpack.c.l.b16 %v511
        %v1219 = vunpack.c.h.b16 %v511
        %v1220 = vunpack.c.l.b16 %v512
        %v1221 = vunpack.c.h.b16 %v512
        %v1222 = vunpack.c.l.b16 %v513
        %v1223 = vunpack.c.h.b16 %v513
        %v1224 = vunpack.c.l.b16 %v514
        %v1225 = vunpack.c.h.b16 %v514
        %v1226 = vunpack.c.l.b16 %v515
        %v1227 = vunpack.c.h.b16 %v515
        %v1228 = vunpack.c.l.b16 %v516
        %v1229 = vunpack.c.h.b16 %v516
        %v1230 = vunpack.c.l.b16 %v517
        %v1231 = vunpack.c.h.b16 %v517
        %v1232 = vunpack.c.l.b16 %v518
        %v1233 = vunpack.c.h.b16 %v518
        %v1234 = vunpack.c.l.b16 %v519
        %v1235 = vunpack.c.h.b16 %v519
        %v1236 = vunpack.c.l.b16 %v520
        %v1237 = vunpack.c.h.b16 %v520
        %v1238 = vunpack.c.l.b16 %v521
        %v1239 = vunpack.c.h.b16 %v521
        %v1240 = vunpack.c.l.b16 %v522
        %v1241 = vunpack.c.h.b16 %v522
        %v1242 = vunpack.c.l.b16 %v523
        %v1243 = vunpack.c.h.b16 %v523
        %v1244 = vunpack.c.l.b16 %v524
        %v1245 = vunpack.c.h.b16 %v524
        %v1246 = vunpack.c.l.b16 %v525
        %v1247 = vunpack.c.h.b16 %v525
        %v1248 = vunpack.c.l.b16 %v526
        %v1249 = vunpack.c.h.b16 %v526
        %v1250 = vunpack.c.l.b16 %v527
        %v1251 = vunpack.c.h.b16 %v527
        %v1252 = vunpack.c.l.b16 %v528
        %v1253 = vunpack.c.h.b16 %v528
        %v1254 = vunpack.c.l.b16 %v529
        %v1255 = vunpack.c.h.b16 %v529
        %v1256 = vunpack.c.l.b16 %v530
        %v1257 = vunpack.c.h.b16 %v530
        %v1258 = vunpack.c.l.b16 %v531
        %v1259 = vunpack.c.h.b16 %v531
        %v1260 = vunpack.c.l.b16 %v532
        %v1261 = vunpack.c.h.b16 %v532
        %v1262 = vunpack.c.l.b16 %v533
        %v1263 = vunpack.c.h.b16 %v533
        %v1264 = vunpack.c.l.b16 %v534
        %v1265 = vunpack.c.h.b16 %v534
        %v1266 = vunpack.c.l.b16 %v535
        %v1267 = vunpack.c.h.b16 %v535
        %v1268 = vunpack.c.l.b16 %v536
        %v1269 = vunpack.c.h.b16 %v536
        %v1270 = vunpack.c.l.b16 %v537
        %v1271 = vunpack.c.h.b16 %v537
        %v1272 = vunpack.c.l.b16 %v538
        %v1273 = vunpack.c.h.b16 %v538
        %v1274 = vunpack.c.l.b16 %v539
        %v1275 = vunpack.c.h.b16 %v539
        %v1276 = vunpack.c.l.b16 %v540
        %v1277 = vunpack.c.h.b16 %v540
        %v1278 = vunpack.c.l.b16 %v541
        %v1279 = vunpack.c.h.b16 %v541
        %v1280 = vunpack.c.l.b16 %v542
        %v1281 = vunpack.c.h.b16 %v542
        %v1282 = vunpack.c.l.b16 %v543
        %v1283 = vunpack.c.h.b16 %v543
        %v1284 = vunpack.c.l.b16 %v544
        %v1285 = vunpack.c.h.b16 %v544
        %v1286 = vunpack.c.l.b16 %v545
        %v1287 = vunpack.c.h.b16 %v545
        %v1288 = vunpack.c.l.b16 %v546
        %v1289 = vunpack.c.h.b16 %v546
        %v1290 = vunpack.c.l.b16 %v547
        %v1291 = vunpack.c.h.b16 %v547
        %v1292 = vunpack.c.l.b16 %v548
        %v1293 = vunpack.c.h.b16 %v548
        %v1294 = vunpack.c.l.b16 %v549
        %v1295 = vunpack.c.h.b16 %v549
        %v1296 = vunpack.c.l.b16 %v550
        %v1297 = vunpack.c.h.b16 %v550
        %v1298 = vunpack.c.l.b16 %v551
        %v1299 = vunpack.c.h.b16 %v551
        %v1300 = vunpack.c.l.b16 %v552
        %v1301 = vunpack.c.h.b16 %v552
        %v1302 = vunpack.c.l.b16 %v553
        %v1303 = vunpack.c.h.b16 %v553
        %v1304 = vunpack.c.l.b16 %v554
        %v1305 = vunpack.c.h.b16 %v554
        %v1306 = vunpack.c.l.b16 %v555
        %v1307 = vunpack.c.h.b16 %v555
        %v1308 = vunpack.c.l.b16 %v556
        %v1309 = vunpack.c.h.b16 %v556
        %v1310 = vunpack.c.l.b16 %v557
        %v1311 = vunpack.c.h.b16 %v557
        %v1312 = vunpack.c.l.b16 %v558
        %v1313 = vunpack.c.h.b16 %v558
        %v1314 = vunpack.c.l.b16 %v559
        %v1315 = vunpack.c.h.b16 %v559
        %v1316 = vunpack.c.l.b16 %v560
        %v1317 = vunpack.c.h.b16 %v560
        %v1318 = vunpack.c.l.b16 %v561
        %v1319 = vunpack.c.h.b16 %v561
        %v1320 = vunpack.c.l.b16 %v562
        %v1321 = vunpack.c.h.b16 %v562
        %v1322 = vunpack.c.l.b16 %v563
        %v1323 = vunpack.c.h.b16 %v563
        %v1324 = vunpack.c.l.b16 %v564
        %v1325 = vunpack.c.h.b16 %v564
        %v1326 = vunpack.c.l.b16 %v565
        %v1327 = vunpack.c.h.b16 %v565
        %v1328 = vunpack.c.l.b16 %v566
        %v1329 = vunpack.c.h.b16 %v566
        %v1330 = vunpack.c.l.b16 %v567
        %v1331 = vunpack.c.h.b16 %v567
        %v1332 = vunpack.c.l.b16 %v568
        %v1333 = vunpack.c.h.b16 %v568
        %v1334 = vunpack.c.l.b16 %v569
        %v1335 = vunpack.c.h.b16 %v569
        %v1336 = vunpack.c.l.b16 %v570
        %v1337 = vunpack.c.h.b16 %v570
        %v1338 = vunpack.c.l.b16 %v571
        %v1339 = vunpack.c.h.b16 %v571
        %v1340 = vunpack.c.l.b16 %v572
        %v1341 = vunpack.c.h.b16 %v572
        %v1342 = vunpack.c.l.b16 %v573
        %v1343 = vunpack.c.h.b16 %v573
        %v1344 = vunpack.c.l.b16 %v574
        %v1345 = vunpack.c.h.b16 %v574
        %v1346 = vunpack.c.l.b16 %v575
        %v1347 = vunpack.c.h.b16 %v575
        %v1348 = vunpack.c.l.b16 %v576
        %v1349 = vunpack.c.h.b16 %v576
        %v1350 = vunpack.c.l.b16 %v577
        %v1351 = vunpack.c.h.b16 %v577
        %v1352 = vunpack.c.l.b16 %v578
        %v1353 = vunpack.c.h.b16 %v578
        %v1354 = vunpack.c.l.b16 %v579
        %v1355 = vunpack.c.h.b16 %v579
        %v1356 = vunpack.c.l.b16 %v580
        %v1357 = vunpack.c.h.b16 %v580
        %v1358 = vunpack.c.l.b16 %v581
        %v1359 = vunpack.c.h.b16 %v581
        %v1360 = vunpack.c.l.b16 %v582
        %v1361 = vunpack.c.h.b16 %v582
        %v1362 = vunpack.c.l.b16 %v583
        %v1363 = vunpack.c.h.b16 %v583
        %v1364 = vunpack.c.l.b16 %v584
        %v1365 = vunpack.c.h.b16 %v584
        %v1366 = vunpack.c.l.b16 %v585
        %v1367 = vunpack.c.h.b16 %v585
        %v1368 = vunpack.c.l.b16 %v586
        %v1369 = vunpack.c.h.b16 %v586
        %v1370 = vunpack.c.l.b16 %v587
        %v1371 = vunpack.c.h.b16 %v587
        %v1372 = vunpack.c.l.b16 %v588
        %v1373 = vunpack.c.h.b16 %v588
        %v1374 = vunpack.c.l.b16 %v589
        %v1375 = vunpack.c.h.b16 %v589
        %v1376 = vunpack.c.l.b16 %v590
        %v1377 = vunpack.c.h.b16 %v590
        %v1378 = vunpack.c.l.b16 %v591
        %v1379 = vunpack.c.h.b16 %v591
        %v1380 = vunpack.c.l.b16 %v592
        %v1381 = vunpack.c.h.b16 %v592
        %v1382 = vunpack.c.l.b16 %v593
        %v1383 = vunpack.c.h.b16 %v593
        %v1384 = vunpack.c.l.b16 %v594
        %v1385 = vunpack.c.h.b16 %v594
        %v1386 = vunpack.c.l.b16 %v595
        %v1387 = vunpack.c.h.b16 %v595
        %v1388 = vunpack.c.l.b16 %v596
        %v1389 = vunpack.c.h.b16 %v596
        %v1390 = vunpack.c.l.b16 %v597
        %v1391 = vunpack.c.h.b16 %v597
        %v1392 = vunpack.c.l.b16 %v598
        %v1393 = vunpack.c.h.b16 %v598
        %v1394 = vunpack.c.l.b16 %v599
        %v1395 = vunpack.c.h.b16 %v599
        %v1396 = vunpack.c.l.b16 %v600
        %v1397 = vunpack.c.h.b16 %v600
        %v1398 = vunpack.c.l.b16 %v601
        %v1399 = vunpack.c.h.b16 %v601
        %v1400 = vunpack.c.l.b16 %v602
        %v1401 = vunpack.c.h.b16 %v602
        %v1402 = vunpack.c.l.b16 %v603
        %v1403 = vunpack.c.h.b16 %v603
        %v1404 = vunpack.c.l.b16 %v604
        %v1405 = vunpack.c.h.b16 %v604
        %v1406 = vunpack.c.l.b16 %v605
        %v1407 = vunpack.c.h.b16 %v605
        %v1408 = vunpack.c.l.b16 %v606
        %v1409 = vunpack.c.h.b16 %v606
        %v1410 = vunpack.c.l.b16 %v607
        %v1411 = vunpack.c.h.b16 %v607
        %v1412 = vunpack.c.l.b16 %v608
        %v1413 = vunpack.c.h.b16 %v608
        %v1414 = vunpack.c.l.b16 %v609
        %v1415 = vunpack.c.h.b16 %v609
        %v1416 = vunpack.c.l.b16 %v610
        %v1417 = vunpack.c.h.b16 %v610
        %v1418 = vunpack.c.l.b16 %v611
        %v1419 = vunpack.c.h.b16 %v611
        %v1420 = vunpack.c.l.b16 %v612
        %v1421 = vunpack.c.h.b16 %v612
        %v1422 = vunpack.c.l.b16 %v613
        %v1423 = vunpack.c.h.b16 %v613
        %v1424 = vunpack.c.l.b16 %v614
        %v1425 = vunpack.c.h.b16 %v614
        %v1426 = vunpack.c.l.b16 %v615
        %v1427 = vunpack.c.h.b16 %v615
        %v1428 = vunpack.c.l.b16 %v616
        %v1429 = vunpack.c.h.b16 %v616
        %v1430 = vunpack.c.l.b16 %v617
        %v1431 = vunpack.c.h.b16 %v617
        %v1432 = vunpack.c.l.b16 %v618
        %v1433 = vunpack.c.h.b16 %v618
        %v1434 = vunpack.c.l.b16 %v619
        %v1435 = vunpack.c.h.b16 %v619
        %v1436 = vunpack.c.l.b16 %v620
        %v1437 = vunpack.c.h.b16 %v620
        %v1438 = vunpack.c.l.b16 %v621
        %v1439 = vunpack.c.h.b16 %v621
        %v1440 = vunpack.c.l.b16 %v622
        %v1441 = vunpack.c.h.b16 %v622
        %v1442 = vunpack.c.l.b16 %v623
        %v1443 = vunpack.c.h.b16 %v623
        %v1444 = vunpack.c.l.b16 %v624
        %v1445 = vunpack.c.h.b16 %v624
        %v1446 = vunpack.c.l.b16 %v625
        %v1447 = vunpack.c.h.b16 %v625
        %v1448 = vunpack.c.l.b16 %v626
        %v1449 = vunpack.c.h.b16 %v626
        %v1450 = vunpack.c.l.b16 %v627
        %v1451 = vunpack.c.h.b16 %v627
        %v1452 = vpack.c.b16 %v1198, %v1196
        %v1453 = vpack.c.b16 %v1199, %v1197
        %v1454 = vpack.c.b16 %v1202, %v1200
        %v1455 = vpack.c.b16 %v1203, %v1201
        %v1456 = vpack.c.b16 %v1206, %v1204
        %v1457 = vpack.c.b16 %v1207, %v1205
        %v1458 = vpack.c.b16 %v1210, %v1208
        %v1459 = vpack.c.b16 %v1211, %v1209
        %v1460 = vpack.c.b16 %v1214, %v1212
        %v1461 = vpack.c.b16 %v1215, %v1213
        %v1462 = vpack.c.b16 %v1218, %v1216
        %v1463 = vpack.c.b16 %v1219, %v1217
        %v1464 = vpack.c.b16 %v1222, %v1220
        %v1465 = vpack.c.b16 %v1223, %v1221
        %v1466 = vpack.c.b16 %v1226, %v1224
        %v1467 = vpack.c.b16 %v1227, %v1225
        %v1468 = vpack.c.b16 %v1230, %v1228
        %v1469 = vpack.c.b16 %v1231, %v1229
        %v1470 = vpack.c.b16 %v1234, %v1232
        %v1471 = vpack.c.b16 %v1235, %v1233
        %v1472 = vpack.c.b16 %v1238, %v1236
        %v1473 = vpack.c.b16 %v1239, %v1237
        %v1474 = vpack.c.b16 %v1242, %v1240
        %v1475 = vpack.c.b16 %v1243, %v1241
        %v1476 = vpack.c.b16 %v1246, %v1244
        %v1477 = vpack.c.b16 %v1247, %v1245
        %v1478 = vpack.c.b16 %v1250, %v1248
        %v1479 = vpack.c.b16 %v1251, %v1249
        %v1480 = vpack.c.b16 %v1254, %v1252
        %v1481 = vpack.c.b16 %v1255, %v1253
        %v1482 = vpack.c.b16 %v1258, %v1256
        %v1483 = vpack.c.b16 %v1259, %v1257
        %v1484 = vpack.c.b16 %v1262, %v1260
        %v1485 = vpack.c.b16 %v1263, %v1261
        %v1486 = vpack.c.b16 %v1266, %v1264
        %v1487 = vpack.c.b16 %v1267, %v1265
        %v1488 = vpack.c.b16 %v1270, %v1268
        %v1489 = vpack.c.b16 %v1271, %v1269
        %v1490 = vpack.c.b16 %v1274, %v1272
        %v1491 = vpack.c.b16 %v1275, %v1273
        %v1492 = vpack.c.b16 %v1278, %v1276
        %v1493 = vpack.c.b16 %v1279, %v1277
        %v1494 = vpack.c.b16 %v1282, %v1280
        %v1495 = vpack.c.b16 %v1283, %v1281
        %v1496 = vpack.c.b16 %v1286, %v1284
        %v1497 = vpack.c.b16 %v1287, %v1285
        %v1498 = vpack.c.b16 %v1290, %v1288
        %v1499 = vpack.c.b16 %v1291, %v1289
        %v1500 = vpack.c.b16 %v1294, %v1292
        %v1501 = vpack.c.b16 %v1295, %v1293
        %v1502 = vpack.c.b16 %v1298, %v1296
        %v1503 = vpack.c.b16 %v1299, %v1297
        %v1504 = vpack.c.b16 %v1302, %v1300
        %v1505 = vpack.c.b16 %v1303, %v1301
        %v1506 = vpack.c.b16 %v1306, %v1304
        %v1507 = vpack.c.b16 %v1307, %v1305
        %v1508 = vpack.c.b16 %v1310, %v1308
        %v1509 = vpack.c.b16 %v1311, %v1309
        %v1510 = vpack.c.b16 %v1314, %v1312
        %v1511 = vpack.c.b16 %v1315, %v1313
        %v1512 = vpack.c.b16 %v1318, %v1316
        %v1513 = vpack.c.b16 %v1319, %v1317
        %v1514 = vpack.c.b16 %v1322, %v1320
        %v1515 = vpack.c.b16 %v1323, %v1321
        %v1516 = vpack.c.b16 %v1326, %v1324
        %v1517 = vpack.c.b16 %v1327, %v1325
        %v1518 = vpack.c.b16 %v1330, %v1328
        %v1519 = vpack.c.b16 %v1331, %v1329
        %v1520 = vpack.c.b16 %v1334, %v1332
        %v1521 = vpack.c.b16 %v1335, %v1333
        %v1522 = vpack.c.b16 %v1338, %v1336
        %v1523 = vpack.c.b16 %v1339, %v1337
        %v1524 = vpack.c.b16 %v1342, %v1340
        %v1525 = vpack.c.b16 %v1343, %v1341
        %v1526 = vpack.c.b16 %v1346, %v1344
        %v1527 = vpack.c.b16 %v1347, %v1345
        %v1528 = vpack.c.b16 %v1350, %v1348
        %v1529 = vpack.c.b16 %v1351, %v1349
        %v1530 = vpack.c.b16 %v1354, %v1352
        %v1531 = vpack.c.b16 %v1355, %v1353
        %v1532 = vpack.c.b16 %v1358, %v1356
        %v1533 = vpack.c.b16 %v1359, %v1357
        %v1534 = vpack.c.b16 %v1362, %v1360
        %v1535 = vpack.c.b16 %v1363, %v1361
        %v1536 = vpack.c.b16 %v1366, %v1364
        %v1537 = vpack.c.b16 %v1367, %v1365
        %v1538 = vpack.c.b16 %v1370, %v1368
        %v1539 = vpack.c.b16 %v1371, %v1369
        %v1540 = vpack.c.b16 %v1374, %v1372
        %v1541 = vpack.c.b16 %v1375, %v1373
        %v1542 = vpack.c.b16 %v1378, %v1376
        %v1543 = vpack.c.b16 %v1379, %v1377
        %v1544 = vpack.c.b16 %v1382, %v1380
        %v1545 = vpack.c.b16 %v1383, %v1381
        %v1546 = vpack.c.b16 %v1386, %v1384
        %v1547 = vpack.c.b16 %v1387, %v1385
        %v1548 = vpack.c.b16 %v1390, %v1388
        %v1549 = vpack.c.b16 %v1391, %v1389
        %v1550 = vpack.c.b16 %v1394, %v1392
        %v1551 = vpack.c.b16 %v1395, %v1393
        %v1552 = vpack.c.b16 %v1398, %v1396
        %v1553 = vpack.c.b16 %v1399, %v1397
        %v1554 = vpack.c.b16 %v1402, %v1400
        %v1555 = vpack.c.b16 %v1403, %v1401
        %v1556 = vpack.c.b16 %v1406, %v1404
        %v1557 = vpack.c.b16 %v1407, %v1405
        %v1558 = vpack.c.b16 %v1410, %v1408
        %v1559 = vpack.c.b16 %v1411, %v1409
        %v1560 = vpack.c.b16 %v1414, %v1412
        %v1561 = vpack.c.b16 %v1415, %v1413
        %v1562 = vpack.c.b16 %v1418, %v1416
        %v1563 = vpack.c.b16 %v1419, %v1417
        %v1564 = vpack.c.b16 %v1422, %v1420
        %v1565 = vpack.c.b16 %v1423, %v1421
        %v1566 = vpack.c.b16 %v1426, %v1424
        %v1567 = vpack.c.b16 %v1427, %v1425
        %v1568 = vpack.c.b16 %v1430, %v1428
        %v1569 = vpack.c.b16 %v1431, %v1429
        %v1570 = vpack.c.b16 %v1434, %v1432
        %v1571 = vpack.c.b16 %v1435, %v1433
        %v1572 = vpack.c.b16 %v1438, %v1436
        %v1573 = vpack.c.b16 %v1439, %v1437
        %v1574 = vpack.c.b16 %v1442, %v1440
        %v1575 = vpack.c.b16 %v1443, %v1441
        %v1576 = vpack.c.b16 %v1446, %v1444
        %v1577 = vpack.c.b16 %v1447, %v1445
        %v1578 = vpack.c.b16 %v1450, %v1448
        %v1579 = vpack.c.b16 %v1451, %v1449
        %1708 = vmatprep.subr.bf16.mxu0 %v1453
        %1709 = vmatpush1.bf16.msra.mxu0 %v1452
        %1710 = vmatprep.subr.bf16.mxu0 %v1455
        %1711 = vmatpush1.bf16.msra.mxu0 %v1454
        %1712 = vmatprep.subr.bf16.mxu0 %v1457
        %1713 = vmatpush1.bf16.msra.mxu0 %v1456
        %1714 = vmatprep.subr.bf16.mxu0 %v1459
        %1715 = vmatpush1.bf16.msra.mxu0 %v1458
        %1716 = vmatprep.subr.bf16.mxu0 %v1461
        %1717 = vmatpush1.bf16.msra.mxu0 %v1460
        %1718 = vmatprep.subr.bf16.mxu0 %v1463
        %1719 = vmatpush1.bf16.msra.mxu0 %v1462
        %1720 = vmatprep.subr.bf16.mxu0 %v1465
        %1721 = vmatpush1.bf16.msra.mxu0 %v1464
        %1722 = vmatprep.subr.bf16.mxu0 %v1467
        %1723 = vmatpush1.bf16.msra.mxu0 %v1466
        %1724 = vmatprep.subr.bf16.mxu0 %v1469
        %1725 = vmatpush1.bf16.msra.mxu0 %v1468
        %1726 = vmatprep.subr.bf16.mxu0 %v1471
        %1727 = vmatpush1.bf16.msra.mxu0 %v1470
        %1728 = vmatprep.subr.bf16.mxu0 %v1473
        %1729 = vmatpush1.bf16.msra.mxu0 %v1472
        %1730 = vmatprep.subr.bf16.mxu0 %v1475
        %1731 = vmatpush1.bf16.msra.mxu0 %v1474
        %1732 = vmatprep.subr.bf16.mxu0 %v1477
        %1733 = vmatpush1.bf16.msra.mxu0 %v1476
        %1734 = vmatprep.subr.bf16.mxu0 %v1479
        %1735 = vmatpush1.bf16.msra.mxu0 %v1478
        %1736 = vmatprep.subr.bf16.mxu0 %v1481
        %1737 = vmatpush1.bf16.msra.mxu0 %v1480
        %1738 = vmatprep.subr.bf16.mxu0 %v1483
        %1739 = vmatpush1.bf16.msra.mxu0 %v1482
        %1740 = vmatprep.mubr.bf16.mxu0 %v893
        %1741 = vmatmul.mubr.bf16.gmra.mrb[0].mxu0 %v892
        %v1742 = vpop.f32.mrb[0].mxu0
        %v1743 = vadd.f32 0.0, %v1742
        %v1744 = vpop.f32.mrb[0].mxu0
        %v1745 = vadd.f32 0.0, %v1744
        %v1746 = vpop.f32.mrb[0].mxu0
        %v1747 = vadd.f32 0.0, %v1746
        %v1748 = vpop.f32.mrb[0].mxu0
        %v1749 = vadd.f32 0.0, %v1748
        %1750 = vmatprep.mubr.bf16.mxu0 %v901
        %1751 = vmatmul.mubr.bf16.gmra.mrb[0].mxu0 %v900
        %v1752 = vpop.f32.mrb[0].mxu0
        %v1753 = vadd.f32 0.0, %v1752
        %v1754 = vpop.f32.mrb[0].mxu0
        %v1755 = vadd.f32 0.0, %v1754
        %v1756 = vpop.f32.mrb[0].mxu0
        %v1757 = vadd.f32 0.0, %v1756
        %v1758 = vpop.f32.mrb[0].mxu0
        %v1759 = vadd.f32 0.0, %v1758
        %1760 = vmatprep.mubr.bf16.mxu0 %v909
        %1761 = vmatmul.mubr.bf16.gmra.mrb[0].mxu0 %v908
        %v1762 = vpop.f32.mrb[0].mxu0
        %v1763 = vadd.f32 0.0, %v1762
        %v1764 = vpop.f32.mrb[0].mxu0
        %v1765 = vadd.f32 0.0, %v1764
        %v1766 = vpop.f32.mrb[0].mxu0
        %v1767 = vadd.f32 0.0, %v1766
        %v1768 = vpop.f32.mrb[0].mxu0
        %v1769 = vadd.f32 0.0, %v1768
        %1770 = vmatprep.mubr.bf16.mxu0 %v917
        %1771 = vmatmul.mubr.bf16.gmra.mrb[0].mxu0 %v916
        %v1772 = vpop.f32.mrb[0].mxu0
        %v1773 = vadd.f32 0.0, %v1772
        %v1774 = vpop.f32.mrb[0].mxu0
        %v1775 = vadd.f32 0.0, %v1774
        %v1776 = vpop.f32.mrb[0].mxu0
        %v1777 = vadd.f32 0.0, %v1776
        %v1778 = vpop.f32.mrb[0].mxu0
        %v1779 = vadd.f32 0.0, %v1778
        %1780 = vmatprep.mubr.bf16.mxu0 %v925
        %1781 = vmatmul.mubr.bf16.gmra.mrb[0].mxu0 %v924
        %v1782 = vpop.f32.mrb[0].mxu0
        %v1783 = vadd.f32 0.0, %v1782
        %v1784 = vpop.f32.mrb[0].mxu0
        %v1785 = vadd.f32 0.0, %v1784
        %v1786 = vpop.f32.mrb[0].mxu0
        %v1787 = vadd.f32 0.0, %v1786
        %v1788 = vpop.f32.mrb[0].mxu0
        %v1789 = vadd.f32 0.0, %v1788
        %1790 = vmatprep.mubr.bf16.mxu0 %v933
        %1791 = vmatmul.mubr.bf16.gmra.mrb[0].mxu0 %v932
        %v1792 = vpop.f32.mrb[0].mxu0
        %v1793 = vadd.f32 0.0, %v1792
        %v1794 = vpop.f32.mrb[0].mxu0
        %v1795 = vadd.f32 0.0, %v1794
        %v1796 = vpop.f32.mrb[0].mxu0
        %v1797 = vadd.f32 0.0, %v1796
        %v1798 = vpop.f32.mrb[0].mxu0
        %v1799 = vadd.f32 0.0, %v1798
        %1800 = vmatprep.mubr.bf16.mxu0 %v941
        %1801 = vmatmul.mubr.bf16.gmra.mrb[0].mxu0 %v940
        %v1802 = vpop.f32.mrb[0].mxu0
        %v1803 = vadd.f32 0.0, %v1802
        %v1804 = vpop.f32.mrb[0].mxu0
        %v1805 = vadd.f32 0.0, %v1804
        %v1806 = vpop.f32.mrb[0].mxu0
        %v1807 = vadd.f32 0.0, %v1806
        %v1808 = vpop.f32.mrb[0].mxu0
        %v1809 = vadd.f32 0.0, %v1808
        %1810 = vmatprep.mubr.bf16.mxu0 %v949
        %1811 = vmatmul.mubr.bf16.gmra.mrb[0].mxu0 %v948
        %v1812 = vpop.f32.mrb[0].mxu0
        %v1813 = vadd.f32 0.0, %v1812
        %v1814 = vpop.f32.mrb[0].mxu0
        %v1815 = vadd.f32 0.0, %v1814
        %v1816 = vpop.f32.mrb[0].mxu0
        %v1817 = vadd.f32 0.0, %v1816
        %v1818 = vpop.f32.mrb[0].mxu0
        %v1819 = vadd.f32 0.0, %v1818
        %1820 = vmatprep.mubr.bf16.mxu0 %v957
        %1821 = vmatmul.mubr.bf16.gmra.mrb[0].mxu0 %v956
        %v1822 = vpop.f32.mrb[0].mxu0
        %v1823 = vadd.f32 0.0, %v1822
        %v1824 = vpop.f32.mrb[0].mxu0
        %v1825 = vadd.f32 0.0, %v1824
        %v1826 = vpop.f32.mrb[0].mxu0
        %v1827 = vadd.f32 0.0, %v1826
        %v1828 = vpop.f32.mrb[0].mxu0
        %v1829 = vadd.f32 0.0, %v1828
        %1830 = vmatprep.mubr.bf16.mxu0 %v965
        %1831 = vmatmul.mubr.bf16.gmra.mrb[0].mxu0 %v964
        %v1832 = vpop.f32.mrb[0].mxu0
        %v1833 = vadd.f32 0.0, %v1832
        %v1834 = vpop.f32.mrb[0].mxu0
        %v1835 = vadd.f32 0.0, %v1834
        %v1836 = vpop.f32.mrb[0].mxu0
        %v1837 = vadd.f32 0.0, %v1836
        %v1838 = vpop.f32.mrb[0].mxu0
        %v1839 = vadd.f32 0.0, %v1838
        %1840 = vmatprep.mubr.bf16.mxu0 %v973
        %1841 = vmatmul.mubr.bf16.gmra.mrb[0].mxu0 %v972
        %v1842 = vpop.f32.mrb[0].mxu0
        %v1843 = vadd.f32 0.0, %v1842
        %v1844 = vpop.f32.mrb[0].mxu0
        %v1845 = vadd.f32 0.0, %v1844
        %v1846 = vpop.f32.mrb[0].mxu0
        %v1847 = vadd.f32 0.0, %v1846
        %v1848 = vpop.f32.mrb[0].mxu0
        %v1849 = vadd.f32 0.0, %v1848
        %1850 = vdwg.mxu0
        %1851 = vmatprep.subr.bf16.mxu0 %v1485
        %1852 = vmatpush1.bf16.msra.mxu0 %v1484
        %1853 = vmatprep.subr.bf16.mxu0 %v1487
        %1854 = vmatpush1.bf16.msra.mxu0 %v1486
        %1855 = vmatprep.subr.bf16.mxu0 %v1489
        %1856 = vmatpush1.bf16.msra.mxu0 %v1488
        %1857 = vmatprep.subr.bf16.mxu0 %v1491
        %1858 = vmatpush1.bf16.msra.mxu0 %v1490
        %1859 = vmatprep.subr.bf16.mxu0 %v1493
        %1860 = vmatpush1.bf16.msra.mxu0 %v1492
        %1861 = vmatprep.subr.bf16.mxu0 %v1495
        %1862 = vmatpush1.bf16.msra.mxu0 %v1494
        %1863 = vmatprep.subr.bf16.mxu0 %v1497
        %1864 = vmatpush1.bf16.msra.mxu0 %v1496
        %1865 = vmatprep.subr.bf16.mxu0 %v1499
        %1866 = vmatpush1.bf16.msra.mxu0 %v1498
        %1867 = vmatprep.subr.bf16.mxu0 %v1501
        %1868 = vmatpush1.bf16.msra.mxu0 %v1500
        %1869 = vmatprep.subr.bf16.mxu0 %v1503
        %1870 = vmatpush1.bf16.msra.mxu0 %v1502
        %1871 = vmatprep.subr.bf16.mxu0 %v1505
        %1872 = vmatpush1.bf16.msra.mxu0 %v1504
        %1873 = vmatprep.subr.bf16.mxu0 %v1507
        %1874 = vmatpush1.bf16.msra.mxu0 %v1506
        %1875 = vmatprep.subr.bf16.mxu0 %v1509
        %1876 = vmatpush1.bf16.msra.mxu0 %v1508
        %1877 = vmatprep.subr.bf16.mxu0 %v1511
        %1878 = vmatpush1.bf16.msra.mxu0 %v1510
        %1879 = vmatprep.subr.bf16.mxu0 %v1513
        %1880 = vmatpush1.bf16.msra.mxu0 %v1512
        %1881 = vmatprep.subr.bf16.mxu0 %v1515
        %1882 = vmatpush1.bf16.msra.mxu0 %v1514
        %1883 = vmatprep.mubr.bf16.mxu0 %v895
        %1884 = vmatmul.mubr.bf16.gmra.mrb[0].mxu0 %v894
        %v1885 = vpop.f32.mrb[0].mxu0
        %v1886 = vadd.f32 %v1743, %v1885
        %v1887 = vpop.f32.mrb[0].mxu0
        %v1888 = vadd.f32 %v1745, %v1887
        %v1889 = vpop.f32.mrb[0].mxu0
        %v1890 = vadd.f32 %v1747, %v1889
        %v1891 = vpop.f32.mrb[0].mxu0
        %v1892 = vadd.f32 %v1749, %v1891
        %1893 = vmatprep.mubr.bf16.mxu0 %v903
        %1894 = vmatmul.mubr.bf16.gmra.mrb[0].mxu0 %v902
        %v1895 = vpop.f32.mrb[0].mxu0
        %v1896 = vadd.f32 %v1753, %v1895
        %v1897 = vpop.f32.mrb[0].mxu0
        %v1898 = vadd.f32 %v1755, %v1897
        %v1899 = vpop.f32.mrb[0].mxu0
        %v1900 = vadd.f32 %v1757, %v1899
        %v1901 = vpop.f32.mrb[0].mxu0
        %v1902 = vadd.f32 %v1759, %v1901
        %1903 = vmatprep.mubr.bf16.mxu0 %v911
        %1904 = vmatmul.mubr.bf16.gmra.mrb[0].mxu0 %v910
        %v1905 = vpop.f32.mrb[0].mxu0
        %v1906 = vadd.f32 %v1763, %v1905
        %v1907 = vpop.f32.mrb[0].mxu0
        %v1908 = vadd.f32 %v1765, %v1907
        %v1909 = vpop.f32.mrb[0].mxu0
        %v1910 = vadd.f32 %v1767, %v1909
        %v1911 = vpop.f32.mrb[0].mxu0
        %v1912 = vadd.f32 %v1769, %v1911
        %1913 = vmatprep.mubr.bf16.mxu0 %v919
        %1914 = vmatmul.mubr.bf16.gmra.mrb[0].mxu0 %v918
        %v1915 = vpop.f32.mrb[0].mxu0
        %v1916 = vadd.f32 %v1773, %v1915
        %v1917 = vpop.f32.mrb[0].mxu0
        %v1918 = vadd.f32 %v1775, %v1917
        %v1919 = vpop.f32.mrb[0].mxu0
        %v1920 = vadd.f32 %v1777, %v1919
        %v1921 = vpop.f32.mrb[0].mxu0
        %v1922 = vadd.f32 %v1779, %v1921
        %1923 = vmatprep.mubr.bf16.mxu0 %v927
        %1924 = vmatmul.mubr.bf16.gmra.mrb[0].mxu0 %v926
        %v1925 = vpop.f32.mrb[0].mxu0
        %v1926 = vadd.f32 %v1783, %v1925
        %v1927 = vpop.f32.mrb[0].mxu0
        %v1928 = vadd.f32 %v1785, %v1927
        %v1929 = vpop.f32.mrb[0].mxu0
        %v1930 = vadd.f32 %v1787, %v1929
        %v1931 = vpop.f32.mrb[0].mxu0
        %v1932 = vadd.f32 %v1789, %v1931
        %1933 = vmatprep.mubr.bf16.mxu0 %v935
        %1934 = vmatmul.mubr.bf16.gmra.mrb[0].mxu0 %v934
        %v1935 = vpop.f32.mrb[0].mxu0
        %v1936 = vadd.f32 %v1793, %v1935
        %v1937 = vpop.f32.mrb[0].mxu0
        %v1938 = vadd.f32 %v1795, %v1937
        %v1939 = vpop.f32.mrb[0].mxu0
        %v1940 = vadd.f32 %v1797, %v1939
        %v1941 = vpop.f32.mrb[0].mxu0
        %v1942 = vadd.f32 %v1799, %v1941
        %1943 = vmatprep.mubr.bf16.mxu0 %v943
        %1944 = vmatmul.mubr.bf16.gmra.mrb[0].mxu0 %v942
        %v1945 = vpop.f32.mrb[0].mxu0
        %v1946 = vadd.f32 %v1803, %v1945
        %v1947 = vpop.f32.mrb[0].mxu0
        %v1948 = vadd.f32 %v1805, %v1947
        %v1949 = vpop.f32.mrb[0].mxu0
        %v1950 = vadd.f32 %v1807, %v1949
        %v1951 = vpop.f32.mrb[0].mxu0
        %v1952 = vadd.f32 %v1809, %v1951
        %1953 = vmatprep.mubr.bf16.mxu0 %v951
        %1954 = vmatmul.mubr.bf16.gmra.mrb[0].mxu0 %v950
        %v1955 = vpop.f32.mrb[0].mxu0
        %v1956 = vadd.f32 %v1813, %v1955
        %v1957 = vpop.f32.mrb[0].mxu0
        %v1958 = vadd.f32 %v1815, %v1957
        %v1959 = vpop.f32.mrb[0].mxu0
        %v1960 = vadd.f32 %v1817, %v1959
        %v1961 = vpop.f32.mrb[0].mxu0
        %v1962 = vadd.f32 %v1819, %v1961
        %1963 = vmatprep.mubr.bf16.mxu0 %v959
        %1964 = vmatmul.mubr.bf16.gmra.mrb[0].mxu0 %v958
        %v1965 = vpop.f32.mrb[0].mxu0
        %v1966 = vadd.f32 %v1823, %v1965
        %v1967 = vpop.f32.mrb[0].mxu0
        %v1968 = vadd.f32 %v1825, %v1967
        %v1969 = vpop.f32.mrb[0].mxu0
        %v1970 = vadd.f32 %v1827, %v1969
        %v1971 = vpop.f32.mrb[0].mxu0
        %v1972 = vadd.f32 %v1829, %v1971
        %1973 = vmatprep.mubr.bf16.mxu0 %v967
        %1974 = vmatmul.mubr.bf16.gmra.mrb[0].mxu0 %v966
        %v1975 = vpop.f32.mrb[0].mxu0
        %v1976 = vadd.f32 %v1833, %v1975
        %v1977 = vpop.f32.mrb[0].mxu0
        %v1978 = vadd.f32 %v1835, %v1977
        %v1979 = vpop.f32.mrb[0].mxu0
        %v1980 = vadd.f32 %v1837, %v1979
        %v1981 = vpop.f32.mrb[0].mxu0
        %v1982 = vadd.f32 %v1839, %v1981
        %1983 = vmatprep.mubr.bf16.mxu0 %v975
        %1984 = vmatmul.mubr.bf16.gmra.mrb[0].mxu0 %v974
        %v1985 = vpop.f32.mrb[0].mxu0
        %v1986 = vadd.f32 %v1843, %v1985
        %v1987 = vpop.f32.mrb[0].mxu0
        %v1988 = vadd.f32 %v1845, %v1987
        %v1989 = vpop.f32.mrb[0].mxu0
        %v1990 = vadd.f32 %v1847, %v1989
        %v1991 = vpop.f32.mrb[0].mxu0
        %v1992 = vadd.f32 %v1849, %v1991
        %1993 = vdwg.mxu0
        %1994 = vmatprep.subr.bf16.mxu0 %v1517
        %1995 = vmatpush1.bf16.msra.mxu0 %v1516
        %1996 = vmatprep.subr.bf16.mxu0 %v1519
        %1997 = vmatpush1.bf16.msra.mxu0 %v1518
        %1998 = vmatprep.subr.bf16.mxu0 %v1521
        %1999 = vmatpush1.bf16.msra.mxu0 %v1520
        %2000 = vmatprep.subr.bf16.mxu0 %v1523
        %2001 = vmatpush1.bf16.msra.mxu0 %v1522
        %2002 = vmatprep.subr.bf16.mxu0 %v1525
        %2003 = vmatpush1.bf16.msra.mxu0 %v1524
        %2004 = vmatprep.subr.bf16.mxu0 %v1527
        %2005 = vmatpush1.bf16.msra.mxu0 %v1526
        %2006 = vmatprep.subr.bf16.mxu0 %v1529
        %2007 = vmatpush1.bf16.msra.mxu0 %v1528
        %2008 = vmatprep.subr.bf16.mxu0 %v1531
        %2009 = vmatpush1.bf16.msra.mxu0 %v1530
        %2010 = vmatprep.subr.bf16.mxu0 %v1533
        %2011 = vmatpush1.bf16.msra.mxu0 %v1532
        %2012 = vmatprep.subr.bf16.mxu0 %v1535
        %2013 = vmatpush1.bf16.msra.mxu0 %v1534
        %2014 = vmatprep.subr.bf16.mxu0 %v1537
        %2015 = vmatpush1.bf16.msra.mxu0 %v1536
        %2016 = vmatprep.subr.bf16.mxu0 %v1539
        %2017 = vmatpush1.bf16.msra.mxu0 %v1538
        %2018 = vmatprep.subr.bf16.mxu0 %v1541
        %2019 = vmatpush1.bf16.msra.mxu0 %v1540
        %2020 = vmatprep.subr.bf16.mxu0 %v1543
        %2021 = vmatpush1.bf16.msra.mxu0 %v1542
        %2022 = vmatprep.subr.bf16.mxu0 %v1545
        %2023 = vmatpush1.bf16.msra.mxu0 %v1544
        %2024 = vmatprep.subr.bf16.mxu0 %v1547
        %2025 = vmatpush1.bf16.msra.mxu0 %v1546
        %2026 = vmatprep.mubr.bf16.mxu0 %v897
        %2027 = vmatmul.mubr.bf16.gmra.mrb[0].mxu0 %v896
        %v2028 = vpop.f32.mrb[0].mxu0
        %v2029 = vadd.f32 %v1886, %v2028
        %v2030 = vpop.f32.mrb[0].mxu0
        %v2031 = vadd.f32 %v1888, %v2030
        %v2032 = vpop.f32.mrb[0].mxu0
        %v2033 = vadd.f32 %v1890, %v2032
        %v2034 = vpop.f32.mrb[0].mxu0
        %v2035 = vadd.f32 %v1892, %v2034
        %2036 = vmatprep.mubr.bf16.mxu0 %v905
        %2037 = vmatmul.mubr.bf16.gmra.mrb[0].mxu0 %v904
        %v2038 = vpop.f32.mrb[0].mxu0
        %v2039 = vadd.f32 %v1896, %v2038
        %v2040 = vpop.f32.mrb[0].mxu0
        %v2041 = vadd.f32 %v1898, %v2040
        %v2042 = vpop.f32.mrb[0].mxu0
        %v2043 = vadd.f32 %v1900, %v2042
        %v2044 = vpop.f32.mrb[0].mxu0
        %v2045 = vadd.f32 %v1902, %v2044
        %2046 = vmatprep.mubr.bf16.mxu0 %v913
        %2047 = vmatmul.mubr.bf16.gmra.mrb[0].mxu0 %v912
        %v2048 = vpop.f32.mrb[0].mxu0
        %v2049 = vadd.f32 %v1906, %v2048
        %v2050 = vpop.f32.mrb[0].mxu0
        %v2051 = vadd.f32 %v1908, %v2050
        %v2052 = vpop.f32.mrb[0].mxu0
        %v2053 = vadd.f32 %v1910, %v2052
        %v2054 = vpop.f32.mrb[0].mxu0
        %v2055 = vadd.f32 %v1912, %v2054
        %2056 = vmatprep.mubr.bf16.mxu0 %v921
        %2057 = vmatmul.mubr.bf16.gmra.mrb[0].mxu0 %v920
        %v2058 = vpop.f32.mrb[0].mxu0
        %v2059 = vadd.f32 %v1916, %v2058
        %v2060 = vpop.f32.mrb[0].mxu0
        %v2061 = vadd.f32 %v1918, %v2060
        %v2062 = vpop.f32.mrb[0].mxu0
        %v2063 = vadd.f32 %v1920, %v2062
        %v2064 = vpop.f32.mrb[0].mxu0
        %v2065 = vadd.f32 %v1922, %v2064
        %2066 = vmatprep.mubr.bf16.mxu0 %v929
        %2067 = vmatmul.mubr.bf16.gmra.mrb[0].mxu0 %v928
        %v2068 = vpop.f32.mrb[0].mxu0
        %v2069 = vadd.f32 %v1926, %v2068
        %v2070 = vpop.f32.mrb[0].mxu0
        %v2071 = vadd.f32 %v1928, %v2070
        %v2072 = vpop.f32.mrb[0].mxu0
        %v2073 = vadd.f32 %v1930, %v2072
        %v2074 = vpop.f32.mrb[0].mxu0
        %v2075 = vadd.f32 %v1932, %v2074
        %2076 = vmatprep.mubr.bf16.mxu0 %v937
        %2077 = vmatmul.mubr.bf16.gmra.mrb[0].mxu0 %v936
        %v2078 = vpop.f32.mrb[0].mxu0
        %v2079 = vadd.f32 %v1936, %v2078
        %v2080 = vpop.f32.mrb[0].mxu0
        %v2081 = vadd.f32 %v1938, %v2080
        %v2082 = vpop.f32.mrb[0].mxu0
        %v2083 = vadd.f32 %v1940, %v2082
        %v2084 = vpop.f32.mrb[0].mxu0
        %v2085 = vadd.f32 %v1942, %v2084
        %2086 = vmatprep.mubr.bf16.mxu0 %v945
        %2087 = vmatmul.mubr.bf16.gmra.mrb[0].mxu0 %v944
        %v2088 = vpop.f32.mrb[0].mxu0
        %v2089 = vadd.f32 %v1946, %v2088
        %v2090 = vpop.f32.mrb[0].mxu0
        %v2091 = vadd.f32 %v1948, %v2090
        %v2092 = vpop.f32.mrb[0].mxu0
        %v2093 = vadd.f32 %v1950, %v2092
        %v2094 = vpop.f32.mrb[0].mxu0
        %v2095 = vadd.f32 %v1952, %v2094
        %2096 = vmatprep.mubr.bf16.mxu0 %v953
        %2097 = vmatmul.mubr.bf16.gmra.mrb[0].mxu0 %v952
        %v2098 = vpop.f32.mrb[0].mxu0
        %v2099 = vadd.f32 %v1956, %v2098
        %v2100 = vpop.f32.mrb[0].mxu0
        %v2101 = vadd.f32 %v1958, %v2100
        %v2102 = vpop.f32.mrb[0].mxu0
        %v2103 = vadd.f32 %v1960, %v2102
        %v2104 = vpop.f32.mrb[0].mxu0
        %v2105 = vadd.f32 %v1962, %v2104
        %2106 = vmatprep.mubr.bf16.mxu0 %v961
        %2107 = vmatmul.mubr.bf16.gmra.mrb[0].mxu0 %v960
        %v2108 = vpop.f32.mrb[0].mxu0
        %v2109 = vadd.f32 %v1966, %v2108
        %v2110 = vpop.f32.mrb[0].mxu0
        %v2111 = vadd.f32 %v1968, %v2110
        %v2112 = vpop.f32.mrb[0].mxu0
        %v2113 = vadd.f32 %v1970, %v2112
        %v2114 = vpop.f32.mrb[0].mxu0
        %v2115 = vadd.f32 %v1972, %v2114
        %2116 = vmatprep.mubr.bf16.mxu0 %v969
        %2117 = vmatmul.mubr.bf16.gmra.mrb[0].mxu0 %v968
        %v2118 = vpop.f32.mrb[0].mxu0
        %v2119 = vadd.f32 %v1976, %v2118
        %v2120 = vpop.f32.mrb[0].mxu0
        %v2121 = vadd.f32 %v1978, %v2120
        %v2122 = vpop.f32.mrb[0].mxu0
        %v2123 = vadd.f32 %v1980, %v2122
        %v2124 = vpop.f32.mrb[0].mxu0
        %v2125 = vadd.f32 %v1982, %v2124
        %2126 = vmatprep.mubr.bf16.mxu0 %v977
        %2127 = vmatmul.mubr.bf16.gmra.mrb[0].mxu0 %v976
        %v2128 = vpop.f32.mrb[0].mxu0
        %v2129 = vadd.f32 %v1986, %v2128
        %v2130 = vpop.f32.mrb[0].mxu0
        %v2131 = vadd.f32 %v1988, %v2130
        %v2132 = vpop.f32.mrb[0].mxu0
        %v2133 = vadd.f32 %v1990, %v2132
        %v2134 = vpop.f32.mrb[0].mxu0
        %v2135 = vadd.f32 %v1992, %v2134
        %2136 = vdwg.mxu0
        %2137 = vmatprep.subr.bf16.mxu0 %v1549
        %2138 = vmatpush1.bf16.msra.mxu0 %v1548
        %2139 = vmatprep.subr.bf16.mxu0 %v1551
        %2140 = vmatpush1.bf16.msra.mxu0 %v1550
        %2141 = vmatprep.subr.bf16.mxu0 %v1553
        %2142 = vmatpush1.bf16.msra.mxu0 %v1552
        %2143 = vmatprep.subr.bf16.mxu0 %v1555
        %2144 = vmatpush1.bf16.msra.mxu0 %v1554
        %2145 = vmatprep.subr.bf16.mxu0 %v1557
        %2146 = vmatpush1.bf16.msra.mxu0 %v1556
        %2147 = vmatprep.subr.bf16.mxu0 %v1559
        %2148 = vmatpush1.bf16.msra.mxu0 %v1558
        %2149 = vmatprep.subr.bf16.mxu0 %v1561
        %2150 = vmatpush1.bf16.msra.mxu0 %v1560
        %2151 = vmatprep.subr.bf16.mxu0 %v1563
        %2152 = vmatpush1.bf16.msra.mxu0 %v1562
        %2153 = vmatprep.subr.bf16.mxu0 %v1565
        %2154 = vmatpush1.bf16.msra.mxu0 %v1564
        %2155 = vmatprep.subr.bf16.mxu0 %v1567
        %2156 = vmatpush1.bf16.msra.mxu0 %v1566
        %2157 = vmatprep.subr.bf16.mxu0 %v1569
        %2158 = vmatpush1.bf16.msra.mxu0 %v1568
        %2159 = vmatprep.subr.bf16.mxu0 %v1571
        %2160 = vmatpush1.bf16.msra.mxu0 %v1570
        %2161 = vmatprep.subr.bf16.mxu0 %v1573
        %2162 = vmatpush1.bf16.msra.mxu0 %v1572
        %2163 = vmatprep.subr.bf16.mxu0 %v1575
        %2164 = vmatpush1.bf16.msra.mxu0 %v1574
        %2165 = vmatprep.subr.bf16.mxu0 %v1577
        %2166 = vmatpush1.bf16.msra.mxu0 %v1576
        %2167 = vmatprep.subr.bf16.mxu0 %v1579
        %2168 = vmatpush1.bf16.msra.mxu0 %v1578
        %2169 = vmatprep.mubr.bf16.mxu0 %v899
        %2170 = vmatmul.mubr.bf16.gmra.mrb[0].mxu0 %v898
        %v2171 = vpop.f32.mrb[0].mxu0
        %v2172 = vadd.f32 %v2029, %v2171
        %v2173 = vpop.f32.mrb[0].mxu0
        %v2174 = vadd.f32 %v2031, %v2173
        %v2175 = vpop.f32.mrb[0].mxu0
        %v2176 = vadd.f32 %v2033, %v2175
        %v2177 = vpop.f32.mrb[0].mxu0
        %v2178 = vadd.f32 %v2035, %v2177
        %2179 = vmatprep.mubr.bf16.mxu0 %v907
        %2180 = vmatmul.mubr.bf16.gmra.mrb[0].mxu0 %v906
        %v2181 = vpop.f32.mrb[0].mxu0
        %v2182 = vadd.f32 %v2039, %v2181
        %v2183 = vpop.f32.mrb[0].mxu0
        %v2184 = vadd.f32 %v2041, %v2183
        %v2185 = vpop.f32.mrb[0].mxu0
        %v2186 = vadd.f32 %v2043, %v2185
        %v2187 = vpop.f32.mrb[0].mxu0
        %v2188 = vadd.f32 %v2045, %v2187
        %2189 = vmatprep.mubr.bf16.mxu0 %v915
        %2190 = vmatmul.mubr.bf16.gmra.mrb[0].mxu0 %v914
        %v2191 = vpop.f32.mrb[0].mxu0
        %v2192 = vadd.f32 %v2049, %v2191
        %v2193 = vpop.f32.mrb[0].mxu0
        %v2194 = vadd.f32 %v2051, %v2193
        %v2195 = vpop.f32.mrb[0].mxu0
        %v2196 = vadd.f32 %v2053, %v2195
        %v2197 = vpop.f32.mrb[0].mxu0
        %v2198 = vadd.f32 %v2055, %v2197
        %2199 = vmatprep.mubr.bf16.mxu0 %v923
        %2200 = vmatmul.mubr.bf16.gmra.mrb[0].mxu0 %v922
        %v2201 = vpop.f32.mrb[0].mxu0
        %v2202 = vadd.f32 %v2059, %v2201
        %v2203 = vpop.f32.mrb[0].mxu0
        %v2204 = vadd.f32 %v2061, %v2203
        %v2205 = vpop.f32.mrb[0].mxu0
        %v2206 = vadd.f32 %v2063, %v2205
        %v2207 = vpop.f32.mrb[0].mxu0
        %v2208 = vadd.f32 %v2065, %v2207
        %2209 = vmatprep.mubr.bf16.mxu0 %v931
        %2210 = vmatmul.mubr.bf16.gmra.mrb[0].mxu0 %v930
        %v2211 = vpop.f32.mrb[0].mxu0
        %v2212 = vadd.f32 %v2069, %v2211
        %v2213 = vpop.f32.mrb[0].mxu0
        %v2214 = vadd.f32 %v2071, %v2213
        %v2215 = vpop.f32.mrb[0].mxu0
        %v2216 = vadd.f32 %v2073, %v2215
        %v2217 = vpop.f32.mrb[0].mxu0
        %v2218 = vadd.f32 %v2075, %v2217
        %2219 = vmatprep.mubr.bf16.mxu0 %v939
        %2220 = vmatmul.mubr.bf16.gmra.mrb[0].mxu0 %v938
        %v2221 = vpop.f32.mrb[0].mxu0
        %v2222 = vadd.f32 %v2079, %v2221
        %v2223 = vpop.f32.mrb[0].mxu0
        %v2224 = vadd.f32 %v2081, %v2223
        %v2225 = vpop.f32.mrb[0].mxu0
        %v2226 = vadd.f32 %v2083, %v2225
        %v2227 = vpop.f32.mrb[0].mxu0
        %v2228 = vadd.f32 %v2085, %v2227
        %2229 = vmatprep.mubr.bf16.mxu0 %v947
        %2230 = vmatmul.mubr.bf16.gmra.mrb[0].mxu0 %v946
        %v2231 = vpop.f32.mrb[0].mxu0
        %v2232 = vadd.f32 %v2089, %v2231
        %v2233 = vpop.f32.mrb[0].mxu0
        %v2234 = vadd.f32 %v2091, %v2233
        %v2235 = vpop.f32.mrb[0].mxu0
        %v2236 = vadd.f32 %v2093, %v2235
        %v2237 = vpop.f32.mrb[0].mxu0
        %v2238 = vadd.f32 %v2095, %v2237
        %2239 = vmatprep.mubr.bf16.mxu0 %v955
        %2240 = vmatmul.mubr.bf16.gmra.mrb[0].mxu0 %v954
        %v2241 = vpop.f32.mrb[0].mxu0
        %v2242 = vadd.f32 %v2099, %v2241
        %v2243 = vpop.f32.mrb[0].mxu0
        %v2244 = vadd.f32 %v2101, %v2243
        %v2245 = vpop.f32.mrb[0].mxu0
        %v2246 = vadd.f32 %v2103, %v2245
        %v2247 = vpop.f32.mrb[0].mxu0
        %v2248 = vadd.f32 %v2105, %v2247
        %2249 = vmatprep.mubr.bf16.mxu0 %v963
        %2250 = vmatmul.mubr.bf16.gmra.mrb[0].mxu0 %v962
        %v2251 = vpop.f32.mrb[0].mxu0
        %v2252 = vadd.f32 %v2109, %v2251
        %v2253 = vpop.f32.mrb[0].mxu0
        %v2254 = vadd.f32 %v2111, %v2253
        %v2255 = vpop.f32.mrb[0].mxu0
        %v2256 = vadd.f32 %v2113, %v2255
        %v2257 = vpop.f32.mrb[0].mxu0
        %v2258 = vadd.f32 %v2115, %v2257
        %2259 = vmatprep.mubr.bf16.mxu0 %v971
        %2260 = vmatmul.mubr.bf16.gmra.mrb[0].mxu0 %v970
        %v2261 = vpop.f32.mrb[0].mxu0
        %v2262 = vadd.f32 %v2119, %v2261
        %v2263 = vpop.f32.mrb[0].mxu0
        %v2264 = vadd.f32 %v2121, %v2263
        %v2265 = vpop.f32.mrb[0].mxu0
        %v2266 = vadd.f32 %v2123, %v2265
        %v2267 = vpop.f32.mrb[0].mxu0
        %v2268 = vadd.f32 %v2125, %v2267
        %2269 = vmatprep.mubr.bf16.mxu0 %v979
        %2270 = vmatmul.mubr.bf16.gmra.mrb[0].mxu0 %v978
        %v2271 = vpop.f32.mrb[0].mxu0
        %v2272 = vadd.f32 %v2129, %v2271
        %v2273 = vpop.f32.mrb[0].mxu0
        %v2274 = vadd.f32 %v2131, %v2273
        %v2275 = vpop.f32.mrb[0].mxu0
        %v2276 = vadd.f32 %v2133, %v2275
        %v2277 = vpop.f32.mrb[0].mxu0
        %v2278 = vadd.f32 %v2135, %v2277
        %2279 = vdwg.mxu0
        %p2280 = scmp.eq.s32.totalorder %s19, 0
        // Predicated region
        $region56: #{_policy_act_impl.5} parent=50 // pred_check
          %p2281 = pneg %p2280
        $region57: #{_policy_act_impl.5} parent=50 // pred_check_branch
          %2283 = sbr.rel (%p2281) target = $region59
        $region58: #{_policy_act_impl.5} parent=50 // pred_region
          %v2284 = vld [vmem:[%s2] sm:$0x3]
          %v2286 = vlaneseq
          %v2287 = vshrl.u32 %v2286, 7
          %v2288 = vsub.s32 0, %v2287
          %v2289 = vrot.slane %v2284, %v2288
          %v2290 = vlaneseq
          %v2291 = vshrl.u32 %v2290, 7
          %v2292 = vsub.s32 1, %v2291
          %v2293 = vrot.slane %v2284, %v2292
          %v2296 = vadd.f32 %v2172, %v2289
          %v2297 = vadd.f32 %v2174, %v2293
          %v2298 = vadd.f32 %v2176, %v2289
          %v2299 = vadd.f32 %v2178, %v2293
          %v2300 = vadd.f32 %v2182, %v2289
          %v2301 = vadd.f32 %v2184, %v2293
          %v2302 = vadd.f32 %v2186, %v2289
          %v2303 = vadd.f32 %v2188, %v2293
          %v2304 = vadd.f32 %v2192, %v2289
          %v2305 = vadd.f32 %v2194, %v2293
          %v2306 = vadd.f32 %v2196, %v2289
          %v2307 = vadd.f32 %v2198, %v2293
          %v2308 = vadd.f32 %v2202, %v2289
          %v2309 = vadd.f32 %v2204, %v2293
          %v2310 = vadd.f32 %v2206, %v2289
          %v2311 = vadd.f32 %v2208, %v2293
          %v2312 = vadd.f32 %v2212, %v2289
          %v2313 = vadd.f32 %v2214, %v2293
          %v2314 = vadd.f32 %v2216, %v2289
          %v2315 = vadd.f32 %v2218, %v2293
          %v2316 = vadd.f32 %v2222, %v2289
          %v2317 = vadd.f32 %v2224, %v2293
          %v2318 = vadd.f32 %v2226, %v2289
          %v2319 = vadd.f32 %v2228, %v2293
          %v2320 = vadd.f32 %v2232, %v2289
          %v2321 = vadd.f32 %v2234, %v2293
          %v2322 = vadd.f32 %v2236, %v2289
          %v2323 = vadd.f32 %v2238, %v2293
          %v2324 = vadd.f32 %v2242, %v2289
          %v2325 = vadd.f32 %v2244, %v2293
          %v2326 = vadd.f32 %v2246, %v2289
          %v2327 = vadd.f32 %v2248, %v2293
          %v2328 = vadd.f32 %v2252, %v2289
          %v2329 = vadd.f32 %v2254, %v2293
          %v2330 = vadd.f32 %v2256, %v2289
          %v2331 = vadd.f32 %v2258, %v2293
          %v2332 = vadd.f32 %v2262, %v2289
          %v2333 = vadd.f32 %v2264, %v2293
          %v2334 = vadd.f32 %v2266, %v2289
          %v2335 = vadd.f32 %v2268, %v2293
          %v2336 = vadd.f32 %v2272, %v2289
          %v2337 = vadd.f32 %v2274, %v2293
          %v2338 = vadd.f32 %v2276, %v2289
          %v2339 = vadd.f32 %v2278, %v2293
          %2340 = vst [vmem:[#allocation2] sm:$0xff] %v2296
          %2341 = vst [vmem:[#allocation2 + $0x8] sm:$0xff] %v2297
          %2342 = vst [vmem:[#allocation2 + $0x10] sm:$0xff] %v2298
          %2343 = vst [vmem:[#allocation2 + $0x18] sm:$0xff] %v2299
          %2344 = vst [vmem:[#allocation2 + $0x20] sm:$0xff] %v2300
          %2345 = vst [vmem:[#allocation2 + $0x28] sm:$0xff] %v2301
          %2346 = vst [vmem:[#allocation2 + $0x30] sm:$0xff] %v2302
          %2347 = vst [vmem:[#allocation2 + $0x38] sm:$0xff] %v2303
          %2348 = vst [vmem:[#allocation2 + $0x40] sm:$0xff] %v2304
          %2349 = vst [vmem:[#allocation2 + $0x48] sm:$0xff] %v2305
          %2350 = vst [vmem:[#allocation2 + $0x50] sm:$0xff] %v2306
          %2351 = vst [vmem:[#allocation2 + $0x58] sm:$0xff] %v2307
          %2352 = vst [vmem:[#allocation2 + $0x60] sm:$0xff] %v2308
          %2353 = vst [vmem:[#allocation2 + $0x68] sm:$0xff] %v2309
          %2354 = vst [vmem:[#allocation2 + $0x70] sm:$0xff] %v2310
          %2355 = vst [vmem:[#allocation2 + $0x78] sm:$0xff] %v2311
          %2356 = vst [vmem:[#allocation2 + $0x80] sm:$0xff] %v2312
          %2357 = vst [vmem:[#allocation2 + $0x88] sm:$0xff] %v2313
          %2358 = vst [vmem:[#allocation2 + $0x90] sm:$0xff] %v2314
          %2359 = vst [vmem:[#allocation2 + $0x98] sm:$0xff] %v2315
          %2360 = vst [vmem:[#allocation2 + $0xa0] sm:$0xff] %v2316
          %2361 = vst [vmem:[#allocation2 + $0xa8] sm:$0xff] %v2317
          %2362 = vst [vmem:[#allocation2 + $0xb0] sm:$0xff] %v2318
          %2363 = vst [vmem:[#allocation2 + $0xb8] sm:$0xff] %v2319
          %2364 = vst [vmem:[#allocation2 + $0xc0] sm:$0xff] %v2320
          %2365 = vst [vmem:[#allocation2 + $0xc8] sm:$0xff] %v2321
          %2366 = vst [vmem:[#allocation2 + $0xd0] sm:$0xff] %v2322
          %2367 = vst [vmem:[#allocation2 + $0xd8] sm:$0xff] %v2323
          %2368 = vst [vmem:[#allocation2 + $0xe0] sm:$0xff] %v2324
          %2369 = vst [vmem:[#allocation2 + $0xe8] sm:$0xff] %v2325
          %2370 = vst [vmem:[#allocation2 + $0xf0] sm:$0xff] %v2326
          %2371 = vst [vmem:[#allocation2 + $0xf8] sm:$0xff] %v2327
          %2372 = vst [vmem:[#allocation2 + $0x100] sm:$0xff] %v2328
          %2373 = vst [vmem:[#allocation2 + $0x108] sm:$0xff] %v2329
          %2374 = vst [vmem:[#allocation2 + $0x110] sm:$0xff] %v2330
          %2375 = vst [vmem:[#allocation2 + $0x118] sm:$0xff] %v2331
          %2376 = vst [vmem:[#allocation2 + $0x120] sm:$0xff] %v2332
          %2377 = vst [vmem:[#allocation2 + $0x128] sm:$0xff] %v2333
          %2378 = vst [vmem:[#allocation2 + $0x130] sm:$0xff] %v2334
          %2379 = vst [vmem:[#allocation2 + $0x138] sm:$0xff] %v2335
          %2380 = vst [vmem:[#allocation2 + $0x140] sm:$0xff] %v2336
          %2381 = vst [vmem:[#allocation2 + $0x148] sm:$0xff] %v2337
          %2382 = vst [vmem:[#allocation2 + $0x150] sm:$0xff] %v2338
          %2383 = vst [vmem:[#allocation2 + $0x158] sm:$0xff] %v2339
        $region59: #{_policy_act_impl.5} parent=50 // pred_fallthru
          _
        %p2384 = scmp.gt.s32.totalorder %s19, 0
        %p2385 = scmp.lt.s32.totalorder %s19, 1
        %p2386 = pnand %p2384, %p2385
        %p2387 = pneg %p2386
        // Predicated region
        $region60: #{_policy_act_impl.5} parent=50 // pred_check
          _
        $region61: #{_policy_act_impl.5} parent=50 // pred_check_branch
          %2389 = sbr.rel (%p2386) target = $region63
        $region62: #{_policy_act_impl.5} parent=50 // pred_region
          %v2390 = vld [vmem:[#allocation2] sm:$0xff]
          %v2391 = vld [vmem:[#allocation2 + $0x8] sm:$0xff]
          %v2392 = vld [vmem:[#allocation2 + $0x10] sm:$0xff]
          %v2393 = vld [vmem:[#allocation2 + $0x18] sm:$0xff]
          %v2394 = vld [vmem:[#allocation2 + $0x20] sm:$0xff]
          %v2395 = vld [vmem:[#allocation2 + $0x28] sm:$0xff]
          %v2396 = vld [vmem:[#allocation2 + $0x30] sm:$0xff]
          %v2397 = vld [vmem:[#allocation2 + $0x38] sm:$0xff]
          %v2398 = vld [vmem:[#allocation2 + $0x40] sm:$0xff]
          %v2399 = vld [vmem:[#allocation2 + $0x48] sm:$0xff]
          %v2400 = vld [vmem:[#allocation2 + $0x50] sm:$0xff]
          %v2401 = vld [vmem:[#allocation2 + $0x58] sm:$0xff]
          %v2402 = vld [vmem:[#allocation2 + $0x60] sm:$0xff]
          %v2403 = vld [vmem:[#allocation2 + $0x68] sm:$0xff]
          %v2404 = vld [vmem:[#allocation2 + $0x70] sm:$0xff]
          %v2405 = vld [vmem:[#allocation2 + $0x78] sm:$0xff]
          %v2406 = vld [vmem:[#allocation2 + $0x80] sm:$0xff]
          %v2407 = vld [vmem:[#allocation2 + $0x88] sm:$0xff]
          %v2408 = vld [vmem:[#allocation2 + $0x90] sm:$0xff]
          %v2409 = vld [vmem:[#allocation2 + $0x98] sm:$0xff]
          %v2410 = vld [vmem:[#allocation2 + $0xa0] sm:$0xff]
          %v2411 = vld [vmem:[#allocation2 + $0xa8] sm:$0xff]
          %v2412 = vld [vmem:[#allocation2 + $0xb0] sm:$0xff]
          %v2413 = vld [vmem:[#allocation2 + $0xb8] sm:$0xff]
          %v2414 = vld [vmem:[#allocation2 + $0xc0] sm:$0xff]
          %v2415 = vld [vmem:[#allocation2 + $0xc8] sm:$0xff]
          %v2416 = vld [vmem:[#allocation2 + $0xd0] sm:$0xff]
          %v2417 = vld [vmem:[#allocation2 + $0xd8] sm:$0xff]
          %v2418 = vld [vmem:[#allocation2 + $0xe0] sm:$0xff]
          %v2419 = vld [vmem:[#allocation2 + $0xe8] sm:$0xff]
          %v2420 = vld [vmem:[#allocation2 + $0xf0] sm:$0xff]
          %v2421 = vld [vmem:[#allocation2 + $0xf8] sm:$0xff]
          %v2422 = vld [vmem:[#allocation2 + $0x100] sm:$0xff]
          %v2423 = vld [vmem:[#allocation2 + $0x108] sm:$0xff]
          %v2424 = vld [vmem:[#allocation2 + $0x110] sm:$0xff]
          %v2425 = vld [vmem:[#allocation2 + $0x118] sm:$0xff]
          %v2426 = vld [vmem:[#allocation2 + $0x120] sm:$0xff]
          %v2427 = vld [vmem:[#allocation2 + $0x128] sm:$0xff]
          %v2428 = vld [vmem:[#allocation2 + $0x130] sm:$0xff]
          %v2429 = vld [vmem:[#allocation2 + $0x138] sm:$0xff]
          %v2430 = vld [vmem:[#allocation2 + $0x140] sm:$0xff]
          %v2431 = vld [vmem:[#allocation2 + $0x148] sm:$0xff]
          %v2432 = vld [vmem:[#allocation2 + $0x150] sm:$0xff]
          %v2433 = vld [vmem:[#allocation2 + $0x158] sm:$0xff]
          %v2434 = vadd.f32 %v2390, %v2172
          %v2435 = vadd.f32 %v2391, %v2174
          %v2436 = vadd.f32 %v2392, %v2176
          %v2437 = vadd.f32 %v2393, %v2178
          %v2438 = vadd.f32 %v2394, %v2182
          %v2439 = vadd.f32 %v2395, %v2184
          %v2440 = vadd.f32 %v2396, %v2186
          %v2441 = vadd.f32 %v2397, %v2188
          %v2442 = vadd.f32 %v2398, %v2192
          %v2443 = vadd.f32 %v2399, %v2194
          %v2444 = vadd.f32 %v2400, %v2196
          %v2445 = vadd.f32 %v2401, %v2198
          %v2446 = vadd.f32 %v2402, %v2202
          %v2447 = vadd.f32 %v2403, %v2204
          %v2448 = vadd.f32 %v2404, %v2206
          %v2449 = vadd.f32 %v2405, %v2208
          %v2450 = vadd.f32 %v2406, %v2212
          %v2451 = vadd.f32 %v2407, %v2214
          %v2452 = vadd.f32 %v2408, %v2216
          %v2453 = vadd.f32 %v2409, %v2218
          %v2454 = vadd.f32 %v2410, %v2222
          %v2455 = vadd.f32 %v2411, %v2224
          %v2456 = vadd.f32 %v2412, %v2226
          %v2457 = vadd.f32 %v2413, %v2228
          %v2458 = vadd.f32 %v2414, %v2232
          %v2459 = vadd.f32 %v2415, %v2234
          %v2460 = vadd.f32 %v2416, %v2236
          %v2461 = vadd.f32 %v2417, %v2238
          %v2462 = vadd.f32 %v2418, %v2242
          %v2463 = vadd.f32 %v2419, %v2244
          %v2464 = vadd.f32 %v2420, %v2246
          %v2465 = vadd.f32 %v2421, %v2248
          %v2466 = vadd.f32 %v2422, %v2252
          %v2467 = vadd.f32 %v2423, %v2254
          %v2468 = vadd.f32 %v2424, %v2256
          %v2469 = vadd.f32 %v2425, %v2258
          %v2470 = vadd.f32 %v2426, %v2262
          %v2471 = vadd.f32 %v2427, %v2264
          %v2472 = vadd.f32 %v2428, %v2266
          %v2473 = vadd.f32 %v2429, %v2268
          %v2474 = vadd.f32 %v2430, %v2272
          %v2475 = vadd.f32 %v2431, %v2274
          %v2476 = vadd.f32 %v2432, %v2276
          %v2477 = vadd.f32 %v2433, %v2278
          %2478 = vst [vmem:[#allocation2] sm:$0xff] %v2434
          %2479 = vst [vmem:[#allocation2 + $0x8] sm:$0xff] %v2435
          %2480 = vst [vmem:[#allocation2 + $0x10] sm:$0xff] %v2436
          %2481 = vst [vmem:[#allocation2 + $0x18] sm:$0xff] %v2437
          %2482 = vst [vmem:[#allocation2 + $0x20] sm:$0xff] %v2438
          %2483 = vst [vmem:[#allocation2 + $0x28] sm:$0xff] %v2439
          %2484 = vst [vmem:[#allocation2 + $0x30] sm:$0xff] %v2440
          %2485 = vst [vmem:[#allocation2 + $0x38] sm:$0xff] %v2441
          %2486 = vst [vmem:[#allocation2 + $0x40] sm:$0xff] %v2442
          %2487 = vst [vmem:[#allocation2 + $0x48] sm:$0xff] %v2443
          %2488 = vst [vmem:[#allocation2 + $0x50] sm:$0xff] %v2444
          %2489 = vst [vmem:[#allocation2 + $0x58] sm:$0xff] %v2445
          %2490 = vst [vmem:[#allocation2 + $0x60] sm:$0xff] %v2446
          %2491 = vst [vmem:[#allocation2 + $0x68] sm:$0xff] %v2447
          %2492 = vst [vmem:[#allocation2 + $0x70] sm:$0xff] %v2448
          %2493 = vst [vmem:[#allocation2 + $0x78] sm:$0xff] %v2449
          %2494 = vst [vmem:[#allocation2 + $0x80] sm:$0xff] %v2450
          %2495 = vst [vmem:[#allocation2 + $0x88] sm:$0xff] %v2451
          %2496 = vst [vmem:[#allocation2 + $0x90] sm:$0xff] %v2452
          %2497 = vst [vmem:[#allocation2 + $0x98] sm:$0xff] %v2453
          %2498 = vst [vmem:[#allocation2 + $0xa0] sm:$0xff] %v2454
          %2499 = vst [vmem:[#allocation2 + $0xa8] sm:$0xff] %v2455
          %2500 = vst [vmem:[#allocation2 + $0xb0] sm:$0xff] %v2456
          %2501 = vst [vmem:[#allocation2 + $0xb8] sm:$0xff] %v2457
          %2502 = vst [vmem:[#allocation2 + $0xc0] sm:$0xff] %v2458
          %2503 = vst [vmem:[#allocation2 + $0xc8] sm:$0xff] %v2459
          %2504 = vst [vmem:[#allocation2 + $0xd0] sm:$0xff] %v2460
          %2505 = vst [vmem:[#allocation2 + $0xd8] sm:$0xff] %v2461
          %2506 = vst [vmem:[#allocation2 + $0xe0] sm:$0xff] %v2462
          %2507 = vst [vmem:[#allocation2 + $0xe8] sm:$0xff] %v2463
          %2508 = vst [vmem:[#allocation2 + $0xf0] sm:$0xff] %v2464
          %2509 = vst [vmem:[#allocation2 + $0xf8] sm:$0xff] %v2465
          %2510 = vst [vmem:[#allocation2 + $0x100] sm:$0xff] %v2466
          %2511 = vst [vmem:[#allocation2 + $0x108] sm:$0xff] %v2467
          %2512 = vst [vmem:[#allocation2 + $0x110] sm:$0xff] %v2468
          %2513 = vst [vmem:[#allocation2 + $0x118] sm:$0xff] %v2469
          %2514 = vst [vmem:[#allocation2 + $0x120] sm:$0xff] %v2470
          %2515 = vst [vmem:[#allocation2 + $0x128] sm:$0xff] %v2471
          %2516 = vst [vmem:[#allocation2 + $0x130] sm:$0xff] %v2472
          %2517 = vst [vmem:[#allocation2 + $0x138] sm:$0xff] %v2473
          %2518 = vst [vmem:[#allocation2 + $0x140] sm:$0xff] %v2474
          %2519 = vst [vmem:[#allocation2 + $0x148] sm:$0xff] %v2475
          %2520 = vst [vmem:[#allocation2 + $0x150] sm:$0xff] %v2476
          %2521 = vst [vmem:[#allocation2 + $0x158] sm:$0xff] %v2477
        $region63: #{_policy_act_impl.5} parent=50 // pred_fallthru
          _
        %p2522 = scmp.eq.s32.totalorder %s19, 1
        // Predicated region
        $region64: #{_policy_act_impl.5} parent=50 // pred_check
          %p2523 = pneg %p2522
        $region65: #{_policy_act_impl.5} parent=50 // pred_check_branch
          %2525 = sbr.rel (%p2523) target = $region67
        $region66: #{_policy_act_impl.5} parent=50 // pred_region
          %v2526 = vld [vmem:[#allocation2] sm:$0xff]
          %v2527 = vld [vmem:[#allocation2 + $0x8] sm:$0xff]
          %v2528 = vld [vmem:[#allocation2 + $0x10] sm:$0xff]
          %v2529 = vld [vmem:[#allocation2 + $0x18] sm:$0xff]
          %v2530 = vld [vmem:[#allocation2 + $0x20] sm:$0xff]
          %v2531 = vld [vmem:[#allocation2 + $0x28] sm:$0xff]
          %v2532 = vld [vmem:[#allocation2 + $0x30] sm:$0xff]
          %v2533 = vld [vmem:[#allocation2 + $0x38] sm:$0xff]
          %v2534 = vld [vmem:[#allocation2 + $0x40] sm:$0xff]
          %v2535 = vld [vmem:[#allocation2 + $0x48] sm:$0xff]
          %v2536 = vld [vmem:[#allocation2 + $0x50] sm:$0xff]
          %v2537 = vld [vmem:[#allocation2 + $0x58] sm:$0xff]
          %v2538 = vld [vmem:[#allocation2 + $0x60] sm:$0xff]
          %v2539 = vld [vmem:[#allocation2 + $0x68] sm:$0xff]
          %v2540 = vld [vmem:[#allocation2 + $0x70] sm:$0xff]
          %v2541 = vld [vmem:[#allocation2 + $0x78] sm:$0xff]
          %v2542 = vld [vmem:[#allocation2 + $0x80] sm:$0xff]
          %v2543 = vld [vmem:[#allocation2 + $0x88] sm:$0xff]
          %v2544 = vld [vmem:[#allocation2 + $0x90] sm:$0xff]
          %v2545 = vld [vmem:[#allocation2 + $0x98] sm:$0xff]
          %v2546 = vld [vmem:[#allocation2 + $0xa0] sm:$0xff]
          %v2547 = vld [vmem:[#allocation2 + $0xa8] sm:$0xff]
          %v2548 = vld [vmem:[#allocation2 + $0xb0] sm:$0xff]
          %v2549 = vld [vmem:[#allocation2 + $0xb8] sm:$0xff]
          %v2550 = vld [vmem:[#allocation2 + $0xc0] sm:$0xff]
          %v2551 = vld [vmem:[#allocation2 + $0xc8] sm:$0xff]
          %v2552 = vld [vmem:[#allocation2 + $0xd0] sm:$0xff]
          %v2553 = vld [vmem:[#allocation2 + $0xd8] sm:$0xff]
          %v2554 = vld [vmem:[#allocation2 + $0xe0] sm:$0xff]
          %v2555 = vld [vmem:[#allocation2 + $0xe8] sm:$0xff]
          %v2556 = vld [vmem:[#allocation2 + $0xf0] sm:$0xff]
          %v2557 = vld [vmem:[#allocation2 + $0xf8] sm:$0xff]
          %v2558 = vld [vmem:[#allocation2 + $0x100] sm:$0xff]
          %v2559 = vld [vmem:[#allocation2 + $0x108] sm:$0xff]
          %v2560 = vld [vmem:[#allocation2 + $0x110] sm:$0xff]
          %v2561 = vld [vmem:[#allocation2 + $0x118] sm:$0xff]
          %v2562 = vld [vmem:[#allocation2 + $0x120] sm:$0xff]
          %v2563 = vld [vmem:[#allocation2 + $0x128] sm:$0xff]
          %v2564 = vld [vmem:[#allocation2 + $0x130] sm:$0xff]
          %v2565 = vld [vmem:[#allocation2 + $0x138] sm:$0xff]
          %v2566 = vld [vmem:[#allocation2 + $0x140] sm:$0xff]
          %v2567 = vld [vmem:[#allocation2 + $0x148] sm:$0xff]
          %v2568 = vld [vmem:[#allocation2 + $0x150] sm:$0xff]
          %v2569 = vld [vmem:[#allocation2 + $0x158] sm:$0xff]
          %v2570 = vadd.f32 %v2526, %v2172
          %v2571 = vadd.f32 %v2527, %v2174
          %v2572 = vadd.f32 %v2528, %v2176
          %v2573 = vadd.f32 %v2529, %v2178
          %v2574 = vadd.f32 %v2530, %v2182
          %v2575 = vadd.f32 %v2531, %v2184
          %v2576 = vadd.f32 %v2532, %v2186
          %v2577 = vadd.f32 %v2533, %v2188
          %v2578 = vadd.f32 %v2534, %v2192
          %v2579 = vadd.f32 %v2535, %v2194
          %v2580 = vadd.f32 %v2536, %v2196
          %v2581 = vadd.f32 %v2537, %v2198
          %v2582 = vadd.f32 %v2538, %v2202
          %v2583 = vadd.f32 %v2539, %v2204
          %v2584 = vadd.f32 %v2540, %v2206
          %v2585 = vadd.f32 %v2541, %v2208
          %v2586 = vadd.f32 %v2542, %v2212
          %v2587 = vadd.f32 %v2543, %v2214
          %v2588 = vadd.f32 %v2544, %v2216
          %v2589 = vadd.f32 %v2545, %v2218
          %v2590 = vadd.f32 %v2546, %v2222
          %v2591 = vadd.f32 %v2547, %v2224
          %v2592 = vadd.f32 %v2548, %v2226
          %v2593 = vadd.f32 %v2549, %v2228
          %v2594 = vadd.f32 %v2550, %v2232
          %v2595 = vadd.f32 %v2551, %v2234
          %v2596 = vadd.f32 %v2552, %v2236
          %v2597 = vadd.f32 %v2553, %v2238
          %v2598 = vadd.f32 %v2554, %v2242
          %v2599 = vadd.f32 %v2555, %v2244
          %v2600 = vadd.f32 %v2556, %v2246
          %v2601 = vadd.f32 %v2557, %v2248
          %v2602 = vadd.f32 %v2558, %v2252
          %v2603 = vadd.f32 %v2559, %v2254
          %v2604 = vadd.f32 %v2560, %v2256
          %v2605 = vadd.f32 %v2561, %v2258
          %v2606 = vadd.f32 %v2562, %v2262
          %v2607 = vadd.f32 %v2563, %v2264
          %v2608 = vadd.f32 %v2564, %v2266
          %v2609 = vadd.f32 %v2565, %v2268
          %v2610 = vadd.f32 %v2566, %v2272
          %v2611 = vadd.f32 %v2567, %v2274
          %v2612 = vadd.f32 %v2568, %v2276
          %v2613 = vadd.f32 %v2569, %v2278
          %v2614 = vmax.f32 %v2570, 0.0
          %v2615 = vmax.f32 %v2571, 0.0
          %v2616 = vmax.f32 %v2572, 0.0
          %v2617 = vmax.f32 %v2573, 0.0
          %v2618 = vmax.f32 %v2574, 0.0
          %v2619 = vmax.f32 %v2575, 0.0
          %v2620 = vmax.f32 %v2576, 0.0
          %v2621 = vmax.f32 %v2577, 0.0
          %v2622 = vmax.f32 %v2578, 0.0
          %v2623 = vmax.f32 %v2579, 0.0
          %v2624 = vmax.f32 %v2580, 0.0
          %v2625 = vmax.f32 %v2581, 0.0
          %v2626 = vmax.f32 %v2582, 0.0
          %v2627 = vmax.f32 %v2583, 0.0
          %v2628 = vmax.f32 %v2584, 0.0
          %v2629 = vmax.f32 %v2585, 0.0
          %v2630 = vmax.f32 %v2586, 0.0
          %v2631 = vmax.f32 %v2587, 0.0
          %v2632 = vmax.f32 %v2588, 0.0
          %v2633 = vmax.f32 %v2589, 0.0
          %v2634 = vmax.f32 %v2590, 0.0
          %v2635 = vmax.f32 %v2591, 0.0
          %v2636 = vmax.f32 %v2592, 0.0
          %v2637 = vmax.f32 %v2593, 0.0
          %v2638 = vmax.f32 %v2594, 0.0
          %v2639 = vmax.f32 %v2595, 0.0
          %v2640 = vmax.f32 %v2596, 0.0
          %v2641 = vmax.f32 %v2597, 0.0
          %v2642 = vmax.f32 %v2598, 0.0
          %v2643 = vmax.f32 %v2599, 0.0
          %v2644 = vmax.f32 %v2600, 0.0
          %v2645 = vmax.f32 %v2601, 0.0
          %v2646 = vmax.f32 %v2602, 0.0
          %v2647 = vmax.f32 %v2603, 0.0
          %v2648 = vmax.f32 %v2604, 0.0
          %v2649 = vmax.f32 %v2605, 0.0
          %v2650 = vmax.f32 %v2606, 0.0
          %v2651 = vmax.f32 %v2607, 0.0
          %v2652 = vmax.f32 %v2608, 0.0
          %v2653 = vmax.f32 %v2609, 0.0
          %v2654 = vmax.f32 %v2610, 0.0
          %v2655 = vmax.f32 %v2611, 0.0
          %v2656 = vmax.f32 %v2612, 0.0
          %v2657 = vmax.f32 %v2613, 0.0
          %v2658 = vpack.c.bf16 %v2616, %v2614
          %v2659 = vpack.c.bf16 %v2617, %v2615
          %v2660 = vpack.c.bf16 %v2620, %v2618
          %v2661 = vpack.c.bf16 %v2621, %v2619
          %v2662 = vpack.c.bf16 %v2624, %v2622
          %v2663 = vpack.c.bf16 %v2625, %v2623
          %v2664 = vpack.c.bf16 %v2628, %v2626
          %v2665 = vpack.c.bf16 %v2629, %v2627
          %v2666 = vpack.c.bf16 %v2632, %v2630
          %v2667 = vpack.c.bf16 %v2633, %v2631
          %v2668 = vpack.c.bf16 %v2636, %v2634
          %v2669 = vpack.c.bf16 %v2637, %v2635
          %v2670 = vpack.c.bf16 %v2640, %v2638
          %v2671 = vpack.c.bf16 %v2641, %v2639
          %v2672 = vpack.c.bf16 %v2644, %v2642
          %v2673 = vpack.c.bf16 %v2645, %v2643
          %v2674 = vpack.c.bf16 %v2648, %v2646
          %v2675 = vpack.c.bf16 %v2649, %v2647
          %v2676 = vpack.c.bf16 %v2652, %v2650
          %v2677 = vpack.c.bf16 %v2653, %v2651
          %v2678 = vpack.c.bf16 %v2656, %v2654
          %v2679 = vpack.c.bf16 %v2657, %v2655
          %v2702 = vunpack.c.l.b16 %v2658
          %v2703 = vunpack.c.l.b16 %v2659
          %v2704 = vunpack.c.h.b16 %v2658
          %v2705 = vunpack.c.h.b16 %v2659
          %v2706 = vunpack.c.l.b16 %v2660
          %v2707 = vunpack.c.l.b16 %v2661
          %v2708 = vunpack.c.h.b16 %v2660
          %v2709 = vunpack.c.h.b16 %v2661
          %v2710 = vunpack.c.l.b16 %v2662
          %v2711 = vunpack.c.l.b16 %v2663
          %v2712 = vunpack.c.h.b16 %v2662
          %v2713 = vunpack.c.h.b16 %v2663
          %v2714 = vunpack.c.l.b16 %v2664
          %v2715 = vunpack.c.l.b16 %v2665
          %v2716 = vunpack.c.h.b16 %v2664
          %v2717 = vunpack.c.h.b16 %v2665
          %v2718 = vunpack.c.l.b16 %v2666
          %v2719 = vunpack.c.l.b16 %v2667
          %v2720 = vunpack.c.h.b16 %v2666
          %v2721 = vunpack.c.h.b16 %v2667
          %v2722 = vunpack.c.l.b16 %v2668
          %v2723 = vunpack.c.l.b16 %v2669
          %v2724 = vunpack.c.h.b16 %v2668
          %v2725 = vunpack.c.h.b16 %v2669
          %v2726 = vunpack.c.l.b16 %v2670
          %v2727 = vunpack.c.l.b16 %v2671
          %v2728 = vunpack.c.h.b16 %v2670
          %v2729 = vunpack.c.h.b16 %v2671
          %v2730 = vunpack.c.l.b16 %v2672
          %v2731 = vunpack.c.l.b16 %v2673
          %v2732 = vunpack.c.h.b16 %v2672
          %v2733 = vunpack.c.h.b16 %v2673
          %v2734 = vunpack.c.l.b16 %v2674
          %v2735 = vunpack.c.l.b16 %v2675
          %v2736 = vunpack.c.h.b16 %v2674
          %v2737 = vunpack.c.h.b16 %v2675
          %v2738 = vunpack.c.l.b16 %v2676
          %v2739 = vunpack.c.l.b16 %v2677
          %v2740 = vunpack.c.h.b16 %v2676
          %v2741 = vunpack.c.h.b16 %v2677
          %v2742 = vunpack.c.l.b16 %v2678
          %v2743 = vunpack.c.l.b16 %v2679
          %v2744 = vunpack.c.h.b16 %v2678
          %v2745 = vunpack.c.h.b16 %v2679
          %v2746 = vpack.c.b16 %v2703, %v2702
          %v2747 = vpack.c.b16 %v2705, %v2704
          %v2748 = vpack.c.b16 %v2707, %v2706
          %v2749 = vpack.c.b16 %v2709, %v2708
          %v2750 = vpack.c.b16 %v2711, %v2710
          %v2751 = vpack.c.b16 %v2713, %v2712
          %v2752 = vpack.c.b16 %v2715, %v2714
          %v2753 = vpack.c.b16 %v2717, %v2716
          %v2754 = vpack.c.b16 %v2719, %v2718
          %v2755 = vpack.c.b16 %v2721, %v2720
          %v2756 = vpack.c.b16 %v2723, %v2722
          %v2757 = vpack.c.b16 %v2725, %v2724
          %v2758 = vpack.c.b16 %v2727, %v2726
          %v2759 = vpack.c.b16 %v2729, %v2728
          %v2760 = vpack.c.b16 %v2731, %v2730
          %v2761 = vpack.c.b16 %v2733, %v2732
          %v2762 = vpack.c.b16 %v2735, %v2734
          %v2763 = vpack.c.b16 %v2737, %v2736
          %v2764 = vpack.c.b16 %v2739, %v2738
          %v2765 = vpack.c.b16 %v2741, %v2740
          %v2766 = vpack.c.b16 %v2743, %v2742
          %v2767 = vpack.c.b16 %v2745, %v2744
          %2790 = vst [vmem:[%s410] sm:$0xff] %v2746
          %2791 = vst [vmem:[%s410 + $0x8] sm:$0xff] %v2747
          %2792 = vst [vmem:[%s410 + $0x10] sm:$0xff] %v2748
          %2793 = vst [vmem:[%s410 + $0x18] sm:$0xff] %v2749
          %2794 = vst [vmem:[%s410 + $0x20] sm:$0xff] %v2750
          %2795 = vst [vmem:[%s410 + $0x28] sm:$0xff] %v2751
          %2796 = vst [vmem:[%s410 + $0x30] sm:$0xff] %v2752
          %2797 = vst [vmem:[%s410 + $0x38] sm:$0xff] %v2753
          %2798 = vst [vmem:[%s410 + $0x40] sm:$0xff] %v2754
          %2799 = vst [vmem:[%s410 + $0x48] sm:$0xff] %v2755
          %2800 = vst [vmem:[%s410 + $0x50] sm:$0xff] %v2756
          %2801 = vst [vmem:[%s410 + $0x58] sm:$0xff] %v2757
          %2802 = vst [vmem:[%s410 + $0x60] sm:$0xff] %v2758
          %2803 = vst [vmem:[%s410 + $0x68] sm:$0xff] %v2759
          %2804 = vst [vmem:[%s410 + $0x70] sm:$0xff] %v2760
          %2805 = vst [vmem:[%s410 + $0x78] sm:$0xff] %v2761
          %2806 = vst [vmem:[%s410 + $0x80] sm:$0xff] %v2762
          %2807 = vst [vmem:[%s410 + $0x88] sm:$0xff] %v2763
          %2808 = vst [vmem:[%s410 + $0x90] sm:$0xff] %v2764
          %2809 = vst [vmem:[%s410 + $0x98] sm:$0xff] %v2765
          %2810 = vst [vmem:[%s410 + $0xa0] sm:$0xff] %v2766
          %2811 = vst [vmem:[%s410 + $0xa8] sm:$0xff] %v2767
        $region67: #{_policy_act_impl.5} parent=50 // pred_fallthru
          _
        %s2812 = smul.u32 22, %s18
        %p2813 = scmp.lt.s32.totalorder %s2812, 21
        %s2814 = scalar_select %p2813, %s2812, 21
        %s2815 = smul.addr %s2814, 2
        %s2816 = smul.addr %s2815, 4
        %s2817 = scalar_lea.vmem %s3, %s2816
        // Predicated region
        $region68: #{_policy_act_impl.5} parent=50 // pred_check
          %p2818 = pneg %p119
        $region69: #{_policy_act_impl.5} parent=50 // pred_check_branch
          %2820 = sbr.rel (%p2818) target = $region71
        $region70: #{_policy_act_impl.5} parent=50 // pred_region
          %s2821 = smul.u32 22, %s18
        $region71: #{_policy_act_impl.5} parent=50 // pred_fallthru
          _
        // Predicated region
        $region72: #{_policy_act_impl.5} parent=50 // pred_check
          %p2822 = pneg %p119
        $region73: #{_policy_act_impl.5} parent=50 // pred_check_branch
          %2824 = sbr.rel (%p2822) target = $region75
        $region74: #{_policy_act_impl.5} parent=50 // pred_region
          %s2825 = smul.u32 22, %s18
          %p2826 = scmp.lt.s32.totalorder %s2825, 21
          %s2827 = scalar_select %p2826, %s2825, 21
          %s2828 = smul.addr %s2827, 2
          %s2829 = smul.addr %s2828, 4
          %s2830 = scalar_lea.vmem %s3, %s2829
        $region75: #{_policy_act_impl.5} parent=50 // pred_fallthru
          _
      $region51: #{_policy_act_impl.5} parent=5 // pred_fallthru
        _
      %p2831 = scmp.le.s32.totalorder 2, %s9
      // Predicated region
      $region76: #{_policy_act_impl.5} parent=5 // pred_check
        %p2832 = pneg %p2831
      $region77: #{_policy_act_impl.5} parent=5 // pred_check_branch
        %2834 = sbr.rel (%p2832) target = $region79
      $region78: #{_policy_act_impl.5} parent=5 // pred_region
        %s2835 = ssub.s32 %s9, 2
      $region79: #{_policy_act_impl.5} parent=5 // pred_fallthru
        _
    $region6: #{_policy_act_impl.5} parent=1 // loop_footer
      %s13 = sadd.s32 1, %s9
    $region7: #{_policy_act_impl.5} parent=1 // loop_footer_branch
      %8 = sbr.rel target = $region3
    $region8: #{_policy_act_impl.5} parent=1 // loop_exit
      _

// kernel: _policy_act_impl.6
$region0: #{_policy_act_impl.6}
  #allocation0 [shape = 'u32[]', space=smem, size = 0x4, offset = 0x4, fixed_abs, tag = 'smem constant byte address 0x4 - core index']
  #allocation1 [shape = 'u32[144,128]{1,0:T(1,128)}', space=vmem, size = 0x12000, scoped, tag = 'internal scratch']
  #allocation2 [shape = 'f32[112,128]{1,0:T(8,128)}', space=vmem, size = 0xe000, scoped, tag = 'scratch operand']
  %s0 = inlined_call_operand.vmem [shape: bf16[112,2304], index: 0, kind: input, shape index: {}]
  %s1 = inlined_call_operand.vmem [shape: bf16[2304,128], index: 1, kind: input, shape index: {}]
  %s2 = inlined_call_operand.vmem [shape: f32[1,128], index: 2, kind: input, shape index: {}]
  %s3 = inlined_call_operand.vmem [shape: bf16[112,128], index: 3, kind: output, shape index: {}]
  %s4 = sld [smem:[#allocation0]]
  $region80: #{_policy_act_impl.6} parent=0
    _
  %s6 = ssub.s32 1, %s4
  %s7 = scalar_select 0, %s6, %s4
  $region1: #{_policy_act_impl.6} parent=0
    #allocation3 [shape = 'u8[344064]{0}', space=vmem, size = 0x54000, scoped, tag = 'input window, operand 0']
    loop: start=0, step=1, limit=5
    $region2: #{_policy_act_impl.6} parent=1 // loop_pre_header
      _
    $region3: #{_policy_act_impl.6} parent=1 // loop_header
      %s9 = sphi 0, %s13
      %p10 = scmp.ge.s32.totalorder %s9, 5
      %s16 = sphi 0, %s28
      %s17 = sphi 0, %s24
      %s18 = sphi 0, %s16
      %s19 = sphi 0, %s17
      %s20 = sphi 0, %s18
      %s21 = sphi 0, %s19
      %s33 = sphi 0, %s35
      %s36 = sphi 0, %s33
      %s37 = sphi 0, %s36
      %s53 = sphi 0, %s37
      %s59 = sphi 0, %s61
      %s62 = sphi 0, %s59
      %s63 = sphi 0, %s62
      %s79 = sphi 0, %s63
      %s83 = sphi 0, %s83
      %s85 = sphi 0, %s83
      %s86 = sphi 0, %s85
      %s100 = sphi 0, %s86
      %s106 = sphi 0, %s108
      %s109 = sphi 0, %s106
      %s110 = sphi 0, %s109
      %s126 = sphi 0, %s110
    $region4: #{_policy_act_impl.6} parent=1 // loop_header_branch
      %12 = sbr.rel (%p10) target = $region8
    $region5: #{_policy_act_impl.6} parent=1 // loop_body
      %s14 = ssub.s32 %s9, 1
      %s15 = ssub.s32 %s9, 2
      %s22 = sadd.s32 1, %s17
      %p23 = scmp.ge.s32.totalorder %s22, 3
      %s24 = scalar_select %p23, 0, %s22
      %s25 = sadd.s32 1, %s16
      %s26 = scalar_select %p23, %s25, %s16
      %p27 = scmp.ge.s32.totalorder %s26, 1
      %s28 = scalar_select %p27, 0, %s26
      %s29 = ssub.s32 %s16, %s28
      %s30 = ssub.s32 %s17, %s24
      %s31 = sor.u32 %s29, %s30
      %p32 = scmp.eq.s32.totalorder %s31, 0
      %s34 = sadd.s32 %s33, 1
      %s35 = scalar_select %p32, %s33, %s34
      %p38 = pneg %p32
      %p39 = scmp.eq.s32.totalorder %s9, 2
      %p40 = por %p38, %p39
      %p41 = scmp.ne.s32.totalorder %s33, %s36
      %p42 = scmp.eq.s32.totalorder %s9, 0
      %p43 = por %p41, %p42
      %p44 = scmp.ne.s32.totalorder %s33, %s36
      %p45 = scmp.eq.s32.totalorder %s14, 2
      %p46 = por %p44, %p45
      %p47 = scmp.ne.s32.totalorder %s36, %s37
      %p48 = scmp.eq.s32.totalorder %s14, 0
      %p49 = por %p47, %p48
      %p50 = scmp.ne.s32.totalorder %s36, %s37
      %p51 = scmp.eq.s32.totalorder %s15, 2
      %p52 = por %p50, %p51
      %p54 = scmp.ne.s32.totalorder %s37, %s53
      %p55 = scmp.eq.s32.totalorder %s15, 0
      %p56 = por %p54, %p55
      %s57 = ssub.s32 %s17, %s24
      %p58 = scmp.eq.s32.totalorder %s57, 0
      %s60 = sadd.s32 %s59, 1
      %s61 = scalar_select %p58, %s59, %s60
      %p64 = pneg %p58
      %p65 = scmp.eq.s32.totalorder %s9, 2
      %p66 = por %p64, %p65
      %p67 = scmp.ne.s32.totalorder %s59, %s62
      %p68 = scmp.eq.s32.totalorder %s9, 0
      %p69 = por %p67, %p68
      %p70 = scmp.ne.s32.totalorder %s59, %s62
      %p71 = scmp.eq.s32.totalorder %s14, 2
      %p72 = por %p70, %p71
      %p73 = scmp.ne.s32.totalorder %s62, %s63
      %p74 = scmp.eq.s32.totalorder %s14, 0
      %p75 = por %p73, %p74
      %p76 = scmp.ne.s32.totalorder %s62, %s63
      %p77 = scmp.eq.s32.totalorder %s15, 2
      %p78 = por %p76, %p77
      %p80 = scmp.ne.s32.totalorder %s63, %s79
      %p81 = scmp.eq.s32.totalorder %s15, 0
      %p82 = por %p80, %p81
      %s84 = sadd.s32 %s83, 1
      %p87 = scmp.eq.s32.totalorder %s9, 2
      %p88 = scmp.ne.s32.totalorder %s83, %s85
      %p89 = scmp.eq.s32.totalorder %s9, 0
      %p90 = por %p88, %p89
      %p91 = scmp.ne.s32.totalorder %s83, %s85
      %p92 = scmp.eq.s32.totalorder %s14, 2
      %p93 = por %p91, %p92
      %p94 = scmp.ne.s32.totalorder %s85, %s86
      %p95 = scmp.eq.s32.totalorder %s14, 0
      %p96 = por %p94, %p95
      %p97 = scmp.ne.s32.totalorder %s85, %s86
      %p98 = scmp.eq.s32.totalorder %s15, 2
      %p99 = por %p97, %p98
      %p101 = scmp.ne.s32.totalorder %s86, %s100
      %p102 = scmp.eq.s32.totalorder %s15, 0
      %p103 = por %p101, %p102
      %s104 = ssub.s32 %s16, %s28
      %p105 = scmp.eq.s32.totalorder %s104, 0
      %s107 = sadd.s32 %s106, 1
      %s108 = scalar_select %p105, %s106, %s107
      %p111 = pneg %p105
      %p112 = scmp.eq.s32.totalorder %s9, 2
      %p113 = por %p111, %p112
      %p114 = scmp.ne.s32.totalorder %s106, %s109
      %p115 = scmp.eq.s32.totalorder %s9, 0
      %p116 = por %p114, %p115
      %p117 = scmp.ne.s32.totalorder %s106, %s109
      %p118 = scmp.eq.s32.totalorder %s14, 2
      %p119 = por %p117, %p118
      %p120 = scmp.ne.s32.totalorder %s109, %s110
      %p121 = scmp.eq.s32.totalorder %s14, 0
      %p122 = por %p120, %p121
      %p123 = scmp.ne.s32.totalorder %s109, %s110
      %p124 = scmp.eq.s32.totalorder %s15, 2
      %p125 = por %p123, %p124
      %p127 = scmp.ne.s32.totalorder %s110, %s126
      %p128 = scmp.eq.s32.totalorder %s15, 0
      %p129 = por %p127, %p128
      %p130 = scmp.le.s32.totalorder 1, %s9
      %p131 = scmp.lt.s32.totalorder %s9, 4
      %p132 = pnand %p130, %p131
      %p133 = pneg %p132
      // Predicated region
      $region9: #{_policy_act_impl.6} parent=5 // pred_check
        _
      $region10: #{_policy_act_impl.6} parent=5 // pred_check_branch
        %135 = sbr.rel (%p132) target = $region12
      $region11: #{_policy_act_impl.6} parent=5 // pred_region
        %s136 = ssub.s32 %s9, 1
        // Predicated region
        $region13: #{_policy_act_impl.6} parent=11 // pred_check
          %p137 = pneg %p96
        $region14: #{_policy_act_impl.6} parent=11 // pred_check_branch
          %139 = sbr.rel (%p137) target = $region16
        $region15: #{_policy_act_impl.6} parent=11 // pred_region
          _
        $region16: #{_policy_act_impl.6} parent=11 // pred_fallthru
          _
      $region12: #{_policy_act_impl.6} parent=5 // pred_fallthru
        _
      %p140 = scmp.lt.s32.totalorder %s9, 3
      // Predicated region
      $region17: #{_policy_act_impl.6} parent=5 // pred_check
        %p141 = pneg %p140
      $region18: #{_policy_act_impl.6} parent=5 // pred_check_branch
        %143 = sbr.rel (%p141) target = $region20
      $region19: #{_policy_act_impl.6} parent=5 // pred_region
        // Predicated region
        $region21: #{_policy_act_impl.6} parent=19 // pred_check
          %p144 = pneg %p43
        $region22: #{_policy_act_impl.6} parent=19 // pred_check_branch
          %146 = sbr.rel (%p144) target = $region24
        $region23: #{_policy_act_impl.6} parent=19 // pred_region
          %s147 = sand.u32 %s33, 1
          %s148 = sand.u32 %s33, 1
          %s149 = smul.addr %s148, 336
          %s150 = scalar_lea.vmem [#allocation3], %s149
          %s151 = smul.u32 14, %s16
          %s152 = smul.u32 6, %s17
          %s153 = smul.addr %s151, 18
          %s154 = sadd.s32 %s152, %s153
          %s155 = smul.addr %s154, 4
          %s156 = scalar_lea.vmem %s0, %s155
          // Predicated region
          $region25: #{_policy_act_impl.6} parent=23 // pred_check
            _
          $region26: #{_policy_act_impl.6} parent=23 // pred_check_branch
            %158 = sbr.rel (0) target = $region28
          $region27: #{_policy_act_impl.6} parent=23 // pred_region
            // Predicated region
            $region29: #{_policy_act_impl.6} parent=27 // pred_check
              _
            $region30: #{_policy_act_impl.6} parent=27 // pred_check_branch
              %160 = sbr.rel (0) target = $region32
            $region31: #{_policy_act_impl.6} parent=27 // pred_region
              loop: start=0, step=1, limit=1
              $region33: #{_policy_act_impl.6} parent=31 // loop_pre_header
                _
              $region34: #{_policy_act_impl.6} parent=31 // loop_header
                %s162 = sphi 0, %s166
                %p163 = scmp.ge.s32.totalorder %s162, 1
                %s167 = sphi %s156, %s156
                %s168 = sphi %s150, %s150
              $region35: #{_policy_act_impl.6} parent=31 // loop_header_branch
                %165 = sbr.rel (%p163) target = $region39
              $region36: #{_policy_act_impl.6} parent=31 // loop_body
                %v169 = vld [vmem:[%s167] sm:$0xff]
                %170 = vst [vmem:[%s168] sm:$0xff] %v169
                %v171 = vld [vmem:[%s167 + $0x8] sm:$0xff]
                %172 = vst [vmem:[%s168 + $0x8] sm:$0xff] %v171
                %v173 = vld [vmem:[%s167 + $0x10] sm:$0xff]
                %174 = vst [vmem:[%s168 + $0x10] sm:$0xff] %v173
                %v175 = vld [vmem:[%s167 + $0x48] sm:$0xff]
                %176 = vst [vmem:[%s168 + $0x18] sm:$0xff] %v175
                %v177 = vld [vmem:[%s167 + $0x50] sm:$0xff]
                %178 = vst [vmem:[%s168 + $0x20] sm:$0xff] %v177
                %v179 = vld [vmem:[%s167 + $0x58] sm:$0xff]
                %180 = vst [vmem:[%s168 + $0x28] sm:$0xff] %v179
                %v181 = vld [vmem:[%s167 + $0x90] sm:$0xff]
                %182 = vst [vmem:[%s168 + $0x30] sm:$0xff] %v181
                %v183 = vld [vmem:[%s167 + $0x98] sm:$0xff]
                %184 = vst [vmem:[%s168 + $0x38] sm:$0xff] %v183
                %v185 = vld [vmem:[%s167 + $0xa0] sm:$0xff]
                %186 = vst [vmem:[%s168 + $0x40] sm:$0xff] %v185
                %v187 = vld [vmem:[%s167 + $0xd8] sm:$0xff]
                %188 = vst [vmem:[%s168 + $0x48] sm:$0xff] %v187
                %v189 = vld [vmem:[%s167 + $0xe0] sm:$0xff]
                %190 = vst [vmem:[%s168 + $0x50] sm:$0xff] %v189
                %v191 = vld [vmem:[%s167 + $0xe8] sm:$0xff]
                %192 = vst [vmem:[%s168 + $0x58] sm:$0xff] %v191
                %v193 = vld [vmem:[%s167 + $0x120] sm:$0xff]
                %194 = vst [vmem:[%s168 + $0x60] sm:$0xff] %v193
                %v195 = vld [vmem:[%s167 + $0x128] sm:$0xff]
                %196 = vst [vmem:[%s168 + $0x68] sm:$0xff] %v195
                %v197 = vld [vmem:[%s167 + $0x130] sm:$0xff]
                %198 = vst [vmem:[%s168 + $0x70] sm:$0xff] %v197
                %v199 = vld [vmem:[%s167 + $0x168] sm:$0xff]
                %200 = vst [vmem:[%s168 + $0x78] sm:$0xff] %v199
                %v201 = vld [vmem:[%s167 + $0x170] sm:$0xff]
                %202 = vst [vmem:[%s168 + $0x80] sm:$0xff] %v201
                %v203 = vld [vmem:[%s167 + $0x178] sm:$0xff]
                %204 = vst [vmem:[%s168 + $0x88] sm:$0xff] %v203
                %v205 = vld [vmem:[%s167 + $0x1b0] sm:$0xff]
                %206 = vst [vmem:[%s168 + $0x90] sm:$0xff] %v205
                %v207 = vld [vmem:[%s167 + $0x1b8] sm:$0xff]
                %208 = vst [vmem:[%s168 + $0x98] sm:$0xff] %v207
                %v209 = vld [vmem:[%s167 + $0x1c0] sm:$0xff]
                %210 = vst [vmem:[%s168 + $0xa0] sm:$0xff] %v209
                %v211 = vld [vmem:[%s167 + $0x1f8] sm:$0xff]
                %212 = vst [vmem:[%s168 + $0xa8] sm:$0xff] %v211
                %v213 = vld [vmem:[%s167 + $0x200] sm:$0xff]
                %214 = vst [vmem:[%s168 + $0xb0] sm:$0xff] %v213
                %v215 = vld [vmem:[%s167 + $0x208] sm:$0xff]
                %216 = vst [vmem:[%s168 + $0xb8] sm:$0xff] %v215
                %v217 = vld [vmem:[%s167 + $0x240] sm:$0xff]
                %218 = vst [vmem:[%s168 + $0xc0] sm:$0xff] %v217
                %v219 = vld [vmem:[%s167 + $0x248] sm:$0xff]
                %220 = vst [vmem:[%s168 + $0xc8] sm:$0xff] %v219
                %v221 = vld [vmem:[%s167 + $0x250] sm:$0xff]
                %222 = vst [vmem:[%s168 + $0xd0] sm:$0xff] %v221
                %v223 = vld [vmem:[%s167 + $0x288] sm:$0xff]
                %224 = vst [vmem:[%s168 + $0xd8] sm:$0xff] %v223
                %v225 = vld [vmem:[%s167 + $0x290] sm:$0xff]
                %226 = vst [vmem:[%s168 + $0xe0] sm:$0xff] %v225
                %v227 = vld [vmem:[%s167 + $0x298] sm:$0xff]
                %228 = vst [vmem:[%s168 + $0xe8] sm:$0xff] %v227
                %v229 = vld [vmem:[%s167 + $0x2d0] sm:$0xff]
                %230 = vst [vmem:[%s168 + $0xf0] sm:$0xff] %v229
                %v231 = vld [vmem:[%s167 + $0x2d8] sm:$0xff]
                %232 = vst [vmem:[%s168 + $0xf8] sm:$0xff] %v231
                %v233 = vld [vmem:[%s167 + $0x2e0] sm:$0xff]
                %234 = vst [vmem:[%s168 + $0x100] sm:$0xff] %v233
                %v235 = vld [vmem:[%s167 + $0x318] sm:$0xff]
                %236 = vst [vmem:[%s168 + $0x108] sm:$0xff] %v235
                %v237 = vld [vmem:[%s167 + $0x320] sm:$0xff]
                %238 = vst [vmem:[%s168 + $0x110] sm:$0xff] %v237
                %v239 = vld [vmem:[%s167 + $0x328] sm:$0xff]
                %240 = vst [vmem:[%s168 + $0x118] sm:$0xff] %v239
                %v241 = vld [vmem:[%s167 + $0x360] sm:$0xff]
                %242 = vst [vmem:[%s168 + $0x120] sm:$0xff] %v241
                %v243 = vld [vmem:[%s167 + $0x368] sm:$0xff]
                %244 = vst [vmem:[%s168 + $0x128] sm:$0xff] %v243
                %v245 = vld [vmem:[%s167 + $0x370] sm:$0xff]
                %246 = vst [vmem:[%s168 + $0x130] sm:$0xff] %v245
                %v247 = vld [vmem:[%s167 + $0x3a8] sm:$0xff]
                %248 = vst [vmem:[%s168 + $0x138] sm:$0xff] %v247
                %v249 = vld [vmem:[%s167 + $0x3b0] sm:$0xff]
                %250 = vst [vmem:[%s168 + $0x140] sm:$0xff] %v249
                %v251 = vld [vmem:[%s167 + $0x3b8] sm:$0xff]
                %252 = vst [vmem:[%s168 + $0x148] sm:$0xff] %v251
              $region37: #{_policy_act_impl.6} parent=31 // loop_footer
                %s166 = sadd.s32 1, %s162
              $region38: #{_policy_act_impl.6} parent=31 // loop_footer_branch
                %161 = sbr.rel target = $region34
              $region39: #{_policy_act_impl.6} parent=31 // loop_exit
                _
            $region32: #{_policy_act_impl.6} parent=27 // pred_fallthru
              _
            // Predicated region
            $region40: #{_policy_act_impl.6} parent=27 // pred_check
              _
            $region41: #{_policy_act_impl.6} parent=27 // pred_check_branch
              %254 = sbr.rel target = $region43
            $region42: #{_policy_act_impl.6} parent=27 // pred_region
              _
            $region43: #{_policy_act_impl.6} parent=27 // pred_fallthru
              _
          $region28: #{_policy_act_impl.6} parent=23 // pred_fallthru
            _
          %255 = vnop
        $region24: #{_policy_act_impl.6} parent=19 // pred_fallthru
          _
        // Predicated region
        $region44: #{_policy_act_impl.6} parent=19 // pred_check
          %p256 = pneg %p69
        $region45: #{_policy_act_impl.6} parent=19 // pred_check_branch
          %258 = sbr.rel (%p256) target = $region47
        $region46: #{_policy_act_impl.6} parent=19 // pred_region
          %s259 = smul.u32 96, %s17
          %p260 = scmp.lt.s32.totalorder %s259, 287
          %s261 = scalar_select %p260, %s259, 287
          %s262 = smul.addr %s261, 4
          %s263 = scalar_lea.vmem %s1, %s262
          %s264 = smul.u32 96, %s17
        $region47: #{_policy_act_impl.6} parent=19 // pred_fallthru
          _
      $region20: #{_policy_act_impl.6} parent=5 // pred_fallthru
        _
      %p265 = scmp.le.s32.totalorder 1, %s9
      %p266 = scmp.lt.s32.totalorder %s9, 4
      %p267 = pnand %p265, %p266
      %p268 = pneg %p267
      // Predicated region
      $region48: #{_policy_act_impl.6} parent=5 // pred_check
        _
      $region49: #{_policy_act_impl.6} parent=5 // pred_check_branch
        %270 = sbr.rel (%p267) target = $region51
      $region50: #{_policy_act_impl.6} parent=5 // pred_region
        %s271 = ssub.s32 %s9, 1
        %s272 = sand.u32 %s36, 1
        %s273 = sand.u32 %s36, 1
        %s274 = smul.addr %s273, 336
        %s275 = scalar_lea.vmem [#allocation3], %s274
        // Predicated region
        $region52: #{_policy_act_impl.6} parent=50 // pred_check
          %p276 = pneg %p49
        $region53: #{_policy_act_impl.6} parent=50 // pred_check_branch
          %278 = sbr.rel (%p276) target = $region55
        $region54: #{_policy_act_impl.6} parent=50 // pred_region
          _
        $region55: #{_policy_act_impl.6} parent=50 // pred_fallthru
          _
        %s279 = sand.u32 %s36, 1
        %s280 = sand.u32 %s36, 1
        %s281 = smul.addr %s280, 336
        %s282 = scalar_lea.vmem [#allocation3], %s281
        %p283 = pneg %p49
        %p284 = pneg %p46
        %s285 = smul.u32 96, %s19
        %p286 = scmp.lt.s32.totalorder %s285, 287
        %s287 = scalar_select %p286, %s285, 287
        %s288 = smul.addr %s287, 4
        %s289 = scalar_lea.vmem %s1, %s288
        %p290 = pneg %p75
        %p291 = pneg %p72
        %p292 = pneg %p96
        %p293 = pneg %p93
        %p294 = pneg %p122
        %p295 = pneg %p119
        %s296 = smul.u32 14, %s18
        %p297 = scmp.lt.s32.totalorder %s296, 13
        %s298 = scalar_select %p297, %s296, 13
        %s299 = smul.addr %s298, 4
        %s300 = scalar_lea.vmem %s3, %s299
        %s301 = smul.u32 14, %s18
        %s302 = smul.u32 6, %s19
        %s303 = smul.u32 96, %s19
        %p304 = scmp.lt.s32.totalorder %s303, 287
        %s305 = scalar_select %p304, %s303, 287
        %s306 = smul.addr %s305, 4
        %s307 = scalar_lea.vmem %s1, %s306
        %s308 = smul.u32 96, %s19
        %s309 = smul.u32 14, %s18
        %p310 = scmp.lt.s32.totalorder %s309, 13
        %s311 = scalar_select %p310, %s309, 13
        %s312 = smul.addr %s311, 4
        %s313 = scalar_lea.vmem %s3, %s312
        %s314 = smul.u32 14, %s18
        %v316 = vld [vmem:[%s275] sm:$0xff]
        %v317 = vld [vmem:[%s275 + $0x8] sm:$0xff]
        %v318 = vld [vmem:[%s275 + $0x10] sm:$0xff]
        %v319 = vld [vmem:[%s275 + $0x18] sm:$0xff]
        %v320 = vld [vmem:[%s275 + $0x20] sm:$0xff]
        %v321 = vld [vmem:[%s275 + $0x28] sm:$0xff]
        %v322 = vld [vmem:[%s275 + $0x30] sm:$0xff]
        %v323 = vld [vmem:[%s275 + $0x38] sm:$0xff]
        %v324 = vld [vmem:[%s275 + $0x40] sm:$0xff]
        %v325 = vld [vmem:[%s275 + $0x48] sm:$0xff]
        %v326 = vld [vmem:[%s275 + $0x50] sm:$0xff]
        %v327 = vld [vmem:[%s275 + $0x58] sm:$0xff]
        %v328 = vld [vmem:[%s275 + $0x60] sm:$0xff]
        %v329 = vld [vmem:[%s275 + $0x68] sm:$0xff]
        %v330 = vld [vmem:[%s275 + $0x70] sm:$0xff]
        %v331 = vld [vmem:[%s275 + $0x78] sm:$0xff]
        %v332 = vld [vmem:[%s275 + $0x80] sm:$0xff]
        %v333 = vld [vmem:[%s275 + $0x88] sm:$0xff]
        %v334 = vld [vmem:[%s275 + $0x90] sm:$0xff]
        %v335 = vld [vmem:[%s275 + $0x98] sm:$0xff]
        %v336 = vld [vmem:[%s275 + $0xa0] sm:$0xff]
        %v337 = vld [vmem:[%s275 + $0xa8] sm:$0xff]
        %v338 = vld [vmem:[%s275 + $0xb0] sm:$0xff]
        %v339 = vld [vmem:[%s275 + $0xb8] sm:$0xff]
        %v340 = vld [vmem:[%s275 + $0xc0] sm:$0xff]
        %v341 = vld [vmem:[%s275 + $0xc8] sm:$0xff]
        %v342 = vld [vmem:[%s275 + $0xd0] sm:$0xff]
        %v343 = vld [vmem:[%s275 + $0xd8] sm:$0xff]
        %v344 = vld [vmem:[%s275 + $0xe0] sm:$0xff]
        %v345 = vld [vmem:[%s275 + $0xe8] sm:$0xff]
        %v346 = vld [vmem:[%s275 + $0xf0] sm:$0xff]
        %v347 = vld [vmem:[%s275 + $0xf8] sm:$0xff]
        %v348 = vld [vmem:[%s275 + $0x100] sm:$0xff]
        %v349 = vld [vmem:[%s275 + $0x108] sm:$0xff]
        %v350 = vld [vmem:[%s275 + $0x110] sm:$0xff]
        %v351 = vld [vmem:[%s275 + $0x118] sm:$0xff]
        %v352 = vld [vmem:[%s275 + $0x120] sm:$0xff]
        %v353 = vld [vmem:[%s275 + $0x128] sm:$0xff]
        %v354 = vld [vmem:[%s275 + $0x130] sm:$0xff]
        %v355 = vld [vmem:[%s275 + $0x138] sm:$0xff]
        %v356 = vld [vmem:[%s275 + $0x140] sm:$0xff]
        %v357 = vld [vmem:[%s275 + $0x148] sm:$0xff]
        %v358 = vld [vmem:[%s307] sm:$0xf]
        %v359 = vld [vmem:[%s307 + $0x4] sm:$0xf]
        %v360 = vld [vmem:[%s307 + $0x8] sm:$0xf]
        %v361 = vld [vmem:[%s307 + $0xc] sm:$0xf]
        %v362 = vld [vmem:[%s307 + $0x10] sm:$0xf]
        %v363 = vld [vmem:[%s307 + $0x14] sm:$0xf]
        %v364 = vld [vmem:[%s307 + $0x18] sm:$0xf]
        %v365 = vld [vmem:[%s307 + $0x1c] sm:$0xf]
        %v366 = vld [vmem:[%s307 + $0x20] sm:$0xf]
        %v367 = vld [vmem:[%s307 + $0x24] sm:$0xf]
        %v368 = vld [vmem:[%s307 + $0x28] sm:$0xf]
        %v369 = vld [vmem:[%s307 + $0x2c] sm:$0xf]
        %v370 = vld [vmem:[%s307 + $0x30] sm:$0xf]
        %v371 = vld [vmem:[%s307 + $0x34] sm:$0xf]
        %v372 = vld [vmem:[%s307 + $0x38] sm:$0xf]
        %v373 = vld [vmem:[%s307 + $0x3c] sm:$0xf]
        %v374 = vld [vmem:[%s307 + $0x40] sm:$0xf]
        %v375 = vld [vmem:[%s307 + $0x44] sm:$0xf]
        %v376 = vld [vmem:[%s307 + $0x48] sm:$0xf]
        %v377 = vld [vmem:[%s307 + $0x4c] sm:$0xf]
        %v378 = vld [vmem:[%s307 + $0x50] sm:$0xf]
        %v379 = vld [vmem:[%s307 + $0x54] sm:$0xf]
        %v380 = vld [vmem:[%s307 + $0x58] sm:$0xf]
        %v381 = vld [vmem:[%s307 + $0x5c] sm:$0xf]
        %v382 = vld [vmem:[%s307 + $0x60] sm:$0xf]
        %v383 = vld [vmem:[%s307 + $0x64] sm:$0xf]
        %v384 = vld [vmem:[%s307 + $0x68] sm:$0xf]
        %v385 = vld [vmem:[%s307 + $0x6c] sm:$0xf]
        %v386 = vld [vmem:[%s307 + $0x70] sm:$0xf]
        %v387 = vld [vmem:[%s307 + $0x74] sm:$0xf]
        %v388 = vld [vmem:[%s307 + $0x78] sm:$0xf]
        %v389 = vld [vmem:[%s307 + $0x7c] sm:$0xf]
        %v390 = vld [vmem:[%s307 + $0x80] sm:$0xf]
        %v391 = vld [vmem:[%s307 + $0x84] sm:$0xf]
        %v392 = vld [vmem:[%s307 + $0x88] sm:$0xf]
        %v393 = vld [vmem:[%s307 + $0x8c] sm:$0xf]
        %v394 = vld [vmem:[%s307 + $0x90] sm:$0xf]
        %v395 = vld [vmem:[%s307 + $0x94] sm:$0xf]
        %v396 = vld [vmem:[%s307 + $0x98] sm:$0xf]
        %v397 = vld [vmem:[%s307 + $0x9c] sm:$0xf]
        %v398 = vld [vmem:[%s307 + $0xa0] sm:$0xf]
        %v399 = vld [vmem:[%s307 + $0xa4] sm:$0xf]
        %v400 = vld [vmem:[%s307 + $0xa8] sm:$0xf]
        %v401 = vld [vmem:[%s307 + $0xac] sm:$0xf]
        %v402 = vld [vmem:[%s307 + $0xb0] sm:$0xf]
        %v403 = vld [vmem:[%s307 + $0xb4] sm:$0xf]
        %v404 = vld [vmem:[%s307 + $0xb8] sm:$0xf]
        %v405 = vld [vmem:[%s307 + $0xbc] sm:$0xf]
        %v406 = vld [vmem:[%s307 + $0xc0] sm:$0xf]
        %v407 = vld [vmem:[%s307 + $0xc4] sm:$0xf]
        %v408 = vld [vmem:[%s307 + $0xc8] sm:$0xf]
        %v409 = vld [vmem:[%s307 + $0xcc] sm:$0xf]
        %v410 = vld [vmem:[%s307 + $0xd0] sm:$0xf]
        %v411 = vld [vmem:[%s307 + $0xd4] sm:$0xf]
        %v412 = vld [vmem:[%s307 + $0xd8] sm:$0xf]
        %v413 = vld [vmem:[%s307 + $0xdc] sm:$0xf]
        %v414 = vld [vmem:[%s307 + $0xe0] sm:$0xf]
        %v415 = vld [vmem:[%s307 + $0xe4] sm:$0xf]
        %v416 = vld [vmem:[%s307 + $0xe8] sm:$0xf]
        %v417 = vld [vmem:[%s307 + $0xec] sm:$0xf]
        %v418 = vld [vmem:[%s307 + $0xf0] sm:$0xf]
        %v419 = vld [vmem:[%s307 + $0xf4] sm:$0xf]
        %v420 = vld [vmem:[%s307 + $0xf8] sm:$0xf]
        %v421 = vld [vmem:[%s307 + $0xfc] sm:$0xf]
        %v422 = vld [vmem:[%s307 + $0x100] sm:$0xf]
        %v423 = vld [vmem:[%s307 + $0x104] sm:$0xf]
        %v424 = vld [vmem:[%s307 + $0x108] sm:$0xf]
        %v425 = vld [vmem:[%s307 + $0x10c] sm:$0xf]
        %v426 = vld [vmem:[%s307 + $0x110] sm:$0xf]
        %v427 = vld [vmem:[%s307 + $0x114] sm:$0xf]
        %v428 = vld [vmem:[%s307 + $0x118] sm:$0xf]
        %v429 = vld [vmem:[%s307 + $0x11c] sm:$0xf]
        %v430 = vld [vmem:[%s307 + $0x120] sm:$0xf]
        %v431 = vld [vmem:[%s307 + $0x124] sm:$0xf]
        %v432 = vld [vmem:[%s307 + $0x128] sm:$0xf]
        %v433 = vld [vmem:[%s307 + $0x12c] sm:$0xf]
        %v434 = vld [vmem:[%s307 + $0x130] sm:$0xf]
        %v435 = vld [vmem:[%s307 + $0x134] sm:$0xf]
        %v436 = vld [vmem:[%s307 + $0x138] sm:$0xf]
        %v437 = vld [vmem:[%s307 + $0x13c] sm:$0xf]
        %v438 = vld [vmem:[%s307 + $0x140] sm:$0xf]
        %v439 = vld [vmem:[%s307 + $0x144] sm:$0xf]
        %v440 = vld [vmem:[%s307 + $0x148] sm:$0xf]
        %v441 = vld [vmem:[%s307 + $0x14c] sm:$0xf]
        %v442 = vld [vmem:[%s307 + $0x150] sm:$0xf]
        %v443 = vld [vmem:[%s307 + $0x154] sm:$0xf]
        %v444 = vld [vmem:[%s307 + $0x158] sm:$0xf]
        %v445 = vld [vmem:[%s307 + $0x15c] sm:$0xf]
        %v446 = vld [vmem:[%s307 + $0x160] sm:$0xf]
        %v447 = vld [vmem:[%s307 + $0x164] sm:$0xf]
        %v448 = vld [vmem:[%s307 + $0x168] sm:$0xf]
        %v449 = vld [vmem:[%s307 + $0x16c] sm:$0xf]
        %v450 = vld [vmem:[%s307 + $0x170] sm:$0xf]
        %v451 = vld [vmem:[%s307 + $0x174] sm:$0xf]
        %v452 = vld [vmem:[%s307 + $0x178] sm:$0xf]
        %v453 = vld [vmem:[%s307 + $0x17c] sm:$0xf]
        %v496 = vunpack.c.l.b16 %v316
        %v497 = vunpack.c.h.b16 %v316
        %v498 = vunpack.c.l.b16 %v317
        %v499 = vunpack.c.h.b16 %v317
        %v500 = vunpack.c.l.b16 %v318
        %v501 = vunpack.c.h.b16 %v318
        %v502 = vunpack.c.l.b16 %v319
        %v503 = vunpack.c.h.b16 %v319
        %v504 = vunpack.c.l.b16 %v320
        %v505 = vunpack.c.h.b16 %v320
        %v506 = vunpack.c.l.b16 %v321
        %v507 = vunpack.c.h.b16 %v321
        %v508 = vunpack.c.l.b16 %v322
        %v509 = vunpack.c.h.b16 %v322
        %v510 = vunpack.c.l.b16 %v323
        %v511 = vunpack.c.h.b16 %v323
        %v512 = vunpack.c.l.b16 %v324
        %v513 = vunpack.c.h.b16 %v324
        %v514 = vunpack.c.l.b16 %v325
        %v515 = vunpack.c.h.b16 %v325
        %v516 = vunpack.c.l.b16 %v326
        %v517 = vunpack.c.h.b16 %v326
        %v518 = vunpack.c.l.b16 %v327
        %v519 = vunpack.c.h.b16 %v327
        %v520 = vunpack.c.l.b16 %v328
        %v521 = vunpack.c.h.b16 %v328
        %v522 = vunpack.c.l.b16 %v329
        %v523 = vunpack.c.h.b16 %v329
        %v524 = vunpack.c.l.b16 %v330
        %v525 = vunpack.c.h.b16 %v330
        %v526 = vunpack.c.l.b16 %v331
        %v527 = vunpack.c.h.b16 %v331
        %v528 = vunpack.c.l.b16 %v332
        %v529 = vunpack.c.h.b16 %v332
        %v530 = vunpack.c.l.b16 %v333
        %v531 = vunpack.c.h.b16 %v333
        %v532 = vunpack.c.l.b16 %v334
        %v533 = vunpack.c.h.b16 %v334
        %v534 = vunpack.c.l.b16 %v335
        %v535 = vunpack.c.h.b16 %v335
        %v536 = vunpack.c.l.b16 %v336
        %v537 = vunpack.c.h.b16 %v336
        %v538 = vunpack.c.l.b16 %v337
        %v539 = vunpack.c.h.b16 %v337
        %v540 = vunpack.c.l.b16 %v338
        %v541 = vunpack.c.h.b16 %v338
        %v542 = vunpack.c.l.b16 %v339
        %v543 = vunpack.c.h.b16 %v339
        %v544 = vunpack.c.l.b16 %v340
        %v545 = vunpack.c.h.b16 %v340
        %v546 = vunpack.c.l.b16 %v341
        %v547 = vunpack.c.h.b16 %v341
        %v548 = vunpack.c.l.b16 %v342
        %v549 = vunpack.c.h.b16 %v342
        %v550 = vunpack.c.l.b16 %v343
        %v551 = vunpack.c.h.b16 %v343
        %v552 = vunpack.c.l.b16 %v344
        %v553 = vunpack.c.h.b16 %v344
        %v554 = vunpack.c.l.b16 %v345
        %v555 = vunpack.c.h.b16 %v345
        %v556 = vunpack.c.l.b16 %v346
        %v557 = vunpack.c.h.b16 %v346
        %v558 = vunpack.c.l.b16 %v347
        %v559 = vunpack.c.h.b16 %v347
        %v560 = vunpack.c.l.b16 %v348
        %v561 = vunpack.c.h.b16 %v348
        %v562 = vunpack.c.l.b16 %v349
        %v563 = vunpack.c.h.b16 %v349
        %v564 = vunpack.c.l.b16 %v350
        %v565 = vunpack.c.h.b16 %v350
        %v566 = vunpack.c.l.b16 %v351
        %v567 = vunpack.c.h.b16 %v351
        %v568 = vunpack.c.l.b16 %v352
        %v569 = vunpack.c.h.b16 %v352
        %v570 = vunpack.c.l.b16 %v353
        %v571 = vunpack.c.h.b16 %v353
        %v572 = vunpack.c.l.b16 %v354
        %v573 = vunpack.c.h.b16 %v354
        %v574 = vunpack.c.l.b16 %v355
        %v575 = vunpack.c.h.b16 %v355
        %v576 = vunpack.c.l.b16 %v356
        %v577 = vunpack.c.h.b16 %v356
        %v578 = vunpack.c.l.b16 %v357
        %v579 = vunpack.c.h.b16 %v357
        %v580 = vpack.c.b16 %v502, %v496
        %v581 = vpack.c.b16 %v503, %v497
        %v582 = vpack.c.b16 %v504, %v498
        %v583 = vpack.c.b16 %v505, %v499
        %v584 = vpack.c.b16 %v506, %v500
        %v585 = vpack.c.b16 %v507, %v501
        %v586 = vpack.c.b16 %v514, %v508
        %v587 = vpack.c.b16 %v515, %v509
        %v588 = vpack.c.b16 %v516, %v510
        %v589 = vpack.c.b16 %v517, %v511
        %v590 = vpack.c.b16 %v518, %v512
        %v591 = vpack.c.b16 %v519, %v513
        %v592 = vpack.c.b16 %v526, %v520
        %v593 = vpack.c.b16 %v527, %v521
        %v594 = vpack.c.b16 %v528, %v522
        %v595 = vpack.c.b16 %v529, %v523
        %v596 = vpack.c.b16 %v530, %v524
        %v597 = vpack.c.b16 %v531, %v525
        %v598 = vpack.c.b16 %v538, %v532
        %v599 = vpack.c.b16 %v539, %v533
        %v600 = vpack.c.b16 %v540, %v534
        %v601 = vpack.c.b16 %v541, %v535
        %v602 = vpack.c.b16 %v542, %v536
        %v603 = vpack.c.b16 %v543, %v537
        %v604 = vpack.c.b16 %v550, %v544
        %v605 = vpack.c.b16 %v551, %v545
        %v606 = vpack.c.b16 %v552, %v546
        %v607 = vpack.c.b16 %v553, %v547
        %v608 = vpack.c.b16 %v554, %v548
        %v609 = vpack.c.b16 %v555, %v549
        %v610 = vpack.c.b16 %v562, %v556
        %v611 = vpack.c.b16 %v563, %v557
        %v612 = vpack.c.b16 %v564, %v558
        %v613 = vpack.c.b16 %v565, %v559
        %v614 = vpack.c.b16 %v566, %v560
        %v615 = vpack.c.b16 %v567, %v561
        %v616 = vpack.c.b16 %v574, %v568
        %v617 = vpack.c.b16 %v575, %v569
        %v618 = vpack.c.b16 %v576, %v570
        %v619 = vpack.c.b16 %v577, %v571
        %v620 = vpack.c.b16 %v578, %v572
        %v621 = vpack.c.b16 %v579, %v573
        %v760 = vunpack.c.l.b16 %v358
        %v761 = vunpack.c.l.b16 %v359
        %v762 = vunpack.c.l.b16 %v360
        %v763 = vunpack.c.l.b16 %v361
        %v764 = vunpack.c.l.b16 %v362
        %v765 = vunpack.c.l.b16 %v363
        %v766 = vunpack.c.l.b16 %v364
        %v767 = vunpack.c.l.b16 %v365
        %v768 = vunpack.c.l.b16 %v366
        %v769 = vunpack.c.l.b16 %v367
        %v770 = vunpack.c.l.b16 %v368
        %v771 = vunpack.c.l.b16 %v369
        %v772 = vunpack.c.l.b16 %v370
        %v773 = vunpack.c.l.b16 %v371
        %v774 = vunpack.c.l.b16 %v372
        %v775 = vunpack.c.l.b16 %v373
        %v776 = vunpack.c.l.b16 %v374
        %v777 = vunpack.c.l.b16 %v375
        %v778 = vunpack.c.l.b16 %v376
        %v779 = vunpack.c.l.b16 %v377
        %v780 = vunpack.c.l.b16 %v378
        %v781 = vunpack.c.l.b16 %v379
        %v782 = vunpack.c.l.b16 %v380
        %v783 = vunpack.c.l.b16 %v381
        %v784 = vunpack.c.l.b16 %v382
        %v785 = vunpack.c.l.b16 %v383
        %v786 = vunpack.c.l.b16 %v384
        %v787 = vunpack.c.l.b16 %v385
        %v788 = vunpack.c.l.b16 %v386
        %v789 = vunpack.c.l.b16 %v387
        %v790 = vunpack.c.l.b16 %v388
        %v791 = vunpack.c.l.b16 %v389
        %v792 = vunpack.c.l.b16 %v390
        %v793 = vunpack.c.l.b16 %v391
        %v794 = vunpack.c.l.b16 %v392
        %v795 = vunpack.c.l.b16 %v393
        %v796 = vunpack.c.l.b16 %v394
        %v797 = vunpack.c.l.b16 %v395
        %v798 = vunpack.c.l.b16 %v396
        %v799 = vunpack.c.l.b16 %v397
        %v800 = vunpack.c.l.b16 %v398
        %v801 = vunpack.c.l.b16 %v399
        %v802 = vunpack.c.l.b16 %v400
        %v803 = vunpack.c.l.b16 %v401
        %v804 = vunpack.c.l.b16 %v402
        %v805 = vunpack.c.l.b16 %v403
        %v806 = vunpack.c.l.b16 %v404
        %v807 = vunpack.c.l.b16 %v405
        %v808 = vunpack.c.l.b16 %v406
        %v809 = vunpack.c.l.b16 %v407
        %v810 = vunpack.c.l.b16 %v408
        %v811 = vunpack.c.l.b16 %v409
        %v812 = vunpack.c.l.b16 %v410
        %v813 = vunpack.c.l.b16 %v411
        %v814 = vunpack.c.l.b16 %v412
        %v815 = vunpack.c.l.b16 %v413
        %v816 = vunpack.c.l.b16 %v414
        %v817 = vunpack.c.l.b16 %v415
        %v818 = vunpack.c.l.b16 %v416
        %v819 = vunpack.c.l.b16 %v417
        %v820 = vunpack.c.l.b16 %v418
        %v821 = vunpack.c.l.b16 %v419
        %v822 = vunpack.c.l.b16 %v420
        %v823 = vunpack.c.l.b16 %v421
        %v824 = vunpack.c.l.b16 %v422
        %v825 = vunpack.c.l.b16 %v423
        %v826 = vunpack.c.l.b16 %v424
        %v827 = vunpack.c.l.b16 %v425
        %v828 = vunpack.c.l.b16 %v426
        %v829 = vunpack.c.l.b16 %v427
        %v830 = vunpack.c.l.b16 %v428
        %v831 = vunpack.c.l.b16 %v429
        %v832 = vunpack.c.l.b16 %v430
        %v833 = vunpack.c.l.b16 %v431
        %v834 = vunpack.c.l.b16 %v432
        %v835 = vunpack.c.l.b16 %v433
        %v836 = vunpack.c.l.b16 %v434
        %v837 = vunpack.c.l.b16 %v435
        %v838 = vunpack.c.l.b16 %v436
        %v839 = vunpack.c.l.b16 %v437
        %v840 = vunpack.c.l.b16 %v438
        %v841 = vunpack.c.l.b16 %v439
        %v842 = vunpack.c.l.b16 %v440
        %v843 = vunpack.c.l.b16 %v441
        %v844 = vunpack.c.l.b16 %v442
        %v845 = vunpack.c.l.b16 %v443
        %v846 = vunpack.c.l.b16 %v444
        %v847 = vunpack.c.l.b16 %v445
        %v848 = vunpack.c.l.b16 %v446
        %v849 = vunpack.c.l.b16 %v447
        %v850 = vunpack.c.l.b16 %v448
        %v851 = vunpack.c.l.b16 %v449
        %v852 = vunpack.c.l.b16 %v450
        %v853 = vunpack.c.l.b16 %v451
        %v854 = vunpack.c.l.b16 %v452
        %v855 = vunpack.c.l.b16 %v453
        %v856 = vpack.c.b16 %v761, %v760
        %v857 = vpack.c.b16 %v763, %v762
        %v858 = vpack.c.b16 %v765, %v764
        %v859 = vpack.c.b16 %v767, %v766
        %v860 = vpack.c.b16 %v769, %v768
        %v861 = vpack.c.b16 %v771, %v770
        %v862 = vpack.c.b16 %v773, %v772
        %v863 = vpack.c.b16 %v775, %v774
        %v864 = vpack.c.b16 %v777, %v776
        %v865 = vpack.c.b16 %v779, %v778
        %v866 = vpack.c.b16 %v781, %v780
        %v867 = vpack.c.b16 %v783, %v782
        %v868 = vpack.c.b16 %v785, %v784
        %v869 = vpack.c.b16 %v787, %v786
        %v870 = vpack.c.b16 %v789, %v788
        %v871 = vpack.c.b16 %v791, %v790
        %v872 = vpack.c.b16 %v793, %v792
        %v873 = vpack.c.b16 %v795, %v794
        %v874 = vpack.c.b16 %v797, %v796
        %v875 = vpack.c.b16 %v799, %v798
        %v876 = vpack.c.b16 %v801, %v800
        %v877 = vpack.c.b16 %v803, %v802
        %v878 = vpack.c.b16 %v805, %v804
        %v879 = vpack.c.b16 %v807, %v806
        %v880 = vpack.c.b16 %v809, %v808
        %v881 = vpack.c.b16 %v811, %v810
        %v882 = vpack.c.b16 %v813, %v812
        %v883 = vpack.c.b16 %v815, %v814
        %v884 = vpack.c.b16 %v817, %v816
        %v885 = vpack.c.b16 %v819, %v818
        %v886 = vpack.c.b16 %v821, %v820
        %v887 = vpack.c.b16 %v823, %v822
        %v888 = vpack.c.b16 %v825, %v824
        %v889 = vpack.c.b16 %v827, %v826
        %v890 = vpack.c.b16 %v829, %v828
        %v891 = vpack.c.b16 %v831, %v830
        %v892 = vpack.c.b16 %v833, %v832
        %v893 = vpack.c.b16 %v835, %v834
        %v894 = vpack.c.b16 %v837, %v836
        %v895 = vpack.c.b16 %v839, %v838
        %v896 = vpack.c.b16 %v841, %v840
        %v897 = vpack.c.b16 %v843, %v842
        %v898 = vpack.c.b16 %v845, %v844
        %v899 = vpack.c.b16 %v847, %v846
        %v900 = vpack.c.b16 %v849, %v848
        %v901 = vpack.c.b16 %v851, %v850
        %v902 = vpack.c.b16 %v853, %v852
        %v903 = vpack.c.b16 %v855, %v854
        %952 = vmatprep.subr.bf16.mxu0 0
        %953 = vmatpush1.bf16.msra.mxu0 %v856
        %954 = vmatprep.subr.bf16.mxu0 0
        %955 = vmatpush1.bf16.msra.mxu0 %v857
        %956 = vmatprep.subr.bf16.mxu0 0
        %957 = vmatpush1.bf16.msra.mxu0 %v858
        %958 = vmatprep.subr.bf16.mxu0 0
        %959 = vmatpush1.bf16.msra.mxu0 %v859
        %960 = vmatprep.subr.bf16.mxu0 0
        %961 = vmatpush1.bf16.msra.mxu0 %v860
        %962 = vmatprep.subr.bf16.mxu0 0
        %963 = vmatpush1.bf16.msra.mxu0 %v861
        %964 = vmatprep.subr.bf16.mxu0 0
        %965 = vmatpush1.bf16.msra.mxu0 %v862
        %966 = vmatprep.subr.bf16.mxu0 0
        %967 = vmatpush1.bf16.msra.mxu0 %v863
        %968 = vmatprep.subr.bf16.mxu0 0
        %969 = vmatpush1.bf16.msra.mxu0 %v864
        %970 = vmatprep.subr.bf16.mxu0 0
        %971 = vmatpush1.bf16.msra.mxu0 %v865
        %972 = vmatprep.subr.bf16.mxu0 0
        %973 = vmatpush1.bf16.msra.mxu0 %v866
        %974 = vmatprep.subr.bf16.mxu0 0
        %975 = vmatpush1.bf16.msra.mxu0 %v867
        %976 = vmatprep.subr.bf16.mxu0 0
        %977 = vmatpush1.bf16.msra.mxu0 %v868
        %978 = vmatprep.subr.bf16.mxu0 0
        %979 = vmatpush1.bf16.msra.mxu0 %v869
        %980 = vmatprep.subr.bf16.mxu0 0
        %981 = vmatpush1.bf16.msra.mxu0 %v870
        %982 = vmatprep.subr.bf16.mxu0 0
        %983 = vmatpush1.bf16.msra.mxu0 %v871
        %984 = vmatprep.mubr.bf16.mxu0 %v581
        %985 = vmatmul.mubr.bf16.gmra.mrb[0].mxu0 %v580
        %v986 = vpop.f32.mrb[0].mxu0
        %v987 = vadd.f32 0.0, %v986
        %v988 = vpop.f32.mrb[0].mxu0
        %v989 = vpop.f32.mrb[0].mxu0
        %v990 = vadd.f32 0.0, %v989
        %v991 = vpop.f32.mrb[0].mxu0
        %992 = vmatprep.mubr.bf16.mxu0 %v587
        %993 = vmatmul.mubr.bf16.gmra.mrb[0].mxu0 %v586
        %v994 = vpop.f32.mrb[0].mxu0
        %v995 = vadd.f32 0.0, %v994
        %v996 = vpop.f32.mrb[0].mxu0
        %v997 = vpop.f32.mrb[0].mxu0
        %v998 = vadd.f32 0.0, %v997
        %v999 = vpop.f32.mrb[0].mxu0
        %1000 = vmatprep.mubr.bf16.mxu0 %v593
        %1001 = vmatmul.mubr.bf16.gmra.mrb[0].mxu0 %v592
        %v1002 = vpop.f32.mrb[0].mxu0
        %v1003 = vadd.f32 0.0, %v1002
        %v1004 = vpop.f32.mrb[0].mxu0
        %v1005 = vpop.f32.mrb[0].mxu0
        %v1006 = vadd.f32 0.0, %v1005
        %v1007 = vpop.f32.mrb[0].mxu0
        %1008 = vmatprep.mubr.bf16.mxu0 %v599
        %1009 = vmatmul.mubr.bf16.gmra.mrb[0].mxu0 %v598
        %v1010 = vpop.f32.mrb[0].mxu0
        %v1011 = vadd.f32 0.0, %v1010
        %v1012 = vpop.f32.mrb[0].mxu0
        %v1013 = vpop.f32.mrb[0].mxu0
        %v1014 = vadd.f32 0.0, %v1013
        %v1015 = vpop.f32.mrb[0].mxu0
        %1016 = vmatprep.mubr.bf16.mxu0 %v605
        %1017 = vmatmul.mubr.bf16.gmra.mrb[0].mxu0 %v604
        %v1018 = vpop.f32.mrb[0].mxu0
        %v1019 = vadd.f32 0.0, %v1018
        %v1020 = vpop.f32.mrb[0].mxu0
        %v1021 = vpop.f32.mrb[0].mxu0
        %v1022 = vadd.f32 0.0, %v1021
        %v1023 = vpop.f32.mrb[0].mxu0
        %1024 = vmatprep.mubr.bf16.mxu0 %v611
        %1025 = vmatmul.mubr.bf16.gmra.mrb[0].mxu0 %v610
        %v1026 = vpop.f32.mrb[0].mxu0
        %v1027 = vadd.f32 0.0, %v1026
        %v1028 = vpop.f32.mrb[0].mxu0
        %v1029 = vpop.f32.mrb[0].mxu0
        %v1030 = vadd.f32 0.0, %v1029
        %v1031 = vpop.f32.mrb[0].mxu0
        %1032 = vmatprep.mubr.bf16.mxu0 %v617
        %1033 = vmatmul.mubr.bf16.gmra.mrb[0].mxu0 %v616
        %v1034 = vpop.f32.mrb[0].mxu0
        %v1035 = vadd.f32 0.0, %v1034
        %v1036 = vpop.f32.mrb[0].mxu0
        %v1037 = vpop.f32.mrb[0].mxu0
        %v1038 = vadd.f32 0.0, %v1037
        %v1039 = vpop.f32.mrb[0].mxu0
        %1040 = vdwg.mxu0
        %1041 = vmatprep.subr.bf16.mxu0 0
        %1042 = vmatpush1.bf16.msra.mxu0 %v872
        %1043 = vmatprep.subr.bf16.mxu0 0
        %1044 = vmatpush1.bf16.msra.mxu0 %v873
        %1045 = vmatprep.subr.bf16.mxu0 0
        %1046 = vmatpush1.bf16.msra.mxu0 %v874
        %1047 = vmatprep.subr.bf16.mxu0 0
        %1048 = vmatpush1.bf16.msra.mxu0 %v875
        %1049 = vmatprep.subr.bf16.mxu0 0
        %1050 = vmatpush1.bf16.msra.mxu0 %v876
        %1051 = vmatprep.subr.bf16.mxu0 0
        %1052 = vmatpush1.bf16.msra.mxu0 %v877
        %1053 = vmatprep.subr.bf16.mxu0 0
        %1054 = vmatpush1.bf16.msra.mxu0 %v878
        %1055 = vmatprep.subr.bf16.mxu0 0
        %1056 = vmatpush1.bf16.msra.mxu0 %v879
        %1057 = vmatprep.subr.bf16.mxu0 0
        %1058 = vmatpush1.bf16.msra.mxu0 %v880
        %1059 = vmatprep.subr.bf16.mxu0 0
        %1060 = vmatpush1.bf16.msra.mxu0 %v881
        %1061 = vmatprep.subr.bf16.mxu0 0
        %1062 = vmatpush1.bf16.msra.mxu0 %v882
        %1063 = vmatprep.subr.bf16.mxu0 0
        %1064 = vmatpush1.bf16.msra.mxu0 %v883
        %1065 = vmatprep.subr.bf16.mxu0 0
        %1066 = vmatpush1.bf16.msra.mxu0 %v884
        %1067 = vmatprep.subr.bf16.mxu0 0
        %1068 = vmatpush1.bf16.msra.mxu0 %v885
        %1069 = vmatprep.subr.bf16.mxu0 0
        %1070 = vmatpush1.bf16.msra.mxu0 %v886
        %1071 = vmatprep.subr.bf16.mxu0 0
        %1072 = vmatpush1.bf16.msra.mxu0 %v887
        %1073 = vmatprep.mubr.bf16.mxu0 %v583
        %1074 = vmatmul.mubr.bf16.gmra.mrb[0].mxu0 %v582
        %v1075 = vpop.f32.mrb[0].mxu0
        %v1076 = vadd.f32 %v987, %v1075
        %v1077 = vpop.f32.mrb[0].mxu0
        %v1078 = vpop.f32.mrb[0].mxu0
        %v1079 = vadd.f32 %v990, %v1078
        %v1080 = vpop.f32.mrb[0].mxu0
        %1081 = vmatprep.mubr.bf16.mxu0 %v589
        %1082 = vmatmul.mubr.bf16.gmra.mrb[0].mxu0 %v588
        %v1083 = vpop.f32.mrb[0].mxu0
        %v1084 = vadd.f32 %v995, %v1083
        %v1085 = vpop.f32.mrb[0].mxu0
        %v1086 = vpop.f32.mrb[0].mxu0
        %v1087 = vadd.f32 %v998, %v1086
        %v1088 = vpop.f32.mrb[0].mxu0
        %1089 = vmatprep.mubr.bf16.mxu0 %v595
        %1090 = vmatmul.mubr.bf16.gmra.mrb[0].mxu0 %v594
        %v1091 = vpop.f32.mrb[0].mxu0
        %v1092 = vadd.f32 %v1003, %v1091
        %v1093 = vpop.f32.mrb[0].mxu0
        %v1094 = vpop.f32.mrb[0].mxu0
        %v1095 = vadd.f32 %v1006, %v1094
        %v1096 = vpop.f32.mrb[0].mxu0
        %1097 = vmatprep.mubr.bf16.mxu0 %v601
        %1098 = vmatmul.mubr.bf16.gmra.mrb[0].mxu0 %v600
        %v1099 = vpop.f32.mrb[0].mxu0
        %v1100 = vadd.f32 %v1011, %v1099
        %v1101 = vpop.f32.mrb[0].mxu0
        %v1102 = vpop.f32.mrb[0].mxu0
        %v1103 = vadd.f32 %v1014, %v1102
        %v1104 = vpop.f32.mrb[0].mxu0
        %1105 = vmatprep.mubr.bf16.mxu0 %v607
        %1106 = vmatmul.mubr.bf16.gmra.mrb[0].mxu0 %v606
        %v1107 = vpop.f32.mrb[0].mxu0
        %v1108 = vadd.f32 %v1019, %v1107
        %v1109 = vpop.f32.mrb[0].mxu0
        %v1110 = vpop.f32.mrb[0].mxu0
        %v1111 = vadd.f32 %v1022, %v1110
        %v1112 = vpop.f32.mrb[0].mxu0
        %1113 = vmatprep.mubr.bf16.mxu0 %v613
        %1114 = vmatmul.mubr.bf16.gmra.mrb[0].mxu0 %v612
        %v1115 = vpop.f32.mrb[0].mxu0
        %v1116 = vadd.f32 %v1027, %v1115
        %v1117 = vpop.f32.mrb[0].mxu0
        %v1118 = vpop.f32.mrb[0].mxu0
        %v1119 = vadd.f32 %v1030, %v1118
        %v1120 = vpop.f32.mrb[0].mxu0
        %1121 = vmatprep.mubr.bf16.mxu0 %v619
        %1122 = vmatmul.mubr.bf16.gmra.mrb[0].mxu0 %v618
        %v1123 = vpop.f32.mrb[0].mxu0
        %v1124 = vadd.f32 %v1035, %v1123
        %v1125 = vpop.f32.mrb[0].mxu0
        %v1126 = vpop.f32.mrb[0].mxu0
        %v1127 = vadd.f32 %v1038, %v1126
        %v1128 = vpop.f32.mrb[0].mxu0
        %1129 = vdwg.mxu0
        %1130 = vmatprep.subr.bf16.mxu0 0
        %1131 = vmatpush1.bf16.msra.mxu0 %v888
        %1132 = vmatprep.subr.bf16.mxu0 0
        %1133 = vmatpush1.bf16.msra.mxu0 %v889
        %1134 = vmatprep.subr.bf16.mxu0 0
        %1135 = vmatpush1.bf16.msra.mxu0 %v890
        %1136 = vmatprep.subr.bf16.mxu0 0
        %1137 = vmatpush1.bf16.msra.mxu0 %v891
        %1138 = vmatprep.subr.bf16.mxu0 0
        %1139 = vmatpush1.bf16.msra.mxu0 %v892
        %1140 = vmatprep.subr.bf16.mxu0 0
        %1141 = vmatpush1.bf16.msra.mxu0 %v893
        %1142 = vmatprep.subr.bf16.mxu0 0
        %1143 = vmatpush1.bf16.msra.mxu0 %v894
        %1144 = vmatprep.subr.bf16.mxu0 0
        %1145 = vmatpush1.bf16.msra.mxu0 %v895
        %1146 = vmatprep.subr.bf16.mxu0 0
        %1147 = vmatpush1.bf16.msra.mxu0 %v896
        %1148 = vmatprep.subr.bf16.mxu0 0
        %1149 = vmatpush1.bf16.msra.mxu0 %v897
        %1150 = vmatprep.subr.bf16.mxu0 0
        %1151 = vmatpush1.bf16.msra.mxu0 %v898
        %1152 = vmatprep.subr.bf16.mxu0 0
        %1153 = vmatpush1.bf16.msra.mxu0 %v899
        %1154 = vmatprep.subr.bf16.mxu0 0
        %1155 = vmatpush1.bf16.msra.mxu0 %v900
        %1156 = vmatprep.subr.bf16.mxu0 0
        %1157 = vmatpush1.bf16.msra.mxu0 %v901
        %1158 = vmatprep.subr.bf16.mxu0 0
        %1159 = vmatpush1.bf16.msra.mxu0 %v902
        %1160 = vmatprep.subr.bf16.mxu0 0
        %1161 = vmatpush1.bf16.msra.mxu0 %v903
        %1162 = vmatprep.mubr.bf16.mxu0 %v585
        %1163 = vmatmul.mubr.bf16.gmra.mrb[0].mxu0 %v584
        %v1164 = vpop.f32.mrb[0].mxu0
        %v1165 = vadd.f32 %v1076, %v1164
        %v1166 = vpop.f32.mrb[0].mxu0
        %v1167 = vpop.f32.mrb[0].mxu0
        %v1168 = vadd.f32 %v1079, %v1167
        %v1169 = vpop.f32.mrb[0].mxu0
        %1170 = vmatprep.mubr.bf16.mxu0 %v591
        %1171 = vmatmul.mubr.bf16.gmra.mrb[0].mxu0 %v590
        %v1172 = vpop.f32.mrb[0].mxu0
        %v1173 = vadd.f32 %v1084, %v1172
        %v1174 = vpop.f32.mrb[0].mxu0
        %v1175 = vpop.f32.mrb[0].mxu0
        %v1176 = vadd.f32 %v1087, %v1175
        %v1177 = vpop.f32.mrb[0].mxu0
        %1178 = vmatprep.mubr.bf16.mxu0 %v597
        %1179 = vmatmul.mubr.bf16.gmra.mrb[0].mxu0 %v596
        %v1180 = vpop.f32.mrb[0].mxu0
        %v1181 = vadd.f32 %v1092, %v1180
        %v1182 = vpop.f32.mrb[0].mxu0
        %v1183 = vpop.f32.mrb[0].mxu0
        %v1184 = vadd.f32 %v1095, %v1183
        %v1185 = vpop.f32.mrb[0].mxu0
        %1186 = vmatprep.mubr.bf16.mxu0 %v603
        %1187 = vmatmul.mubr.bf16.gmra.mrb[0].mxu0 %v602
        %v1188 = vpop.f32.mrb[0].mxu0
        %v1189 = vadd.f32 %v1100, %v1188
        %v1190 = vpop.f32.mrb[0].mxu0
        %v1191 = vpop.f32.mrb[0].mxu0
        %v1192 = vadd.f32 %v1103, %v1191
        %v1193 = vpop.f32.mrb[0].mxu0
        %1194 = vmatprep.mubr.bf16.mxu0 %v609
        %1195 = vmatmul.mubr.bf16.gmra.mrb[0].mxu0 %v608
        %v1196 = vpop.f32.mrb[0].mxu0
        %v1197 = vadd.f32 %v1108, %v1196
        %v1198 = vpop.f32.mrb[0].mxu0
        %v1199 = vpop.f32.mrb[0].mxu0
        %v1200 = vadd.f32 %v1111, %v1199
        %v1201 = vpop.f32.mrb[0].mxu0
        %1202 = vmatprep.mubr.bf16.mxu0 %v615
        %1203 = vmatmul.mubr.bf16.gmra.mrb[0].mxu0 %v614
        %v1204 = vpop.f32.mrb[0].mxu0
        %v1205 = vadd.f32 %v1116, %v1204
        %v1206 = vpop.f32.mrb[0].mxu0
        %v1207 = vpop.f32.mrb[0].mxu0
        %v1208 = vadd.f32 %v1119, %v1207
        %v1209 = vpop.f32.mrb[0].mxu0
        %1210 = vmatprep.mubr.bf16.mxu0 %v621
        %1211 = vmatmul.mubr.bf16.gmra.mrb[0].mxu0 %v620
        %v1212 = vpop.f32.mrb[0].mxu0
        %v1213 = vadd.f32 %v1124, %v1212
        %v1214 = vpop.f32.mrb[0].mxu0
        %v1215 = vpop.f32.mrb[0].mxu0
        %v1216 = vadd.f32 %v1127, %v1215
        %v1217 = vpop.f32.mrb[0].mxu0
        %1218 = vdwg.mxu0
        %p1219 = scmp.eq.s32.totalorder %s19, 0
        // Predicated region
        $region56: #{_policy_act_impl.6} parent=50 // pred_check
          %p1220 = pneg %p1219
        $region57: #{_policy_act_impl.6} parent=50 // pred_check_branch
          %1222 = sbr.rel (%p1220) target = $region59
        $region58: #{_policy_act_impl.6} parent=50 // pred_region
          %v1223 = vld [vmem:[%s2] sm:$0x1]
          %v1225 = vlaneseq
          %v1226 = vshrl.u32 %v1225, 7
          %v1227 = vsub.s32 0, %v1226
          %v1228 = vrot.slane %v1223, %v1227
          %v1230 = vadd.f32 %v1165, %v1228
          %v1231 = vadd.f32 %v1168, %v1228
          %v1232 = vadd.f32 %v1173, %v1228
          %v1233 = vadd.f32 %v1176, %v1228
          %v1234 = vadd.f32 %v1181, %v1228
          %v1235 = vadd.f32 %v1184, %v1228
          %v1236 = vadd.f32 %v1189, %v1228
          %v1237 = vadd.f32 %v1192, %v1228
          %v1238 = vadd.f32 %v1197, %v1228
          %v1239 = vadd.f32 %v1200, %v1228
          %v1240 = vadd.f32 %v1205, %v1228
          %v1241 = vadd.f32 %v1208, %v1228
          %v1242 = vadd.f32 %v1213, %v1228
          %v1243 = vadd.f32 %v1216, %v1228
          %1244 = vst [vmem:[#allocation2] sm:$0xff] %v1230
          %1245 = vst [vmem:[#allocation2 + $0x8] sm:$0xff] %v1231
          %1246 = vst [vmem:[#allocation2 + $0x10] sm:$0xff] %v1232
          %1247 = vst [vmem:[#allocation2 + $0x18] sm:$0xff] %v1233
          %1248 = vst [vmem:[#allocation2 + $0x20] sm:$0xff] %v1234
          %1249 = vst [vmem:[#allocation2 + $0x28] sm:$0xff] %v1235
          %1250 = vst [vmem:[#allocation2 + $0x30] sm:$0xff] %v1236
          %1251 = vst [vmem:[#allocation2 + $0x38] sm:$0xff] %v1237
          %1252 = vst [vmem:[#allocation2 + $0x40] sm:$0xff] %v1238
          %1253 = vst [vmem:[#allocation2 + $0x48] sm:$0xff] %v1239
          %1254 = vst [vmem:[#allocation2 + $0x50] sm:$0xff] %v1240
          %1255 = vst [vmem:[#allocation2 + $0x58] sm:$0xff] %v1241
          %1256 = vst [vmem:[#allocation2 + $0x60] sm:$0xff] %v1242
          %1257 = vst [vmem:[#allocation2 + $0x68] sm:$0xff] %v1243
        $region59: #{_policy_act_impl.6} parent=50 // pred_fallthru
          _
        %p1258 = scmp.gt.s32.totalorder %s19, 0
        %p1259 = scmp.lt.s32.totalorder %s19, 2
        %p1260 = pnand %p1258, %p1259
        %p1261 = pneg %p1260
        // Predicated region
        $region60: #{_policy_act_impl.6} parent=50 // pred_check
          _
        $region61: #{_policy_act_impl.6} parent=50 // pred_check_branch
          %1263 = sbr.rel (%p1260) target = $region63
        $region62: #{_policy_act_impl.6} parent=50 // pred_region
          %v1264 = vld [vmem:[#allocation2] sm:$0xff]
          %v1265 = vld [vmem:[#allocation2 + $0x8] sm:$0xff]
          %v1266 = vld [vmem:[#allocation2 + $0x10] sm:$0xff]
          %v1267 = vld [vmem:[#allocation2 + $0x18] sm:$0xff]
          %v1268 = vld [vmem:[#allocation2 + $0x20] sm:$0xff]
          %v1269 = vld [vmem:[#allocation2 + $0x28] sm:$0xff]
          %v1270 = vld [vmem:[#allocation2 + $0x30] sm:$0xff]
          %v1271 = vld [vmem:[#allocation2 + $0x38] sm:$0xff]
          %v1272 = vld [vmem:[#allocation2 + $0x40] sm:$0xff]
          %v1273 = vld [vmem:[#allocation2 + $0x48] sm:$0xff]
          %v1274 = vld [vmem:[#allocation2 + $0x50] sm:$0xff]
          %v1275 = vld [vmem:[#allocation2 + $0x58] sm:$0xff]
          %v1276 = vld [vmem:[#allocation2 + $0x60] sm:$0xff]
          %v1277 = vld [vmem:[#allocation2 + $0x68] sm:$0xff]
          %v1278 = vadd.f32 %v1264, %v1165
          %v1279 = vadd.f32 %v1265, %v1168
          %v1280 = vadd.f32 %v1266, %v1173
          %v1281 = vadd.f32 %v1267, %v1176
          %v1282 = vadd.f32 %v1268, %v1181
          %v1283 = vadd.f32 %v1269, %v1184
          %v1284 = vadd.f32 %v1270, %v1189
          %v1285 = vadd.f32 %v1271, %v1192
          %v1286 = vadd.f32 %v1272, %v1197
          %v1287 = vadd.f32 %v1273, %v1200
          %v1288 = vadd.f32 %v1274, %v1205
          %v1289 = vadd.f32 %v1275, %v1208
          %v1290 = vadd.f32 %v1276, %v1213
          %v1291 = vadd.f32 %v1277, %v1216
          %1292 = vst [vmem:[#allocation2] sm:$0xff] %v1278
          %1293 = vst [vmem:[#allocation2 + $0x8] sm:$0xff] %v1279
          %1294 = vst [vmem:[#allocation2 + $0x10] sm:$0xff] %v1280
          %1295 = vst [vmem:[#allocation2 + $0x18] sm:$0xff] %v1281
          %1296 = vst [vmem:[#allocation2 + $0x20] sm:$0xff] %v1282
          %1297 = vst [vmem:[#allocation2 + $0x28] sm:$0xff] %v1283
          %1298 = vst [vmem:[#allocation2 + $0x30] sm:$0xff] %v1284
          %1299 = vst [vmem:[#allocation2 + $0x38] sm:$0xff] %v1285
          %1300 = vst [vmem:[#allocation2 + $0x40] sm:$0xff] %v1286
          %1301 = vst [vmem:[#allocation2 + $0x48] sm:$0xff] %v1287
          %1302 = vst [vmem:[#allocation2 + $0x50] sm:$0xff] %v1288
          %1303 = vst [vmem:[#allocation2 + $0x58] sm:$0xff] %v1289
          %1304 = vst [vmem:[#allocation2 + $0x60] sm:$0xff] %v1290
          %1305 = vst [vmem:[#allocation2 + $0x68] sm:$0xff] %v1291
        $region63: #{_policy_act_impl.6} parent=50 // pred_fallthru
          _
        %p1306 = scmp.eq.s32.totalorder %s19, 2
        // Predicated region
        $region64: #{_policy_act_impl.6} parent=50 // pred_check
          %p1307 = pneg %p1306
        $region65: #{_policy_act_impl.6} parent=50 // pred_check_branch
          %1309 = sbr.rel (%p1307) target = $region67
        $region66: #{_policy_act_impl.6} parent=50 // pred_region
          %v1310 = vld [vmem:[#allocation2] sm:$0xff]
          %v1311 = vld [vmem:[#allocation2 + $0x8] sm:$0xff]
          %v1312 = vld [vmem:[#allocation2 + $0x10] sm:$0xff]
          %v1313 = vld [vmem:[#allocation2 + $0x18] sm:$0xff]
          %v1314 = vld [vmem:[#allocation2 + $0x20] sm:$0xff]
          %v1315 = vld [vmem:[#allocation2 + $0x28] sm:$0xff]
          %v1316 = vld [vmem:[#allocation2 + $0x30] sm:$0xff]
          %v1317 = vld [vmem:[#allocation2 + $0x38] sm:$0xff]
          %v1318 = vld [vmem:[#allocation2 + $0x40] sm:$0xff]
          %v1319 = vld [vmem:[#allocation2 + $0x48] sm:$0xff]
          %v1320 = vld [vmem:[#allocation2 + $0x50] sm:$0xff]
          %v1321 = vld [vmem:[#allocation2 + $0x58] sm:$0xff]
          %v1322 = vld [vmem:[#allocation2 + $0x60] sm:$0xff]
          %v1323 = vld [vmem:[#allocation2 + $0x68] sm:$0xff]
          %v1324 = vadd.f32 %v1310, %v1165
          %v1325 = vadd.f32 %v1311, %v1168
          %v1326 = vadd.f32 %v1312, %v1173
          %v1327 = vadd.f32 %v1313, %v1176
          %v1328 = vadd.f32 %v1314, %v1181
          %v1329 = vadd.f32 %v1315, %v1184
          %v1330 = vadd.f32 %v1316, %v1189
          %v1331 = vadd.f32 %v1317, %v1192
          %v1332 = vadd.f32 %v1318, %v1197
          %v1333 = vadd.f32 %v1319, %v1200
          %v1334 = vadd.f32 %v1320, %v1205
          %v1335 = vadd.f32 %v1321, %v1208
          %v1336 = vadd.f32 %v1322, %v1213
          %v1337 = vadd.f32 %v1323, %v1216
          %v1338 = vmax.f32 %v1324, 0.0
          %v1339 = vmax.f32 %v1325, 0.0
          %v1340 = vmax.f32 %v1326, 0.0
          %v1341 = vmax.f32 %v1327, 0.0
          %v1342 = vmax.f32 %v1328, 0.0
          %v1343 = vmax.f32 %v1329, 0.0
          %v1344 = vmax.f32 %v1330, 0.0
          %v1345 = vmax.f32 %v1331, 0.0
          %v1346 = vmax.f32 %v1332, 0.0
          %v1347 = vmax.f32 %v1333, 0.0
          %v1348 = vmax.f32 %v1334, 0.0
          %v1349 = vmax.f32 %v1335, 0.0
          %v1350 = vmax.f32 %v1336, 0.0
          %v1351 = vmax.f32 %v1337, 0.0
          %v1352 = vpack.c.bf16 %v1339, %v1338
          %v1353 = vpack.c.bf16 %v1341, %v1340
          %v1354 = vpack.c.bf16 %v1343, %v1342
          %v1355 = vpack.c.bf16 %v1345, %v1344
          %v1356 = vpack.c.bf16 %v1347, %v1346
          %v1357 = vpack.c.bf16 %v1349, %v1348
          %v1358 = vpack.c.bf16 %v1351, %v1350
          %v1366 = vunpack.c.l.b16 %v1352
          %v1367 = vunpack.c.h.b16 %v1352
          %v1368 = vunpack.c.l.b16 %v1353
          %v1369 = vunpack.c.h.b16 %v1353
          %v1370 = vunpack.c.l.b16 %v1354
          %v1371 = vunpack.c.h.b16 %v1354
          %v1372 = vunpack.c.l.b16 %v1355
          %v1373 = vunpack.c.h.b16 %v1355
          %v1374 = vunpack.c.l.b16 %v1356
          %v1375 = vunpack.c.h.b16 %v1356
          %v1376 = vunpack.c.l.b16 %v1357
          %v1377 = vunpack.c.h.b16 %v1357
          %v1378 = vunpack.c.l.b16 %v1358
          %v1379 = vunpack.c.h.b16 %v1358
          %v1380 = vpack.c.b16 %v1366, %v1366
          %v1381 = vpack.c.b16 %v1367, %v1367
          %v1382 = vpack.c.b16 %v1368, %v1368
          %v1383 = vpack.c.b16 %v1369, %v1369
          %v1384 = vpack.c.b16 %v1370, %v1370
          %v1385 = vpack.c.b16 %v1371, %v1371
          %v1386 = vpack.c.b16 %v1372, %v1372
          %v1387 = vpack.c.b16 %v1373, %v1373
          %v1388 = vpack.c.b16 %v1374, %v1374
          %v1389 = vpack.c.b16 %v1375, %v1375
          %v1390 = vpack.c.b16 %v1376, %v1376
          %v1391 = vpack.c.b16 %v1377, %v1377
          %v1392 = vpack.c.b16 %v1378, %v1378
          %v1393 = vpack.c.b16 %v1379, %v1379
          %1408 = vst [vmem:[%s313] sm:$0xf] %v1380
          %1409 = vst [vmem:[%s313 + $0x4] sm:$0xf] %v1381
          %1410 = vst [vmem:[%s313 + $0x8] sm:$0xf] %v1382
          %1411 = vst [vmem:[%s313 + $0xc] sm:$0xf] %v1383
          %1412 = vst [vmem:[%s313 + $0x10] sm:$0xf] %v1384
          %1413 = vst [vmem:[%s313 + $0x14] sm:$0xf] %v1385
          %1414 = vst [vmem:[%s313 + $0x18] sm:$0xf] %v1386
          %1415 = vst [vmem:[%s313 + $0x1c] sm:$0xf] %v1387
          %1416 = vst [vmem:[%s313 + $0x20] sm:$0xf] %v1388
          %1417 = vst [vmem:[%s313 + $0x24] sm:$0xf] %v1389
          %1418 = vst [vmem:[%s313 + $0x28] sm:$0xf] %v1390
          %1419 = vst [vmem:[%s313 + $0x2c] sm:$0xf] %v1391
          %1420 = vst [vmem:[%s313 + $0x30] sm:$0xf] %v1392
          %1421 = vst [vmem:[%s313 + $0x34] sm:$0xf] %v1393
        $region67: #{_policy_act_impl.6} parent=50 // pred_fallthru
          _
        %s1422 = smul.u32 14, %s18
        %p1423 = scmp.lt.s32.totalorder %s1422, 13
        %s1424 = scalar_select %p1423, %s1422, 13
        %s1425 = smul.addr %s1424, 4
        %s1426 = scalar_lea.vmem %s3, %s1425
        // Predicated region
        $region68: #{_policy_act_impl.6} parent=50 // pred_check
          %p1427 = pneg %p119
        $region69: #{_policy_act_impl.6} parent=50 // pred_check_branch
          %1429 = sbr.rel (%p1427) target = $region71
        $region70: #{_policy_act_impl.6} parent=50 // pred_region
          %s1430 = smul.u32 14, %s18
        $region71: #{_policy_act_impl.6} parent=50 // pred_fallthru
          _
        // Predicated region
        $region72: #{_policy_act_impl.6} parent=50 // pred_check
          %p1431 = pneg %p119
        $region73: #{_policy_act_impl.6} parent=50 // pred_check_branch
          %1433 = sbr.rel (%p1431) target = $region75
        $region74: #{_policy_act_impl.6} parent=50 // pred_region
          %s1434 = smul.u32 14, %s18
          %p1435 = scmp.lt.s32.totalorder %s1434, 13
          %s1436 = scalar_select %p1435, %s1434, 13
          %s1437 = smul.addr %s1436, 4
          %s1438 = scalar_lea.vmem %s3, %s1437
        $region75: #{_policy_act_impl.6} parent=50 // pred_fallthru
          _
      $region51: #{_policy_act_impl.6} parent=5 // pred_fallthru
        _
      %p1439 = scmp.le.s32.totalorder 2, %s9
      // Predicated region
      $region76: #{_policy_act_impl.6} parent=5 // pred_check
        %p1440 = pneg %p1439
      $region77: #{_policy_act_impl.6} parent=5 // pred_check_branch
        %1442 = sbr.rel (%p1440) target = $region79
      $region78: #{_policy_act_impl.6} parent=5 // pred_region
        %s1443 = ssub.s32 %s9, 2
      $region79: #{_policy_act_impl.6} parent=5 // pred_fallthru
        _
    $region6: #{_policy_act_impl.6} parent=1 // loop_footer
      %s13 = sadd.s32 1, %s9
    $region7: #{_policy_act_impl.6} parent=1 // loop_footer_branch
      %8 = sbr.rel target = $region3
    $region8: #{_policy_act_impl.6} parent=1 // loop_exit
      _

// kernel: _policy_act_impl.7
$region0: #{_policy_act_impl.7}
  #allocation0 [shape = 'u32[]', space=smem, size = 0x4, offset = 0x4, fixed_abs, tag = 'smem constant byte address 0x4 - core index']
  #allocation1 [shape = 'u32[144,128]{1,0:T(1,128)}', space=vmem, size = 0x12000, scoped, tag = 'internal scratch']
  %s0 = inlined_call_operand.vmem [shape: bf16[16,6272], index: 0, kind: input, shape index: {}]
  %s1 = inlined_call_operand.vmem [shape: bf16[6272,512], index: 1, kind: input, shape index: {}]
  %s2 = inlined_call_operand.vmem [shape: f32[1,512], index: 2, kind: input, shape index: {}]
  %s3 = inlined_call_operand.vmem [shape: bf16[512,128], index: 3, kind: input, shape index: {}]
  %s4 = inlined_call_operand.vmem [shape: f32[1,128], index: 4, kind: input, shape index: {}]
  %s5 = inlined_call_operand.vmem [shape: f32[16,512], index: 5, kind: output, shape index: {0}]
  %s6 = inlined_call_operand.vmem [shape: f32[16,128], index: 6, kind: output, shape index: {1}]
  %7 = xla_tuple %s5, %s6
  %s8 = sld [smem:[#allocation0]]
  $region99: #{_policy_act_impl.7} parent=0
    _
  %s10 = ssub.s32 1, %s8
  %s11 = scalar_select 0, %s10, %s8
  $region1: #{_policy_act_impl.7} parent=0
    #allocation2 [shape = 'u8[57344]{0}', space=vmem, size = 0xe000, scoped, tag = 'input window, operand 0']
    loop: start=0, step=1, limit=9
    $region2: #{_policy_act_impl.7} parent=1 // loop_pre_header
      _
    $region3: #{_policy_act_impl.7} parent=1 // loop_header
      %s13 = sphi 0, %s17
      %p14 = scmp.ge.s32.totalorder %s13, 9
      %s20 = sphi 0, %s32
      %s21 = sphi 0, %s28
      %s22 = sphi 0, %s20
      %s23 = sphi 0, %s21
      %s24 = sphi 0, %s22
      %s25 = sphi 0, %s23
      %s37 = sphi 0, %s39
      %s40 = sphi 0, %s37
      %s41 = sphi 0, %s40
      %s57 = sphi 0, %s41
      %s63 = sphi 0, %s65
      %s66 = sphi 0, %s63
      %s67 = sphi 0, %s66
      %s83 = sphi 0, %s67
      %s87 = sphi 0, %s87
      %s89 = sphi 0, %s87
      %s90 = sphi 0, %s89
      %s104 = sphi 0, %s90
      %s108 = sphi 0, %s108
      %s110 = sphi 0, %s108
      %s111 = sphi 0, %s110
      %s125 = sphi 0, %s111
      %s129 = sphi 0, %s129
      %s131 = sphi 0, %s129
      %s132 = sphi 0, %s131
      %s146 = sphi 0, %s132
      %s152 = sphi 0, %s154
      %s155 = sphi 0, %s152
      %s156 = sphi 0, %s155
      %s172 = sphi 0, %s156
      %s178 = sphi 0, %s180
      %s181 = sphi 0, %s178
      %s182 = sphi 0, %s181
      %s198 = sphi 0, %s182
    $region4: #{_policy_act_impl.7} parent=1 // loop_header_branch
      %16 = sbr.rel (%p14) target = $region8
    $region5: #{_policy_act_impl.7} parent=1 // loop_body
      %s18 = ssub.s32 %s13, 1
      %s19 = ssub.s32 %s13, 2
      %s26 = sadd.s32 1, %s21
      %p27 = scmp.ge.s32.totalorder %s26, 7
      %s28 = scalar_select %p27, 0, %s26
      %s29 = sadd.s32 1, %s20
      %s30 = scalar_select %p27, %s29, %s20
      %p31 = scmp.ge.s32.totalorder %s30, 1
      %s32 = scalar_select %p31, 0, %s30
      %s33 = ssub.s32 %s20, %s32
      %s34 = ssub.s32 %s21, %s28
      %s35 = sor.u32 %s33, %s34
      %p36 = scmp.eq.s32.totalorder %s35, 0
      %s38 = sadd.s32 %s37, 1
      %s39 = scalar_select %p36, %s37, %s38
      %p42 = pneg %p36
      %p43 = scmp.eq.s32.totalorder %s13, 6
      %p44 = por %p42, %p43
      %p45 = scmp.ne.s32.totalorder %s37, %s40
      %p46 = scmp.eq.s32.totalorder %s13, 0
      %p47 = por %p45, %p46
      %p48 = scmp.ne.s32.totalorder %s37, %s40
      %p49 = scmp.eq.s32.totalorder %s18, 6
      %p50 = por %p48, %p49
      %p51 = scmp.ne.s32.totalorder %s40, %s41
      %p52 = scmp.eq.s32.totalorder %s18, 0
      %p53 = por %p51, %p52
      %p54 = scmp.ne.s32.totalorder %s40, %s41
      %p55 = scmp.eq.s32.totalorder %s19, 6
      %p56 = por %p54, %p55
      %p58 = scmp.ne.s32.totalorder %s41, %s57
      %p59 = scmp.eq.s32.totalorder %s19, 0
      %p60 = por %p58, %p59
      %s61 = ssub.s32 %s21, %s28
      %p62 = scmp.eq.s32.totalorder %s61, 0
      %s64 = sadd.s32 %s63, 1
      %s65 = scalar_select %p62, %s63, %s64
      %p68 = pneg %p62
      %p69 = scmp.eq.s32.totalorder %s13, 6
      %p70 = por %p68, %p69
      %p71 = scmp.ne.s32.totalorder %s63, %s66
      %p72 = scmp.eq.s32.totalorder %s13, 0
      %p73 = por %p71, %p72
      %p74 = scmp.ne.s32.totalorder %s63, %s66
      %p75 = scmp.eq.s32.totalorder %s18, 6
      %p76 = por %p74, %p75
      %p77 = scmp.ne.s32.totalorder %s66, %s67
      %p78 = scmp.eq.s32.totalorder %s18, 0
      %p79 = por %p77, %p78
      %p80 = scmp.ne.s32.totalorder %s66, %s67
      %p81 = scmp.eq.s32.totalorder %s19, 6
      %p82 = por %p80, %p81
      %p84 = scmp.ne.s32.totalorder %s67, %s83
      %p85 = scmp.eq.s32.totalorder %s19, 0
      %p86 = por %p84, %p85
      %s88 = sadd.s32 %s87, 1
      %p91 = scmp.eq.s32.totalorder %s13, 6
      %p92 = scmp.ne.s32.totalorder %s87, %s89
      %p93 = scmp.eq.s32.totalorder %s13, 0
      %p94 = por %p92, %p93
      %p95 = scmp.ne.s32.totalorder %s87, %s89
      %p96 = scmp.eq.s32.totalorder %s18, 6
      %p97 = por %p95, %p96
      %p98 = scmp.ne.s32.totalorder %s89, %s90
      %p99 = scmp.eq.s32.totalorder %s18, 0
      %p100 = por %p98, %p99
      %p101 = scmp.ne.s32.totalorder %s89, %s90
      %p102 = scmp.eq.s32.totalorder %s19, 6
      %p103 = por %p101, %p102
      %p105 = scmp.ne.s32.totalorder %s90, %s104
      %p106 = scmp.eq.s32.totalorder %s19, 0
      %p107 = por %p105, %p106
      %s109 = sadd.s32 %s108, 1
      %p112 = scmp.eq.s32.totalorder %s13, 6
      %p113 = scmp.ne.s32.totalorder %s108, %s110
      %p114 = scmp.eq.s32.totalorder %s13, 0
      %p115 = por %p113, %p114
      %p116 = scmp.ne.s32.totalorder %s108, %s110
      %p117 = scmp.eq.s32.totalorder %s18, 6
      %p118 = por %p116, %p117
      %p119 = scmp.ne.s32.totalorder %s110, %s111
      %p120 = scmp.eq.s32.totalorder %s18, 0
      %p121 = por %p119, %p120
      %p122 = scmp.ne.s32.totalorder %s110, %s111
      %p123 = scmp.eq.s32.totalorder %s19, 6
      %p124 = por %p122, %p123
      %p126 = scmp.ne.s32.totalorder %s111, %s125
      %p127 = scmp.eq.s32.totalorder %s19, 0
      %p128 = por %p126, %p127
      %s130 = sadd.s32 %s129, 1
      %p133 = scmp.eq.s32.totalorder %s13, 6
      %p134 = scmp.ne.s32.totalorder %s129, %s131
      %p135 = scmp.eq.s32.totalorder %s13, 0
      %p136 = por %p134, %p135
      %p137 = scmp.ne.s32.totalorder %s129, %s131
      %p138 = scmp.eq.s32.totalorder %s18, 6
      %p139 = por %p137, %p138
      %p140 = scmp.ne.s32.totalorder %s131, %s132
      %p141 = scmp.eq.s32.totalorder %s18, 0
      %p142 = por %p140, %p141
      %p143 = scmp.ne.s32.totalorder %s131, %s132
      %p144 = scmp.eq.s32.totalorder %s19, 6
      %p145 = por %p143, %p144
      %p147 = scmp.ne.s32.totalorder %s132, %s146
      %p148 = scmp.eq.s32.totalorder %s19, 0
      %p149 = por %p147, %p148
      %s150 = ssub.s32 %s20, %s32
      %p151 = scmp.eq.s32.totalorder %s150, 0
      %s153 = sadd.s32 %s152, 1
      %s154 = scalar_select %p151, %s152, %s153
      %p157 = pneg %p151
      %p158 = scmp.eq.s32.totalorder %s13, 6
      %p159 = por %p157, %p158
      %p160 = scmp.ne.s32.totalorder %s152, %s155
      %p161 = scmp.eq.s32.totalorder %s13, 0
      %p162 = por %p160, %p161
      %p163 = scmp.ne.s32.totalorder %s152, %s155
      %p164 = scmp.eq.s32.totalorder %s18, 6
      %p165 = por %p163, %p164
      %p166 = scmp.ne.s32.totalorder %s155, %s156
      %p167 = scmp.eq.s32.totalorder %s18, 0
      %p168 = por %p166, %p167
      %p169 = scmp.ne.s32.totalorder %s155, %s156
      %p170 = scmp.eq.s32.totalorder %s19, 6
      %p171 = por %p169, %p170
      %p173 = scmp.ne.s32.totalorder %s156, %s172
      %p174 = scmp.eq.s32.totalorder %s19, 0
      %p175 = por %p173, %p174
      %s176 = ssub.s32 %s20, %s32
      %p177 = scmp.eq.s32.totalorder %s176, 0
      %s179 = sadd.s32 %s178, 1
      %s180 = scalar_select %p177, %s178, %s179
      %p183 = pneg %p177
      %p184 = scmp.eq.s32.totalorder %s13, 6
      %p185 = por %p183, %p184
      %p186 = scmp.ne.s32.totalorder %s178, %s181
      %p187 = scmp.eq.s32.totalorder %s13, 0
      %p188 = por %p186, %p187
      %p189 = scmp.ne.s32.totalorder %s178, %s181
      %p190 = scmp.eq.s32.totalorder %s18, 6
      %p191 = por %p189, %p190
      %p192 = scmp.ne.s32.totalorder %s181, %s182
      %p193 = scmp.eq.s32.totalorder %s18, 0
      %p194 = por %p192, %p193
      %p195 = scmp.ne.s32.totalorder %s181, %s182
      %p196 = scmp.eq.s32.totalorder %s19, 6
      %p197 = por %p195, %p196
      %p199 = scmp.ne.s32.totalorder %s182, %s198
      %p200 = scmp.eq.s32.totalorder %s19, 0
      %p201 = por %p199, %p200
      %p202 = scmp.le.s32.totalorder 1, %s13
      %p203 = scmp.lt.s32.totalorder %s13, 8
      %p204 = pnand %p202, %p203
      %p205 = pneg %p204
      // Predicated region
      $region9: #{_policy_act_impl.7} parent=5 // pred_check
        _
      $region10: #{_policy_act_impl.7} parent=5 // pred_check_branch
        %207 = sbr.rel (%p204) target = $region12
      $region11: #{_policy_act_impl.7} parent=5 // pred_region
        %s208 = ssub.s32 %s13, 1
        // Predicated region
        $region13: #{_policy_act_impl.7} parent=11 // pred_check
          %p209 = pneg %p100
        $region14: #{_policy_act_impl.7} parent=11 // pred_check_branch
          %211 = sbr.rel (%p209) target = $region16
        $region15: #{_policy_act_impl.7} parent=11 // pred_region
          _
        $region16: #{_policy_act_impl.7} parent=11 // pred_fallthru
          _
        // Predicated region
        $region17: #{_policy_act_impl.7} parent=11 // pred_check
          %p212 = pneg %p121
        $region18: #{_policy_act_impl.7} parent=11 // pred_check_branch
          %214 = sbr.rel (%p212) target = $region20
        $region19: #{_policy_act_impl.7} parent=11 // pred_region
          _
        $region20: #{_policy_act_impl.7} parent=11 // pred_fallthru
          _
        // Predicated region
        $region21: #{_policy_act_impl.7} parent=11 // pred_check
          %p215 = pneg %p142
        $region22: #{_policy_act_impl.7} parent=11 // pred_check_branch
          %217 = sbr.rel (%p215) target = $region24
        $region23: #{_policy_act_impl.7} parent=11 // pred_region
          _
        $region24: #{_policy_act_impl.7} parent=11 // pred_fallthru
          _
      $region12: #{_policy_act_impl.7} parent=5 // pred_fallthru
        _
      %p218 = scmp.lt.s32.totalorder %s13, 7
      // Predicated region
      $region25: #{_policy_act_impl.7} parent=5 // pred_check
        %p219 = pneg %p218
      $region26: #{_policy_act_impl.7} parent=5 // pred_check_branch
        %221 = sbr.rel (%p219) target = $region28
      $region27: #{_policy_act_impl.7} parent=5 // pred_region
        // Predicated region
        $region29: #{_policy_act_impl.7} parent=27 // pred_check
          %p222 = pneg %p47
        $region30: #{_policy_act_impl.7} parent=27 // pred_check_branch
          %224 = sbr.rel (%p222) target = $region32
        $region31: #{_policy_act_impl.7} parent=27 // pred_region
          %s225 = sand.u32 %s37, 1
          %s226 = sand.u32 %s37, 1
          %s227 = smul.addr %s226, 56
          %s228 = scalar_lea.vmem [#allocation2], %s227
          %s229 = smul.u32 2, %s20
          %s230 = smul.u32 7, %s21
          %s231 = smul.addr %s229, 49
          %s232 = sadd.s32 %s230, %s231
          %s233 = smul.addr %s232, 4
          %s234 = scalar_lea.vmem %s0, %s233
          // Predicated region
          $region33: #{_policy_act_impl.7} parent=31 // pred_check
            _
          $region34: #{_policy_act_impl.7} parent=31 // pred_check_branch
            %236 = sbr.rel (0) target = $region36
          $region35: #{_policy_act_impl.7} parent=31 // pred_region
            // Predicated region
            $region37: #{_policy_act_impl.7} parent=35 // pred_check
              _
            $region38: #{_policy_act_impl.7} parent=35 // pred_check_branch
              %238 = sbr.rel (0) target = $region40
            $region39: #{_policy_act_impl.7} parent=35 // pred_region
              %s239 = scalar_lea.vmem %s234, 24
              %s240 = scalar_lea.vmem %s228, 24 [#allocation2]
              loop: start=0, step=1, limit=1
              $region41: #{_policy_act_impl.7} parent=39 // loop_pre_header
                _
              $region42: #{_policy_act_impl.7} parent=39 // loop_header
                %s242 = sphi 0, %s246
                %p243 = scmp.ge.s32.totalorder %s242, 1
                %s247 = sphi %s234, %s234
                %s248 = sphi %s228, %s228
              $region43: #{_policy_act_impl.7} parent=39 // loop_header_branch
                %245 = sbr.rel (%p243) target = $region47
              $region44: #{_policy_act_impl.7} parent=39 // loop_body
                %v249 = vld [vmem:[%s247] sm:$0xff]
                %250 = vst [vmem:[%s248] sm:$0xff] %v249
                %v251 = vld [vmem:[%s247 + $0x8] sm:$0xff]
                %252 = vst [vmem:[%s248 + $0x8] sm:$0xff] %v251
                %v253 = vld [vmem:[%s247 + $0x10] sm:$0xff]
                %254 = vst [vmem:[%s248 + $0x10] sm:$0xff] %v253
                %v255 = vld [vmem:[%s247 + $0xc4] sm:$0xff]
                %256 = vst [vmem:[%s248 + $0x1c] sm:$0xff] %v255
                %v257 = vld [vmem:[%s247 + $0xcc] sm:$0xff]
                %258 = vst [vmem:[%s248 + $0x24] sm:$0xff] %v257
                %v259 = vld [vmem:[%s247 + $0xd4] sm:$0xff]
                %260 = vst [vmem:[%s248 + $0x2c] sm:$0xff] %v259
              $region45: #{_policy_act_impl.7} parent=39 // loop_footer
                %s246 = sadd.s32 1, %s242
              $region46: #{_policy_act_impl.7} parent=39 // loop_footer_branch
                %241 = sbr.rel target = $region42
              $region47: #{_policy_act_impl.7} parent=39 // loop_exit
                _
              loop: start=0, step=1, limit=1
              $region48: #{_policy_act_impl.7} parent=39 // loop_pre_header
                _
              $region49: #{_policy_act_impl.7} parent=39 // loop_header
                %s263 = sphi 0, %s267
                %p264 = scmp.ge.s32.totalorder %s263, 1
                %s268 = sphi %s239, %s239
                %s269 = sphi %s240, %s240
              $region50: #{_policy_act_impl.7} parent=39 // loop_header_branch
                %266 = sbr.rel (%p264) target = $region54
              $region51: #{_policy_act_impl.7} parent=39 // loop_body
                %v270 = vld [vmem:[%s268] sm:$0xf]
                %271 = vst [vmem:[%s269] sm:$0xf] %v270
                %v272 = vld [vmem:[%s268 + $0xc4] sm:$0xf]
                %273 = vst [vmem:[%s269 + $0x1c] sm:$0xf] %v272
              $region52: #{_policy_act_impl.7} parent=39 // loop_footer
                %s267 = sadd.s32 1, %s263
              $region53: #{_policy_act_impl.7} parent=39 // loop_footer_branch
                %262 = sbr.rel target = $region49
              $region54: #{_policy_act_impl.7} parent=39 // loop_exit
                _
            $region40: #{_policy_act_impl.7} parent=35 // pred_fallthru
              _
          $region36: #{_policy_act_impl.7} parent=31 // pred_fallthru
            _
          %274 = vnop
        $region32: #{_policy_act_impl.7} parent=27 // pred_fallthru
          _
        // Predicated region
        $region55: #{_policy_act_impl.7} parent=27 // pred_check
          %p275 = pneg %p73
        $region56: #{_policy_act_impl.7} parent=27 // pred_check_branch
          %277 = sbr.rel (%p275) target = $region58
        $region57: #{_policy_act_impl.7} parent=27 // pred_region
          %s278 = smul.u32 112, %s21
          %p279 = scmp.lt.s32.totalorder %s278, 783
          %s280 = scalar_select %p279, %s278, 783
          %s281 = smul.addr %s280, 4
          %s282 = smul.addr %s281, 4
          %s283 = scalar_lea.vmem %s1, %s282
          %s284 = smul.u32 112, %s21
        $region58: #{_policy_act_impl.7} parent=27 // pred_fallthru
          _
      $region28: #{_policy_act_impl.7} parent=5 // pred_fallthru
        _
      %p285 = scmp.le.s32.totalorder 1, %s13
      %p286 = scmp.lt.s32.totalorder %s13, 8
      %p287 = pnand %p285, %p286
      %p288 = pneg %p287
      // Predicated region
      $region59: #{_policy_act_impl.7} parent=5 // pred_check
        _
      $region60: #{_policy_act_impl.7} parent=5 // pred_check_branch
        %290 = sbr.rel (%p287) target = $region62
      $region61: #{_policy_act_impl.7} parent=5 // pred_region
        %s291 = ssub.s32 %s13, 1
        %s292 = sand.u32 %s40, 1
        %s293 = sand.u32 %s40, 1
        %s294 = smul.addr %s293, 56
        %s295 = scalar_lea.vmem [#allocation2], %s294
        // Predicated region
        $region63: #{_policy_act_impl.7} parent=61 // pred_check
          %p296 = pneg %p53
        $region64: #{_policy_act_impl.7} parent=61 // pred_check_branch
          %298 = sbr.rel (%p296) target = $region66
        $region65: #{_policy_act_impl.7} parent=61 // pred_region
          _
        $region66: #{_policy_act_impl.7} parent=61 // pred_fallthru
          _
        %s299 = sand.u32 %s40, 1
        %s300 = sand.u32 %s40, 1
        %s301 = smul.addr %s300, 56
        %s302 = scalar_lea.vmem [#allocation2], %s301
        %p303 = pneg %p53
        %p304 = pneg %p50
        %s305 = smul.u32 112, %s23
        %p306 = scmp.lt.s32.totalorder %s305, 783
        %s307 = scalar_select %p306, %s305, 783
        %s308 = smul.addr %s307, 4
        %s309 = smul.addr %s308, 4
        %s310 = scalar_lea.vmem %s1, %s309
        %p311 = pneg %p79
        %p312 = pneg %p76
        %p313 = pneg %p100
        %p314 = pneg %p97
        %p315 = pneg %p121
        %p316 = pneg %p118
        %p317 = pneg %p142
        %p318 = pneg %p139
        %p319 = pneg %p168
        %p320 = pneg %p165
        %s321 = smul.u32 2, %s22
        %p322 = scmp.lt.s32.totalorder %s321, 1
        %s323 = scalar_select %p322, %s321, 1
        %s324 = smul.addr %s323, 4
        %s325 = smul.addr %s324, 8
        %s326 = scalar_lea.vmem %s5, %s325
        %p327 = pneg %p194
        %p328 = pneg %p191
        %s329 = smul.u32 2, %s22
        %p330 = scmp.lt.s32.totalorder %s329, 1
        %s331 = scalar_select %p330, %s329, 1
        %s332 = smul.addr %s331, 8
        %s333 = scalar_lea.vmem %s6, %s332
        %s334 = smul.u32 2, %s22
        %s335 = smul.u32 7, %s23
        %s336 = smul.u32 112, %s23
        %p337 = scmp.lt.s32.totalorder %s336, 783
        %s338 = scalar_select %p337, %s336, 783
        %s339 = smul.addr %s338, 4
        %s340 = smul.addr %s339, 4
        %s341 = scalar_lea.vmem %s1, %s340
        %s342 = smul.u32 112, %s23
        %s343 = smul.u32 2, %s22
        %p344 = scmp.lt.s32.totalorder %s343, 1
        %s345 = scalar_select %p344, %s343, 1
        %s346 = smul.addr %s345, 4
        %s347 = smul.addr %s346, 8
        %s348 = scalar_lea.vmem %s5, %s347
        %s349 = smul.u32 2, %s22
        %s350 = smul.u32 2, %s22
        %p351 = scmp.lt.s32.totalorder %s350, 1
        %s352 = scalar_select %p351, %s350, 1
        %s353 = smul.addr %s352, 8
        %s354 = scalar_lea.vmem %s6, %s353
        %s355 = smul.u32 2, %s22
        %v357 = vld [vmem:[%s295] sm:$0xff]
        %v358 = vld [vmem:[%s295 + $0x8] sm:$0xff]
        %v359 = vld [vmem:[%s295 + $0x10] sm:$0xff]
        %v360 = vld [vmem:[%s295 + $0x18] sm:$0xf]
        %v361 = vld [vmem:[%s295 + $0x1c] sm:$0xff]
        %v362 = vld [vmem:[%s295 + $0x24] sm:$0xff]
        %v363 = vld [vmem:[%s295 + $0x2c] sm:$0xff]
        %v364 = vld [vmem:[%s295 + $0x34] sm:$0xf]
        %v365 = vld [vmem:[%s341] sm:$0xff]
        %v366 = vld [vmem:[%s341 + $0x8] sm:$0xff]
        %v367 = vld [vmem:[%s341 + $0x10] sm:$0xff]
        %v368 = vld [vmem:[%s341 + $0x18] sm:$0xff]
        %v369 = vld [vmem:[%s341 + $0x20] sm:$0xff]
        %v370 = vld [vmem:[%s341 + $0x28] sm:$0xff]
        %v371 = vld [vmem:[%s341 + $0x30] sm:$0xff]
        %v372 = vld [vmem:[%s341 + $0x38] sm:$0xff]
        %v373 = vld [vmem:[%s341 + $0x40] sm:$0xff]
        %v374 = vld [vmem:[%s341 + $0x48] sm:$0xff]
        %v375 = vld [vmem:[%s341 + $0x50] sm:$0xff]
        %v376 = vld [vmem:[%s341 + $0x58] sm:$0xff]
        %v377 = vld [vmem:[%s341 + $0x60] sm:$0xff]
        %v378 = vld [vmem:[%s341 + $0x68] sm:$0xff]
        %v379 = vld [vmem:[%s341 + $0x70] sm:$0xff]
        %v380 = vld [vmem:[%s341 + $0x78] sm:$0xff]
        %v381 = vld [vmem:[%s341 + $0x80] sm:$0xff]
        %v382 = vld [vmem:[%s341 + $0x88] sm:$0xff]
        %v383 = vld [vmem:[%s341 + $0x90] sm:$0xff]
        %v384 = vld [vmem:[%s341 + $0x98] sm:$0xff]
        %v385 = vld [vmem:[%s341 + $0xa0] sm:$0xff]
        %v386 = vld [vmem:[%s341 + $0xa8] sm:$0xff]
        %v387 = vld [vmem:[%s341 + $0xb0] sm:$0xff]
        %v388 = vld [vmem:[%s341 + $0xb8] sm:$0xff]
        %v389 = vld [vmem:[%s341 + $0xc0] sm:$0xff]
        %v390 = vld [vmem:[%s341 + $0xc8] sm:$0xff]
        %v391 = vld [vmem:[%s341 + $0xd0] sm:$0xff]
        %v392 = vld [vmem:[%s341 + $0xd8] sm:$0xff]
        %v393 = vld [vmem:[%s341 + $0xe0] sm:$0xff]
        %v394 = vld [vmem:[%s341 + $0xe8] sm:$0xff]
        %v395 = vld [vmem:[%s341 + $0xf0] sm:$0xff]
        %v396 = vld [vmem:[%s341 + $0xf8] sm:$0xff]
        %v397 = vld [vmem:[%s341 + $0x100] sm:$0xff]
        %v398 = vld [vmem:[%s341 + $0x108] sm:$0xff]
        %v399 = vld [vmem:[%s341 + $0x110] sm:$0xff]
        %v400 = vld [vmem:[%s341 + $0x118] sm:$0xff]
        %v401 = vld [vmem:[%s341 + $0x120] sm:$0xff]
        %v402 = vld [vmem:[%s341 + $0x128] sm:$0xff]
        %v403 = vld [vmem:[%s341 + $0x130] sm:$0xff]
        %v404 = vld [vmem:[%s341 + $0x138] sm:$0xff]
        %v405 = vld [vmem:[%s341 + $0x140] sm:$0xff]
        %v406 = vld [vmem:[%s341 + $0x148] sm:$0xff]
        %v407 = vld [vmem:[%s341 + $0x150] sm:$0xff]
        %v408 = vld [vmem:[%s341 + $0x158] sm:$0xff]
        %v409 = vld [vmem:[%s341 + $0x160] sm:$0xff]
        %v410 = vld [vmem:[%s341 + $0x168] sm:$0xff]
        %v411 = vld [vmem:[%s341 + $0x170] sm:$0xff]
        %v412 = vld [vmem:[%s341 + $0x178] sm:$0xff]
        %v413 = vld [vmem:[%s341 + $0x180] sm:$0xff]
        %v414 = vld [vmem:[%s341 + $0x188] sm:$0xff]
        %v415 = vld [vmem:[%s341 + $0x190] sm:$0xff]
        %v416 = vld [vmem:[%s341 + $0x198] sm:$0xff]
        %v417 = vld [vmem:[%s341 + $0x1a0] sm:$0xff]
        %v418 = vld [vmem:[%s341 + $0x1a8] sm:$0xff]
        %v419 = vld [vmem:[%s341 + $0x1b0] sm:$0xff]
        %v420 = vld [vmem:[%s341 + $0x1b8] sm:$0xff]
        %v421 = vld [vmem:[%s341 + $0x1c0] sm:$0xff]
        %v422 = vld [vmem:[%s341 + $0x1c8] sm:$0xff]
        %v423 = vld [vmem:[%s341 + $0x1d0] sm:$0xff]
        %v424 = vld [vmem:[%s341 + $0x1d8] sm:$0xff]
        %v425 = vld [vmem:[%s341 + $0x1e0] sm:$0xff]
        %v426 = vld [vmem:[%s341 + $0x1e8] sm:$0xff]
        %v427 = vld [vmem:[%s341 + $0x1f0] sm:$0xff]
        %v428 = vld [vmem:[%s341 + $0x1f8] sm:$0xff]
        %v429 = vld [vmem:[%s341 + $0x200] sm:$0xff]
        %v430 = vld [vmem:[%s341 + $0x208] sm:$0xff]
        %v431 = vld [vmem:[%s341 + $0x210] sm:$0xff]
        %v432 = vld [vmem:[%s341 + $0x218] sm:$0xff]
        %v433 = vld [vmem:[%s341 + $0x220] sm:$0xff]
        %v434 = vld [vmem:[%s341 + $0x228] sm:$0xff]
        %v435 = vld [vmem:[%s341 + $0x230] sm:$0xff]
        %v436 = vld [vmem:[%s341 + $0x238] sm:$0xff]
        %v437 = vld [vmem:[%s341 + $0x240] sm:$0xff]
        %v438 = vld [vmem:[%s341 + $0x248] sm:$0xff]
        %v439 = vld [vmem:[%s341 + $0x250] sm:$0xff]
        %v440 = vld [vmem:[%s341 + $0x258] sm:$0xff]
        %v441 = vld [vmem:[%s341 + $0x260] sm:$0xff]
        %v442 = vld [vmem:[%s341 + $0x268] sm:$0xff]
        %v443 = vld [vmem:[%s341 + $0x270] sm:$0xff]
        %v444 = vld [vmem:[%s341 + $0x278] sm:$0xff]
        %v445 = vld [vmem:[%s341 + $0x280] sm:$0xff]
        %v446 = vld [vmem:[%s341 + $0x288] sm:$0xff]
        %v447 = vld [vmem:[%s341 + $0x290] sm:$0xff]
        %v448 = vld [vmem:[%s341 + $0x298] sm:$0xff]
        %v449 = vld [vmem:[%s341 + $0x2a0] sm:$0xff]
        %v450 = vld [vmem:[%s341 + $0x2a8] sm:$0xff]
        %v451 = vld [vmem:[%s341 + $0x2b0] sm:$0xff]
        %v452 = vld [vmem:[%s341 + $0x2b8] sm:$0xff]
        %v453 = vld [vmem:[%s341 + $0x2c0] sm:$0xff]
        %v454 = vld [vmem:[%s341 + $0x2c8] sm:$0xff]
        %v455 = vld [vmem:[%s341 + $0x2d0] sm:$0xff]
        %v456 = vld [vmem:[%s341 + $0x2d8] sm:$0xff]
        %v457 = vld [vmem:[%s341 + $0x2e0] sm:$0xff]
        %v458 = vld [vmem:[%s341 + $0x2e8] sm:$0xff]
        %v459 = vld [vmem:[%s341 + $0x2f0] sm:$0xff]
        %v460 = vld [vmem:[%s341 + $0x2f8] sm:$0xff]
        %v461 = vld [vmem:[%s341 + $0x300] sm:$0xff]
        %v462 = vld [vmem:[%s341 + $0x308] sm:$0xff]
        %v463 = vld [vmem:[%s341 + $0x310] sm:$0xff]
        %v464 = vld [vmem:[%s341 + $0x318] sm:$0xff]
        %v465 = vld [vmem:[%s341 + $0x320] sm:$0xff]
        %v466 = vld [vmem:[%s341 + $0x328] sm:$0xff]
        %v467 = vld [vmem:[%s341 + $0x330] sm:$0xff]
        %v468 = vld [vmem:[%s341 + $0x338] sm:$0xff]
        %v469 = vld [vmem:[%s341 + $0x340] sm:$0xff]
        %v470 = vld [vmem:[%s341 + $0x348] sm:$0xff]
        %v471 = vld [vmem:[%s341 + $0x350] sm:$0xff]
        %v472 = vld [vmem:[%s341 + $0x358] sm:$0xff]
        %v473 = vld [vmem:[%s341 + $0x360] sm:$0xff]
        %v474 = vld [vmem:[%s341 + $0x368] sm:$0xff]
        %v475 = vld [vmem:[%s341 + $0x370] sm:$0xff]
        %v476 = vld [vmem:[%s341 + $0x378] sm:$0xff]
        %v477 = vld [vmem:[%s341 + $0x380] sm:$0xff]
        %v478 = vld [vmem:[%s341 + $0x388] sm:$0xff]
        %v479 = vld [vmem:[%s341 + $0x390] sm:$0xff]
        %v480 = vld [vmem:[%s341 + $0x398] sm:$0xff]
        %v481 = vld [vmem:[%s341 + $0x3a0] sm:$0xff]
        %v482 = vld [vmem:[%s341 + $0x3a8] sm:$0xff]
        %v483 = vld [vmem:[%s341 + $0x3b0] sm:$0xff]
        %v484 = vld [vmem:[%s341 + $0x3b8] sm:$0xff]
        %v485 = vld [vmem:[%s341 + $0x3c0] sm:$0xff]
        %v486 = vld [vmem:[%s341 + $0x3c8] sm:$0xff]
        %v487 = vld [vmem:[%s341 + $0x3d0] sm:$0xff]
        %v488 = vld [vmem:[%s341 + $0x3d8] sm:$0xff]
        %v489 = vld [vmem:[%s341 + $0x3e0] sm:$0xff]
        %v490 = vld [vmem:[%s341 + $0x3e8] sm:$0xff]
        %v491 = vld [vmem:[%s341 + $0x3f0] sm:$0xff]
        %v492 = vld [vmem:[%s341 + $0x3f8] sm:$0xff]
        %v493 = vld [vmem:[%s341 + $0x400] sm:$0xff]
        %v494 = vld [vmem:[%s341 + $0x408] sm:$0xff]
        %v495 = vld [vmem:[%s341 + $0x410] sm:$0xff]
        %v496 = vld [vmem:[%s341 + $0x418] sm:$0xff]
        %v497 = vld [vmem:[%s341 + $0x420] sm:$0xff]
        %v498 = vld [vmem:[%s341 + $0x428] sm:$0xff]
        %v499 = vld [vmem:[%s341 + $0x430] sm:$0xff]
        %v500 = vld [vmem:[%s341 + $0x438] sm:$0xff]
        %v501 = vld [vmem:[%s341 + $0x440] sm:$0xff]
        %v502 = vld [vmem:[%s341 + $0x448] sm:$0xff]
        %v503 = vld [vmem:[%s341 + $0x450] sm:$0xff]
        %v504 = vld [vmem:[%s341 + $0x458] sm:$0xff]
        %v505 = vld [vmem:[%s341 + $0x460] sm:$0xff]
        %v506 = vld [vmem:[%s341 + $0x468] sm:$0xff]
        %v507 = vld [vmem:[%s341 + $0x470] sm:$0xff]
        %v508 = vld [vmem:[%s341 + $0x478] sm:$0xff]
        %v509 = vld [vmem:[%s341 + $0x480] sm:$0xff]
        %v510 = vld [vmem:[%s341 + $0x488] sm:$0xff]
        %v511 = vld [vmem:[%s341 + $0x490] sm:$0xff]
        %v512 = vld [vmem:[%s341 + $0x498] sm:$0xff]
        %v513 = vld [vmem:[%s341 + $0x4a0] sm:$0xff]
        %v514 = vld [vmem:[%s341 + $0x4a8] sm:$0xff]
        %v515 = vld [vmem:[%s341 + $0x4b0] sm:$0xff]
        %v516 = vld [vmem:[%s341 + $0x4b8] sm:$0xff]
        %v517 = vld [vmem:[%s341 + $0x4c0] sm:$0xff]
        %v518 = vld [vmem:[%s341 + $0x4c8] sm:$0xff]
        %v519 = vld [vmem:[%s341 + $0x4d0] sm:$0xff]
        %v520 = vld [vmem:[%s341 + $0x4d8] sm:$0xff]
        %v521 = vld [vmem:[%s341 + $0x4e0] sm:$0xff]
        %v522 = vld [vmem:[%s341 + $0x4e8] sm:$0xff]
        %v523 = vld [vmem:[%s341 + $0x4f0] sm:$0xff]
        %v524 = vld [vmem:[%s341 + $0x4f8] sm:$0xff]
        %v525 = vld [vmem:[%s341 + $0x500] sm:$0xff]
        %v526 = vld [vmem:[%s341 + $0x508] sm:$0xff]
        %v527 = vld [vmem:[%s341 + $0x510] sm:$0xff]
        %v528 = vld [vmem:[%s341 + $0x518] sm:$0xff]
        %v529 = vld [vmem:[%s341 + $0x520] sm:$0xff]
        %v530 = vld [vmem:[%s341 + $0x528] sm:$0xff]
        %v531 = vld [vmem:[%s341 + $0x530] sm:$0xff]
        %v532 = vld [vmem:[%s341 + $0x538] sm:$0xff]
        %v533 = vld [vmem:[%s341 + $0x540] sm:$0xff]
        %v534 = vld [vmem:[%s341 + $0x548] sm:$0xff]
        %v535 = vld [vmem:[%s341 + $0x550] sm:$0xff]
        %v536 = vld [vmem:[%s341 + $0x558] sm:$0xff]
        %v537 = vld [vmem:[%s341 + $0x560] sm:$0xff]
        %v538 = vld [vmem:[%s341 + $0x568] sm:$0xff]
        %v539 = vld [vmem:[%s341 + $0x570] sm:$0xff]
        %v540 = vld [vmem:[%s341 + $0x578] sm:$0xff]
        %v541 = vld [vmem:[%s341 + $0x580] sm:$0xff]
        %v542 = vld [vmem:[%s341 + $0x588] sm:$0xff]
        %v543 = vld [vmem:[%s341 + $0x590] sm:$0xff]
        %v544 = vld [vmem:[%s341 + $0x598] sm:$0xff]
        %v545 = vld [vmem:[%s341 + $0x5a0] sm:$0xff]
        %v546 = vld [vmem:[%s341 + $0x5a8] sm:$0xff]
        %v547 = vld [vmem:[%s341 + $0x5b0] sm:$0xff]
        %v548 = vld [vmem:[%s341 + $0x5b8] sm:$0xff]
        %v549 = vld [vmem:[%s341 + $0x5c0] sm:$0xff]
        %v550 = vld [vmem:[%s341 + $0x5c8] sm:$0xff]
        %v551 = vld [vmem:[%s341 + $0x5d0] sm:$0xff]
        %v552 = vld [vmem:[%s341 + $0x5d8] sm:$0xff]
        %v553 = vld [vmem:[%s341 + $0x5e0] sm:$0xff]
        %v554 = vld [vmem:[%s341 + $0x5e8] sm:$0xff]
        %v555 = vld [vmem:[%s341 + $0x5f0] sm:$0xff]
        %v556 = vld [vmem:[%s341 + $0x5f8] sm:$0xff]
        %v557 = vld [vmem:[%s341 + $0x600] sm:$0xff]
        %v558 = vld [vmem:[%s341 + $0x608] sm:$0xff]
        %v559 = vld [vmem:[%s341 + $0x610] sm:$0xff]
        %v560 = vld [vmem:[%s341 + $0x618] sm:$0xff]
        %v561 = vld [vmem:[%s341 + $0x620] sm:$0xff]
        %v562 = vld [vmem:[%s341 + $0x628] sm:$0xff]
        %v563 = vld [vmem:[%s341 + $0x630] sm:$0xff]
        %v564 = vld [vmem:[%s341 + $0x638] sm:$0xff]
        %v565 = vld [vmem:[%s341 + $0x640] sm:$0xff]
        %v566 = vld [vmem:[%s341 + $0x648] sm:$0xff]
        %v567 = vld [vmem:[%s341 + $0x650] sm:$0xff]
        %v568 = vld [vmem:[%s341 + $0x658] sm:$0xff]
        %v569 = vld [vmem:[%s341 + $0x660] sm:$0xff]
        %v570 = vld [vmem:[%s341 + $0x668] sm:$0xff]
        %v571 = vld [vmem:[%s341 + $0x670] sm:$0xff]
        %v572 = vld [vmem:[%s341 + $0x678] sm:$0xff]
        %v573 = vld [vmem:[%s341 + $0x680] sm:$0xff]
        %v574 = vld [vmem:[%s341 + $0x688] sm:$0xff]
        %v575 = vld [vmem:[%s341 + $0x690] sm:$0xff]
        %v576 = vld [vmem:[%s341 + $0x698] sm:$0xff]
        %v577 = vld [vmem:[%s341 + $0x6a0] sm:$0xff]
        %v578 = vld [vmem:[%s341 + $0x6a8] sm:$0xff]
        %v579 = vld [vmem:[%s341 + $0x6b0] sm:$0xff]
        %v580 = vld [vmem:[%s341 + $0x6b8] sm:$0xff]
        %v581 = vld [vmem:[%s341 + $0x6c0] sm:$0xff]
        %v582 = vld [vmem:[%s341 + $0x6c8] sm:$0xff]
        %v583 = vld [vmem:[%s341 + $0x6d0] sm:$0xff]
        %v584 = vld [vmem:[%s341 + $0x6d8] sm:$0xff]
        %v585 = vld [vmem:[%s341 + $0x6e0] sm:$0xff]
        %v586 = vld [vmem:[%s341 + $0x6e8] sm:$0xff]
        %v587 = vld [vmem:[%s341 + $0x6f0] sm:$0xff]
        %v588 = vld [vmem:[%s341 + $0x6f8] sm:$0xff]
        %v597 = vunpack.c.l.b16 %v357
        %v598 = vunpack.c.h.b16 %v357
        %v599 = vunpack.c.l.b16 %v358
        %v600 = vunpack.c.h.b16 %v358
        %v601 = vunpack.c.l.b16 %v359
        %v602 = vunpack.c.h.b16 %v359
        %v603 = vunpack.c.l.b16 %v360
        %v604 = vunpack.c.l.b16 %v361
        %v605 = vunpack.c.h.b16 %v361
        %v606 = vunpack.c.l.b16 %v362
        %v607 = vunpack.c.h.b16 %v362
        %v608 = vunpack.c.l.b16 %v363
        %v609 = vunpack.c.h.b16 %v363
        %v610 = vunpack.c.l.b16 %v364
        %v611 = vpack.c.b16 %v604, %v597
        %v612 = vpack.c.b16 %v605, %v598
        %v613 = vpack.c.b16 %v606, %v599
        %v614 = vpack.c.b16 %v607, %v600
        %v615 = vpack.c.b16 %v608, %v601
        %v616 = vpack.c.b16 %v609, %v602
        %v617 = vpack.c.b16 %v610, %v603
        %v849 = vunpack.c.l.b16 %v365
        %v850 = vunpack.c.h.b16 %v365
        %v851 = vunpack.c.l.b16 %v366
        %v852 = vunpack.c.h.b16 %v366
        %v853 = vunpack.c.l.b16 %v367
        %v854 = vunpack.c.h.b16 %v367
        %v855 = vunpack.c.l.b16 %v368
        %v856 = vunpack.c.h.b16 %v368
        %v857 = vunpack.c.l.b16 %v369
        %v858 = vunpack.c.h.b16 %v369
        %v859 = vunpack.c.l.b16 %v370
        %v860 = vunpack.c.h.b16 %v370
        %v861 = vunpack.c.l.b16 %v371
        %v862 = vunpack.c.h.b16 %v371
        %v863 = vunpack.c.l.b16 %v372
        %v864 = vunpack.c.h.b16 %v372
        %v865 = vunpack.c.l.b16 %v373
        %v866 = vunpack.c.h.b16 %v373
        %v867 = vunpack.c.l.b16 %v374
        %v868 = vunpack.c.h.b16 %v374
        %v869 = vunpack.c.l.b16 %v375
        %v870 = vunpack.c.h.b16 %v375
        %v871 = vunpack.c.l.b16 %v376
        %v872 = vunpack.c.h.b16 %v376
        %v873 = vunpack.c.l.b16 %v377
        %v874 = vunpack.c.h.b16 %v377
        %v875 = vunpack.c.l.b16 %v378
        %v876 = vunpack.c.h.b16 %v378
        %v877 = vunpack.c.l.b16 %v379
        %v878 = vunpack.c.h.b16 %v379
        %v879 = vunpack.c.l.b16 %v380
        %v880 = vunpack.c.h.b16 %v380
        %v881 = vunpack.c.l.b16 %v381
        %v882 = vunpack.c.h.b16 %v381
        %v883 = vunpack.c.l.b16 %v382
        %v884 = vunpack.c.h.b16 %v382
        %v885 = vunpack.c.l.b16 %v383
        %v886 = vunpack.c.h.b16 %v383
        %v887 = vunpack.c.l.b16 %v384
        %v888 = vunpack.c.h.b16 %v384
        %v889 = vunpack.c.l.b16 %v385
        %v890 = vunpack.c.h.b16 %v385
        %v891 = vunpack.c.l.b16 %v386
        %v892 = vunpack.c.h.b16 %v386
        %v893 = vunpack.c.l.b16 %v387
        %v894 = vunpack.c.h.b16 %v387
        %v895 = vunpack.c.l.b16 %v388
        %v896 = vunpack.c.h.b16 %v388
        %v897 = vunpack.c.l.b16 %v389
        %v898 = vunpack.c.h.b16 %v389
        %v899 = vunpack.c.l.b16 %v390
        %v900 = vunpack.c.h.b16 %v390
        %v901 = vunpack.c.l.b16 %v391
        %v902 = vunpack.c.h.b16 %v391
        %v903 = vunpack.c.l.b16 %v392
        %v904 = vunpack.c.h.b16 %v392
        %v905 = vunpack.c.l.b16 %v393
        %v906 = vunpack.c.h.b16 %v393
        %v907 = vunpack.c.l.b16 %v394
        %v908 = vunpack.c.h.b16 %v394
        %v909 = vunpack.c.l.b16 %v395
        %v910 = vunpack.c.h.b16 %v395
        %v911 = vunpack.c.l.b16 %v396
        %v912 = vunpack.c.h.b16 %v396
        %v913 = vunpack.c.l.b16 %v397
        %v914 = vunpack.c.h.b16 %v397
        %v915 = vunpack.c.l.b16 %v398
        %v916 = vunpack.c.h.b16 %v398
        %v917 = vunpack.c.l.b16 %v399
        %v918 = vunpack.c.h.b16 %v399
        %v919 = vunpack.c.l.b16 %v400
        %v920 = vunpack.c.h.b16 %v400
        %v921 = vunpack.c.l.b16 %v401
        %v922 = vunpack.c.h.b16 %v401
        %v923 = vunpack.c.l.b16 %v402
        %v924 = vunpack.c.h.b16 %v402
        %v925 = vunpack.c.l.b16 %v403
        %v926 = vunpack.c.h.b16 %v403
        %v927 = vunpack.c.l.b16 %v404
        %v928 = vunpack.c.h.b16 %v404
        %v929 = vunpack.c.l.b16 %v405
        %v930 = vunpack.c.h.b16 %v405
        %v931 = vunpack.c.l.b16 %v406
        %v932 = vunpack.c.h.b16 %v406
        %v933 = vunpack.c.l.b16 %v407
        %v934 = vunpack.c.h.b16 %v407
        %v935 = vunpack.c.l.b16 %v408
        %v936 = vunpack.c.h.b16 %v408
        %v937 = vunpack.c.l.b16 %v409
        %v938 = vunpack.c.h.b16 %v409
        %v939 = vunpack.c.l.b16 %v410
        %v940 = vunpack.c.h.b16 %v410
        %v941 = vunpack.c.l.b16 %v411
        %v942 = vunpack.c.h.b16 %v411
        %v943 = vunpack.c.l.b16 %v412
        %v944 = vunpack.c.h.b16 %v412
        %v945 = vunpack.c.l.b16 %v413
        %v946 = vunpack.c.h.b16 %v413
        %v947 = vunpack.c.l.b16 %v414
        %v948 = vunpack.c.h.b16 %v414
        %v949 = vunpack.c.l.b16 %v415
        %v950 = vunpack.c.h.b16 %v415
        %v951 = vunpack.c.l.b16 %v416
        %v952 = vunpack.c.h.b16 %v416
        %v953 = vunpack.c.l.b16 %v417
        %v954 = vunpack.c.h.b16 %v417
        %v955 = vunpack.c.l.b16 %v418
        %v956 = vunpack.c.h.b16 %v418
        %v957 = vunpack.c.l.b16 %v419
        %v958 = vunpack.c.h.b16 %v419
        %v959 = vunpack.c.l.b16 %v420
        %v960 = vunpack.c.h.b16 %v420
        %v961 = vunpack.c.l.b16 %v421
        %v962 = vunpack.c.h.b16 %v421
        %v963 = vunpack.c.l.b16 %v422
        %v964 = vunpack.c.h.b16 %v422
        %v965 = vunpack.c.l.b16 %v423
        %v966 = vunpack.c.h.b16 %v423
        %v967 = vunpack.c.l.b16 %v424
        %v968 = vunpack.c.h.b16 %v424
        %v969 = vunpack.c.l.b16 %v425
        %v970 = vunpack.c.h.b16 %v425
        %v971 = vunpack.c.l.b16 %v426
        %v972 = vunpack.c.h.b16 %v426
        %v973 = vunpack.c.l.b16 %v427
        %v974 = vunpack.c.h.b16 %v427
        %v975 = vunpack.c.l.b16 %v428
        %v976 = vunpack.c.h.b16 %v428
        %v977 = vunpack.c.l.b16 %v429
        %v978 = vunpack.c.h.b16 %v429
        %v979 = vunpack.c.l.b16 %v430
        %v980 = vunpack.c.h.b16 %v430
        %v981 = vunpack.c.l.b16 %v431
        %v982 = vunpack.c.h.b16 %v431
        %v983 = vunpack.c.l.b16 %v432
        %v984 = vunpack.c.h.b16 %v432
        %v985 = vunpack.c.l.b16 %v433
        %v986 = vunpack.c.h.b16 %v433
        %v987 = vunpack.c.l.b16 %v434
        %v988 = vunpack.c.h.b16 %v434
        %v989 = vunpack.c.l.b16 %v435
        %v990 = vunpack.c.h.b16 %v435
        %v991 = vunpack.c.l.b16 %v436
        %v992 = vunpack.c.h.b16 %v436
        %v993 = vunpack.c.l.b16 %v437
        %v994 = vunpack.c.h.b16 %v437
        %v995 = vunpack.c.l.b16 %v438
        %v996 = vunpack.c.h.b16 %v438
        %v997 = vunpack.c.l.b16 %v439
        %v998 = vunpack.c.h.b16 %v439
        %v999 = vunpack.c.l.b16 %v440
        %v1000 = vunpack.c.h.b16 %v440
        %v1001 = vunpack.c.l.b16 %v441
        %v1002 = vunpack.c.h.b16 %v441
        %v1003 = vunpack.c.l.b16 %v442
        %v1004 = vunpack.c.h.b16 %v442
        %v1005 = vunpack.c.l.b16 %v443
        %v1006 = vunpack.c.h.b16 %v443
        %v1007 = vunpack.c.l.b16 %v444
        %v1008 = vunpack.c.h.b16 %v444
        %v1009 = vunpack.c.l.b16 %v445
        %v1010 = vunpack.c.h.b16 %v445
        %v1011 = vunpack.c.l.b16 %v446
        %v1012 = vunpack.c.h.b16 %v446
        %v1013 = vunpack.c.l.b16 %v447
        %v1014 = vunpack.c.h.b16 %v447
        %v1015 = vunpack.c.l.b16 %v448
        %v1016 = vunpack.c.h.b16 %v448
        %v1017 = vunpack.c.l.b16 %v449
        %v1018 = vunpack.c.h.b16 %v449
        %v1019 = vunpack.c.l.b16 %v450
        %v1020 = vunpack.c.h.b16 %v450
        %v1021 = vunpack.c.l.b16 %v451
        %v1022 = vunpack.c.h.b16 %v451
        %v1023 = vunpack.c.l.b16 %v452
        %v1024 = vunpack.c.h.b16 %v452
        %v1025 = vunpack.c.l.b16 %v453
        %v1026 = vunpack.c.h.b16 %v453
        %v1027 = vunpack.c.l.b16 %v454
        %v1028 = vunpack.c.h.b16 %v454
        %v1029 = vunpack.c.l.b16 %v455
        %v1030 = vunpack.c.h.b16 %v455
        %v1031 = vunpack.c.l.b16 %v456
        %v1032 = vunpack.c.h.b16 %v456
        %v1033 = vunpack.c.l.b16 %v457
        %v1034 = vunpack.c.h.b16 %v457
        %v1035 = vunpack.c.l.b16 %v458
        %v1036 = vunpack.c.h.b16 %v458
        %v1037 = vunpack.c.l.b16 %v459
        %v1038 = vunpack.c.h.b16 %v459
        %v1039 = vunpack.c.l.b16 %v460
        %v1040 = vunpack.c.h.b16 %v460
        %v1041 = vunpack.c.l.b16 %v461
        %v1042 = vunpack.c.h.b16 %v461
        %v1043 = vunpack.c.l.b16 %v462
        %v1044 = vunpack.c.h.b16 %v462
        %v1045 = vunpack.c.l.b16 %v463
        %v1046 = vunpack.c.h.b16 %v463
        %v1047 = vunpack.c.l.b16 %v464
        %v1048 = vunpack.c.h.b16 %v464
        %v1049 = vunpack.c.l.b16 %v465
        %v1050 = vunpack.c.h.b16 %v465
        %v1051 = vunpack.c.l.b16 %v466
        %v1052 = vunpack.c.h.b16 %v466
        %v1053 = vunpack.c.l.b16 %v467
        %v1054 = vunpack.c.h.b16 %v467
        %v1055 = vunpack.c.l.b16 %v468
        %v1056 = vunpack.c.h.b16 %v468
        %v1057 = vunpack.c.l.b16 %v469
        %v1058 = vunpack.c.h.b16 %v469
        %v1059 = vunpack.c.l.b16 %v470
        %v1060 = vunpack.c.h.b16 %v470
        %v1061 = vunpack.c.l.b16 %v471
        %v1062 = vunpack.c.h.b16 %v471
        %v1063 = vunpack.c.l.b16 %v472
        %v1064 = vunpack.c.h.b16 %v472
        %v1065 = vunpack.c.l.b16 %v473
        %v1066 = vunpack.c.h.b16 %v473
        %v1067 = vunpack.c.l.b16 %v474
        %v1068 = vunpack.c.h.b16 %v474
        %v1069 = vunpack.c.l.b16 %v475
        %v1070 = vunpack.c.h.b16 %v475
        %v1071 = vunpack.c.l.b16 %v476
        %v1072 = vunpack.c.h.b16 %v476
        %v1073 = vunpack.c.l.b16 %v477
        %v1074 = vunpack.c.h.b16 %v477
        %v1075 = vunpack.c.l.b16 %v478
        %v1076 = vunpack.c.h.b16 %v478
        %v1077 = vunpack.c.l.b16 %v479
        %v1078 = vunpack.c.h.b16 %v479
        %v1079 = vunpack.c.l.b16 %v480
        %v1080 = vunpack.c.h.b16 %v480
        %v1081 = vunpack.c.l.b16 %v481
        %v1082 = vunpack.c.h.b16 %v481
        %v1083 = vunpack.c.l.b16 %v482
        %v1084 = vunpack.c.h.b16 %v482
        %v1085 = vunpack.c.l.b16 %v483
        %v1086 = vunpack.c.h.b16 %v483
        %v1087 = vunpack.c.l.b16 %v484
        %v1088 = vunpack.c.h.b16 %v484
        %v1089 = vunpack.c.l.b16 %v485
        %v1090 = vunpack.c.h.b16 %v485
        %v1091 = vunpack.c.l.b16 %v486
        %v1092 = vunpack.c.h.b16 %v486
        %v1093 = vunpack.c.l.b16 %v487
        %v1094 = vunpack.c.h.b16 %v487
        %v1095 = vunpack.c.l.b16 %v488
        %v1096 = vunpack.c.h.b16 %v488
        %v1097 = vunpack.c.l.b16 %v489
        %v1098 = vunpack.c.h.b16 %v489
        %v1099 = vunpack.c.l.b16 %v490
        %v1100 = vunpack.c.h.b16 %v490
        %v1101 = vunpack.c.l.b16 %v491
        %v1102 = vunpack.c.h.b16 %v491
        %v1103 = vunpack.c.l.b16 %v492
        %v1104 = vunpack.c.h.b16 %v492
        %v1105 = vunpack.c.l.b16 %v493
        %v1106 = vunpack.c.h.b16 %v493
        %v1107 = vunpack.c.l.b16 %v494
        %v1108 = vunpack.c.h.b16 %v494
        %v1109 = vunpack.c.l.b16 %v495
        %v1110 = vunpack.c.h.b16 %v495
        %v1111 = vunpack.c.l.b16 %v496
        %v1112 = vunpack.c.h.b16 %v496
        %v1113 = vunpack.c.l.b16 %v497
        %v1114 = vunpack.c.h.b16 %v497
        %v1115 = vunpack.c.l.b16 %v498
        %v1116 = vunpack.c.h.b16 %v498
        %v1117 = vunpack.c.l.b16 %v499
        %v1118 = vunpack.c.h.b16 %v499
        %v1119 = vunpack.c.l.b16 %v500
        %v1120 = vunpack.c.h.b16 %v500
        %v1121 = vunpack.c.l.b16 %v501
        %v1122 = vunpack.c.h.b16 %v501
        %v1123 = vunpack.c.l.b16 %v502
        %v1124 = vunpack.c.h.b16 %v502
        %v1125 = vunpack.c.l.b16 %v503
        %v1126 = vunpack.c.h.b16 %v503
        %v1127 = vunpack.c.l.b16 %v504
        %v1128 = vunpack.c.h.b16 %v504
        %v1129 = vunpack.c.l.b16 %v505
        %v1130 = vunpack.c.h.b16 %v505
        %v1131 = vunpack.c.l.b16 %v506
        %v1132 = vunpack.c.h.b16 %v506
        %v1133 = vunpack.c.l.b16 %v507
        %v1134 = vunpack.c.h.b16 %v507
        %v1135 = vunpack.c.l.b16 %v508
        %v1136 = vunpack.c.h.b16 %v508
        %v1137 = vunpack.c.l.b16 %v509
        %v1138 = vunpack.c.h.b16 %v509
        %v1139 = vunpack.c.l.b16 %v510
        %v1140 = vunpack.c.h.b16 %v510
        %v1141 = vunpack.c.l.b16 %v511
        %v1142 = vunpack.c.h.b16 %v511
        %v1143 = vunpack.c.l.b16 %v512
        %v1144 = vunpack.c.h.b16 %v512
        %v1145 = vunpack.c.l.b16 %v513
        %v1146 = vunpack.c.h.b16 %v513
        %v1147 = vunpack.c.l.b16 %v514
        %v1148 = vunpack.c.h.b16 %v514
        %v1149 = vunpack.c.l.b16 %v515
        %v1150 = vunpack.c.h.b16 %v515
        %v1151 = vunpack.c.l.b16 %v516
        %v1152 = vunpack.c.h.b16 %v516
        %v1153 = vunpack.c.l.b16 %v517
        %v1154 = vunpack.c.h.b16 %v517
        %v1155 = vunpack.c.l.b16 %v518
        %v1156 = vunpack.c.h.b16 %v518
        %v1157 = vunpack.c.l.b16 %v519
        %v1158 = vunpack.c.h.b16 %v519
        %v1159 = vunpack.c.l.b16 %v520
        %v1160 = vunpack.c.h.b16 %v520
        %v1161 = vunpack.c.l.b16 %v521
        %v1162 = vunpack.c.h.b16 %v521
        %v1163 = vunpack.c.l.b16 %v522
        %v1164 = vunpack.c.h.b16 %v522
        %v1165 = vunpack.c.l.b16 %v523
        %v1166 = vunpack.c.h.b16 %v523
        %v1167 = vunpack.c.l.b16 %v524
        %v1168 = vunpack.c.h.b16 %v524
        %v1169 = vunpack.c.l.b16 %v525
        %v1170 = vunpack.c.h.b16 %v525
        %v1171 = vunpack.c.l.b16 %v526
        %v1172 = vunpack.c.h.b16 %v526
        %v1173 = vunpack.c.l.b16 %v527
        %v1174 = vunpack.c.h.b16 %v527
        %v1175 = vunpack.c.l.b16 %v528
        %v1176 = vunpack.c.h.b16 %v528
        %v1177 = vunpack.c.l.b16 %v529
        %v1178 = vunpack.c.h.b16 %v529
        %v1179 = vunpack.c.l.b16 %v530
        %v1180 = vunpack.c.h.b16 %v530
        %v1181 = vunpack.c.l.b16 %v531
        %v1182 = vunpack.c.h.b16 %v531
        %v1183 = vunpack.c.l.b16 %v532
        %v1184 = vunpack.c.h.b16 %v532
        %v1185 = vunpack.c.l.b16 %v533
        %v1186 = vunpack.c.h.b16 %v533
        %v1187 = vunpack.c.l.b16 %v534
        %v1188 = vunpack.c.h.b16 %v534
        %v1189 = vunpack.c.l.b16 %v535
        %v1190 = vunpack.c.h.b16 %v535
        %v1191 = vunpack.c.l.b16 %v536
        %v1192 = vunpack.c.h.b16 %v536
        %v1193 = vunpack.c.l.b16 %v537
        %v1194 = vunpack.c.h.b16 %v537
        %v1195 = vunpack.c.l.b16 %v538
        %v1196 = vunpack.c.h.b16 %v538
        %v1197 = vunpack.c.l.b16 %v539
        %v1198 = vunpack.c.h.b16 %v539
        %v1199 = vunpack.c.l.b16 %v540
        %v1200 = vunpack.c.h.b16 %v540
        %v1201 = vunpack.c.l.b16 %v541
        %v1202 = vunpack.c.h.b16 %v541
        %v1203 = vunpack.c.l.b16 %v542
        %v1204 = vunpack.c.h.b16 %v542
        %v1205 = vunpack.c.l.b16 %v543
        %v1206 = vunpack.c.h.b16 %v543
        %v1207 = vunpack.c.l.b16 %v544
        %v1208 = vunpack.c.h.b16 %v544
        %v1209 = vunpack.c.l.b16 %v545
        %v1210 = vunpack.c.h.b16 %v545
        %v1211 = vunpack.c.l.b16 %v546
        %v1212 = vunpack.c.h.b16 %v546
        %v1213 = vunpack.c.l.b16 %v547
        %v1214 = vunpack.c.h.b16 %v547
        %v1215 = vunpack.c.l.b16 %v548
        %v1216 = vunpack.c.h.b16 %v548
        %v1217 = vunpack.c.l.b16 %v549
        %v1218 = vunpack.c.h.b16 %v549
        %v1219 = vunpack.c.l.b16 %v550
        %v1220 = vunpack.c.h.b16 %v550
        %v1221 = vunpack.c.l.b16 %v551
        %v1222 = vunpack.c.h.b16 %v551
        %v1223 = vunpack.c.l.b16 %v552
        %v1224 = vunpack.c.h.b16 %v552
        %v1225 = vunpack.c.l.b16 %v553
        %v1226 = vunpack.c.h.b16 %v553
        %v1227 = vunpack.c.l.b16 %v554
        %v1228 = vunpack.c.h.b16 %v554
        %v1229 = vunpack.c.l.b16 %v555
        %v1230 = vunpack.c.h.b16 %v555
        %v1231 = vunpack.c.l.b16 %v556
        %v1232 = vunpack.c.h.b16 %v556
        %v1233 = vunpack.c.l.b16 %v557
        %v1234 = vunpack.c.h.b16 %v557
        %v1235 = vunpack.c.l.b16 %v558
        %v1236 = vunpack.c.h.b16 %v558
        %v1237 = vunpack.c.l.b16 %v559
        %v1238 = vunpack.c.h.b16 %v559
        %v1239 = vunpack.c.l.b16 %v560
        %v1240 = vunpack.c.h.b16 %v560
        %v1241 = vunpack.c.l.b16 %v561
        %v1242 = vunpack.c.h.b16 %v561
        %v1243 = vunpack.c.l.b16 %v562
        %v1244 = vunpack.c.h.b16 %v562
        %v1245 = vunpack.c.l.b16 %v563
        %v1246 = vunpack.c.h.b16 %v563
        %v1247 = vunpack.c.l.b16 %v564
        %v1248 = vunpack.c.h.b16 %v564
        %v1249 = vunpack.c.l.b16 %v565
        %v1250 = vunpack.c.h.b16 %v565
        %v1251 = vunpack.c.l.b16 %v566
        %v1252 = vunpack.c.h.b16 %v566
        %v1253 = vunpack.c.l.b16 %v567
        %v1254 = vunpack.c.h.b16 %v567
        %v1255 = vunpack.c.l.b16 %v568
        %v1256 = vunpack.c.h.b16 %v568
        %v1257 = vunpack.c.l.b16 %v569
        %v1258 = vunpack.c.h.b16 %v569
        %v1259 = vunpack.c.l.b16 %v570
        %v1260 = vunpack.c.h.b16 %v570
        %v1261 = vunpack.c.l.b16 %v571
        %v1262 = vunpack.c.h.b16 %v571
        %v1263 = vunpack.c.l.b16 %v572
        %v1264 = vunpack.c.h.b16 %v572
        %v1265 = vunpack.c.l.b16 %v573
        %v1266 = vunpack.c.h.b16 %v573
        %v1267 = vunpack.c.l.b16 %v574
        %v1268 = vunpack.c.h.b16 %v574
        %v1269 = vunpack.c.l.b16 %v575
        %v1270 = vunpack.c.h.b16 %v575
        %v1271 = vunpack.c.l.b16 %v576
        %v1272 = vunpack.c.h.b16 %v576
        %v1273 = vunpack.c.l.b16 %v577
        %v1274 = vunpack.c.h.b16 %v577
        %v1275 = vunpack.c.l.b16 %v578
        %v1276 = vunpack.c.h.b16 %v578
        %v1277 = vunpack.c.l.b16 %v579
        %v1278 = vunpack.c.h.b16 %v579
        %v1279 = vunpack.c.l.b16 %v580
        %v1280 = vunpack.c.h.b16 %v580
        %v1281 = vunpack.c.l.b16 %v581
        %v1282 = vunpack.c.h.b16 %v581
        %v1283 = vunpack.c.l.b16 %v582
        %v1284 = vunpack.c.h.b16 %v582
        %v1285 = vunpack.c.l.b16 %v583
        %v1286 = vunpack.c.h.b16 %v583
        %v1287 = vunpack.c.l.b16 %v584
        %v1288 = vunpack.c.h.b16 %v584
        %v1289 = vunpack.c.l.b16 %v585
        %v1290 = vunpack.c.h.b16 %v585
        %v1291 = vunpack.c.l.b16 %v586
        %v1292 = vunpack.c.h.b16 %v586
        %v1293 = vunpack.c.l.b16 %v587
        %v1294 = vunpack.c.h.b16 %v587
        %v1295 = vunpack.c.l.b16 %v588
        %v1296 = vunpack.c.h.b16 %v588
        %v1297 = vpack.c.b16 %v853, %v849
        %v1298 = vpack.c.b16 %v854, %v850
        %v1299 = vpack.c.b16 %v855, %v851
        %v1300 = vpack.c.b16 %v856, %v852
        %v1301 = vpack.c.b16 %v861, %v857
        %v1302 = vpack.c.b16 %v862, %v858
        %v1303 = vpack.c.b16 %v863, %v859
        %v1304 = vpack.c.b16 %v864, %v860
        %v1305 = vpack.c.b16 %v869, %v865
        %v1306 = vpack.c.b16 %v870, %v866
        %v1307 = vpack.c.b16 %v871, %v867
        %v1308 = vpack.c.b16 %v872, %v868
        %v1309 = vpack.c.b16 %v877, %v873
        %v1310 = vpack.c.b16 %v878, %v874
        %v1311 = vpack.c.b16 %v879, %v875
        %v1312 = vpack.c.b16 %v880, %v876
        %v1313 = vpack.c.b16 %v885, %v881
        %v1314 = vpack.c.b16 %v886, %v882
        %v1315 = vpack.c.b16 %v887, %v883
        %v1316 = vpack.c.b16 %v888, %v884
        %v1317 = vpack.c.b16 %v893, %v889
        %v1318 = vpack.c.b16 %v894, %v890
        %v1319 = vpack.c.b16 %v895, %v891
        %v1320 = vpack.c.b16 %v896, %v892
        %v1321 = vpack.c.b16 %v901, %v897
        %v1322 = vpack.c.b16 %v902, %v898
        %v1323 = vpack.c.b16 %v903, %v899
        %v1324 = vpack.c.b16 %v904, %v900
        %v1325 = vpack.c.b16 %v909, %v905
        %v1326 = vpack.c.b16 %v910, %v906
        %v1327 = vpack.c.b16 %v911, %v907
        %v1328 = vpack.c.b16 %v912, %v908
        %v1329 = vpack.c.b16 %v917, %v913
        %v1330 = vpack.c.b16 %v918, %v914
        %v1331 = vpack.c.b16 %v919, %v915
        %v1332 = vpack.c.b16 %v920, %v916
        %v1333 = vpack.c.b16 %v925, %v921
        %v1334 = vpack.c.b16 %v926, %v922
        %v1335 = vpack.c.b16 %v927, %v923
        %v1336 = vpack.c.b16 %v928, %v924
        %v1337 = vpack.c.b16 %v933, %v929
        %v1338 = vpack.c.b16 %v934, %v930
        %v1339 = vpack.c.b16 %v935, %v931
        %v1340 = vpack.c.b16 %v936, %v932
        %v1341 = vpack.c.b16 %v941, %v937
        %v1342 = vpack.c.b16 %v942, %v938
        %v1343 = vpack.c.b16 %v943, %v939
        %v1344 = vpack.c.b16 %v944, %v940
        %v1345 = vpack.c.b16 %v949, %v945
        %v1346 = vpack.c.b16 %v950, %v946
        %v1347 = vpack.c.b16 %v951, %v947
        %v1348 = vpack.c.b16 %v952, %v948
        %v1349 = vpack.c.b16 %v957, %v953
        %v1350 = vpack.c.b16 %v958, %v954
        %v1351 = vpack.c.b16 %v959, %v955
        %v1352 = vpack.c.b16 %v960, %v956
        %v1353 = vpack.c.b16 %v965, %v961
        %v1354 = vpack.c.b16 %v966, %v962
        %v1355 = vpack.c.b16 %v967, %v963
        %v1356 = vpack.c.b16 %v968, %v964
        %v1357 = vpack.c.b16 %v973, %v969
        %v1358 = vpack.c.b16 %v974, %v970
        %v1359 = vpack.c.b16 %v975, %v971
        %v1360 = vpack.c.b16 %v976, %v972
        %v1361 = vpack.c.b16 %v981, %v977
        %v1362 = vpack.c.b16 %v982, %v978
        %v1363 = vpack.c.b16 %v983, %v979
        %v1364 = vpack.c.b16 %v984, %v980
        %v1365 = vpack.c.b16 %v989, %v985
        %v1366 = vpack.c.b16 %v990, %v986
        %v1367 = vpack.c.b16 %v991, %v987
        %v1368 = vpack.c.b16 %v992, %v988
        %v1369 = vpack.c.b16 %v997, %v993
        %v1370 = vpack.c.b16 %v998, %v994
        %v1371 = vpack.c.b16 %v999, %v995
        %v1372 = vpack.c.b16 %v1000, %v996
        %v1373 = vpack.c.b16 %v1005, %v1001
        %v1374 = vpack.c.b16 %v1006, %v1002
        %v1375 = vpack.c.b16 %v1007, %v1003
        %v1376 = vpack.c.b16 %v1008, %v1004
        %v1377 = vpack.c.b16 %v1013, %v1009
        %v1378 = vpack.c.b16 %v1014, %v1010
        %v1379 = vpack.c.b16 %v1015, %v1011
        %v1380 = vpack.c.b16 %v1016, %v1012
        %v1381 = vpack.c.b16 %v1021, %v1017
        %v1382 = vpack.c.b16 %v1022, %v1018
        %v1383 = vpack.c.b16 %v1023, %v1019
        %v1384 = vpack.c.b16 %v1024, %v1020
        %v1385 = vpack.c.b16 %v1029, %v1025
        %v1386 = vpack.c.b16 %v1030, %v1026
        %v1387 = vpack.c.b16 %v1031, %v1027
        %v1388 = vpack.c.b16 %v1032, %v1028
        %v1389 = vpack.c.b16 %v1037, %v1033
        %v1390 = vpack.c.b16 %v1038, %v1034
        %v1391 = vpack.c.b16 %v1039, %v1035
        %v1392 = vpack.c.b16 %v1040, %v1036
        %v1393 = vpack.c.b16 %v1045, %v1041
        %v1394 = vpack.c.b16 %v1046, %v1042
        %v1395 = vpack.c.b16 %v1047, %v1043
        %v1396 = vpack.c.b16 %v1048, %v1044
        %v1397 = vpack.c.b16 %v1053, %v1049
        %v1398 = vpack.c.b16 %v1054, %v1050
        %v1399 = vpack.c.b16 %v1055, %v1051
        %v1400 = vpack.c.b16 %v1056, %v1052
        %v1401 = vpack.c.b16 %v1061, %v1057
        %v1402 = vpack.c.b16 %v1062, %v1058
        %v1403 = vpack.c.b16 %v1063, %v1059
        %v1404 = vpack.c.b16 %v1064, %v1060
        %v1405 = vpack.c.b16 %v1069, %v1065
        %v1406 = vpack.c.b16 %v1070, %v1066
        %v1407 = vpack.c.b16 %v1071, %v1067
        %v1408 = vpack.c.b16 %v1072, %v1068
        %v1409 = vpack.c.b16 %v1077, %v1073
        %v1410 = vpack.c.b16 %v1078, %v1074
        %v1411 = vpack.c.b16 %v1079, %v1075
        %v1412 = vpack.c.b16 %v1080, %v1076
        %v1413 = vpack.c.b16 %v1085, %v1081
        %v1414 = vpack.c.b16 %v1086, %v1082
        %v1415 = vpack.c.b16 %v1087, %v1083
        %v1416 = vpack.c.b16 %v1088, %v1084
        %v1417 = vpack.c.b16 %v1093, %v1089
        %v1418 = vpack.c.b16 %v1094, %v1090
        %v1419 = vpack.c.b16 %v1095, %v1091
        %v1420 = vpack.c.b16 %v1096, %v1092
        %v1421 = vpack.c.b16 %v1101, %v1097
        %v1422 = vpack.c.b16 %v1102, %v1098
        %v1423 = vpack.c.b16 %v1103, %v1099
        %v1424 = vpack.c.b16 %v1104, %v1100
        %v1425 = vpack.c.b16 %v1109, %v1105
        %v1426 = vpack.c.b16 %v1110, %v1106
        %v1427 = vpack.c.b16 %v1111, %v1107
        %v1428 = vpack.c.b16 %v1112, %v1108
        %v1429 = vpack.c.b16 %v1117, %v1113
        %v1430 = vpack.c.b16 %v1118, %v1114
        %v1431 = vpack.c.b16 %v1119, %v1115
        %v1432 = vpack.c.b16 %v1120, %v1116
        %v1433 = vpack.c.b16 %v1125, %v1121
        %v1434 = vpack.c.b16 %v1126, %v1122
        %v1435 = vpack.c.b16 %v1127, %v1123
        %v1436 = vpack.c.b16 %v1128, %v1124
        %v1437 = vpack.c.b16 %v1133, %v1129
        %v1438 = vpack.c.b16 %v1134, %v1130
        %v1439 = vpack.c.b16 %v1135, %v1131
        %v1440 = vpack.c.b16 %v1136, %v1132
        %v1441 = vpack.c.b16 %v1141, %v1137
        %v1442 = vpack.c.b16 %v1142, %v1138
        %v1443 = vpack.c.b16 %v1143, %v1139
        %v1444 = vpack.c.b16 %v1144, %v1140
        %v1445 = vpack.c.b16 %v1149, %v1145
        %v1446 = vpack.c.b16 %v1150, %v1146
        %v1447 = vpack.c.b16 %v1151, %v1147
        %v1448 = vpack.c.b16 %v1152, %v1148
        %v1449 = vpack.c.b16 %v1157, %v1153
        %v1450 = vpack.c.b16 %v1158, %v1154
        %v1451 = vpack.c.b16 %v1159, %v1155
        %v1452 = vpack.c.b16 %v1160, %v1156
        %v1453 = vpack.c.b16 %v1165, %v1161
        %v1454 = vpack.c.b16 %v1166, %v1162
        %v1455 = vpack.c.b16 %v1167, %v1163
        %v1456 = vpack.c.b16 %v1168, %v1164
        %v1457 = vpack.c.b16 %v1173, %v1169
        %v1458 = vpack.c.b16 %v1174, %v1170
        %v1459 = vpack.c.b16 %v1175, %v1171
        %v1460 = vpack.c.b16 %v1176, %v1172
        %v1461 = vpack.c.b16 %v1181, %v1177
        %v1462 = vpack.c.b16 %v1182, %v1178
        %v1463 = vpack.c.b16 %v1183, %v1179
        %v1464 = vpack.c.b16 %v1184, %v1180
        %v1465 = vpack.c.b16 %v1189, %v1185
        %v1466 = vpack.c.b16 %v1190, %v1186
        %v1467 = vpack.c.b16 %v1191, %v1187
        %v1468 = vpack.c.b16 %v1192, %v1188
        %v1469 = vpack.c.b16 %v1197, %v1193
        %v1470 = vpack.c.b16 %v1198, %v1194
        %v1471 = vpack.c.b16 %v1199, %v1195
        %v1472 = vpack.c.b16 %v1200, %v1196
        %v1473 = vpack.c.b16 %v1205, %v1201
        %v1474 = vpack.c.b16 %v1206, %v1202
        %v1475 = vpack.c.b16 %v1207, %v1203
        %v1476 = vpack.c.b16 %v1208, %v1204
        %v1477 = vpack.c.b16 %v1213, %v1209
        %v1478 = vpack.c.b16 %v1214, %v1210
        %v1479 = vpack.c.b16 %v1215, %v1211
        %v1480 = vpack.c.b16 %v1216, %v1212
        %v1481 = vpack.c.b16 %v1221, %v1217
        %v1482 = vpack.c.b16 %v1222, %v1218
        %v1483 = vpack.c.b16 %v1223, %v1219
        %v1484 = vpack.c.b16 %v1224, %v1220
        %v1485 = vpack.c.b16 %v1229, %v1225
        %v1486 = vpack.c.b16 %v1230, %v1226
        %v1487 = vpack.c.b16 %v1231, %v1227
        %v1488 = vpack.c.b16 %v1232, %v1228
        %v1489 = vpack.c.b16 %v1237, %v1233
        %v1490 = vpack.c.b16 %v1238, %v1234
        %v1491 = vpack.c.b16 %v1239, %v1235
        %v1492 = vpack.c.b16 %v1240, %v1236
        %v1493 = vpack.c.b16 %v1245, %v1241
        %v1494 = vpack.c.b16 %v1246, %v1242
        %v1495 = vpack.c.b16 %v1247, %v1243
        %v1496 = vpack.c.b16 %v1248, %v1244
        %v1497 = vpack.c.b16 %v1253, %v1249
        %v1498 = vpack.c.b16 %v1254, %v1250
        %v1499 = vpack.c.b16 %v1255, %v1251
        %v1500 = vpack.c.b16 %v1256, %v1252
        %v1501 = vpack.c.b16 %v1261, %v1257
        %v1502 = vpack.c.b16 %v1262, %v1258
        %v1503 = vpack.c.b16 %v1263, %v1259
        %v1504 = vpack.c.b16 %v1264, %v1260
        %v1505 = vpack.c.b16 %v1269, %v1265
        %v1506 = vpack.c.b16 %v1270, %v1266
        %v1507 = vpack.c.b16 %v1271, %v1267
        %v1508 = vpack.c.b16 %v1272, %v1268
        %v1509 = vpack.c.b16 %v1277, %v1273
        %v1510 = vpack.c.b16 %v1278, %v1274
        %v1511 = vpack.c.b16 %v1279, %v1275
        %v1512 = vpack.c.b16 %v1280, %v1276
        %v1513 = vpack.c.b16 %v1285, %v1281
        %v1514 = vpack.c.b16 %v1286, %v1282
        %v1515 = vpack.c.b16 %v1287, %v1283
        %v1516 = vpack.c.b16 %v1288, %v1284
        %v1517 = vpack.c.b16 %v1293, %v1289
        %v1518 = vpack.c.b16 %v1294, %v1290
        %v1519 = vpack.c.b16 %v1295, %v1291
        %v1520 = vpack.c.b16 %v1296, %v1292
        %1745 = vmatprep.subr.bf16.mxu0 %v1298
        %1746 = vmatpush1.bf16.msra.mxu0 %v1297
        %1747 = vmatprep.subr.bf16.mxu0 %v1302
        %1748 = vmatpush1.bf16.msra.mxu0 %v1301
        %1749 = vmatprep.subr.bf16.mxu0 %v1306
        %1750 = vmatpush1.bf16.msra.mxu0 %v1305
        %1751 = vmatprep.subr.bf16.mxu0 %v1310
        %1752 = vmatpush1.bf16.msra.mxu0 %v1309
        %1753 = vmatprep.subr.bf16.mxu0 %v1314
        %1754 = vmatpush1.bf16.msra.mxu0 %v1313
        %1755 = vmatprep.subr.bf16.mxu0 %v1318
        %1756 = vmatpush1.bf16.msra.mxu0 %v1317
        %1757 = vmatprep.subr.bf16.mxu0 %v1322
        %1758 = vmatpush1.bf16.msra.mxu0 %v1321
        %1759 = vmatprep.subr.bf16.mxu0 %v1326
        %1760 = vmatpush1.bf16.msra.mxu0 %v1325
        %1761 = vmatprep.subr.bf16.mxu0 %v1330
        %1762 = vmatpush1.bf16.msra.mxu0 %v1329
        %1763 = vmatprep.subr.bf16.mxu0 %v1334
        %1764 = vmatpush1.bf16.msra.mxu0 %v1333
        %1765 = vmatprep.subr.bf16.mxu0 %v1338
        %1766 = vmatpush1.bf16.msra.mxu0 %v1337
        %1767 = vmatprep.subr.bf16.mxu0 %v1342
        %1768 = vmatpush1.bf16.msra.mxu0 %v1341
        %1769 = vmatprep.subr.bf16.mxu0 %v1346
        %1770 = vmatpush1.bf16.msra.mxu0 %v1345
        %1771 = vmatprep.subr.bf16.mxu0 %v1350
        %1772 = vmatpush1.bf16.msra.mxu0 %v1349
        %1773 = vmatprep.subr.bf16.mxu0 %v1354
        %1774 = vmatpush1.bf16.msra.mxu0 %v1353
        %1775 = vmatprep.subr.bf16.mxu0 %v1358
        %1776 = vmatpush1.bf16.msra.mxu0 %v1357
        %1777 = vmatprep.mubr.bf16.mxu0 %v612
        %1778 = vmatmul.mubr.bf16.gmra.mrb[0].mxu0 %v611
        %v1779 = vpop.f32.mrb[0].mxu0
        %v1780 = vadd.f32 0.0, %v1779
        %v1781 = vpop.f32.mrb[0].mxu0
        %v1782 = vadd.f32 0.0, %v1781
        %v1783 = vpop.f32.mrb[0].mxu0
        %v1784 = vadd.f32 0.0, %v1783
        %v1785 = vpop.f32.mrb[0].mxu0
        %v1786 = vadd.f32 0.0, %v1785
        %1787 = vdwg.mxu0
        %1788 = vmatprep.subr.bf16.mxu0 %v1362
        %1789 = vmatpush1.bf16.msra.mxu0 %v1361
        %1790 = vmatprep.subr.bf16.mxu0 %v1366
        %1791 = vmatpush1.bf16.msra.mxu0 %v1365
        %1792 = vmatprep.subr.bf16.mxu0 %v1370
        %1793 = vmatpush1.bf16.msra.mxu0 %v1369
        %1794 = vmatprep.subr.bf16.mxu0 %v1374
        %1795 = vmatpush1.bf16.msra.mxu0 %v1373
        %1796 = vmatprep.subr.bf16.mxu0 %v1378
        %1797 = vmatpush1.bf16.msra.mxu0 %v1377
        %1798 = vmatprep.subr.bf16.mxu0 %v1382
        %1799 = vmatpush1.bf16.msra.mxu0 %v1381
        %1800 = vmatprep.subr.bf16.mxu0 %v1386
        %1801 = vmatpush1.bf16.msra.mxu0 %v1385
        %1802 = vmatprep.subr.bf16.mxu0 %v1390
        %1803 = vmatpush1.bf16.msra.mxu0 %v1389
        %1804 = vmatprep.subr.bf16.mxu0 %v1394
        %1805 = vmatpush1.bf16.msra.mxu0 %v1393
        %1806 = vmatprep.subr.bf16.mxu0 %v1398
        %1807 = vmatpush1.bf16.msra.mxu0 %v1397
        %1808 = vmatprep.subr.bf16.mxu0 %v1402
        %1809 = vmatpush1.bf16.msra.mxu0 %v1401
        %1810 = vmatprep.subr.bf16.mxu0 %v1406
        %1811 = vmatpush1.bf16.msra.mxu0 %v1405
        %1812 = vmatprep.subr.bf16.mxu0 %v1410
        %1813 = vmatpush1.bf16.msra.mxu0 %v1409
        %1814 = vmatprep.subr.bf16.mxu0 %v1414
        %1815 = vmatpush1.bf16.msra.mxu0 %v1413
        %1816 = vmatprep.subr.bf16.mxu0 %v1418
        %1817 = vmatpush1.bf16.msra.mxu0 %v1417
        %1818 = vmatprep.subr.bf16.mxu0 %v1422
        %1819 = vmatpush1.bf16.msra.mxu0 %v1421
        %1820 = vmatprep.mubr.bf16.mxu0 %v614
        %1821 = vmatmul.mubr.bf16.gmra.mrb[0].mxu0 %v613
        %v1822 = vpop.f32.mrb[0].mxu0
        %v1823 = vadd.f32 %v1780, %v1822
        %v1824 = vpop.f32.mrb[0].mxu0
        %v1825 = vadd.f32 %v1782, %v1824
        %v1826 = vpop.f32.mrb[0].mxu0
        %v1827 = vadd.f32 %v1784, %v1826
        %v1828 = vpop.f32.mrb[0].mxu0
        %v1829 = vadd.f32 %v1786, %v1828
        %1830 = vdwg.mxu0
        %1831 = vmatprep.subr.bf16.mxu0 %v1426
        %1832 = vmatpush1.bf16.msra.mxu0 %v1425
        %1833 = vmatprep.subr.bf16.mxu0 %v1430
        %1834 = vmatpush1.bf16.msra.mxu0 %v1429
        %1835 = vmatprep.subr.bf16.mxu0 %v1434
        %1836 = vmatpush1.bf16.msra.mxu0 %v1433
        %1837 = vmatprep.subr.bf16.mxu0 %v1438
        %1838 = vmatpush1.bf16.msra.mxu0 %v1437
        %1839 = vmatprep.subr.bf16.mxu0 %v1442
        %1840 = vmatpush1.bf16.msra.mxu0 %v1441
        %1841 = vmatprep.subr.bf16.mxu0 %v1446
        %1842 = vmatpush1.bf16.msra.mxu0 %v1445
        %1843 = vmatprep.subr.bf16.mxu0 %v1450
        %1844 = vmatpush1.bf16.msra.mxu0 %v1449
        %1845 = vmatprep.subr.bf16.mxu0 %v1454
        %1846 = vmatpush1.bf16.msra.mxu0 %v1453
        %1847 = vmatprep.subr.bf16.mxu0 %v1458
        %1848 = vmatpush1.bf16.msra.mxu0 %v1457
        %1849 = vmatprep.subr.bf16.mxu0 %v1462
        %1850 = vmatpush1.bf16.msra.mxu0 %v1461
        %1851 = vmatprep.subr.bf16.mxu0 %v1466
        %1852 = vmatpush1.bf16.msra.mxu0 %v1465
        %1853 = vmatprep.subr.bf16.mxu0 %v1470
        %1854 = vmatpush1.bf16.msra.mxu0 %v1469
        %1855 = vmatprep.subr.bf16.mxu0 %v1474
        %1856 = vmatpush1.bf16.msra.mxu0 %v1473
        %1857 = vmatprep.subr.bf16.mxu0 %v1478
        %1858 = vmatpush1.bf16.msra.mxu0 %v1477
        %1859 = vmatprep.subr.bf16.mxu0 %v1482
        %1860 = vmatpush1.bf16.msra.mxu0 %v1481
        %1861 = vmatprep.subr.bf16.mxu0 %v1486
        %1862 = vmatpush1.bf16.msra.mxu0 %v1485
        %1863 = vmatprep.mubr.bf16.mxu0 %v616
        %1864 = vmatmul.mubr.bf16.gmra.mrb[0].mxu0 %v615
        %v1865 = vpop.f32.mrb[0].mxu0
        %v1866 = vadd.f32 %v1823, %v1865
        %v1867 = vpop.f32.mrb[0].mxu0
        %v1868 = vadd.f32 %v1825, %v1867
        %v1869 = vpop.f32.mrb[0].mxu0
        %v1870 = vadd.f32 %v1827, %v1869
        %v1871 = vpop.f32.mrb[0].mxu0
        %v1872 = vadd.f32 %v1829, %v1871
        %1873 = vdwg.mxu0
        %1874 = vmatprep.subr.bf16.mxu0 %v1490
        %1875 = vmatpush1.bf16.msra.mxu0 %v1489
        %1876 = vmatprep.subr.bf16.mxu0 %v1494
        %1877 = vmatpush1.bf16.msra.mxu0 %v1493
        %1878 = vmatprep.subr.bf16.mxu0 %v1498
        %1879 = vmatpush1.bf16.msra.mxu0 %v1497
        %1880 = vmatprep.subr.bf16.mxu0 %v1502
        %1881 = vmatpush1.bf16.msra.mxu0 %v1501
        %1882 = vmatprep.subr.bf16.mxu0 %v1506
        %1883 = vmatpush1.bf16.msra.mxu0 %v1505
        %1884 = vmatprep.subr.bf16.mxu0 %v1510
        %1885 = vmatpush1.bf16.msra.mxu0 %v1509
        %1886 = vmatprep.subr.bf16.mxu0 %v1514
        %1887 = vmatpush1.bf16.msra.mxu0 %v1513
        %1888 = vmatprep.subr.bf16.mxu0 %v1518
        %1889 = vmatpush1.bf16.msra.mxu0 %v1517
        %1890 = vmatprep.subr.bf16.mxu0 0
        %1891 = vmatpush1.bf16.msra.mxu0 0
        %1892 = vmatprep.subr.bf16.mxu0 0
        %1893 = vmatpush1.bf16.msra.mxu0 0
        %1894 = vmatprep.subr.bf16.mxu0 0
        %1895 = vmatpush1.bf16.msra.mxu0 0
        %1896 = vmatprep.subr.bf16.mxu0 0
        %1897 = vmatpush1.bf16.msra.mxu0 0
        %1898 = vmatprep.subr.bf16.mxu0 0
        %1899 = vmatpush1.bf16.msra.mxu0 0
        %1900 = vmatprep.subr.bf16.mxu0 0
        %1901 = vmatpush1.bf16.msra.mxu0 0
        %1902 = vmatprep.subr.bf16.mxu0 0
        %1903 = vmatpush1.bf16.msra.mxu0 0
        %1904 = vmatprep.subr.bf16.mxu0 0
        %1905 = vmatpush1.bf16.msra.mxu0 0
        %1906 = vmatprep.mubr.bf16.mxu0 0
        %1907 = vmatmul.mubr.bf16.gmra.mrb[0].mxu0 %v617
        %v1908 = vpop.f32.mrb[0].mxu0
        %v1909 = vadd.f32 %v1866, %v1908
        %v1910 = vpop.f32.mrb[0].mxu0
        %v1911 = vadd.f32 %v1868, %v1910
        %v1912 = vpop.f32.mrb[0].mxu0
        %v1913 = vadd.f32 %v1870, %v1912
        %v1914 = vpop.f32.mrb[0].mxu0
        %v1915 = vadd.f32 %v1872, %v1914
        %1916 = vdwg.mxu0
        %1917 = vmatprep.subr.bf16.mxu0 %v1300
        %1918 = vmatpush1.bf16.msra.mxu0 %v1299
        %1919 = vmatprep.subr.bf16.mxu0 %v1304
        %1920 = vmatpush1.bf16.msra.mxu0 %v1303
        %1921 = vmatprep.subr.bf16.mxu0 %v1308
        %1922 = vmatpush1.bf16.msra.mxu0 %v1307
        %1923 = vmatprep.subr.bf16.mxu0 %v1312
        %1924 = vmatpush1.bf16.msra.mxu0 %v1311
        %1925 = vmatprep.subr.bf16.mxu0 %v1316
        %1926 = vmatpush1.bf16.msra.mxu0 %v1315
        %1927 = vmatprep.subr.bf16.mxu0 %v1320
        %1928 = vmatpush1.bf16.msra.mxu0 %v1319
        %1929 = vmatprep.subr.bf16.mxu0 %v1324
        %1930 = vmatpush1.bf16.msra.mxu0 %v1323
        %1931 = vmatprep.subr.bf16.mxu0 %v1328
        %1932 = vmatpush1.bf16.msra.mxu0 %v1327
        %1933 = vmatprep.subr.bf16.mxu0 %v1332
        %1934 = vmatpush1.bf16.msra.mxu0 %v1331
        %1935 = vmatprep.subr.bf16.mxu0 %v1336
        %1936 = vmatpush1.bf16.msra.mxu0 %v1335
        %1937 = vmatprep.subr.bf16.mxu0 %v1340
        %1938 = vmatpush1.bf16.msra.mxu0 %v1339
        %1939 = vmatprep.subr.bf16.mxu0 %v1344
        %1940 = vmatpush1.bf16.msra.mxu0 %v1343
        %1941 = vmatprep.subr.bf16.mxu0 %v1348
        %1942 = vmatpush1.bf16.msra.mxu0 %v1347
        %1943 = vmatprep.subr.bf16.mxu0 %v1352
        %1944 = vmatpush1.bf16.msra.mxu0 %v1351
        %1945 = vmatprep.subr.bf16.mxu0 %v1356
        %1946 = vmatpush1.bf16.msra.mxu0 %v1355
        %1947 = vmatprep.subr.bf16.mxu0 %v1360
        %1948 = vmatpush1.bf16.msra.mxu0 %v1359
        %1949 = vmatprep.mubr.bf16.mxu0 %v612
        %1950 = vmatmul.mubr.bf16.gmra.mrb[0].mxu0 %v611
        %v1951 = vpop.f32.mrb[0].mxu0
        %v1952 = vadd.f32 0.0, %v1951
        %v1953 = vpop.f32.mrb[0].mxu0
        %v1954 = vadd.f32 0.0, %v1953
        %v1955 = vpop.f32.mrb[0].mxu0
        %v1956 = vadd.f32 0.0, %v1955
        %v1957 = vpop.f32.mrb[0].mxu0
        %v1958 = vadd.f32 0.0, %v1957
        %1959 = vdwg.mxu0
        %1960 = vmatprep.subr.bf16.mxu0 %v1364
        %1961 = vmatpush1.bf16.msra.mxu0 %v1363
        %1962 = vmatprep.subr.bf16.mxu0 %v1368
        %1963 = vmatpush1.bf16.msra.mxu0 %v1367
        %1964 = vmatprep.subr.bf16.mxu0 %v1372
        %1965 = vmatpush1.bf16.msra.mxu0 %v1371
        %1966 = vmatprep.subr.bf16.mxu0 %v1376
        %1967 = vmatpush1.bf16.msra.mxu0 %v1375
        %1968 = vmatprep.subr.bf16.mxu0 %v1380
        %1969 = vmatpush1.bf16.msra.mxu0 %v1379
        %1970 = vmatprep.subr.bf16.mxu0 %v1384
        %1971 = vmatpush1.bf16.msra.mxu0 %v1383
        %1972 = vmatprep.subr.bf16.mxu0 %v1388
        %1973 = vmatpush1.bf16.msra.mxu0 %v1387
        %1974 = vmatprep.subr.bf16.mxu0 %v1392
        %1975 = vmatpush1.bf16.msra.mxu0 %v1391
        %1976 = vmatprep.subr.bf16.mxu0 %v1396
        %1977 = vmatpush1.bf16.msra.mxu0 %v1395
        %1978 = vmatprep.subr.bf16.mxu0 %v1400
        %1979 = vmatpush1.bf16.msra.mxu0 %v1399
        %1980 = vmatprep.subr.bf16.mxu0 %v1404
        %1981 = vmatpush1.bf16.msra.mxu0 %v1403
        %1982 = vmatprep.subr.bf16.mxu0 %v1408
        %1983 = vmatpush1.bf16.msra.mxu0 %v1407
        %1984 = vmatprep.subr.bf16.mxu0 %v1412
        %1985 = vmatpush1.bf16.msra.mxu0 %v1411
        %1986 = vmatprep.subr.bf16.mxu0 %v1416
        %1987 = vmatpush1.bf16.msra.mxu0 %v1415
        %1988 = vmatprep.subr.bf16.mxu0 %v1420
        %1989 = vmatpush1.bf16.msra.mxu0 %v1419
        %1990 = vmatprep.subr.bf16.mxu0 %v1424
        %1991 = vmatpush1.bf16.msra.mxu0 %v1423
        %1992 = vmatprep.mubr.bf16.mxu0 %v614
        %1993 = vmatmul.mubr.bf16.gmra.mrb[0].mxu0 %v613
        %v1994 = vpop.f32.mrb[0].mxu0
        %v1995 = vadd.f32 %v1952, %v1994
        %v1996 = vpop.f32.mrb[0].mxu0
        %v1997 = vadd.f32 %v1954, %v1996
        %v1998 = vpop.f32.mrb[0].mxu0
        %v1999 = vadd.f32 %v1956, %v1998
        %v2000 = vpop.f32.mrb[0].mxu0
        %v2001 = vadd.f32 %v1958, %v2000
        %2002 = vdwg.mxu0
        %2003 = vmatprep.subr.bf16.mxu0 %v1428
        %2004 = vmatpush1.bf16.msra.mxu0 %v1427
        %2005 = vmatprep.subr.bf16.mxu0 %v1432
        %2006 = vmatpush1.bf16.msra.mxu0 %v1431
        %2007 = vmatprep.subr.bf16.mxu0 %v1436
        %2008 = vmatpush1.bf16.msra.mxu0 %v1435
        %2009 = vmatprep.subr.bf16.mxu0 %v1440
        %2010 = vmatpush1.bf16.msra.mxu0 %v1439
        %2011 = vmatprep.subr.bf16.mxu0 %v1444
        %2012 = vmatpush1.bf16.msra.mxu0 %v1443
        %2013 = vmatprep.subr.bf16.mxu0 %v1448
        %2014 = vmatpush1.bf16.msra.mxu0 %v1447
        %2015 = vmatprep.subr.bf16.mxu0 %v1452
        %2016 = vmatpush1.bf16.msra.mxu0 %v1451
        %2017 = vmatprep.subr.bf16.mxu0 %v1456
        %2018 = vmatpush1.bf16.msra.mxu0 %v1455
        %2019 = vmatprep.subr.bf16.mxu0 %v1460
        %2020 = vmatpush1.bf16.msra.mxu0 %v1459
        %2021 = vmatprep.subr.bf16.mxu0 %v1464
        %2022 = vmatpush1.bf16.msra.mxu0 %v1463
        %2023 = vmatprep.subr.bf16.mxu0 %v1468
        %2024 = vmatpush1.bf16.msra.mxu0 %v1467
        %2025 = vmatprep.subr.bf16.mxu0 %v1472
        %2026 = vmatpush1.bf16.msra.mxu0 %v1471
        %2027 = vmatprep.subr.bf16.mxu0 %v1476
        %2028 = vmatpush1.bf16.msra.mxu0 %v1475
        %2029 = vmatprep.subr.bf16.mxu0 %v1480
        %2030 = vmatpush1.bf16.msra.mxu0 %v1479
        %2031 = vmatprep.subr.bf16.mxu0 %v1484
        %2032 = vmatpush1.bf16.msra.mxu0 %v1483
        %2033 = vmatprep.subr.bf16.mxu0 %v1488
        %2034 = vmatpush1.bf16.msra.mxu0 %v1487
        %2035 = vmatprep.mubr.bf16.mxu0 %v616
        %2036 = vmatmul.mubr.bf16.gmra.mrb[0].mxu0 %v615
        %v2037 = vpop.f32.mrb[0].mxu0
        %v2038 = vadd.f32 %v1995, %v2037
        %v2039 = vpop.f32.mrb[0].mxu0
        %v2040 = vadd.f32 %v1997, %v2039
        %v2041 = vpop.f32.mrb[0].mxu0
        %v2042 = vadd.f32 %v1999, %v2041
        %v2043 = vpop.f32.mrb[0].mxu0
        %v2044 = vadd.f32 %v2001, %v2043
        %2045 = vdwg.mxu0
        %2046 = vmatprep.subr.bf16.mxu0 %v1492
        %2047 = vmatpush1.bf16.msra.mxu0 %v1491
        %2048 = vmatprep.subr.bf16.mxu0 %v1496
        %2049 = vmatpush1.bf16.msra.mxu0 %v1495
        %2050 = vmatprep.subr.bf16.mxu0 %v1500
        %2051 = vmatpush1.bf16.msra.mxu0 %v1499
        %2052 = vmatprep.subr.bf16.mxu0 %v1504
        %2053 = vmatpush1.bf16.msra.mxu0 %v1503
        %2054 = vmatprep.subr.bf16.mxu0 %v1508
        %2055 = vmatpush1.bf16.msra.mxu0 %v1507
        %2056 = vmatprep.subr.bf16.mxu0 %v1512
        %2057 = vmatpush1.bf16.msra.mxu0 %v1511
        %2058 = vmatprep.subr.bf16.mxu0 %v1516
        %2059 = vmatpush1.bf16.msra.mxu0 %v1515
        %2060 = vmatprep.subr.bf16.mxu0 %v1520
        %2061 = vmatpush1.bf16.msra.mxu0 %v1519
        %2062 = vmatprep.subr.bf16.mxu0 0
        %2063 = vmatpush1.bf16.msra.mxu0 0
        %2064 = vmatprep.subr.bf16.mxu0 0
        %2065 = vmatpush1.bf16.msra.mxu0 0
        %2066 = vmatprep.subr.bf16.mxu0 0
        %2067 = vmatpush1.bf16.msra.mxu0 0
        %2068 = vmatprep.subr.bf16.mxu0 0
        %2069 = vmatpush1.bf16.msra.mxu0 0
        %2070 = vmatprep.subr.bf16.mxu0 0
        %2071 = vmatpush1.bf16.msra.mxu0 0
        %2072 = vmatprep.subr.bf16.mxu0 0
        %2073 = vmatpush1.bf16.msra.mxu0 0
        %2074 = vmatprep.subr.bf16.mxu0 0
        %2075 = vmatpush1.bf16.msra.mxu0 0
        %2076 = vmatprep.subr.bf16.mxu0 0
        %2077 = vmatpush1.bf16.msra.mxu0 0
        %2078 = vmatprep.mubr.bf16.mxu0 0
        %2079 = vmatmul.mubr.bf16.gmra.mrb[0].mxu0 %v617
        %v2080 = vpop.f32.mrb[0].mxu0
        %v2081 = vadd.f32 %v2038, %v2080
        %v2082 = vpop.f32.mrb[0].mxu0
        %v2083 = vadd.f32 %v2040, %v2082
        %v2084 = vpop.f32.mrb[0].mxu0
        %v2085 = vadd.f32 %v2042, %v2084
        %v2086 = vpop.f32.mrb[0].mxu0
        %v2087 = vadd.f32 %v2044, %v2086
        %2088 = vdwg.mxu0
        %p2089 = scmp.eq.s32.totalorder %s23, 0
        // Predicated region
        $region67: #{_policy_act_impl.7} parent=61 // pred_check
          %p2090 = pneg %p2089
        $region68: #{_policy_act_impl.7} parent=61 // pred_check_branch
          %2092 = sbr.rel (%p2090) target = $region70
        $region69: #{_policy_act_impl.7} parent=61 // pred_region
          %v2093 = vld [vmem:[%s2] sm:$0xf]
          %v2095 = vlaneseq
          %v2096 = vshrl.u32 %v2095, 7
          %v2097 = vsub.s32 0, %v2096
          %v2098 = vrot.slane %v2093, %v2097
          %v2099 = vlaneseq
          %v2100 = vshrl.u32 %v2099, 7
          %v2101 = vsub.s32 1, %v2100
          %v2102 = vrot.slane %v2093, %v2101
          %v2103 = vlaneseq
          %v2104 = vshrl.u32 %v2103, 7
          %v2105 = vsub.s32 2, %v2104
          %v2106 = vrot.slane %v2093, %v2105
          %v2107 = vlaneseq
          %v2108 = vshrl.u32 %v2107, 7
          %v2109 = vsub.s32 3, %v2108
          %v2110 = vrot.slane %v2093, %v2109
          %v2115 = vadd.f32 %v1909, %v2098
          %v2116 = vadd.f32 %v1911, %v2102
          %v2117 = vadd.f32 %v2081, %v2106
          %v2118 = vadd.f32 %v2083, %v2110
          %v2119 = vadd.f32 %v1913, %v2098
          %v2120 = vadd.f32 %v1915, %v2102
          %v2121 = vadd.f32 %v2085, %v2106
          %v2122 = vadd.f32 %v2087, %v2110
          %2123 = vst [vmem:[%s348] sm:$0xff] %v2115
          %2124 = vst [vmem:[%s348 + $0x8] sm:$0xff] %v2116
          %2125 = vst [vmem:[%s348 + $0x10] sm:$0xff] %v2117
          %2126 = vst [vmem:[%s348 + $0x18] sm:$0xff] %v2118
          %2127 = vst [vmem:[%s348 + $0x20] sm:$0xff] %v2119
          %2128 = vst [vmem:[%s348 + $0x28] sm:$0xff] %v2120
          %2129 = vst [vmem:[%s348 + $0x30] sm:$0xff] %v2121
          %2130 = vst [vmem:[%s348 + $0x38] sm:$0xff] %v2122
        $region70: #{_policy_act_impl.7} parent=61 // pred_fallthru
          _
        %p2131 = scmp.gt.s32.totalorder %s23, 0
        %p2132 = scmp.lt.s32.totalorder %s23, 6
        %p2133 = pnand %p2131, %p2132
        %p2134 = pneg %p2133
        // Predicated region
        $region71: #{_policy_act_impl.7} parent=61 // pred_check
          _
        $region72: #{_policy_act_impl.7} parent=61 // pred_check_branch
          %2136 = sbr.rel (%p2133) target = $region74
        $region73: #{_policy_act_impl.7} parent=61 // pred_region
          %v2137 = vld [vmem:[%s348] sm:$0xff]
          %v2138 = vld [vmem:[%s348 + $0x8] sm:$0xff]
          %v2139 = vld [vmem:[%s348 + $0x10] sm:$0xff]
          %v2140 = vld [vmem:[%s348 + $0x18] sm:$0xff]
          %v2141 = vld [vmem:[%s348 + $0x20] sm:$0xff]
          %v2142 = vld [vmem:[%s348 + $0x28] sm:$0xff]
          %v2143 = vld [vmem:[%s348 + $0x30] sm:$0xff]
          %v2144 = vld [vmem:[%s348 + $0x38] sm:$0xff]
          %v2145 = vadd.f32 %v2137, %v1909
          %v2146 = vadd.f32 %v2138, %v1911
          %v2147 = vadd.f32 %v2139, %v2081
          %v2148 = vadd.f32 %v2140, %v2083
          %v2149 = vadd.f32 %v2141, %v1913
          %v2150 = vadd.f32 %v2142, %v1915
          %v2151 = vadd.f32 %v2143, %v2085
          %v2152 = vadd.f32 %v2144, %v2087
          %2153 = vst [vmem:[%s348] sm:$0xff] %v2145
          %2154 = vst [vmem:[%s348 + $0x8] sm:$0xff] %v2146
          %2155 = vst [vmem:[%s348 + $0x10] sm:$0xff] %v2147
          %2156 = vst [vmem:[%s348 + $0x18] sm:$0xff] %v2148
          %2157 = vst [vmem:[%s348 + $0x20] sm:$0xff] %v2149
          %2158 = vst [vmem:[%s348 + $0x28] sm:$0xff] %v2150
          %2159 = vst [vmem:[%s348 + $0x30] sm:$0xff] %v2151
          %2160 = vst [vmem:[%s348 + $0x38] sm:$0xff] %v2152
        $region74: #{_policy_act_impl.7} parent=61 // pred_fallthru
          _
        %p2161 = scmp.eq.s32.totalorder %s23, 6
        // Predicated region
        $region75: #{_policy_act_impl.7} parent=61 // pred_check
          %p2162 = pneg %p2161
        $region76: #{_policy_act_impl.7} parent=61 // pred_check_branch
          %2164 = sbr.rel (%p2162) target = $region78
        $region77: #{_policy_act_impl.7} parent=61 // pred_region
          %v2165 = vld [vmem:[%s348] sm:$0xff]
          %v2166 = vld [vmem:[%s348 + $0x8] sm:$0xff]
          %v2167 = vld [vmem:[%s348 + $0x10] sm:$0xff]
          %v2168 = vld [vmem:[%s348 + $0x18] sm:$0xff]
          %v2169 = vld [vmem:[%s348 + $0x20] sm:$0xff]
          %v2170 = vld [vmem:[%s348 + $0x28] sm:$0xff]
          %v2171 = vld [vmem:[%s348 + $0x30] sm:$0xff]
          %v2172 = vld [vmem:[%s348 + $0x38] sm:$0xff]
          %v2173 = vadd.f32 %v2165, %v1909
          %v2174 = vadd.f32 %v2166, %v1911
          %v2175 = vadd.f32 %v2167, %v2081
          %v2176 = vadd.f32 %v2168, %v2083
          %v2177 = vadd.f32 %v2169, %v1913
          %v2178 = vadd.f32 %v2170, %v1915
          %v2179 = vadd.f32 %v2171, %v2085
          %v2180 = vadd.f32 %v2172, %v2087
          %v2181 = vmax.f32 %v2173, 0.0
          %v2182 = vmax.f32 %v2174, 0.0
          %v2183 = vmax.f32 %v2175, 0.0
          %v2184 = vmax.f32 %v2176, 0.0
          %v2185 = vmax.f32 %v2177, 0.0
          %v2186 = vmax.f32 %v2178, 0.0
          %v2187 = vmax.f32 %v2179, 0.0
          %v2188 = vmax.f32 %v2180, 0.0
          %2189 = vst [vmem:[%s348] sm:$0xff] %v2181
          %2190 = vst [vmem:[%s348 + $0x8] sm:$0xff] %v2182
          %2191 = vst [vmem:[%s348 + $0x10] sm:$0xff] %v2183
          %2192 = vst [vmem:[%s348 + $0x18] sm:$0xff] %v2184
          %2193 = vst [vmem:[%s348 + $0x20] sm:$0xff] %v2185
          %2194 = vst [vmem:[%s348 + $0x28] sm:$0xff] %v2186
          %2195 = vst [vmem:[%s348 + $0x30] sm:$0xff] %v2187
          %2196 = vst [vmem:[%s348 + $0x38] sm:$0xff] %v2188
          %v2197 = vpack.c.bf16 %v2185, %v2181
          %v2198 = vpack.c.bf16 %v2186, %v2182
          %v2199 = vpack.c.bf16 %v2187, %v2183
          %v2200 = vpack.c.bf16 %v2188, %v2184
          %v2201 = vld [vmem:[%s3] sm:$0xf]
          %v2202 = vld [vmem:[%s3 + $0x4] sm:$0xf]
          %v2203 = vld [vmem:[%s3 + $0x8] sm:$0xf]
          %v2204 = vld [vmem:[%s3 + $0xc] sm:$0xf]
          %v2205 = vld [vmem:[%s3 + $0x10] sm:$0xf]
          %v2206 = vld [vmem:[%s3 + $0x14] sm:$0xf]
          %v2207 = vld [vmem:[%s3 + $0x18] sm:$0xf]
          %v2208 = vld [vmem:[%s3 + $0x1c] sm:$0xf]
          %v2209 = vld [vmem:[%s3 + $0x20] sm:$0xf]
          %v2210 = vld [vmem:[%s3 + $0x24] sm:$0xf]
          %v2211 = vld [vmem:[%s3 + $0x28] sm:$0xf]
          %v2212 = vld [vmem:[%s3 + $0x2c] sm:$0xf]
          %v2213 = vld [vmem:[%s3 + $0x30] sm:$0xf]
          %v2214 = vld [vmem:[%s3 + $0x34] sm:$0xf]
          %v2215 = vld [vmem:[%s3 + $0x38] sm:$0xf]
          %v2216 = vld [vmem:[%s3 + $0x3c] sm:$0xf]
          %v2217 = vld [vmem:[%s3 + $0x40] sm:$0xf]
          %v2218 = vld [vmem:[%s3 + $0x44] sm:$0xf]
          %v2219 = vld [vmem:[%s3 + $0x48] sm:$0xf]
          %v2220 = vld [vmem:[%s3 + $0x4c] sm:$0xf]
          %v2221 = vld [vmem:[%s3 + $0x50] sm:$0xf]
          %v2222 = vld [vmem:[%s3 + $0x54] sm:$0xf]
          %v2223 = vld [vmem:[%s3 + $0x58] sm:$0xf]
          %v2224 = vld [vmem:[%s3 + $0x5c] sm:$0xf]
          %v2225 = vld [vmem:[%s3 + $0x60] sm:$0xf]
          %v2226 = vld [vmem:[%s3 + $0x64] sm:$0xf]
          %v2227 = vld [vmem:[%s3 + $0x68] sm:$0xf]
          %v2228 = vld [vmem:[%s3 + $0x6c] sm:$0xf]
          %v2229 = vld [vmem:[%s3 + $0x70] sm:$0xf]
          %v2230 = vld [vmem:[%s3 + $0x74] sm:$0xf]
          %v2231 = vld [vmem:[%s3 + $0x78] sm:$0xf]
          %v2232 = vld [vmem:[%s3 + $0x7c] sm:$0xf]
          %v2233 = vld [vmem:[%s3 + $0x80] sm:$0xf]
          %v2234 = vld [vmem:[%s3 + $0x84] sm:$0xf]
          %v2235 = vld [vmem:[%s3 + $0x88] sm:$0xf]
          %v2236 = vld [vmem:[%s3 + $0x8c] sm:$0xf]
          %v2237 = vld [vmem:[%s3 + $0x90] sm:$0xf]
          %v2238 = vld [vmem:[%s3 + $0x94] sm:$0xf]
          %v2239 = vld [vmem:[%s3 + $0x98] sm:$0xf]
          %v2240 = vld [vmem:[%s3 + $0x9c] sm:$0xf]
          %v2241 = vld [vmem:[%s3 + $0xa0] sm:$0xf]
          %v2242 = vld [vmem:[%s3 + $0xa4] sm:$0xf]
          %v2243 = vld [vmem:[%s3 + $0xa8] sm:$0xf]
          %v2244 = vld [vmem:[%s3 + $0xac] sm:$0xf]
          %v2245 = vld [vmem:[%s3 + $0xb0] sm:$0xf]
          %v2246 = vld [vmem:[%s3 + $0xb4] sm:$0xf]
          %v2247 = vld [vmem:[%s3 + $0xb8] sm:$0xf]
          %v2248 = vld [vmem:[%s3 + $0xbc] sm:$0xf]
          %v2249 = vld [vmem:[%s3 + $0xc0] sm:$0xf]
          %v2250 = vld [vmem:[%s3 + $0xc4] sm:$0xf]
          %v2251 = vld [vmem:[%s3 + $0xc8] sm:$0xf]
          %v2252 = vld [vmem:[%s3 + $0xcc] sm:$0xf]
          %v2253 = vld [vmem:[%s3 + $0xd0] sm:$0xf]
          %v2254 = vld [vmem:[%s3 + $0xd4] sm:$0xf]
          %v2255 = vld [vmem:[%s3 + $0xd8] sm:$0xf]
          %v2256 = vld [vmem:[%s3 + $0xdc] sm:$0xf]
          %v2257 = vld [vmem:[%s3 + $0xe0] sm:$0xf]
          %v2258 = vld [vmem:[%s3 + $0xe4] sm:$0xf]
          %v2259 = vld [vmem:[%s3 + $0xe8] sm:$0xf]
          %v2260 = vld [vmem:[%s3 + $0xec] sm:$0xf]
          %v2261 = vld [vmem:[%s3 + $0xf0] sm:$0xf]
          %v2262 = vld [vmem:[%s3 + $0xf4] sm:$0xf]
          %v2263 = vld [vmem:[%s3 + $0xf8] sm:$0xf]
          %v2264 = vld [vmem:[%s3 + $0xfc] sm:$0xf]
          %v2265 = vld [vmem:[%s4] sm:$0x1]
          %v2267 = vlaneseq
          %v2268 = vshrl.u32 %v2267, 7
          %v2269 = vsub.s32 0, %v2268
          %v2270 = vrot.slane %v2265, %v2269
          %v2336 = vunpack.c.l.b16 %v2201
          %v2337 = vunpack.c.l.b16 %v2202
          %v2338 = vunpack.c.l.b16 %v2203
          %v2339 = vunpack.c.l.b16 %v2204
          %v2340 = vunpack.c.l.b16 %v2205
          %v2341 = vunpack.c.l.b16 %v2206
          %v2342 = vunpack.c.l.b16 %v2207
          %v2343 = vunpack.c.l.b16 %v2208
          %v2344 = vunpack.c.l.b16 %v2209
          %v2345 = vunpack.c.l.b16 %v2210
          %v2346 = vunpack.c.l.b16 %v2211
          %v2347 = vunpack.c.l.b16 %v2212
          %v2348 = vunpack.c.l.b16 %v2213
          %v2349 = vunpack.c.l.b16 %v2214
          %v2350 = vunpack.c.l.b16 %v2215
          %v2351 = vunpack.c.l.b16 %v2216
          %v2352 = vunpack.c.l.b16 %v2217
          %v2353 = vunpack.c.l.b16 %v2218
          %v2354 = vunpack.c.l.b16 %v2219
          %v2355 = vunpack.c.l.b16 %v2220
          %v2356 = vunpack.c.l.b16 %v2221
          %v2357 = vunpack.c.l.b16 %v2222
          %v2358 = vunpack.c.l.b16 %v2223
          %v2359 = vunpack.c.l.b16 %v2224
          %v2360 = vunpack.c.l.b16 %v2225
          %v2361 = vunpack.c.l.b16 %v2226
          %v2362 = vunpack.c.l.b16 %v2227
          %v2363 = vunpack.c.l.b16 %v2228
          %v2364 = vunpack.c.l.b16 %v2229
          %v2365 = vunpack.c.l.b16 %v2230
          %v2366 = vunpack.c.l.b16 %v2231
          %v2367 = vunpack.c.l.b16 %v2232
          %v2368 = vunpack.c.l.b16 %v2233
          %v2369 = vunpack.c.l.b16 %v2234
          %v2370 = vunpack.c.l.b16 %v2235
          %v2371 = vunpack.c.l.b16 %v2236
          %v2372 = vunpack.c.l.b16 %v2237
          %v2373 = vunpack.c.l.b16 %v2238
          %v2374 = vunpack.c.l.b16 %v2239
          %v2375 = vunpack.c.l.b16 %v2240
          %v2376 = vunpack.c.l.b16 %v2241
          %v2377 = vunpack.c.l.b16 %v2242
          %v2378 = vunpack.c.l.b16 %v2243
          %v2379 = vunpack.c.l.b16 %v2244
          %v2380 = vunpack.c.l.b16 %v2245
          %v2381 = vunpack.c.l.b16 %v2246
          %v2382 = vunpack.c.l.b16 %v2247
          %v2383 = vunpack.c.l.b16 %v2248
          %v2384 = vunpack.c.l.b16 %v2249
          %v2385 = vunpack.c.l.b16 %v2250
          %v2386 = vunpack.c.l.b16 %v2251
          %v2387 = vunpack.c.l.b16 %v2252
          %v2388 = vunpack.c.l.b16 %v2253
          %v2389 = vunpack.c.l.b16 %v2254
          %v2390 = vunpack.c.l.b16 %v2255
          %v2391 = vunpack.c.l.b16 %v2256
          %v2392 = vunpack.c.l.b16 %v2257
          %v2393 = vunpack.c.l.b16 %v2258
          %v2394 = vunpack.c.l.b16 %v2259
          %v2395 = vunpack.c.l.b16 %v2260
          %v2396 = vunpack.c.l.b16 %v2261
          %v2397 = vunpack.c.l.b16 %v2262
          %v2398 = vunpack.c.l.b16 %v2263
          %v2399 = vunpack.c.l.b16 %v2264
          %v2400 = vpack.c.b16 %v2337, %v2336
          %v2401 = vpack.c.b16 %v2339, %v2338
          %v2402 = vpack.c.b16 %v2341, %v2340
          %v2403 = vpack.c.b16 %v2343, %v2342
          %v2404 = vpack.c.b16 %v2345, %v2344
          %v2405 = vpack.c.b16 %v2347, %v2346
          %v2406 = vpack.c.b16 %v2349, %v2348
          %v2407 = vpack.c.b16 %v2351, %v2350
          %v2408 = vpack.c.b16 %v2353, %v2352
          %v2409 = vpack.c.b16 %v2355, %v2354
          %v2410 = vpack.c.b16 %v2357, %v2356
          %v2411 = vpack.c.b16 %v2359, %v2358
          %v2412 = vpack.c.b16 %v2361, %v2360
          %v2413 = vpack.c.b16 %v2363, %v2362
          %v2414 = vpack.c.b16 %v2365, %v2364
          %v2415 = vpack.c.b16 %v2367, %v2366
          %v2416 = vpack.c.b16 %v2369, %v2368
          %v2417 = vpack.c.b16 %v2371, %v2370
          %v2418 = vpack.c.b16 %v2373, %v2372
          %v2419 = vpack.c.b16 %v2375, %v2374
          %v2420 = vpack.c.b16 %v2377, %v2376
          %v2421 = vpack.c.b16 %v2379, %v2378
          %v2422 = vpack.c.b16 %v2381, %v2380
          %v2423 = vpack.c.b16 %v2383, %v2382
          %v2424 = vpack.c.b16 %v2385, %v2384
          %v2425 = vpack.c.b16 %v2387, %v2386
          %v2426 = vpack.c.b16 %v2389, %v2388
          %v2427 = vpack.c.b16 %v2391, %v2390
          %v2428 = vpack.c.b16 %v2393, %v2392
          %v2429 = vpack.c.b16 %v2395, %v2394
          %v2430 = vpack.c.b16 %v2397, %v2396
          %v2431 = vpack.c.b16 %v2399, %v2398
          %2464 = vmatprep.subr.bf16.mxu0 0
          %2465 = vmatpush1.bf16.msra.mxu0 %v2400
          %2466 = vmatprep.subr.bf16.mxu0 0
          %2467 = vmatpush1.bf16.msra.mxu0 %v2401
          %2468 = vmatprep.subr.bf16.mxu0 0
          %2469 = vmatpush1.bf16.msra.mxu0 %v2402
          %2470 = vmatprep.subr.bf16.mxu0 0
          %2471 = vmatpush1.bf16.msra.mxu0 %v2403
          %2472 = vmatprep.subr.bf16.mxu0 0
          %2473 = vmatpush1.bf16.msra.mxu0 %v2404
          %2474 = vmatprep.subr.bf16.mxu0 0
          %2475 = vmatpush1.bf16.msra.mxu0 %v2405
          %2476 = vmatprep.subr.bf16.mxu0 0
          %2477 = vmatpush1.bf16.msra.mxu0 %v2406
          %2478 = vmatprep.subr.bf16.mxu0 0
          %2479 = vmatpush1.bf16.msra.mxu0 %v2407
          %2480 = vmatprep.subr.bf16.mxu0 0
          %2481 = vmatpush1.bf16.msra.mxu0 %v2408
          %2482 = vmatprep.subr.bf16.mxu0 0
          %2483 = vmatpush1.bf16.msra.mxu0 %v2409
          %2484 = vmatprep.subr.bf16.mxu0 0
          %2485 = vmatpush1.bf16.msra.mxu0 %v2410
          %2486 = vmatprep.subr.bf16.mxu0 0
          %2487 = vmatpush1.bf16.msra.mxu0 %v2411
          %2488 = vmatprep.subr.bf16.mxu0 0
          %2489 = vmatpush1.bf16.msra.mxu0 %v2412
          %2490 = vmatprep.subr.bf16.mxu0 0
          %2491 = vmatpush1.bf16.msra.mxu0 %v2413
          %2492 = vmatprep.subr.bf16.mxu0 0
          %2493 = vmatpush1.bf16.msra.mxu0 %v2414
          %2494 = vmatprep.subr.bf16.mxu0 0
          %2495 = vmatpush1.bf16.msra.mxu0 %v2415
          %2496 = vmatprep.mubr.bf16.mxu0 %v2198
          %2497 = vmatmul.mubr.bf16.gmra.mrb[0].mxu0 %v2197
          %v2498 = vpop.f32.mrb[0].mxu0
          %v2499 = vadd.f32 %v2270, %v2498
          %v2500 = vpop.f32.mrb[0].mxu0
          %v2501 = vpop.f32.mrb[0].mxu0
          %v2502 = vadd.f32 %v2270, %v2501
          %v2503 = vpop.f32.mrb[0].mxu0
          %2504 = vdwg.mxu0
          %2505 = vmatprep.subr.bf16.mxu0 0
          %2506 = vmatpush1.bf16.msra.mxu0 %v2416
          %2507 = vmatprep.subr.bf16.mxu0 0
          %2508 = vmatpush1.bf16.msra.mxu0 %v2417
          %2509 = vmatprep.subr.bf16.mxu0 0
          %2510 = vmatpush1.bf16.msra.mxu0 %v2418
          %2511 = vmatprep.subr.bf16.mxu0 0
          %2512 = vmatpush1.bf16.msra.mxu0 %v2419
          %2513 = vmatprep.subr.bf16.mxu0 0
          %2514 = vmatpush1.bf16.msra.mxu0 %v2420
          %2515 = vmatprep.subr.bf16.mxu0 0
          %2516 = vmatpush1.bf16.msra.mxu0 %v2421
          %2517 = vmatprep.subr.bf16.mxu0 0
          %2518 = vmatpush1.bf16.msra.mxu0 %v2422
          %2519 = vmatprep.subr.bf16.mxu0 0
          %2520 = vmatpush1.bf16.msra.mxu0 %v2423
          %2521 = vmatprep.subr.bf16.mxu0 0
          %2522 = vmatpush1.bf16.msra.mxu0 %v2424
          %2523 = vmatprep.subr.bf16.mxu0 0
          %2524 = vmatpush1.bf16.msra.mxu0 %v2425
          %2525 = vmatprep.subr.bf16.mxu0 0
          %2526 = vmatpush1.bf16.msra.mxu0 %v2426
          %2527 = vmatprep.subr.bf16.mxu0 0
          %2528 = vmatpush1.bf16.msra.mxu0 %v2427
          %2529 = vmatprep.subr.bf16.mxu0 0
          %2530 = vmatpush1.bf16.msra.mxu0 %v2428
          %2531 = vmatprep.subr.bf16.mxu0 0
          %2532 = vmatpush1.bf16.msra.mxu0 %v2429
          %2533 = vmatprep.subr.bf16.mxu0 0
          %2534 = vmatpush1.bf16.msra.mxu0 %v2430
          %2535 = vmatprep.subr.bf16.mxu0 0
          %2536 = vmatpush1.bf16.msra.mxu0 %v2431
          %2537 = vmatprep.mubr.bf16.mxu0 %v2200
          %2538 = vmatmul.mubr.bf16.gmra.mrb[0].mxu0 %v2199
          %v2539 = vpop.f32.mrb[0].mxu0
          %v2540 = vadd.f32 %v2499, %v2539
          %v2541 = vpop.f32.mrb[0].mxu0
          %v2542 = vpop.f32.mrb[0].mxu0
          %v2543 = vadd.f32 %v2502, %v2542
          %v2544 = vpop.f32.mrb[0].mxu0
          %2545 = vdwg.mxu0
          %v2546 = vlaneseq
          %v2547 = vand.u32 %v2546, 127
          %vm2548 = vcmp.ge.s32.totalorder %v2547, 1
          %vm2549 = vcmp.lt.s32.totalorder %v2547, 7
          %vm2550 = vmand %vm2548, %vm2549
          %v2551 = vsel %vm2550, %v2540, -1e+30
          %v2552 = vsel %vm2550, %v2543, -1e+30
          %2553 = vmax.xlane.f32.xlu0 %v2551
          %v2554 = vpop.xlane.xlu0 %2553
          %2555 = vmax.xlane.f32.xlu0 %v2552
          %v2556 = vpop.xlane.xlu0 %2555
          %vm2557 = vcmp.eq.f32.partialorder %v2551, %v2554
          %vm2558 = vcmp.eq.f32.partialorder %v2552, %v2556
          %v2559 = vsel %vm2557, %v2547, 1073741824
          %v2560 = vsel %vm2558, %v2547, 1073741824
          %v2561 = vand.u32 %v2559, 65535
          %v2562 = vshra.s32 %v2559, 16
          %v2563 = vcvt.s32.f32 %v2561
          %v2564 = vcvt.s32.f32 %v2562
          %2565 = vmin.xlane.f32.xlu0 %v2564
          %v2566 = vpop.xlane.xlu0 %2565
          %vm2567 = vcmp.eq.f32.partialorder %v2564, %v2566
          %v2568 = vsel %vm2567, %v2563, inf
          %2569 = vmin.xlane.f32.xlu0 %v2568
          %v2570 = vpop.xlane.xlu0 %2569
          %v2571 = vcvt.f32.s32 %v2570
          %v2572 = vcvt.f32.s32 %v2566
          %v2573 = vshll.u32 %v2572, 16
          %v2574 = vadd.s32 %v2573, %v2571
          %v2575 = vand.u32 %v2560, 65535
          %v2576 = vshra.s32 %v2560, 16
          %v2577 = vcvt.s32.f32 %v2575
          %v2578 = vcvt.s32.f32 %v2576
          %2579 = vmin.xlane.f32.xlu0 %v2578
          %v2580 = vpop.xlane.xlu0 %2579
          %vm2581 = vcmp.eq.f32.partialorder %v2578, %v2580
          %v2582 = vsel %vm2581, %v2577, inf
          %2583 = vmin.xlane.f32.xlu0 %v2582
          %v2584 = vpop.xlane.xlu0 %2583
          %v2585 = vcvt.f32.s32 %v2584
          %v2586 = vcvt.f32.s32 %v2580
          %v2587 = vshll.u32 %v2586, 16
          %v2588 = vadd.s32 %v2587, %v2585
          %v2589 = vsub.s32 %v2574, 1
          %v2590 = vsub.s32 %v2588, 1
          %v2591 = vsub.f32 %v2551, %v2554
          %v2592 = vsub.f32 %v2552, %v2556
          %v2593 = vmul.f32 %v2591, 1.442695
          %v2594 = vpow.pop %v2593
          %v2595 = vmul.f32 %v2592, 1.442695
          %v2596 = vpow.pop %v2595
          %2597 = vadd.xlane.f32.xlu0 %v2594
          %v2598 = vpop.xlane.xlu0 %2597
          %2599 = vadd.xlane.f32.xlu0 %v2596
          %v2600 = vpop.xlane.xlu0 %2599
          %v2601 = vlog2.pop %v2598
          %v2602 = vmul.f32 %v2601, 0.6931472
          %v2603 = vlog2.pop %v2600
          %v2604 = vmul.f32 %v2603, 0.6931472
          %v2605 = vsub.f32 0.0, %v2602
          %v2606 = vsub.f32 0.0, %v2604
          %vm2607 = vcmp.eq.s32.totalorder %v2547, 0
          %v2608 = vsel %vm2607, %v2540, 0.0
          %v2609 = vsel %vm2607, %v2543, 0.0
          %2610 = vadd.xlane.f32.xlu0 %v2608
          %v2611 = vpop.xlane.xlu0 %2610
          %2612 = vadd.xlane.f32.xlu0 %v2609
          %v2613 = vpop.xlane.xlu0 %2612
          %vm2614 = vcmp.eq.s32.totalorder %v2547, 1
          %v2615 = vcvt.s32.f32 %v2589
          %v2616 = vcvt.s32.f32 %v2590
          %vm2617 = vcmp.eq.s32.totalorder %v2547, 2
          %v2618 = vsel %vm2617, %v2605, 0.0
          %v2619 = vsel %vm2617, %v2606, 0.0
          %v2620 = vsel %vm2614, %v2615, %v2618
          %v2621 = vsel %vm2614, %v2616, %v2619
          %v2622 = vsel %vm2607, %v2611, %v2620
          %v2623 = vsel %vm2607, %v2613, %v2621
          %2624 = vst [vmem:[%s354] sm:$0xff] %v2622
          %2625 = vst [vmem:[%s354 + $0x8] sm:$0xff] %v2623
        $region78: #{_policy_act_impl.7} parent=61 // pred_fallthru
          _
        %s2626 = smul.u32 2, %s22
        %p2627 = scmp.lt.s32.totalorder %s2626, 1
        %s2628 = scalar_select %p2627, %s2626, 1
        %s2629 = smul.addr %s2628, 4
        %s2630 = smul.addr %s2629, 8
        %s2631 = scalar_lea.vmem %s5, %s2630
        %s2632 = smul.u32 2, %s22
        %p2633 = scmp.lt.s32.totalorder %s2632, 1
        %s2634 = scalar_select %p2633, %s2632, 1
        %s2635 = smul.addr %s2634, 8
        %s2636 = scalar_lea.vmem %s6, %s2635
        // Predicated region
        $region79: #{_policy_act_impl.7} parent=61 // pred_check
          %p2637 = pneg %p165
        $region80: #{_policy_act_impl.7} parent=61 // pred_check_branch
          %2639 = sbr.rel (%p2637) target = $region82
        $region81: #{_policy_act_impl.7} parent=61 // pred_region
          %s2640 = smul.u32 2, %s22
        $region82: #{_policy_act_impl.7} parent=61 // pred_fallthru
          _
        // Predicated region
        $region83: #{_policy_act_impl.7} parent=61 // pred_check
          %p2641 = pneg %p191
        $region84: #{_policy_act_impl.7} parent=61 // pred_check_branch
          %2643 = sbr.rel (%p2641) target = $region86
        $region85: #{_policy_act_impl.7} parent=61 // pred_region
          %s2644 = smul.u32 2, %s22
        $region86: #{_policy_act_impl.7} parent=61 // pred_fallthru
          _
        // Predicated region
        $region87: #{_policy_act_impl.7} parent=61 // pred_check
          %p2645 = pneg %p165
        $region88: #{_policy_act_impl.7} parent=61 // pred_check_branch
          %2647 = sbr.rel (%p2645) target = $region90
        $region89: #{_policy_act_impl.7} parent=61 // pred_region
          %s2648 = smul.u32 2, %s22
          %p2649 = scmp.lt.s32.totalorder %s2648, 1
          %s2650 = scalar_select %p2649, %s2648, 1
          %s2651 = smul.addr %s2650, 4
          %s2652 = smul.addr %s2651, 8
          %s2653 = scalar_lea.vmem %s5, %s2652
        $region90: #{_policy_act_impl.7} parent=61 // pred_fallthru
          _
        // Predicated region
        $region91: #{_policy_act_impl.7} parent=61 // pred_check
          %p2654 = pneg %p191
        $region92: #{_policy_act_impl.7} parent=61 // pred_check_branch
          %2656 = sbr.rel (%p2654) target = $region94
        $region93: #{_policy_act_impl.7} parent=61 // pred_region
          %s2657 = smul.u32 2, %s22
          %p2658 = scmp.lt.s32.totalorder %s2657, 1
          %s2659 = scalar_select %p2658, %s2657, 1
          %s2660 = smul.addr %s2659, 8
          %s2661 = scalar_lea.vmem %s6, %s2660
        $region94: #{_policy_act_impl.7} parent=61 // pred_fallthru
          _
      $region62: #{_policy_act_impl.7} parent=5 // pred_fallthru
        _
      %p2662 = scmp.le.s32.totalorder 2, %s13
      // Predicated region
      $region95: #{_policy_act_impl.7} parent=5 // pred_check
        %p2663 = pneg %p2662
      $region96: #{_policy_act_impl.7} parent=5 // pred_check_branch
        %2665 = sbr.rel (%p2663) target = $region98
      $region97: #{_policy_act_impl.7} parent=5 // pred_region
        %s2666 = ssub.s32 %s13, 2
      $region98: #{_policy_act_impl.7} parent=5 // pred_fallthru
        _
    $region6: #{_policy_act_impl.7} parent=1 // loop_footer
      %s17 = sadd.s32 1, %s13
    $region7: #{_policy_act_impl.7} parent=1 // loop_footer_branch
      %12 = sbr.rel target = $region3
    $region8: #{_policy_act_impl.7} parent=1 // loop_exit
      _

</llo_original>
